<compile_context>
chip_gen: v5e
topology: v5e:2x2
jax: 0.10.0
libtpu: 0.0.40
codegen_flags: <defaults>
</compile_context>

<pallas_src>
import functools

import numpy as np
import jax
import jax.numpy as jnp
from jax import lax
from jax.experimental import pallas as pl
from jax.experimental.pallas import tpu as pltpu

_EPS = 1e-5


# ----------------------------------------------------------------------------
# The single fused Pallas kernel
# ----------------------------------------------------------------------------
def _fused_forward_kernel(x_ref, d_ref, u_ref, mhi_ref, mlo_ref, w_ref, bn_ref,
                          out_ref, *, width_hi, width_lo, c_in, c_out):
    """Whole innermost-block forward on VMEM-resident (CP, N*H*W) activations."""
    f32 = jnp.float32
    x = x_ref[...]                                           # (CP, M_hi)

    def conv3x3(a, ci, mask_ref, width):
        # 3x3, pad=1 conv as 9 accumulated MXU matmuls on shifted+masked views.
        acc = None
        for kh in range(3):
            for kw in range(3):
                t = kh * 3 + kw
                off = (kh - 1) * width + (kw - 1)            # flat-index shift
                src = jnp.roll(a, -off, axis=1) if off != 0 else a
                tap = src * mask_ref[t]                      # zero the halo / wrap
                y = jnp.dot(w_ref[ci, t], tap, preferred_element_type=f32)
                acc = y if acc is None else acc + y
        return acc

    def batchnorm(a, bi):
        # training-mode BatchNorm2d: batch stats over (N, H, W), biased var.
        m = a.shape[1]
        mean = jnp.sum(a, axis=1, keepdims=True) * (1.0 / m)
        cen = a - mean
        var = jnp.sum(cen * cen, axis=1, keepdims=True) * (1.0 / m)
        scale = bn_ref[bi, 0] * lax.rsqrt(var + _EPS)        # gamma * rsqrt(var+eps)
        return cen * scale + bn_ref[bi, 1]                   # + beta

    def res_block(a, ci, bi, mask_ref, width):
        h1 = jnp.maximum(batchnorm(conv3x3(a, ci, mask_ref, width), bi), 0.0)
        h2 = batchnorm(conv3x3(h1, ci + 1, mask_ref, width), bi + 1)
        return jnp.maximum(h2 + a, 0.0)

    # ---- down path: Conv(s=2) -> ReLU -> ResBlock x2 (innermost: no downnorm)
    full = conv3x3(x, 0, mhi_ref, width_hi)                  # stride-1 conv, hi grid
    lo = jnp.dot(full, d_ref[...], preferred_element_type=f32)   # keep even (y, x)
    lo = jnp.maximum(lo, 0.0)
    lo = res_block(lo, 1, 0, mlo_ref, width_lo)
    lo = res_block(lo, 3, 2, mlo_ref, width_lo)

    # ---- up path: nearest x2 -> Conv -> BN -> ReLU -> ResBlock x2
    hi = jnp.dot(lo, u_ref[...], preferred_element_type=f32)     # nearest upsample
    hi = conv3x3(hi, 5, mhi_ref, width_hi)
    hi = jnp.maximum(batchnorm(hi, 4), 0.0)
    hi = res_block(hi, 6, 5, mhi_ref, width_hi)
    hi = res_block(hi, 8, 7, mhi_ref, width_hi)

    # ---- skip connection: cat([x, model(x)], channel) on the sublane axis
    out_ref[:c_in, :] = x[:c_in, :]
    out_ref[c_in:, :] = hi[:c_out, :]


# ----------------------------------------------------------------------------
# One-time geometry / parameter preparation (hoisted out of the forward path)
# ----------------------------------------------------------------------------
def _build_geometry(n, h, w):
    hl, wl = h // 2, w // 2
    m_hi, m_lo = n * h * w, n * hl * wl

    i_hi = np.arange(m_hi)
    n_hi, y_hi, x_hi = i_hi // (h * w), (i_hi // w) % h, i_hi % w
    i_lo = np.arange(m_lo)
    n_lo, y_lo, x_lo = i_lo // (hl * wl), (i_lo // wl) % hl, i_lo % wl

    # stride-2 selection: hi position (n, 2y, 2x) -> lo position (n, y, x)
    d_mat = ((n_hi[:, None] == n_lo[None, :]) &
             (y_hi[:, None] == 2 * y_lo[None, :]) &
             (x_hi[:, None] == 2 * x_lo[None, :])).astype(np.float32)
    # nearest-2x upsample: lo position (n, Y//2, X//2) -> hi position (n, Y, X)
    u_mat = ((n_lo[:, None] == n_hi[None, :]) &
             (y_lo[:, None] == y_hi[None, :] // 2) &
             (x_lo[:, None] == x_hi[None, :] // 2)).astype(np.float32)

    def halo_masks(yy, xx, hh, ww, m):
        out = np.zeros((9, 1, m), np.float32)
        for kh in range(3):
            for kw in range(3):
                ys, xs = yy + kh - 1, xx + kw - 1
                out[kh * 3 + kw, 0] = ((ys >= 0) & (ys < hh) &
                                       (xs >= 0) & (xs < ww)).astype(np.float32)
        return out

    return (jnp.asarray(d_mat), jnp.asarray(u_mat),
            jnp.asarray(halo_masks(y_hi, x_hi, h, w, m_hi)),
            jnp.asarray(halo_masks(y_lo, x_lo, hl, wl, m_lo)))


def prepare_params(params, *, n, h, w, input_nc, inner_nc, outer_nc):
    """Pack weights tap-major and BN params, build the D/U/mask constants."""
    cp = max(input_nc, inner_nc, outer_nc)

    def pack_w(wt):                      # (Cout, Cin, 3, 3) -> (9, CP, CP)
        cout, cin = wt.shape[0], wt.shape[1]
        taps = jnp.transpose(wt, (2, 3, 0, 1)).reshape(9, cout, cin)
        return jnp.pad(taps, ((0, 0), (0, cp - cout), (0, cp - cin)))

    def pack_bn(g, b):                   # -> (2, CP, 1); zero-pad keeps dead rows 0
        c = g.shape[0]
        gb = jnp.stack([g, b]).reshape(2, c, 1)
        return jnp.pad(gb, ((0, 0), (0, cp - c), (0, 0)))

    rd1, rd2 = params["res_down1"], params["res_down2"]
    ru1, ru2 = params["res_up1"], params["res_up2"]
    w_pack = jnp.stack([
        pack_w(params["downconv_w"]),
        pack_w(rd1["w1"]), pack_w(rd1["w2"]), pack_w(rd2["w1"]), pack_w(rd2["w2"]),
        pack_w(params["upconv_w"]),
        pack_w(ru1["w1"]), pack_w(ru1["w2"]), pack_w(ru2["w1"]), pack_w(ru2["w2"]),
    ]).astype(jnp.float32)                                   # (10, 9, CP, CP)
    bn_pack = jnp.stack([
        pack_bn(rd1["g1"], rd1["b1"]), pack_bn(rd1["g2"], rd1["b2"]),
        pack_bn(rd2["g1"], rd2["b1"]), pack_bn(rd2["g2"], rd2["b2"]),
        pack_bn(params["upnorm_g"], params["upnorm_b"]),
        pack_bn(ru1["g1"], ru1["b1"]), pack_bn(ru1["g2"], ru1["b2"]),
        pack_bn(ru2["g1"], ru2["b1"]), pack_bn(ru2["g2"], ru2["b2"]),
    ]).astype(jnp.float32)                                   # (9, 2, CP, 1)

    d_mat, u_mat, mask_hi, mask_lo = _build_geometry(n, h, w)
    return {"w": w_pack, "bn": bn_pack, "down": d_mat, "up": u_mat,
            "mask_hi": mask_hi, "mask_lo": mask_lo}


# ----------------------------------------------------------------------------
# Forward wrapper
# ----------------------------------------------------------------------------
@functools.partial(jax.jit, static_argnames=("outer_nc",))
def res_unet_skip_block_forward(x_nchw, prep, *, outer_nc):
    n, c_in, h, w = x_nchw.shape
    cp = prep["w"].shape[-1]
    m_hi = n * h * w

    # NCHW -> (C, N*H*W): channels on sublanes, flattened spatial on lanes.
    x_cm = jnp.transpose(x_nchw, (1, 0, 2, 3)).reshape(c_in, m_hi)
    x_cm = jnp.pad(x_cm.astype(jnp.float32), ((0, cp - c_in), (0, 0)))

    kernel = functools.partial(_fused_forward_kernel, width_hi=w, width_lo=w // 2,
                               c_in=c_in, c_out=outer_nc)
    vmem = pl.BlockSpec(memory_space=pltpu.MemorySpace.VMEM)
    # Single grid point: whole forward (<~2 MiB working set) with VMEM-resident
    # intermediates; BN batch stats need the full (N,H,W) extent anyway.
    out_cm = pl.pallas_call(
        kernel,
        out_shape=jax.ShapeDtypeStruct((c_in + outer_nc, m_hi), jnp.float32),
        in_specs=[vmem] * 7,
        out_specs=vmem,
        compiler_params=pltpu.CompilerParams(vmem_limit_bytes=32 * 1024 * 1024),
    )(x_cm, prep["down"], prep["up"], prep["mask_hi"], prep["mask_lo"],
      prep["w"], prep["bn"])

    out = out_cm.reshape(c_in + outer_nc, n, h, w)
    return jnp.transpose(out, (1, 0, 2, 3))


# ----------------------------------------------------------------------------
# Pure-JAX reference (mirrors the PyTorch module in train() mode)
# ----------------------------------------------------------------------------
def _reference_forward(x, params, eps=_EPS):
    dn = ("NCHW", "OIHW", "NCHW")
    hp = lax.Precision.HIGHEST

    def conv(a, wt, stride):
        return lax.conv_general_dilated(a, wt, (stride, stride), ((1, 1), (1, 1)),
                                        dimension_numbers=dn, precision=hp)

    def bn(a, g, b):
        mean = jnp.mean(a, axis=(0, 2, 3), keepdims=True)
        var = jnp.mean((a - mean) ** 2, axis=(0, 2, 3), keepdims=True)
        return ((a - mean) * (g.reshape(1, -1, 1, 1) * lax.rsqrt(var + eps))
                + b.reshape(1, -1, 1, 1))

    def resblock(a, p):
        h1 = jax.nn.relu(bn(conv(a, p["w1"], 1), p["g1"], p["b1"]))
        h2 = bn(conv(h1, p["w2"], 1), p["g2"], p["b2"])
        return jax.nn.relu(h2 + a)

    h = jax.nn.relu(conv(x, params["downconv_w"], 2))
    h = resblock(h, params["res_down1"])
    h = resblock(h, params["res_down2"])
    h = jnp.repeat(jnp.repeat(h, 2, axis=2), 2, axis=3)
    h = jax.nn.relu(bn(conv(h, params["upconv_w"], 1),
                       params["upnorm_g"], params["upnorm_b"]))
    h = resblock(h, params["res_up1"])
    h = resblock(h, params["res_up2"])
    return jnp.concatenate([x, h], axis=1)


# ----------------------------------------------------------------------------
# Deterministic parameter init (shapes from the module's __init__)
# ----------------------------------------------------------------------------
def init_params(key, input_nc, inner_nc, outer_nc):
    ks = jax.random.split(key, 8)

    def conv_w(k, cout, cin):
        return jax.random.normal(k, (cout, cin, 3, 3), jnp.float32) * 0.1

    def resblock(k, c):
        k1, k2 = jax.random.split(k)
        return {"w1": conv_w(k1, c, c), "g1": jnp.ones((c,), jnp.float32),
                "b1": jnp.zeros((c,), jnp.float32),
                "w2": conv_w(k2, c, c), "g2": jnp.ones((c,), jnp.float32),
                "b2": jnp.zeros((c,), jnp.float32)}

    return {
        "downconv_w": conv_w(ks[0], inner_nc, input_nc),   # Conv2d(in, inner, 3, 2, 1)
        "res_down1": resblock(ks[1], inner_nc),
        "res_down2": resblock(ks[2], inner_nc),
        "upconv_w": conv_w(ks[3], outer_nc, inner_nc),     # Conv2d(inner, outer, 3, 1, 1)
        "upnorm_g": jnp.ones((outer_nc,), jnp.float32),
        "upnorm_b": jnp.zeros((outer_nc,), jnp.float32),
        "res_up1": resblock(ks[4], outer_nc),
        "res_up2": resblock(ks[5], outer_nc),
    }


if __name__ == "__main__":
    # innermost config: outer_nc=4, inner_nc=8, input_nc=None -> outer_nc
    outer_nc, inner_nc = 4, 8
    input_nc = outer_nc
    n, h, w = 2, 16, 16

    key = jax.random.PRNGKey(0)
    kx, kp = jax.random.split(key)
    x = jax.random.normal(kx, (n, input_nc, h, w), jnp.float32)     # NCHW
    params = init_params(kp, input_nc=input_nc, inner_nc=inner_nc, outer_nc=outer_nc)
    prep = prepare_params(params, n=n, h=h, w=w, input_nc=input_nc,
                          inner_nc=inner_nc, outer_nc=outer_nc)

    out = res_unet_skip_block_forward(x, prep, outer_nc=outer_nc)
    out = jax.block_until_ready(out)

    assert out.shape == (n, input_nc + outer_nc, h, w), out.shape
    assert out.dtype == jnp.float32

    ref = jax.block_until_ready(jax.jit(_reference_forward)(x, params))
    np.testing.assert_allclose(np.asarray(out), np.asarray(ref), rtol=2e-3, atol=2e-3)

    print("KERNEL_OK")
</pallas_src>

<mosaic_0001>
module attributes {stable_mosaic.version = 11 : i64} {
  func.func @_fused_forward_kernel(%arg0: memref<8x512xf32, #tpu.memory_space<vmem>>, %arg1: memref<512x128xf32, #tpu.memory_space<vmem>>, %arg2: memref<128x512xf32, #tpu.memory_space<vmem>>, %arg3: memref<9x1x512xf32, #tpu.memory_space<vmem>>, %arg4: memref<9x1x128xf32, #tpu.memory_space<vmem>>, %arg5: memref<10x9x8x8xf32, #tpu.memory_space<vmem>>, %arg6: memref<9x2x8x1xf32, #tpu.memory_space<vmem>>, %arg7: memref<8x512xf32, #tpu.memory_space<vmem>>) attributes {dimension_semantics = [], scalar_prefetch = 0 : i64, scratch_operands = 0 : i64, tpu.core_type = #tpu.core_type<tc>} {
    %c0 = arith.constant 0 : index
    %c0_0 = arith.constant 0 : index
    %0 = vector.load %arg0[%c0, %c0_0] : memref<8x512xf32, #tpu.memory_space<vmem>>, vector<8x512xf32>
    %1 = vector.extract_strided_slice %0 {offsets = [0, 495], sizes = [8, 17], strides = [1, 1]} : vector<8x512xf32> to vector<8x17xf32>
    %2 = vector.extract_strided_slice %0 {offsets = [0, 0], sizes = [8, 495], strides = [1, 1]} : vector<8x512xf32> to vector<8x495xf32>
    %3 = tpu.concatenate %1, %2 in 1 : vector<8x17xf32>, vector<8x495xf32> -> vector<8x512xf32>
    %c0_1 = arith.constant 0 : index
    %c0_2 = arith.constant 0 : index
    %c0_3 = arith.constant 0 : index
    %4 = vector.load %arg3[%c0_1, %c0_2, %c0_3] : memref<9x1x512xf32, #tpu.memory_space<vmem>>, vector<1x1x512xf32>
    %5 = vector.shape_cast %4 : vector<1x1x512xf32> to vector<1x512xf32>
    %6 = vector.broadcast %5 : vector<1x512xf32> to vector<8x512xf32>
    %7 = arith.mulf %3, %6 : vector<8x512xf32>
    %c0_4 = arith.constant 0 : index
    %c0_5 = arith.constant 0 : index
    %c0_6 = arith.constant 0 : index
    %c0_7 = arith.constant 0 : index
    %8 = vector.load %arg5[%c0_4, %c0_5, %c0_6, %c0_7] : memref<10x9x8x8xf32, #tpu.memory_space<vmem>>, vector<1x1x8x8xf32>
    %9 = vector.shape_cast %8 : vector<1x1x8x8xf32> to vector<8x8xf32>
    %cst = arith.constant dense<0.000000e+00> : vector<8x512xf32>
    %10 = tpu.matmul %9, %7, %cst {dimension_numbers = #tpu.dot_dimension_numbers<[1], [0], [0], [1], [0, 0, 1, 1], [], []>} : vector<8x8xf32>, vector<8x512xf32>, vector<8x512xf32> -> vector<8x512xf32>
    %11 = vector.extract_strided_slice %0 {offsets = [0, 496], sizes = [8, 16], strides = [1, 1]} : vector<8x512xf32> to vector<8x16xf32>
    %12 = vector.extract_strided_slice %0 {offsets = [0, 0], sizes = [8, 496], strides = [1, 1]} : vector<8x512xf32> to vector<8x496xf32>
    %13 = tpu.concatenate %11, %12 in 1 : vector<8x16xf32>, vector<8x496xf32> -> vector<8x512xf32>
    %c1 = arith.constant 1 : index
    %c0_8 = arith.constant 0 : index
    %c0_9 = arith.constant 0 : index
    %14 = vector.load %arg3[%c1, %c0_8, %c0_9] : memref<9x1x512xf32, #tpu.memory_space<vmem>>, vector<1x1x512xf32>
    %15 = vector.shape_cast %14 : vector<1x1x512xf32> to vector<1x512xf32>
    %16 = vector.broadcast %15 : vector<1x512xf32> to vector<8x512xf32>
    %17 = arith.mulf %13, %16 : vector<8x512xf32>
    %c0_10 = arith.constant 0 : index
    %c1_11 = arith.constant 1 : index
    %c0_12 = arith.constant 0 : index
    %c0_13 = arith.constant 0 : index
    %18 = vector.load %arg5[%c0_10, %c1_11, %c0_12, %c0_13] : memref<10x9x8x8xf32, #tpu.memory_space<vmem>>, vector<1x1x8x8xf32>
    %19 = vector.shape_cast %18 : vector<1x1x8x8xf32> to vector<8x8xf32>
    %cst_14 = arith.constant dense<0.000000e+00> : vector<8x512xf32>
    %20 = tpu.matmul %19, %17, %cst_14 {dimension_numbers = #tpu.dot_dimension_numbers<[1], [0], [0], [1], [0, 0, 1, 1], [], []>} : vector<8x8xf32>, vector<8x512xf32>, vector<8x512xf32> -> vector<8x512xf32>
    %21 = arith.addf %10, %20 : vector<8x512xf32>
    %22 = vector.extract_strided_slice %0 {offsets = [0, 497], sizes = [8, 15], strides = [1, 1]} : vector<8x512xf32> to vector<8x15xf32>
    %23 = vector.extract_strided_slice %0 {offsets = [0, 0], sizes = [8, 497], strides = [1, 1]} : vector<8x512xf32> to vector<8x497xf32>
    %24 = tpu.concatenate %22, %23 in 1 : vector<8x15xf32>, vector<8x497xf32> -> vector<8x512xf32>
    %c2 = arith.constant 2 : index
    %c0_15 = arith.constant 0 : index
    %c0_16 = arith.constant 0 : index
    %25 = vector.load %arg3[%c2, %c0_15, %c0_16] : memref<9x1x512xf32, #tpu.memory_space<vmem>>, vector<1x1x512xf32>
    %26 = vector.shape_cast %25 : vector<1x1x512xf32> to vector<1x512xf32>
    %27 = vector.broadcast %26 : vector<1x512xf32> to vector<8x512xf32>
    %28 = arith.mulf %24, %27 : vector<8x512xf32>
    %c0_17 = arith.constant 0 : index
    %c2_18 = arith.constant 2 : index
    %c0_19 = arith.constant 0 : index
    %c0_20 = arith.constant 0 : index
    %29 = vector.load %arg5[%c0_17, %c2_18, %c0_19, %c0_20] : memref<10x9x8x8xf32, #tpu.memory_space<vmem>>, vector<1x1x8x8xf32>
    %30 = vector.shape_cast %29 : vector<1x1x8x8xf32> to vector<8x8xf32>
    %cst_21 = arith.constant dense<0.000000e+00> : vector<8x512xf32>
    %31 = tpu.matmul %30, %28, %cst_21 {dimension_numbers = #tpu.dot_dimension_numbers<[1], [0], [0], [1], [0, 0, 1, 1], [], []>} : vector<8x8xf32>, vector<8x512xf32>, vector<8x512xf32> -> vector<8x512xf32>
    %32 = arith.addf %21, %31 : vector<8x512xf32>
    %33 = vector.extract_strided_slice %0 {offsets = [0, 511], sizes = [8, 1], strides = [1, 1]} : vector<8x512xf32> to vector<8x1xf32>
    %34 = vector.extract_strided_slice %0 {offsets = [0, 0], sizes = [8, 511], strides = [1, 1]} : vector<8x512xf32> to vector<8x511xf32>
    %35 = tpu.concatenate %33, %34 in 1 : vector<8x1xf32>, vector<8x511xf32> -> vector<8x512xf32>
    %c3 = arith.constant 3 : index
    %c0_22 = arith.constant 0 : index
    %c0_23 = arith.constant 0 : index
    %36 = vector.load %arg3[%c3, %c0_22, %c0_23] : memref<9x1x512xf32, #tpu.memory_space<vmem>>, vector<1x1x512xf32>
    %37 = vector.shape_cast %36 : vector<1x1x512xf32> to vector<1x512xf32>
    %38 = vector.broadcast %37 : vector<1x512xf32> to vector<8x512xf32>
    %39 = arith.mulf %35, %38 : vector<8x512xf32>
    %c0_24 = arith.constant 0 : index
    %c3_25 = arith.constant 3 : index
    %c0_26 = arith.constant 0 : index
    %c0_27 = arith.constant 0 : index
    %40 = vector.load %arg5[%c0_24, %c3_25, %c0_26, %c0_27] : memref<10x9x8x8xf32, #tpu.memory_space<vmem>>, vector<1x1x8x8xf32>
    %41 = vector.shape_cast %40 : vector<1x1x8x8xf32> to vector<8x8xf32>
    %cst_28 = arith.constant dense<0.000000e+00> : vector<8x512xf32>
    %42 = tpu.matmul %41, %39, %cst_28 {dimension_numbers = #tpu.dot_dimension_numbers<[1], [0], [0], [1], [0, 0, 1, 1], [], []>} : vector<8x8xf32>, vector<8x512xf32>, vector<8x512xf32> -> vector<8x512xf32>
    %43 = arith.addf %32, %42 : vector<8x512xf32>
    %c4 = arith.constant 4 : index
    %c0_29 = arith.constant 0 : index
    %c0_30 = arith.constant 0 : index
    %44 = vector.load %arg3[%c4, %c0_29, %c0_30] : memref<9x1x512xf32, #tpu.memory_space<vmem>>, vector<1x1x512xf32>
    %45 = vector.shape_cast %44 : vector<1x1x512xf32> to vector<1x512xf32>
    %46 = vector.broadcast %45 : vector<1x512xf32> to vector<8x512xf32>
    %47 = arith.mulf %0, %46 : vector<8x512xf32>
    %c0_31 = arith.constant 0 : index
    %c4_32 = arith.constant 4 : index
    %c0_33 = arith.constant 0 : index
    %c0_34 = arith.constant 0 : index
    %48 = vector.load %arg5[%c0_31, %c4_32, %c0_33, %c0_34] : memref<10x9x8x8xf32, #tpu.memory_space<vmem>>, vector<1x1x8x8xf32>
    %49 = vector.shape_cast %48 : vector<1x1x8x8xf32> to vector<8x8xf32>
    %cst_35 = arith.constant dense<0.000000e+00> : vector<8x512xf32>
    %50 = tpu.matmul %49, %47, %cst_35 {dimension_numbers = #tpu.dot_dimension_numbers<[1], [0], [0], [1], [0, 0, 1, 1], [], []>} : vector<8x8xf32>, vector<8x512xf32>, vector<8x512xf32> -> vector<8x512xf32>
    %51 = arith.addf %43, %50 : vector<8x512xf32>
    %52 = vector.extract_strided_slice %0 {offsets = [0, 1], sizes = [8, 511], strides = [1, 1]} : vector<8x512xf32> to vector<8x511xf32>
    %53 = vector.extract_strided_slice %0 {offsets = [0, 0], sizes = [8, 1], strides = [1, 1]} : vector<8x512xf32> to vector<8x1xf32>
    %54 = tpu.concatenate %52, %53 in 1 : vector<8x511xf32>, vector<8x1xf32> -> vector<8x512xf32>
    %c5 = arith.constant 5 : index
    %c0_36 = arith.constant 0 : index
    %c0_37 = arith.constant 0 : index
    %55 = vector.load %arg3[%c5, %c0_36, %c0_37] : memref<9x1x512xf32, #tpu.memory_space<vmem>>, vector<1x1x512xf32>
    %56 = vector.shape_cast %55 : vector<1x1x512xf32> to vector<1x512xf32>
    %57 = vector.broadcast %56 : vector<1x512xf32> to vector<8x512xf32>
    %58 = arith.mulf %54, %57 : vector<8x512xf32>
    %c0_38 = arith.constant 0 : index
    %c5_39 = arith.constant 5 : index
    %c0_40 = arith.constant 0 : index
    %c0_41 = arith.constant 0 : index
    %59 = vector.load %arg5[%c0_38, %c5_39, %c0_40, %c0_41] : memref<10x9x8x8xf32, #tpu.memory_space<vmem>>, vector<1x1x8x8xf32>
    %60 = vector.shape_cast %59 : vector<1x1x8x8xf32> to vector<8x8xf32>
    %cst_42 = arith.constant dense<0.000000e+00> : vector<8x512xf32>
    %61 = tpu.matmul %60, %58, %cst_42 {dimension_numbers = #tpu.dot_dimension_numbers<[1], [0], [0], [1], [0, 0, 1, 1], [], []>} : vector<8x8xf32>, vector<8x512xf32>, vector<8x512xf32> -> vector<8x512xf32>
    %62 = arith.addf %51, %61 : vector<8x512xf32>
    %63 = vector.extract_strided_slice %0 {offsets = [0, 15], sizes = [8, 497], strides = [1, 1]} : vector<8x512xf32> to vector<8x497xf32>
    %64 = vector.extract_strided_slice %0 {offsets = [0, 0], sizes = [8, 15], strides = [1, 1]} : vector<8x512xf32> to vector<8x15xf32>
    %65 = tpu.concatenate %63, %64 in 1 : vector<8x497xf32>, vector<8x15xf32> -> vector<8x512xf32>
    %c6 = arith.constant 6 : index
    %c0_43 = arith.constant 0 : index
    %c0_44 = arith.constant 0 : index
    %66 = vector.load %arg3[%c6, %c0_43, %c0_44] : memref<9x1x512xf32, #tpu.memory_space<vmem>>, vector<1x1x512xf32>
    %67 = vector.shape_cast %66 : vector<1x1x512xf32> to vector<1x512xf32>
    %68 = vector.broadcast %67 : vector<1x512xf32> to vector<8x512xf32>
    %69 = arith.mulf %65, %68 : vector<8x512xf32>
    %c0_45 = arith.constant 0 : index
    %c6_46 = arith.constant 6 : index
    %c0_47 = arith.constant 0 : index
    %c0_48 = arith.constant 0 : index
    %70 = vector.load %arg5[%c0_45, %c6_46, %c0_47, %c0_48] : memref<10x9x8x8xf32, #tpu.memory_space<vmem>>, vector<1x1x8x8xf32>
    %71 = vector.shape_cast %70 : vector<1x1x8x8xf32> to vector<8x8xf32>
    %cst_49 = arith.constant dense<0.000000e+00> : vector<8x512xf32>
    %72 = tpu.matmul %71, %69, %cst_49 {dimension_numbers = #tpu.dot_dimension_numbers<[1], [0], [0], [1], [0, 0, 1, 1], [], []>} : vector<8x8xf32>, vector<8x512xf32>, vector<8x512xf32> -> vector<8x512xf32>
    %73 = arith.addf %62, %72 : vector<8x512xf32>
    %74 = vector.extract_strided_slice %0 {offsets = [0, 16], sizes = [8, 496], strides = [1, 1]} : vector<8x512xf32> to vector<8x496xf32>
    %75 = vector.extract_strided_slice %0 {offsets = [0, 0], sizes = [8, 16], strides = [1, 1]} : vector<8x512xf32> to vector<8x16xf32>
    %76 = tpu.concatenate %74, %75 in 1 : vector<8x496xf32>, vector<8x16xf32> -> vector<8x512xf32>
    %c7 = arith.constant 7 : index
    %c0_50 = arith.constant 0 : index
    %c0_51 = arith.constant 0 : index
    %77 = vector.load %arg3[%c7, %c0_50, %c0_51] : memref<9x1x512xf32, #tpu.memory_space<vmem>>, vector<1x1x512xf32>
    %78 = vector.shape_cast %77 : vector<1x1x512xf32> to vector<1x512xf32>
    %79 = vector.broadcast %78 : vector<1x512xf32> to vector<8x512xf32>
    %80 = arith.mulf %76, %79 : vector<8x512xf32>
    %c0_52 = arith.constant 0 : index
    %c7_53 = arith.constant 7 : index
    %c0_54 = arith.constant 0 : index
    %c0_55 = arith.constant 0 : index
    %81 = vector.load %arg5[%c0_52, %c7_53, %c0_54, %c0_55] : memref<10x9x8x8xf32, #tpu.memory_space<vmem>>, vector<1x1x8x8xf32>
    %82 = vector.shape_cast %81 : vector<1x1x8x8xf32> to vector<8x8xf32>
    %cst_56 = arith.constant dense<0.000000e+00> : vector<8x512xf32>
    %83 = tpu.matmul %82, %80, %cst_56 {dimension_numbers = #tpu.dot_dimension_numbers<[1], [0], [0], [1], [0, 0, 1, 1], [], []>} : vector<8x8xf32>, vector<8x512xf32>, vector<8x512xf32> -> vector<8x512xf32>
    %84 = arith.addf %73, %83 : vector<8x512xf32>
    %85 = vector.extract_strided_slice %0 {offsets = [0, 17], sizes = [8, 495], strides = [1, 1]} : vector<8x512xf32> to vector<8x495xf32>
    %86 = vector.extract_strided_slice %0 {offsets = [0, 0], sizes = [8, 17], strides = [1, 1]} : vector<8x512xf32> to vector<8x17xf32>
    %87 = tpu.concatenate %85, %86 in 1 : vector<8x495xf32>, vector<8x17xf32> -> vector<8x512xf32>
    %c8 = arith.constant 8 : index
    %c0_57 = arith.constant 0 : index
    %c0_58 = arith.constant 0 : index
    %88 = vector.load %arg3[%c8, %c0_57, %c0_58] : memref<9x1x512xf32, #tpu.memory_space<vmem>>, vector<1x1x512xf32>
    %89 = vector.shape_cast %88 : vector<1x1x512xf32> to vector<1x512xf32>
    %90 = vector.broadcast %89 : vector<1x512xf32> to vector<8x512xf32>
    %91 = arith.mulf %87, %90 : vector<8x512xf32>
    %c0_59 = arith.constant 0 : index
    %c8_60 = arith.constant 8 : index
    %c0_61 = arith.constant 0 : index
    %c0_62 = arith.constant 0 : index
    %92 = vector.load %arg5[%c0_59, %c8_60, %c0_61, %c0_62] : memref<10x9x8x8xf32, #tpu.memory_space<vmem>>, vector<1x1x8x8xf32>
    %93 = vector.shape_cast %92 : vector<1x1x8x8xf32> to vector<8x8xf32>
    %cst_63 = arith.constant dense<0.000000e+00> : vector<8x512xf32>
    %94 = tpu.matmul %93, %91, %cst_63 {dimension_numbers = #tpu.dot_dimension_numbers<[1], [0], [0], [1], [0, 0, 1, 1], [], []>} : vector<8x8xf32>, vector<8x512xf32>, vector<8x512xf32> -> vector<8x512xf32>
    %95 = arith.addf %84, %94 : vector<8x512xf32>
    %c0_64 = arith.constant 0 : index
    %c0_65 = arith.constant 0 : index
    %96 = vector.load %arg1[%c0_64, %c0_65] : memref<512x128xf32, #tpu.memory_space<vmem>>, vector<512x128xf32>
    %cst_66 = arith.constant dense<0.000000e+00> : vector<8x128xf32>
    %97 = tpu.matmul %95, %96, %cst_66 {dimension_numbers = #tpu.dot_dimension_numbers<[1], [0], [0], [1], [0, 0, 1, 1], [], []>} : vector<8x512xf32>, vector<512x128xf32>, vector<8x128xf32> -> vector<8x128xf32>
    %cst_67 = arith.constant 0.000000e+00 : f32
    %98 = vector.broadcast %cst_67 : f32 to vector<8x128xf32>
    %99 = arith.maximumf %97, %98 : vector<8x128xf32>
    %100 = vector.extract_strided_slice %99 {offsets = [0, 119], sizes = [8, 9], strides = [1, 1]} : vector<8x128xf32> to vector<8x9xf32>
    %101 = vector.extract_strided_slice %99 {offsets = [0, 0], sizes = [8, 119], strides = [1, 1]} : vector<8x128xf32> to vector<8x119xf32>
    %102 = tpu.concatenate %100, %101 in 1 : vector<8x9xf32>, vector<8x119xf32> -> vector<8x128xf32>
    %c0_68 = arith.constant 0 : index
    %c0_69 = arith.constant 0 : index
    %c0_70 = arith.constant 0 : index
    %103 = vector.load %arg4[%c0_68, %c0_69, %c0_70] : memref<9x1x128xf32, #tpu.memory_space<vmem>>, vector<1x1x128xf32>
    %104 = vector.shape_cast %103 : vector<1x1x128xf32> to vector<1x128xf32>
    %105 = vector.broadcast %104 : vector<1x128xf32> to vector<8x128xf32>
    %106 = arith.mulf %102, %105 : vector<8x128xf32>
    %c1_71 = arith.constant 1 : index
    %c0_72 = arith.constant 0 : index
    %c0_73 = arith.constant 0 : index
    %c0_74 = arith.constant 0 : index
    %107 = vector.load %arg5[%c1_71, %c0_72, %c0_73, %c0_74] : memref<10x9x8x8xf32, #tpu.memory_space<vmem>>, vector<1x1x8x8xf32>
    %108 = vector.shape_cast %107 : vector<1x1x8x8xf32> to vector<8x8xf32>
    %cst_75 = arith.constant dense<0.000000e+00> : vector<8x128xf32>
    %109 = tpu.matmul %108, %106, %cst_75 {dimension_numbers = #tpu.dot_dimension_numbers<[1], [0], [0], [1], [0, 0, 1, 1], [], []>} : vector<8x8xf32>, vector<8x128xf32>, vector<8x128xf32> -> vector<8x128xf32>
    %110 = vector.extract_strided_slice %99 {offsets = [0, 120], sizes = [8, 8], strides = [1, 1]} : vector<8x128xf32> to vector<8x8xf32>
    %111 = vector.extract_strided_slice %99 {offsets = [0, 0], sizes = [8, 120], strides = [1, 1]} : vector<8x128xf32> to vector<8x120xf32>
    %112 = tpu.concatenate %110, %111 in 1 : vector<8x8xf32>, vector<8x120xf32> -> vector<8x128xf32>
    %c1_76 = arith.constant 1 : index
    %c0_77 = arith.constant 0 : index
    %c0_78 = arith.constant 0 : index
    %113 = vector.load %arg4[%c1_76, %c0_77, %c0_78] : memref<9x1x128xf32, #tpu.memory_space<vmem>>, vector<1x1x128xf32>
    %114 = vector.shape_cast %113 : vector<1x1x128xf32> to vector<1x128xf32>
    %115 = vector.broadcast %114 : vector<1x128xf32> to vector<8x128xf32>
    %116 = arith.mulf %112, %115 : vector<8x128xf32>
    %c1_79 = arith.constant 1 : index
    %c1_80 = arith.constant 1 : index
    %c0_81 = arith.constant 0 : index
    %c0_82 = arith.constant 0 : index
    %117 = vector.load %arg5[%c1_79, %c1_80, %c0_81, %c0_82] : memref<10x9x8x8xf32, #tpu.memory_space<vmem>>, vector<1x1x8x8xf32>
    %118 = vector.shape_cast %117 : vector<1x1x8x8xf32> to vector<8x8xf32>
    %cst_83 = arith.constant dense<0.000000e+00> : vector<8x128xf32>
    %119 = tpu.matmul %118, %116, %cst_83 {dimension_numbers = #tpu.dot_dimension_numbers<[1], [0], [0], [1], [0, 0, 1, 1], [], []>} : vector<8x8xf32>, vector<8x128xf32>, vector<8x128xf32> -> vector<8x128xf32>
    %120 = arith.addf %109, %119 : vector<8x128xf32>
    %121 = vector.extract_strided_slice %99 {offsets = [0, 121], sizes = [8, 7], strides = [1, 1]} : vector<8x128xf32> to vector<8x7xf32>
    %122 = vector.extract_strided_slice %99 {offsets = [0, 0], sizes = [8, 121], strides = [1, 1]} : vector<8x128xf32> to vector<8x121xf32>
    %123 = tpu.concatenate %121, %122 in 1 : vector<8x7xf32>, vector<8x121xf32> -> vector<8x128xf32>
    %c2_84 = arith.constant 2 : index
    %c0_85 = arith.constant 0 : index
    %c0_86 = arith.constant 0 : index
    %124 = vector.load %arg4[%c2_84, %c0_85, %c0_86] : memref<9x1x128xf32, #tpu.memory_space<vmem>>, vector<1x1x128xf32>
    %125 = vector.shape_cast %124 : vector<1x1x128xf32> to vector<1x128xf32>
    %126 = vector.broadcast %125 : vector<1x128xf32> to vector<8x128xf32>
    %127 = arith.mulf %123, %126 : vector<8x128xf32>
    %c1_87 = arith.constant 1 : index
    %c2_88 = arith.constant 2 : index
    %c0_89 = arith.constant 0 : index
    %c0_90 = arith.constant 0 : index
    %128 = vector.load %arg5[%c1_87, %c2_88, %c0_89, %c0_90] : memref<10x9x8x8xf32, #tpu.memory_space<vmem>>, vector<1x1x8x8xf32>
    %129 = vector.shape_cast %128 : vector<1x1x8x8xf32> to vector<8x8xf32>
    %cst_91 = arith.constant dense<0.000000e+00> : vector<8x128xf32>
    %130 = tpu.matmul %129, %127, %cst_91 {dimension_numbers = #tpu.dot_dimension_numbers<[1], [0], [0], [1], [0, 0, 1, 1], [], []>} : vector<8x8xf32>, vector<8x128xf32>, vector<8x128xf32> -> vector<8x128xf32>
    %131 = arith.addf %120, %130 : vector<8x128xf32>
    %132 = vector.extract_strided_slice %99 {offsets = [0, 127], sizes = [8, 1], strides = [1, 1]} : vector<8x128xf32> to vector<8x1xf32>
    %133 = vector.extract_strided_slice %99 {offsets = [0, 0], sizes = [8, 127], strides = [1, 1]} : vector<8x128xf32> to vector<8x127xf32>
    %134 = tpu.concatenate %132, %133 in 1 : vector<8x1xf32>, vector<8x127xf32> -> vector<8x128xf32>
    %c3_92 = arith.constant 3 : index
    %c0_93 = arith.constant 0 : index
    %c0_94 = arith.constant 0 : index
    %135 = vector.load %arg4[%c3_92, %c0_93, %c0_94] : memref<9x1x128xf32, #tpu.memory_space<vmem>>, vector<1x1x128xf32>
    %136 = vector.shape_cast %135 : vector<1x1x128xf32> to vector<1x128xf32>
    %137 = vector.broadcast %136 : vector<1x128xf32> to vector<8x128xf32>
    %138 = arith.mulf %134, %137 : vector<8x128xf32>
    %c1_95 = arith.constant 1 : index
    %c3_96 = arith.constant 3 : index
    %c0_97 = arith.constant 0 : index
    %c0_98 = arith.constant 0 : index
    %139 = vector.load %arg5[%c1_95, %c3_96, %c0_97, %c0_98] : memref<10x9x8x8xf32, #tpu.memory_space<vmem>>, vector<1x1x8x8xf32>
    %140 = vector.shape_cast %139 : vector<1x1x8x8xf32> to vector<8x8xf32>
    %cst_99 = arith.constant dense<0.000000e+00> : vector<8x128xf32>
    %141 = tpu.matmul %140, %138, %cst_99 {dimension_numbers = #tpu.dot_dimension_numbers<[1], [0], [0], [1], [0, 0, 1, 1], [], []>} : vector<8x8xf32>, vector<8x128xf32>, vector<8x128xf32> -> vector<8x128xf32>
    %142 = arith.addf %131, %141 : vector<8x128xf32>
    %c4_100 = arith.constant 4 : index
    %c0_101 = arith.constant 0 : index
    %c0_102 = arith.constant 0 : index
    %143 = vector.load %arg4[%c4_100, %c0_101, %c0_102] : memref<9x1x128xf32, #tpu.memory_space<vmem>>, vector<1x1x128xf32>
    %144 = vector.shape_cast %143 : vector<1x1x128xf32> to vector<1x128xf32>
    %145 = vector.broadcast %144 : vector<1x128xf32> to vector<8x128xf32>
    %146 = arith.mulf %99, %145 : vector<8x128xf32>
    %c1_103 = arith.constant 1 : index
    %c4_104 = arith.constant 4 : index
    %c0_105 = arith.constant 0 : index
    %c0_106 = arith.constant 0 : index
    %147 = vector.load %arg5[%c1_103, %c4_104, %c0_105, %c0_106] : memref<10x9x8x8xf32, #tpu.memory_space<vmem>>, vector<1x1x8x8xf32>
    %148 = vector.shape_cast %147 : vector<1x1x8x8xf32> to vector<8x8xf32>
    %cst_107 = arith.constant dense<0.000000e+00> : vector<8x128xf32>
    %149 = tpu.matmul %148, %146, %cst_107 {dimension_numbers = #tpu.dot_dimension_numbers<[1], [0], [0], [1], [0, 0, 1, 1], [], []>} : vector<8x8xf32>, vector<8x128xf32>, vector<8x128xf32> -> vector<8x128xf32>
    %150 = arith.addf %142, %149 : vector<8x128xf32>
    %151 = vector.extract_strided_slice %99 {offsets = [0, 1], sizes = [8, 127], strides = [1, 1]} : vector<8x128xf32> to vector<8x127xf32>
    %152 = vector.extract_strided_slice %99 {offsets = [0, 0], sizes = [8, 1], strides = [1, 1]} : vector<8x128xf32> to vector<8x1xf32>
    %153 = tpu.concatenate %151, %152 in 1 : vector<8x127xf32>, vector<8x1xf32> -> vector<8x128xf32>
    %c5_108 = arith.constant 5 : index
    %c0_109 = arith.constant 0 : index
    %c0_110 = arith.constant 0 : index
    %154 = vector.load %arg4[%c5_108, %c0_109, %c0_110] : memref<9x1x128xf32, #tpu.memory_space<vmem>>, vector<1x1x128xf32>
    %155 = vector.shape_cast %154 : vector<1x1x128xf32> to vector<1x128xf32>
    %156 = vector.broadcast %155 : vector<1x128xf32> to vector<8x128xf32>
    %157 = arith.mulf %153, %156 : vector<8x128xf32>
    %c1_111 = arith.constant 1 : index
    %c5_112 = arith.constant 5 : index
    %c0_113 = arith.constant 0 : index
    %c0_114 = arith.constant 0 : index
    %158 = vector.load %arg5[%c1_111, %c5_112, %c0_113, %c0_114] : memref<10x9x8x8xf32, #tpu.memory_space<vmem>>, vector<1x1x8x8xf32>
    %159 = vector.shape_cast %158 : vector<1x1x8x8xf32> to vector<8x8xf32>
    %cst_115 = arith.constant dense<0.000000e+00> : vector<8x128xf32>
    %160 = tpu.matmul %159, %157, %cst_115 {dimension_numbers = #tpu.dot_dimension_numbers<[1], [0], [0], [1], [0, 0, 1, 1], [], []>} : vector<8x8xf32>, vector<8x128xf32>, vector<8x128xf32> -> vector<8x128xf32>
    %161 = arith.addf %150, %160 : vector<8x128xf32>
    %162 = vector.extract_strided_slice %99 {offsets = [0, 7], sizes = [8, 121], strides = [1, 1]} : vector<8x128xf32> to vector<8x121xf32>
    %163 = vector.extract_strided_slice %99 {offsets = [0, 0], sizes = [8, 7], strides = [1, 1]} : vector<8x128xf32> to vector<8x7xf32>
    %164 = tpu.concatenate %162, %163 in 1 : vector<8x121xf32>, vector<8x7xf32> -> vector<8x128xf32>
    %c6_116 = arith.constant 6 : index
    %c0_117 = arith.constant 0 : index
    %c0_118 = arith.constant 0 : index
    %165 = vector.load %arg4[%c6_116, %c0_117, %c0_118] : memref<9x1x128xf32, #tpu.memory_space<vmem>>, vector<1x1x128xf32>
    %166 = vector.shape_cast %165 : vector<1x1x128xf32> to vector<1x128xf32>
    %167 = vector.broadcast %166 : vector<1x128xf32> to vector<8x128xf32>
    %168 = arith.mulf %164, %167 : vector<8x128xf32>
    %c1_119 = arith.constant 1 : index
    %c6_120 = arith.constant 6 : index
    %c0_121 = arith.constant 0 : index
    %c0_122 = arith.constant 0 : index
    %169 = vector.load %arg5[%c1_119, %c6_120, %c0_121, %c0_122] : memref<10x9x8x8xf32, #tpu.memory_space<vmem>>, vector<1x1x8x8xf32>
    %170 = vector.shape_cast %169 : vector<1x1x8x8xf32> to vector<8x8xf32>
    %cst_123 = arith.constant dense<0.000000e+00> : vector<8x128xf32>
    %171 = tpu.matmul %170, %168, %cst_123 {dimension_numbers = #tpu.dot_dimension_numbers<[1], [0], [0], [1], [0, 0, 1, 1], [], []>} : vector<8x8xf32>, vector<8x128xf32>, vector<8x128xf32> -> vector<8x128xf32>
    %172 = arith.addf %161, %171 : vector<8x128xf32>
    %173 = vector.extract_strided_slice %99 {offsets = [0, 8], sizes = [8, 120], strides = [1, 1]} : vector<8x128xf32> to vector<8x120xf32>
    %174 = vector.extract_strided_slice %99 {offsets = [0, 0], sizes = [8, 8], strides = [1, 1]} : vector<8x128xf32> to vector<8x8xf32>
    %175 = tpu.concatenate %173, %174 in 1 : vector<8x120xf32>, vector<8x8xf32> -> vector<8x128xf32>
    %c7_124 = arith.constant 7 : index
    %c0_125 = arith.constant 0 : index
    %c0_126 = arith.constant 0 : index
    %176 = vector.load %arg4[%c7_124, %c0_125, %c0_126] : memref<9x1x128xf32, #tpu.memory_space<vmem>>, vector<1x1x128xf32>
    %177 = vector.shape_cast %176 : vector<1x1x128xf32> to vector<1x128xf32>
    %178 = vector.broadcast %177 : vector<1x128xf32> to vector<8x128xf32>
    %179 = arith.mulf %175, %178 : vector<8x128xf32>
    %c1_127 = arith.constant 1 : index
    %c7_128 = arith.constant 7 : index
    %c0_129 = arith.constant 0 : index
    %c0_130 = arith.constant 0 : index
    %180 = vector.load %arg5[%c1_127, %c7_128, %c0_129, %c0_130] : memref<10x9x8x8xf32, #tpu.memory_space<vmem>>, vector<1x1x8x8xf32>
    %181 = vector.shape_cast %180 : vector<1x1x8x8xf32> to vector<8x8xf32>
    %cst_131 = arith.constant dense<0.000000e+00> : vector<8x128xf32>
    %182 = tpu.matmul %181, %179, %cst_131 {dimension_numbers = #tpu.dot_dimension_numbers<[1], [0], [0], [1], [0, 0, 1, 1], [], []>} : vector<8x8xf32>, vector<8x128xf32>, vector<8x128xf32> -> vector<8x128xf32>
    %183 = arith.addf %172, %182 : vector<8x128xf32>
    %184 = vector.extract_strided_slice %99 {offsets = [0, 9], sizes = [8, 119], strides = [1, 1]} : vector<8x128xf32> to vector<8x119xf32>
    %185 = vector.extract_strided_slice %99 {offsets = [0, 0], sizes = [8, 9], strides = [1, 1]} : vector<8x128xf32> to vector<8x9xf32>
    %186 = tpu.concatenate %184, %185 in 1 : vector<8x119xf32>, vector<8x9xf32> -> vector<8x128xf32>
    %c8_132 = arith.constant 8 : index
    %c0_133 = arith.constant 0 : index
    %c0_134 = arith.constant 0 : index
    %187 = vector.load %arg4[%c8_132, %c0_133, %c0_134] : memref<9x1x128xf32, #tpu.memory_space<vmem>>, vector<1x1x128xf32>
    %188 = vector.shape_cast %187 : vector<1x1x128xf32> to vector<1x128xf32>
    %189 = vector.broadcast %188 : vector<1x128xf32> to vector<8x128xf32>
    %190 = arith.mulf %186, %189 : vector<8x128xf32>
    %c1_135 = arith.constant 1 : index
    %c8_136 = arith.constant 8 : index
    %c0_137 = arith.constant 0 : index
    %c0_138 = arith.constant 0 : index
    %191 = vector.load %arg5[%c1_135, %c8_136, %c0_137, %c0_138] : memref<10x9x8x8xf32, #tpu.memory_space<vmem>>, vector<1x1x8x8xf32>
    %192 = vector.shape_cast %191 : vector<1x1x8x8xf32> to vector<8x8xf32>
    %cst_139 = arith.constant dense<0.000000e+00> : vector<8x128xf32>
    %193 = tpu.matmul %192, %190, %cst_139 {dimension_numbers = #tpu.dot_dimension_numbers<[1], [0], [0], [1], [0, 0, 1, 1], [], []>} : vector<8x8xf32>, vector<8x128xf32>, vector<8x128xf32> -> vector<8x128xf32>
    %194 = arith.addf %183, %193 : vector<8x128xf32>
    %cst_140 = arith.constant dense<0.000000e+00> : vector<8xf32>
    %195 = vector.multi_reduction <add>, %194, %cst_140 [1] : vector<8x128xf32> to vector<8xf32>
    %196 = vector.shape_cast %195 : vector<8xf32> to vector<8x1xf32>
    %cst_141 = arith.constant 7.812500e-03 : f32
    %197 = vector.broadcast %cst_141 : f32 to vector<8x1xf32>
    %198 = arith.mulf %196, %197 : vector<8x1xf32>
    %199 = vector.broadcast %198 : vector<8x1xf32> to vector<8x128xf32>
    %200 = arith.subf %194, %199 : vector<8x128xf32>
    %201 = arith.mulf %200, %200 : vector<8x128xf32>
    %cst_142 = arith.constant dense<0.000000e+00> : vector<8xf32>
    %202 = vector.multi_reduction <add>, %201, %cst_142 [1] : vector<8x128xf32> to vector<8xf32>
    %203 = vector.shape_cast %202 : vector<8xf32> to vector<8x1xf32>
    %cst_143 = arith.constant 7.812500e-03 : f32
    %204 = vector.broadcast %cst_143 : f32 to vector<8x1xf32>
    %205 = arith.mulf %203, %204 : vector<8x1xf32>
    %c0_144 = arith.constant 0 : index
    %c0_145 = arith.constant 0 : index
    %c0_146 = arith.constant 0 : index
    %c0_147 = arith.constant 0 : index
    %206 = vector.load %arg6[%c0_144, %c0_145, %c0_146, %c0_147] : memref<9x2x8x1xf32, #tpu.memory_space<vmem>>, vector<1x1x8x1xf32>
    %207 = vector.shape_cast %206 : vector<1x1x8x1xf32> to vector<8x1xf32>
    %cst_148 = arith.constant 9.99999974E-6 : f32
    %208 = vector.broadcast %cst_148 : f32 to vector<8x1xf32>
    %209 = arith.addf %205, %208 : vector<8x1xf32>
    %210 = math.rsqrt %209 : vector<8x1xf32>
    %211 = arith.mulf %207, %210 : vector<8x1xf32>
    %212 = vector.broadcast %211 : vector<8x1xf32> to vector<8x128xf32>
    %213 = arith.mulf %200, %212 : vector<8x128xf32>
    %c0_149 = arith.constant 0 : index
    %c1_150 = arith.constant 1 : index
    %c0_151 = arith.constant 0 : index
    %c0_152 = arith.constant 0 : index
    %214 = vector.load %arg6[%c0_149, %c1_150, %c0_151, %c0_152] : memref<9x2x8x1xf32, #tpu.memory_space<vmem>>, vector<1x1x8x1xf32>
    %215 = vector.shape_cast %214 : vector<1x1x8x1xf32> to vector<8x1xf32>
    %216 = vector.broadcast %215 : vector<8x1xf32> to vector<8x128xf32>
    %217 = arith.addf %213, %216 : vector<8x128xf32>
    %cst_153 = arith.constant 0.000000e+00 : f32
    %218 = vector.broadcast %cst_153 : f32 to vector<8x128xf32>
    %219 = arith.maximumf %217, %218 : vector<8x128xf32>
    %220 = vector.extract_strided_slice %219 {offsets = [0, 119], sizes = [8, 9], strides = [1, 1]} : vector<8x128xf32> to vector<8x9xf32>
    %221 = vector.extract_strided_slice %219 {offsets = [0, 0], sizes = [8, 119], strides = [1, 1]} : vector<8x128xf32> to vector<8x119xf32>
    %222 = tpu.concatenate %220, %221 in 1 : vector<8x9xf32>, vector<8x119xf32> -> vector<8x128xf32>
    %c0_154 = arith.constant 0 : index
    %c0_155 = arith.constant 0 : index
    %c0_156 = arith.constant 0 : index
    %223 = vector.load %arg4[%c0_154, %c0_155, %c0_156] : memref<9x1x128xf32, #tpu.memory_space<vmem>>, vector<1x1x128xf32>
    %224 = vector.shape_cast %223 : vector<1x1x128xf32> to vector<1x128xf32>
    %225 = vector.broadcast %224 : vector<1x128xf32> to vector<8x128xf32>
    %226 = arith.mulf %222, %225 : vector<8x128xf32>
    %c2_157 = arith.constant 2 : index
    %c0_158 = arith.constant 0 : index
    %c0_159 = arith.constant 0 : index
    %c0_160 = arith.constant 0 : index
    %227 = vector.load %arg5[%c2_157, %c0_158, %c0_159, %c0_160] : memref<10x9x8x8xf32, #tpu.memory_space<vmem>>, vector<1x1x8x8xf32>
    %228 = vector.shape_cast %227 : vector<1x1x8x8xf32> to vector<8x8xf32>
    %cst_161 = arith.constant dense<0.000000e+00> : vector<8x128xf32>
    %229 = tpu.matmul %228, %226, %cst_161 {dimension_numbers = #tpu.dot_dimension_numbers<[1], [0], [0], [1], [0, 0, 1, 1], [], []>} : vector<8x8xf32>, vector<8x128xf32>, vector<8x128xf32> -> vector<8x128xf32>
    %230 = vector.extract_strided_slice %219 {offsets = [0, 120], sizes = [8, 8], strides = [1, 1]} : vector<8x128xf32> to vector<8x8xf32>
    %231 = vector.extract_strided_slice %219 {offsets = [0, 0], sizes = [8, 120], strides = [1, 1]} : vector<8x128xf32> to vector<8x120xf32>
    %232 = tpu.concatenate %230, %231 in 1 : vector<8x8xf32>, vector<8x120xf32> -> vector<8x128xf32>
    %c1_162 = arith.constant 1 : index
    %c0_163 = arith.constant 0 : index
    %c0_164 = arith.constant 0 : index
    %233 = vector.load %arg4[%c1_162, %c0_163, %c0_164] : memref<9x1x128xf32, #tpu.memory_space<vmem>>, vector<1x1x128xf32>
    %234 = vector.shape_cast %233 : vector<1x1x128xf32> to vector<1x128xf32>
    %235 = vector.broadcast %234 : vector<1x128xf32> to vector<8x128xf32>
    %236 = arith.mulf %232, %235 : vector<8x128xf32>
    %c2_165 = arith.constant 2 : index
    %c1_166 = arith.constant 1 : index
    %c0_167 = arith.constant 0 : index
    %c0_168 = arith.constant 0 : index
    %237 = vector.load %arg5[%c2_165, %c1_166, %c0_167, %c0_168] : memref<10x9x8x8xf32, #tpu.memory_space<vmem>>, vector<1x1x8x8xf32>
    %238 = vector.shape_cast %237 : vector<1x1x8x8xf32> to vector<8x8xf32>
    %cst_169 = arith.constant dense<0.000000e+00> : vector<8x128xf32>
    %239 = tpu.matmul %238, %236, %cst_169 {dimension_numbers = #tpu.dot_dimension_numbers<[1], [0], [0], [1], [0, 0, 1, 1], [], []>} : vector<8x8xf32>, vector<8x128xf32>, vector<8x128xf32> -> vector<8x128xf32>
    %240 = arith.addf %229, %239 : vector<8x128xf32>
    %241 = vector.extract_strided_slice %219 {offsets = [0, 121], sizes = [8, 7], strides = [1, 1]} : vector<8x128xf32> to vector<8x7xf32>
    %242 = vector.extract_strided_slice %219 {offsets = [0, 0], sizes = [8, 121], strides = [1, 1]} : vector<8x128xf32> to vector<8x121xf32>
    %243 = tpu.concatenate %241, %242 in 1 : vector<8x7xf32>, vector<8x121xf32> -> vector<8x128xf32>
    %c2_170 = arith.constant 2 : index
    %c0_171 = arith.constant 0 : index
    %c0_172 = arith.constant 0 : index
    %244 = vector.load %arg4[%c2_170, %c0_171, %c0_172] : memref<9x1x128xf32, #tpu.memory_space<vmem>>, vector<1x1x128xf32>
    %245 = vector.shape_cast %244 : vector<1x1x128xf32> to vector<1x128xf32>
    %246 = vector.broadcast %245 : vector<1x128xf32> to vector<8x128xf32>
    %247 = arith.mulf %243, %246 : vector<8x128xf32>
    %c2_173 = arith.constant 2 : index
    %c2_174 = arith.constant 2 : index
    %c0_175 = arith.constant 0 : index
    %c0_176 = arith.constant 0 : index
    %248 = vector.load %arg5[%c2_173, %c2_174, %c0_175, %c0_176] : memref<10x9x8x8xf32, #tpu.memory_space<vmem>>, vector<1x1x8x8xf32>
    %249 = vector.shape_cast %248 : vector<1x1x8x8xf32> to vector<8x8xf32>
    %cst_177 = arith.constant dense<0.000000e+00> : vector<8x128xf32>
    %250 = tpu.matmul %249, %247, %cst_177 {dimension_numbers = #tpu.dot_dimension_numbers<[1], [0], [0], [1], [0, 0, 1, 1], [], []>} : vector<8x8xf32>, vector<8x128xf32>, vector<8x128xf32> -> vector<8x128xf32>
    %251 = arith.addf %240, %250 : vector<8x128xf32>
    %252 = vector.extract_strided_slice %219 {offsets = [0, 127], sizes = [8, 1], strides = [1, 1]} : vector<8x128xf32> to vector<8x1xf32>
    %253 = vector.extract_strided_slice %219 {offsets = [0, 0], sizes = [8, 127], strides = [1, 1]} : vector<8x128xf32> to vector<8x127xf32>
    %254 = tpu.concatenate %252, %253 in 1 : vector<8x1xf32>, vector<8x127xf32> -> vector<8x128xf32>
    %c3_178 = arith.constant 3 : index
    %c0_179 = arith.constant 0 : index
    %c0_180 = arith.constant 0 : index
    %255 = vector.load %arg4[%c3_178, %c0_179, %c0_180] : memref<9x1x128xf32, #tpu.memory_space<vmem>>, vector<1x1x128xf32>
    %256 = vector.shape_cast %255 : vector<1x1x128xf32> to vector<1x128xf32>
    %257 = vector.broadcast %256 : vector<1x128xf32> to vector<8x128xf32>
    %258 = arith.mulf %254, %257 : vector<8x128xf32>
    %c2_181 = arith.constant 2 : index
    %c3_182 = arith.constant 3 : index
    %c0_183 = arith.constant 0 : index
    %c0_184 = arith.constant 0 : index
    %259 = vector.load %arg5[%c2_181, %c3_182, %c0_183, %c0_184] : memref<10x9x8x8xf32, #tpu.memory_space<vmem>>, vector<1x1x8x8xf32>
    %260 = vector.shape_cast %259 : vector<1x1x8x8xf32> to vector<8x8xf32>
    %cst_185 = arith.constant dense<0.000000e+00> : vector<8x128xf32>
    %261 = tpu.matmul %260, %258, %cst_185 {dimension_numbers = #tpu.dot_dimension_numbers<[1], [0], [0], [1], [0, 0, 1, 1], [], []>} : vector<8x8xf32>, vector<8x128xf32>, vector<8x128xf32> -> vector<8x128xf32>
    %262 = arith.addf %251, %261 : vector<8x128xf32>
    %c4_186 = arith.constant 4 : index
    %c0_187 = arith.constant 0 : index
    %c0_188 = arith.constant 0 : index
    %263 = vector.load %arg4[%c4_186, %c0_187, %c0_188] : memref<9x1x128xf32, #tpu.memory_space<vmem>>, vector<1x1x128xf32>
    %264 = vector.shape_cast %263 : vector<1x1x128xf32> to vector<1x128xf32>
    %265 = vector.broadcast %264 : vector<1x128xf32> to vector<8x128xf32>
    %266 = arith.mulf %219, %265 : vector<8x128xf32>
    %c2_189 = arith.constant 2 : index
    %c4_190 = arith.constant 4 : index
    %c0_191 = arith.constant 0 : index
    %c0_192 = arith.constant 0 : index
    %267 = vector.load %arg5[%c2_189, %c4_190, %c0_191, %c0_192] : memref<10x9x8x8xf32, #tpu.memory_space<vmem>>, vector<1x1x8x8xf32>
    %268 = vector.shape_cast %267 : vector<1x1x8x8xf32> to vector<8x8xf32>
    %cst_193 = arith.constant dense<0.000000e+00> : vector<8x128xf32>
    %269 = tpu.matmul %268, %266, %cst_193 {dimension_numbers = #tpu.dot_dimension_numbers<[1], [0], [0], [1], [0, 0, 1, 1], [], []>} : vector<8x8xf32>, vector<8x128xf32>, vector<8x128xf32> -> vector<8x128xf32>
    %270 = arith.addf %262, %269 : vector<8x128xf32>
    %271 = vector.extract_strided_slice %219 {offsets = [0, 1], sizes = [8, 127], strides = [1, 1]} : vector<8x128xf32> to vector<8x127xf32>
    %272 = vector.extract_strided_slice %219 {offsets = [0, 0], sizes = [8, 1], strides = [1, 1]} : vector<8x128xf32> to vector<8x1xf32>
    %273 = tpu.concatenate %271, %272 in 1 : vector<8x127xf32>, vector<8x1xf32> -> vector<8x128xf32>
    %c5_194 = arith.constant 5 : index
    %c0_195 = arith.constant 0 : index
    %c0_196 = arith.constant 0 : index
    %274 = vector.load %arg4[%c5_194, %c0_195, %c0_196] : memref<9x1x128xf32, #tpu.memory_space<vmem>>, vector<1x1x128xf32>
    %275 = vector.shape_cast %274 : vector<1x1x128xf32> to vector<1x128xf32>
    %276 = vector.broadcast %275 : vector<1x128xf32> to vector<8x128xf32>
    %277 = arith.mulf %273, %276 : vector<8x128xf32>
    %c2_197 = arith.constant 2 : index
    %c5_198 = arith.constant 5 : index
    %c0_199 = arith.constant 0 : index
    %c0_200 = arith.constant 0 : index
    %278 = vector.load %arg5[%c2_197, %c5_198, %c0_199, %c0_200] : memref<10x9x8x8xf32, #tpu.memory_space<vmem>>, vector<1x1x8x8xf32>
    %279 = vector.shape_cast %278 : vector<1x1x8x8xf32> to vector<8x8xf32>
    %cst_201 = arith.constant dense<0.000000e+00> : vector<8x128xf32>
    %280 = tpu.matmul %279, %277, %cst_201 {dimension_numbers = #tpu.dot_dimension_numbers<[1], [0], [0], [1], [0, 0, 1, 1], [], []>} : vector<8x8xf32>, vector<8x128xf32>, vector<8x128xf32> -> vector<8x128xf32>
    %281 = arith.addf %270, %280 : vector<8x128xf32>
    %282 = vector.extract_strided_slice %219 {offsets = [0, 7], sizes = [8, 121], strides = [1, 1]} : vector<8x128xf32> to vector<8x121xf32>
    %283 = vector.extract_strided_slice %219 {offsets = [0, 0], sizes = [8, 7], strides = [1, 1]} : vector<8x128xf32> to vector<8x7xf32>
    %284 = tpu.concatenate %282, %283 in 1 : vector<8x121xf32>, vector<8x7xf32> -> vector<8x128xf32>
    %c6_202 = arith.constant 6 : index
    %c0_203 = arith.constant 0 : index
    %c0_204 = arith.constant 0 : index
    %285 = vector.load %arg4[%c6_202, %c0_203, %c0_204] : memref<9x1x128xf32, #tpu.memory_space<vmem>>, vector<1x1x128xf32>
    %286 = vector.shape_cast %285 : vector<1x1x128xf32> to vector<1x128xf32>
    %287 = vector.broadcast %286 : vector<1x128xf32> to vector<8x128xf32>
    %288 = arith.mulf %284, %287 : vector<8x128xf32>
    %c2_205 = arith.constant 2 : index
    %c6_206 = arith.constant 6 : index
    %c0_207 = arith.constant 0 : index
    %c0_208 = arith.constant 0 : index
    %289 = vector.load %arg5[%c2_205, %c6_206, %c0_207, %c0_208] : memref<10x9x8x8xf32, #tpu.memory_space<vmem>>, vector<1x1x8x8xf32>
    %290 = vector.shape_cast %289 : vector<1x1x8x8xf32> to vector<8x8xf32>
    %cst_209 = arith.constant dense<0.000000e+00> : vector<8x128xf32>
    %291 = tpu.matmul %290, %288, %cst_209 {dimension_numbers = #tpu.dot_dimension_numbers<[1], [0], [0], [1], [0, 0, 1, 1], [], []>} : vector<8x8xf32>, vector<8x128xf32>, vector<8x128xf32> -> vector<8x128xf32>
    %292 = arith.addf %281, %291 : vector<8x128xf32>
    %293 = vector.extract_strided_slice %219 {offsets = [0, 8], sizes = [8, 120], strides = [1, 1]} : vector<8x128xf32> to vector<8x120xf32>
    %294 = vector.extract_strided_slice %219 {offsets = [0, 0], sizes = [8, 8], strides = [1, 1]} : vector<8x128xf32> to vector<8x8xf32>
    %295 = tpu.concatenate %293, %294 in 1 : vector<8x120xf32>, vector<8x8xf32> -> vector<8x128xf32>
    %c7_210 = arith.constant 7 : index
    %c0_211 = arith.constant 0 : index
    %c0_212 = arith.constant 0 : index
    %296 = vector.load %arg4[%c7_210, %c0_211, %c0_212] : memref<9x1x128xf32, #tpu.memory_space<vmem>>, vector<1x1x128xf32>
    %297 = vector.shape_cast %296 : vector<1x1x128xf32> to vector<1x128xf32>
    %298 = vector.broadcast %297 : vector<1x128xf32> to vector<8x128xf32>
    %299 = arith.mulf %295, %298 : vector<8x128xf32>
    %c2_213 = arith.constant 2 : index
    %c7_214 = arith.constant 7 : index
    %c0_215 = arith.constant 0 : index
    %c0_216 = arith.constant 0 : index
    %300 = vector.load %arg5[%c2_213, %c7_214, %c0_215, %c0_216] : memref<10x9x8x8xf32, #tpu.memory_space<vmem>>, vector<1x1x8x8xf32>
    %301 = vector.shape_cast %300 : vector<1x1x8x8xf32> to vector<8x8xf32>
    %cst_217 = arith.constant dense<0.000000e+00> : vector<8x128xf32>
    %302 = tpu.matmul %301, %299, %cst_217 {dimension_numbers = #tpu.dot_dimension_numbers<[1], [0], [0], [1], [0, 0, 1, 1], [], []>} : vector<8x8xf32>, vector<8x128xf32>, vector<8x128xf32> -> vector<8x128xf32>
    %303 = arith.addf %292, %302 : vector<8x128xf32>
    %304 = vector.extract_strided_slice %219 {offsets = [0, 9], sizes = [8, 119], strides = [1, 1]} : vector<8x128xf32> to vector<8x119xf32>
    %305 = vector.extract_strided_slice %219 {offsets = [0, 0], sizes = [8, 9], strides = [1, 1]} : vector<8x128xf32> to vector<8x9xf32>
    %306 = tpu.concatenate %304, %305 in 1 : vector<8x119xf32>, vector<8x9xf32> -> vector<8x128xf32>
    %c8_218 = arith.constant 8 : index
    %c0_219 = arith.constant 0 : index
    %c0_220 = arith.constant 0 : index
    %307 = vector.load %arg4[%c8_218, %c0_219, %c0_220] : memref<9x1x128xf32, #tpu.memory_space<vmem>>, vector<1x1x128xf32>
    %308 = vector.shape_cast %307 : vector<1x1x128xf32> to vector<1x128xf32>
    %309 = vector.broadcast %308 : vector<1x128xf32> to vector<8x128xf32>
    %310 = arith.mulf %306, %309 : vector<8x128xf32>
    %c2_221 = arith.constant 2 : index
    %c8_222 = arith.constant 8 : index
    %c0_223 = arith.constant 0 : index
    %c0_224 = arith.constant 0 : index
    %311 = vector.load %arg5[%c2_221, %c8_222, %c0_223, %c0_224] : memref<10x9x8x8xf32, #tpu.memory_space<vmem>>, vector<1x1x8x8xf32>
    %312 = vector.shape_cast %311 : vector<1x1x8x8xf32> to vector<8x8xf32>
    %cst_225 = arith.constant dense<0.000000e+00> : vector<8x128xf32>
    %313 = tpu.matmul %312, %310, %cst_225 {dimension_numbers = #tpu.dot_dimension_numbers<[1], [0], [0], [1], [0, 0, 1, 1], [], []>} : vector<8x8xf32>, vector<8x128xf32>, vector<8x128xf32> -> vector<8x128xf32>
    %314 = arith.addf %303, %313 : vector<8x128xf32>
    %cst_226 = arith.constant dense<0.000000e+00> : vector<8xf32>
    %315 = vector.multi_reduction <add>, %314, %cst_226 [1] : vector<8x128xf32> to vector<8xf32>
    %316 = vector.shape_cast %315 : vector<8xf32> to vector<8x1xf32>
    %cst_227 = arith.constant 7.812500e-03 : f32
    %317 = vector.broadcast %cst_227 : f32 to vector<8x1xf32>
    %318 = arith.mulf %316, %317 : vector<8x1xf32>
    %319 = vector.broadcast %318 : vector<8x1xf32> to vector<8x128xf32>
    %320 = arith.subf %314, %319 : vector<8x128xf32>
    %321 = arith.mulf %320, %320 : vector<8x128xf32>
    %cst_228 = arith.constant dense<0.000000e+00> : vector<8xf32>
    %322 = vector.multi_reduction <add>, %321, %cst_228 [1] : vector<8x128xf32> to vector<8xf32>
    %323 = vector.shape_cast %322 : vector<8xf32> to vector<8x1xf32>
    %cst_229 = arith.constant 7.812500e-03 : f32
    %324 = vector.broadcast %cst_229 : f32 to vector<8x1xf32>
    %325 = arith.mulf %323, %324 : vector<8x1xf32>
    %c1_230 = arith.constant 1 : index
    %c0_231 = arith.constant 0 : index
    %c0_232 = arith.constant 0 : index
    %c0_233 = arith.constant 0 : index
    %326 = vector.load %arg6[%c1_230, %c0_231, %c0_232, %c0_233] : memref<9x2x8x1xf32, #tpu.memory_space<vmem>>, vector<1x1x8x1xf32>
    %327 = vector.shape_cast %326 : vector<1x1x8x1xf32> to vector<8x1xf32>
    %cst_234 = arith.constant 9.99999974E-6 : f32
    %328 = vector.broadcast %cst_234 : f32 to vector<8x1xf32>
    %329 = arith.addf %325, %328 : vector<8x1xf32>
    %330 = math.rsqrt %329 : vector<8x1xf32>
    %331 = arith.mulf %327, %330 : vector<8x1xf32>
    %332 = vector.broadcast %331 : vector<8x1xf32> to vector<8x128xf32>
    %333 = arith.mulf %320, %332 : vector<8x128xf32>
    %c1_235 = arith.constant 1 : index
    %c1_236 = arith.constant 1 : index
    %c0_237 = arith.constant 0 : index
    %c0_238 = arith.constant 0 : index
    %334 = vector.load %arg6[%c1_235, %c1_236, %c0_237, %c0_238] : memref<9x2x8x1xf32, #tpu.memory_space<vmem>>, vector<1x1x8x1xf32>
    %335 = vector.shape_cast %334 : vector<1x1x8x1xf32> to vector<8x1xf32>
    %336 = vector.broadcast %335 : vector<8x1xf32> to vector<8x128xf32>
    %337 = arith.addf %333, %336 : vector<8x128xf32>
    %338 = arith.addf %337, %99 : vector<8x128xf32>
    %cst_239 = arith.constant 0.000000e+00 : f32
    %339 = vector.broadcast %cst_239 : f32 to vector<8x128xf32>
    %340 = arith.maximumf %338, %339 : vector<8x128xf32>
    %341 = vector.extract_strided_slice %340 {offsets = [0, 119], sizes = [8, 9], strides = [1, 1]} : vector<8x128xf32> to vector<8x9xf32>
    %342 = vector.extract_strided_slice %340 {offsets = [0, 0], sizes = [8, 119], strides = [1, 1]} : vector<8x128xf32> to vector<8x119xf32>
    %343 = tpu.concatenate %341, %342 in 1 : vector<8x9xf32>, vector<8x119xf32> -> vector<8x128xf32>
    %c0_240 = arith.constant 0 : index
    %c0_241 = arith.constant 0 : index
    %c0_242 = arith.constant 0 : index
    %344 = vector.load %arg4[%c0_240, %c0_241, %c0_242] : memref<9x1x128xf32, #tpu.memory_space<vmem>>, vector<1x1x128xf32>
    %345 = vector.shape_cast %344 : vector<1x1x128xf32> to vector<1x128xf32>
    %346 = vector.broadcast %345 : vector<1x128xf32> to vector<8x128xf32>
    %347 = arith.mulf %343, %346 : vector<8x128xf32>
    %c3_243 = arith.constant 3 : index
    %c0_244 = arith.constant 0 : index
    %c0_245 = arith.constant 0 : index
    %c0_246 = arith.constant 0 : index
    %348 = vector.load %arg5[%c3_243, %c0_244, %c0_245, %c0_246] : memref<10x9x8x8xf32, #tpu.memory_space<vmem>>, vector<1x1x8x8xf32>
    %349 = vector.shape_cast %348 : vector<1x1x8x8xf32> to vector<8x8xf32>
    %cst_247 = arith.constant dense<0.000000e+00> : vector<8x128xf32>
    %350 = tpu.matmul %349, %347, %cst_247 {dimension_numbers = #tpu.dot_dimension_numbers<[1], [0], [0], [1], [0, 0, 1, 1], [], []>} : vector<8x8xf32>, vector<8x128xf32>, vector<8x128xf32> -> vector<8x128xf32>
    %351 = vector.extract_strided_slice %340 {offsets = [0, 120], sizes = [8, 8], strides = [1, 1]} : vector<8x128xf32> to vector<8x8xf32>
    %352 = vector.extract_strided_slice %340 {offsets = [0, 0], sizes = [8, 120], strides = [1, 1]} : vector<8x128xf32> to vector<8x120xf32>
    %353 = tpu.concatenate %351, %352 in 1 : vector<8x8xf32>, vector<8x120xf32> -> vector<8x128xf32>
    %c1_248 = arith.constant 1 : index
    %c0_249 = arith.constant 0 : index
    %c0_250 = arith.constant 0 : index
    %354 = vector.load %arg4[%c1_248, %c0_249, %c0_250] : memref<9x1x128xf32, #tpu.memory_space<vmem>>, vector<1x1x128xf32>
    %355 = vector.shape_cast %354 : vector<1x1x128xf32> to vector<1x128xf32>
    %356 = vector.broadcast %355 : vector<1x128xf32> to vector<8x128xf32>
    %357 = arith.mulf %353, %356 : vector<8x128xf32>
    %c3_251 = arith.constant 3 : index
    %c1_252 = arith.constant 1 : index
    %c0_253 = arith.constant 0 : index
    %c0_254 = arith.constant 0 : index
    %358 = vector.load %arg5[%c3_251, %c1_252, %c0_253, %c0_254] : memref<10x9x8x8xf32, #tpu.memory_space<vmem>>, vector<1x1x8x8xf32>
    %359 = vector.shape_cast %358 : vector<1x1x8x8xf32> to vector<8x8xf32>
    %cst_255 = arith.constant dense<0.000000e+00> : vector<8x128xf32>
    %360 = tpu.matmul %359, %357, %cst_255 {dimension_numbers = #tpu.dot_dimension_numbers<[1], [0], [0], [1], [0, 0, 1, 1], [], []>} : vector<8x8xf32>, vector<8x128xf32>, vector<8x128xf32> -> vector<8x128xf32>
    %361 = arith.addf %350, %360 : vector<8x128xf32>
    %362 = vector.extract_strided_slice %340 {offsets = [0, 121], sizes = [8, 7], strides = [1, 1]} : vector<8x128xf32> to vector<8x7xf32>
    %363 = vector.extract_strided_slice %340 {offsets = [0, 0], sizes = [8, 121], strides = [1, 1]} : vector<8x128xf32> to vector<8x121xf32>
    %364 = tpu.concatenate %362, %363 in 1 : vector<8x7xf32>, vector<8x121xf32> -> vector<8x128xf32>
    %c2_256 = arith.constant 2 : index
    %c0_257 = arith.constant 0 : index
    %c0_258 = arith.constant 0 : index
    %365 = vector.load %arg4[%c2_256, %c0_257, %c0_258] : memref<9x1x128xf32, #tpu.memory_space<vmem>>, vector<1x1x128xf32>
    %366 = vector.shape_cast %365 : vector<1x1x128xf32> to vector<1x128xf32>
    %367 = vector.broadcast %366 : vector<1x128xf32> to vector<8x128xf32>
    %368 = arith.mulf %364, %367 : vector<8x128xf32>
    %c3_259 = arith.constant 3 : index
    %c2_260 = arith.constant 2 : index
    %c0_261 = arith.constant 0 : index
    %c0_262 = arith.constant 0 : index
    %369 = vector.load %arg5[%c3_259, %c2_260, %c0_261, %c0_262] : memref<10x9x8x8xf32, #tpu.memory_space<vmem>>, vector<1x1x8x8xf32>
    %370 = vector.shape_cast %369 : vector<1x1x8x8xf32> to vector<8x8xf32>
    %cst_263 = arith.constant dense<0.000000e+00> : vector<8x128xf32>
    %371 = tpu.matmul %370, %368, %cst_263 {dimension_numbers = #tpu.dot_dimension_numbers<[1], [0], [0], [1], [0, 0, 1, 1], [], []>} : vector<8x8xf32>, vector<8x128xf32>, vector<8x128xf32> -> vector<8x128xf32>
    %372 = arith.addf %361, %371 : vector<8x128xf32>
    %373 = vector.extract_strided_slice %340 {offsets = [0, 127], sizes = [8, 1], strides = [1, 1]} : vector<8x128xf32> to vector<8x1xf32>
    %374 = vector.extract_strided_slice %340 {offsets = [0, 0], sizes = [8, 127], strides = [1, 1]} : vector<8x128xf32> to vector<8x127xf32>
    %375 = tpu.concatenate %373, %374 in 1 : vector<8x1xf32>, vector<8x127xf32> -> vector<8x128xf32>
    %c3_264 = arith.constant 3 : index
    %c0_265 = arith.constant 0 : index
    %c0_266 = arith.constant 0 : index
    %376 = vector.load %arg4[%c3_264, %c0_265, %c0_266] : memref<9x1x128xf32, #tpu.memory_space<vmem>>, vector<1x1x128xf32>
    %377 = vector.shape_cast %376 : vector<1x1x128xf32> to vector<1x128xf32>
    %378 = vector.broadcast %377 : vector<1x128xf32> to vector<8x128xf32>
    %379 = arith.mulf %375, %378 : vector<8x128xf32>
    %c3_267 = arith.constant 3 : index
    %c3_268 = arith.constant 3 : index
    %c0_269 = arith.constant 0 : index
    %c0_270 = arith.constant 0 : index
    %380 = vector.load %arg5[%c3_267, %c3_268, %c0_269, %c0_270] : memref<10x9x8x8xf32, #tpu.memory_space<vmem>>, vector<1x1x8x8xf32>
    %381 = vector.shape_cast %380 : vector<1x1x8x8xf32> to vector<8x8xf32>
    %cst_271 = arith.constant dense<0.000000e+00> : vector<8x128xf32>
    %382 = tpu.matmul %381, %379, %cst_271 {dimension_numbers = #tpu.dot_dimension_numbers<[1], [0], [0], [1], [0, 0, 1, 1], [], []>} : vector<8x8xf32>, vector<8x128xf32>, vector<8x128xf32> -> vector<8x128xf32>
    %383 = arith.addf %372, %382 : vector<8x128xf32>
    %c4_272 = arith.constant 4 : index
    %c0_273 = arith.constant 0 : index
    %c0_274 = arith.constant 0 : index
    %384 = vector.load %arg4[%c4_272, %c0_273, %c0_274] : memref<9x1x128xf32, #tpu.memory_space<vmem>>, vector<1x1x128xf32>
    %385 = vector.shape_cast %384 : vector<1x1x128xf32> to vector<1x128xf32>
    %386 = vector.broadcast %385 : vector<1x128xf32> to vector<8x128xf32>
    %387 = arith.mulf %340, %386 : vector<8x128xf32>
    %c3_275 = arith.constant 3 : index
    %c4_276 = arith.constant 4 : index
    %c0_277 = arith.constant 0 : index
    %c0_278 = arith.constant 0 : index
    %388 = vector.load %arg5[%c3_275, %c4_276, %c0_277, %c0_278] : memref<10x9x8x8xf32, #tpu.memory_space<vmem>>, vector<1x1x8x8xf32>
    %389 = vector.shape_cast %388 : vector<1x1x8x8xf32> to vector<8x8xf32>
    %cst_279 = arith.constant dense<0.000000e+00> : vector<8x128xf32>
    %390 = tpu.matmul %389, %387, %cst_279 {dimension_numbers = #tpu.dot_dimension_numbers<[1], [0], [0], [1], [0, 0, 1, 1], [], []>} : vector<8x8xf32>, vector<8x128xf32>, vector<8x128xf32> -> vector<8x128xf32>
    %391 = arith.addf %383, %390 : vector<8x128xf32>
    %392 = vector.extract_strided_slice %340 {offsets = [0, 1], sizes = [8, 127], strides = [1, 1]} : vector<8x128xf32> to vector<8x127xf32>
    %393 = vector.extract_strided_slice %340 {offsets = [0, 0], sizes = [8, 1], strides = [1, 1]} : vector<8x128xf32> to vector<8x1xf32>
    %394 = tpu.concatenate %392, %393 in 1 : vector<8x127xf32>, vector<8x1xf32> -> vector<8x128xf32>
    %c5_280 = arith.constant 5 : index
    %c0_281 = arith.constant 0 : index
    %c0_282 = arith.constant 0 : index
    %395 = vector.load %arg4[%c5_280, %c0_281, %c0_282] : memref<9x1x128xf32, #tpu.memory_space<vmem>>, vector<1x1x128xf32>
    %396 = vector.shape_cast %395 : vector<1x1x128xf32> to vector<1x128xf32>
    %397 = vector.broadcast %396 : vector<1x128xf32> to vector<8x128xf32>
    %398 = arith.mulf %394, %397 : vector<8x128xf32>
    %c3_283 = arith.constant 3 : index
    %c5_284 = arith.constant 5 : index
    %c0_285 = arith.constant 0 : index
    %c0_286 = arith.constant 0 : index
    %399 = vector.load %arg5[%c3_283, %c5_284, %c0_285, %c0_286] : memref<10x9x8x8xf32, #tpu.memory_space<vmem>>, vector<1x1x8x8xf32>
    %400 = vector.shape_cast %399 : vector<1x1x8x8xf32> to vector<8x8xf32>
    %cst_287 = arith.constant dense<0.000000e+00> : vector<8x128xf32>
    %401 = tpu.matmul %400, %398, %cst_287 {dimension_numbers = #tpu.dot_dimension_numbers<[1], [0], [0], [1], [0, 0, 1, 1], [], []>} : vector<8x8xf32>, vector<8x128xf32>, vector<8x128xf32> -> vector<8x128xf32>
    %402 = arith.addf %391, %401 : vector<8x128xf32>
    %403 = vector.extract_strided_slice %340 {offsets = [0, 7], sizes = [8, 121], strides = [1, 1]} : vector<8x128xf32> to vector<8x121xf32>
    %404 = vector.extract_strided_slice %340 {offsets = [0, 0], sizes = [8, 7], strides = [1, 1]} : vector<8x128xf32> to vector<8x7xf32>
    %405 = tpu.concatenate %403, %404 in 1 : vector<8x121xf32>, vector<8x7xf32> -> vector<8x128xf32>
    %c6_288 = arith.constant 6 : index
    %c0_289 = arith.constant 0 : index
    %c0_290 = arith.constant 0 : index
    %406 = vector.load %arg4[%c6_288, %c0_289, %c0_290] : memref<9x1x128xf32, #tpu.memory_space<vmem>>, vector<1x1x128xf32>
    %407 = vector.shape_cast %406 : vector<1x1x128xf32> to vector<1x128xf32>
    %408 = vector.broadcast %407 : vector<1x128xf32> to vector<8x128xf32>
    %409 = arith.mulf %405, %408 : vector<8x128xf32>
    %c3_291 = arith.constant 3 : index
    %c6_292 = arith.constant 6 : index
    %c0_293 = arith.constant 0 : index
    %c0_294 = arith.constant 0 : index
    %410 = vector.load %arg5[%c3_291, %c6_292, %c0_293, %c0_294] : memref<10x9x8x8xf32, #tpu.memory_space<vmem>>, vector<1x1x8x8xf32>
    %411 = vector.shape_cast %410 : vector<1x1x8x8xf32> to vector<8x8xf32>
    %cst_295 = arith.constant dense<0.000000e+00> : vector<8x128xf32>
    %412 = tpu.matmul %411, %409, %cst_295 {dimension_numbers = #tpu.dot_dimension_numbers<[1], [0], [0], [1], [0, 0, 1, 1], [], []>} : vector<8x8xf32>, vector<8x128xf32>, vector<8x128xf32> -> vector<8x128xf32>
    %413 = arith.addf %402, %412 : vector<8x128xf32>
    %414 = vector.extract_strided_slice %340 {offsets = [0, 8], sizes = [8, 120], strides = [1, 1]} : vector<8x128xf32> to vector<8x120xf32>
    %415 = vector.extract_strided_slice %340 {offsets = [0, 0], sizes = [8, 8], strides = [1, 1]} : vector<8x128xf32> to vector<8x8xf32>
    %416 = tpu.concatenate %414, %415 in 1 : vector<8x120xf32>, vector<8x8xf32> -> vector<8x128xf32>
    %c7_296 = arith.constant 7 : index
    %c0_297 = arith.constant 0 : index
    %c0_298 = arith.constant 0 : index
    %417 = vector.load %arg4[%c7_296, %c0_297, %c0_298] : memref<9x1x128xf32, #tpu.memory_space<vmem>>, vector<1x1x128xf32>
    %418 = vector.shape_cast %417 : vector<1x1x128xf32> to vector<1x128xf32>
    %419 = vector.broadcast %418 : vector<1x128xf32> to vector<8x128xf32>
    %420 = arith.mulf %416, %419 : vector<8x128xf32>
    %c3_299 = arith.constant 3 : index
    %c7_300 = arith.constant 7 : index
    %c0_301 = arith.constant 0 : index
    %c0_302 = arith.constant 0 : index
    %421 = vector.load %arg5[%c3_299, %c7_300, %c0_301, %c0_302] : memref<10x9x8x8xf32, #tpu.memory_space<vmem>>, vector<1x1x8x8xf32>
    %422 = vector.shape_cast %421 : vector<1x1x8x8xf32> to vector<8x8xf32>
    %cst_303 = arith.constant dense<0.000000e+00> : vector<8x128xf32>
    %423 = tpu.matmul %422, %420, %cst_303 {dimension_numbers = #tpu.dot_dimension_numbers<[1], [0], [0], [1], [0, 0, 1, 1], [], []>} : vector<8x8xf32>, vector<8x128xf32>, vector<8x128xf32> -> vector<8x128xf32>
    %424 = arith.addf %413, %423 : vector<8x128xf32>
    %425 = vector.extract_strided_slice %340 {offsets = [0, 9], sizes = [8, 119], strides = [1, 1]} : vector<8x128xf32> to vector<8x119xf32>
    %426 = vector.extract_strided_slice %340 {offsets = [0, 0], sizes = [8, 9], strides = [1, 1]} : vector<8x128xf32> to vector<8x9xf32>
    %427 = tpu.concatenate %425, %426 in 1 : vector<8x119xf32>, vector<8x9xf32> -> vector<8x128xf32>
    %c8_304 = arith.constant 8 : index
    %c0_305 = arith.constant 0 : index
    %c0_306 = arith.constant 0 : index
    %428 = vector.load %arg4[%c8_304, %c0_305, %c0_306] : memref<9x1x128xf32, #tpu.memory_space<vmem>>, vector<1x1x128xf32>
    %429 = vector.shape_cast %428 : vector<1x1x128xf32> to vector<1x128xf32>
    %430 = vector.broadcast %429 : vector<1x128xf32> to vector<8x128xf32>
    %431 = arith.mulf %427, %430 : vector<8x128xf32>
    %c3_307 = arith.constant 3 : index
    %c8_308 = arith.constant 8 : index
    %c0_309 = arith.constant 0 : index
    %c0_310 = arith.constant 0 : index
    %432 = vector.load %arg5[%c3_307, %c8_308, %c0_309, %c0_310] : memref<10x9x8x8xf32, #tpu.memory_space<vmem>>, vector<1x1x8x8xf32>
    %433 = vector.shape_cast %432 : vector<1x1x8x8xf32> to vector<8x8xf32>
    %cst_311 = arith.constant dense<0.000000e+00> : vector<8x128xf32>
    %434 = tpu.matmul %433, %431, %cst_311 {dimension_numbers = #tpu.dot_dimension_numbers<[1], [0], [0], [1], [0, 0, 1, 1], [], []>} : vector<8x8xf32>, vector<8x128xf32>, vector<8x128xf32> -> vector<8x128xf32>
    %435 = arith.addf %424, %434 : vector<8x128xf32>
    %cst_312 = arith.constant dense<0.000000e+00> : vector<8xf32>
    %436 = vector.multi_reduction <add>, %435, %cst_312 [1] : vector<8x128xf32> to vector<8xf32>
    %437 = vector.shape_cast %436 : vector<8xf32> to vector<8x1xf32>
    %cst_313 = arith.constant 7.812500e-03 : f32
    %438 = vector.broadcast %cst_313 : f32 to vector<8x1xf32>
    %439 = arith.mulf %437, %438 : vector<8x1xf32>
    %440 = vector.broadcast %439 : vector<8x1xf32> to vector<8x128xf32>
    %441 = arith.subf %435, %440 : vector<8x128xf32>
    %442 = arith.mulf %441, %441 : vector<8x128xf32>
    %cst_314 = arith.constant dense<0.000000e+00> : vector<8xf32>
    %443 = vector.multi_reduction <add>, %442, %cst_314 [1] : vector<8x128xf32> to vector<8xf32>
    %444 = vector.shape_cast %443 : vector<8xf32> to vector<8x1xf32>
    %cst_315 = arith.constant 7.812500e-03 : f32
    %445 = vector.broadcast %cst_315 : f32 to vector<8x1xf32>
    %446 = arith.mulf %444, %445 : vector<8x1xf32>
    %c2_316 = arith.constant 2 : index
    %c0_317 = arith.constant 0 : index
    %c0_318 = arith.constant 0 : index
    %c0_319 = arith.constant 0 : index
    %447 = vector.load %arg6[%c2_316, %c0_317, %c0_318, %c0_319] : memref<9x2x8x1xf32, #tpu.memory_space<vmem>>, vector<1x1x8x1xf32>
    %448 = vector.shape_cast %447 : vector<1x1x8x1xf32> to vector<8x1xf32>
    %cst_320 = arith.constant 9.99999974E-6 : f32
    %449 = vector.broadcast %cst_320 : f32 to vector<8x1xf32>
    %450 = arith.addf %446, %449 : vector<8x1xf32>
    %451 = math.rsqrt %450 : vector<8x1xf32>
    %452 = arith.mulf %448, %451 : vector<8x1xf32>
    %453 = vector.broadcast %452 : vector<8x1xf32> to vector<8x128xf32>
    %454 = arith.mulf %441, %453 : vector<8x128xf32>
    %c2_321 = arith.constant 2 : index
    %c1_322 = arith.constant 1 : index
    %c0_323 = arith.constant 0 : index
    %c0_324 = arith.constant 0 : index
    %455 = vector.load %arg6[%c2_321, %c1_322, %c0_323, %c0_324] : memref<9x2x8x1xf32, #tpu.memory_space<vmem>>, vector<1x1x8x1xf32>
    %456 = vector.shape_cast %455 : vector<1x1x8x1xf32> to vector<8x1xf32>
    %457 = vector.broadcast %456 : vector<8x1xf32> to vector<8x128xf32>
    %458 = arith.addf %454, %457 : vector<8x128xf32>
    %cst_325 = arith.constant 0.000000e+00 : f32
    %459 = vector.broadcast %cst_325 : f32 to vector<8x128xf32>
    %460 = arith.maximumf %458, %459 : vector<8x128xf32>
    %461 = vector.extract_strided_slice %460 {offsets = [0, 119], sizes = [8, 9], strides = [1, 1]} : vector<8x128xf32> to vector<8x9xf32>
    %462 = vector.extract_strided_slice %460 {offsets = [0, 0], sizes = [8, 119], strides = [1, 1]} : vector<8x128xf32> to vector<8x119xf32>
    %463 = tpu.concatenate %461, %462 in 1 : vector<8x9xf32>, vector<8x119xf32> -> vector<8x128xf32>
    %c0_326 = arith.constant 0 : index
    %c0_327 = arith.constant 0 : index
    %c0_328 = arith.constant 0 : index
    %464 = vector.load %arg4[%c0_326, %c0_327, %c0_328] : memref<9x1x128xf32, #tpu.memory_space<vmem>>, vector<1x1x128xf32>
    %465 = vector.shape_cast %464 : vector<1x1x128xf32> to vector<1x128xf32>
    %466 = vector.broadcast %465 : vector<1x128xf32> to vector<8x128xf32>
    %467 = arith.mulf %463, %466 : vector<8x128xf32>
    %c4_329 = arith.constant 4 : index
    %c0_330 = arith.constant 0 : index
    %c0_331 = arith.constant 0 : index
    %c0_332 = arith.constant 0 : index
    %468 = vector.load %arg5[%c4_329, %c0_330, %c0_331, %c0_332] : memref<10x9x8x8xf32, #tpu.memory_space<vmem>>, vector<1x1x8x8xf32>
    %469 = vector.shape_cast %468 : vector<1x1x8x8xf32> to vector<8x8xf32>
    %cst_333 = arith.constant dense<0.000000e+00> : vector<8x128xf32>
    %470 = tpu.matmul %469, %467, %cst_333 {dimension_numbers = #tpu.dot_dimension_numbers<[1], [0], [0], [1], [0, 0, 1, 1], [], []>} : vector<8x8xf32>, vector<8x128xf32>, vector<8x128xf32> -> vector<8x128xf32>
    %471 = vector.extract_strided_slice %460 {offsets = [0, 120], sizes = [8, 8], strides = [1, 1]} : vector<8x128xf32> to vector<8x8xf32>
    %472 = vector.extract_strided_slice %460 {offsets = [0, 0], sizes = [8, 120], strides = [1, 1]} : vector<8x128xf32> to vector<8x120xf32>
    %473 = tpu.concatenate %471, %472 in 1 : vector<8x8xf32>, vector<8x120xf32> -> vector<8x128xf32>
    %c1_334 = arith.constant 1 : index
    %c0_335 = arith.constant 0 : index
    %c0_336 = arith.constant 0 : index
    %474 = vector.load %arg4[%c1_334, %c0_335, %c0_336] : memref<9x1x128xf32, #tpu.memory_space<vmem>>, vector<1x1x128xf32>
    %475 = vector.shape_cast %474 : vector<1x1x128xf32> to vector<1x128xf32>
    %476 = vector.broadcast %475 : vector<1x128xf32> to vector<8x128xf32>
    %477 = arith.mulf %473, %476 : vector<8x128xf32>
    %c4_337 = arith.constant 4 : index
    %c1_338 = arith.constant 1 : index
    %c0_339 = arith.constant 0 : index
    %c0_340 = arith.constant 0 : index
    %478 = vector.load %arg5[%c4_337, %c1_338, %c0_339, %c0_340] : memref<10x9x8x8xf32, #tpu.memory_space<vmem>>, vector<1x1x8x8xf32>
    %479 = vector.shape_cast %478 : vector<1x1x8x8xf32> to vector<8x8xf32>
    %cst_341 = arith.constant dense<0.000000e+00> : vector<8x128xf32>
    %480 = tpu.matmul %479, %477, %cst_341 {dimension_numbers = #tpu.dot_dimension_numbers<[1], [0], [0], [1], [0, 0, 1, 1], [], []>} : vector<8x8xf32>, vector<8x128xf32>, vector<8x128xf32> -> vector<8x128xf32>
    %481 = arith.addf %470, %480 : vector<8x128xf32>
    %482 = vector.extract_strided_slice %460 {offsets = [0, 121], sizes = [8, 7], strides = [1, 1]} : vector<8x128xf32> to vector<8x7xf32>
    %483 = vector.extract_strided_slice %460 {offsets = [0, 0], sizes = [8, 121], strides = [1, 1]} : vector<8x128xf32> to vector<8x121xf32>
    %484 = tpu.concatenate %482, %483 in 1 : vector<8x7xf32>, vector<8x121xf32> -> vector<8x128xf32>
    %c2_342 = arith.constant 2 : index
    %c0_343 = arith.constant 0 : index
    %c0_344 = arith.constant 0 : index
    %485 = vector.load %arg4[%c2_342, %c0_343, %c0_344] : memref<9x1x128xf32, #tpu.memory_space<vmem>>, vector<1x1x128xf32>
    %486 = vector.shape_cast %485 : vector<1x1x128xf32> to vector<1x128xf32>
    %487 = vector.broadcast %486 : vector<1x128xf32> to vector<8x128xf32>
    %488 = arith.mulf %484, %487 : vector<8x128xf32>
    %c4_345 = arith.constant 4 : index
    %c2_346 = arith.constant 2 : index
    %c0_347 = arith.constant 0 : index
    %c0_348 = arith.constant 0 : index
    %489 = vector.load %arg5[%c4_345, %c2_346, %c0_347, %c0_348] : memref<10x9x8x8xf32, #tpu.memory_space<vmem>>, vector<1x1x8x8xf32>
    %490 = vector.shape_cast %489 : vector<1x1x8x8xf32> to vector<8x8xf32>
    %cst_349 = arith.constant dense<0.000000e+00> : vector<8x128xf32>
    %491 = tpu.matmul %490, %488, %cst_349 {dimension_numbers = #tpu.dot_dimension_numbers<[1], [0], [0], [1], [0, 0, 1, 1], [], []>} : vector<8x8xf32>, vector<8x128xf32>, vector<8x128xf32> -> vector<8x128xf32>
    %492 = arith.addf %481, %491 : vector<8x128xf32>
    %493 = vector.extract_strided_slice %460 {offsets = [0, 127], sizes = [8, 1], strides = [1, 1]} : vector<8x128xf32> to vector<8x1xf32>
    %494 = vector.extract_strided_slice %460 {offsets = [0, 0], sizes = [8, 127], strides = [1, 1]} : vector<8x128xf32> to vector<8x127xf32>
    %495 = tpu.concatenate %493, %494 in 1 : vector<8x1xf32>, vector<8x127xf32> -> vector<8x128xf32>
    %c3_350 = arith.constant 3 : index
    %c0_351 = arith.constant 0 : index
    %c0_352 = arith.constant 0 : index
    %496 = vector.load %arg4[%c3_350, %c0_351, %c0_352] : memref<9x1x128xf32, #tpu.memory_space<vmem>>, vector<1x1x128xf32>
    %497 = vector.shape_cast %496 : vector<1x1x128xf32> to vector<1x128xf32>
    %498 = vector.broadcast %497 : vector<1x128xf32> to vector<8x128xf32>
    %499 = arith.mulf %495, %498 : vector<8x128xf32>
    %c4_353 = arith.constant 4 : index
    %c3_354 = arith.constant 3 : index
    %c0_355 = arith.constant 0 : index
    %c0_356 = arith.constant 0 : index
    %500 = vector.load %arg5[%c4_353, %c3_354, %c0_355, %c0_356] : memref<10x9x8x8xf32, #tpu.memory_space<vmem>>, vector<1x1x8x8xf32>
    %501 = vector.shape_cast %500 : vector<1x1x8x8xf32> to vector<8x8xf32>
    %cst_357 = arith.constant dense<0.000000e+00> : vector<8x128xf32>
    %502 = tpu.matmul %501, %499, %cst_357 {dimension_numbers = #tpu.dot_dimension_numbers<[1], [0], [0], [1], [0, 0, 1, 1], [], []>} : vector<8x8xf32>, vector<8x128xf32>, vector<8x128xf32> -> vector<8x128xf32>
    %503 = arith.addf %492, %502 : vector<8x128xf32>
    %c4_358 = arith.constant 4 : index
    %c0_359 = arith.constant 0 : index
    %c0_360 = arith.constant 0 : index
    %504 = vector.load %arg4[%c4_358, %c0_359, %c0_360] : memref<9x1x128xf32, #tpu.memory_space<vmem>>, vector<1x1x128xf32>
    %505 = vector.shape_cast %504 : vector<1x1x128xf32> to vector<1x128xf32>
    %506 = vector.broadcast %505 : vector<1x128xf32> to vector<8x128xf32>
    %507 = arith.mulf %460, %506 : vector<8x128xf32>
    %c4_361 = arith.constant 4 : index
    %c4_362 = arith.constant 4 : index
    %c0_363 = arith.constant 0 : index
    %c0_364 = arith.constant 0 : index
    %508 = vector.load %arg5[%c4_361, %c4_362, %c0_363, %c0_364] : memref<10x9x8x8xf32, #tpu.memory_space<vmem>>, vector<1x1x8x8xf32>
    %509 = vector.shape_cast %508 : vector<1x1x8x8xf32> to vector<8x8xf32>
    %cst_365 = arith.constant dense<0.000000e+00> : vector<8x128xf32>
    %510 = tpu.matmul %509, %507, %cst_365 {dimension_numbers = #tpu.dot_dimension_numbers<[1], [0], [0], [1], [0, 0, 1, 1], [], []>} : vector<8x8xf32>, vector<8x128xf32>, vector<8x128xf32> -> vector<8x128xf32>
    %511 = arith.addf %503, %510 : vector<8x128xf32>
    %512 = vector.extract_strided_slice %460 {offsets = [0, 1], sizes = [8, 127], strides = [1, 1]} : vector<8x128xf32> to vector<8x127xf32>
    %513 = vector.extract_strided_slice %460 {offsets = [0, 0], sizes = [8, 1], strides = [1, 1]} : vector<8x128xf32> to vector<8x1xf32>
    %514 = tpu.concatenate %512, %513 in 1 : vector<8x127xf32>, vector<8x1xf32> -> vector<8x128xf32>
    %c5_366 = arith.constant 5 : index
    %c0_367 = arith.constant 0 : index
    %c0_368 = arith.constant 0 : index
    %515 = vector.load %arg4[%c5_366, %c0_367, %c0_368] : memref<9x1x128xf32, #tpu.memory_space<vmem>>, vector<1x1x128xf32>
    %516 = vector.shape_cast %515 : vector<1x1x128xf32> to vector<1x128xf32>
    %517 = vector.broadcast %516 : vector<1x128xf32> to vector<8x128xf32>
    %518 = arith.mulf %514, %517 : vector<8x128xf32>
    %c4_369 = arith.constant 4 : index
    %c5_370 = arith.constant 5 : index
    %c0_371 = arith.constant 0 : index
    %c0_372 = arith.constant 0 : index
    %519 = vector.load %arg5[%c4_369, %c5_370, %c0_371, %c0_372] : memref<10x9x8x8xf32, #tpu.memory_space<vmem>>, vector<1x1x8x8xf32>
    %520 = vector.shape_cast %519 : vector<1x1x8x8xf32> to vector<8x8xf32>
    %cst_373 = arith.constant dense<0.000000e+00> : vector<8x128xf32>
    %521 = tpu.matmul %520, %518, %cst_373 {dimension_numbers = #tpu.dot_dimension_numbers<[1], [0], [0], [1], [0, 0, 1, 1], [], []>} : vector<8x8xf32>, vector<8x128xf32>, vector<8x128xf32> -> vector<8x128xf32>
    %522 = arith.addf %511, %521 : vector<8x128xf32>
    %523 = vector.extract_strided_slice %460 {offsets = [0, 7], sizes = [8, 121], strides = [1, 1]} : vector<8x128xf32> to vector<8x121xf32>
    %524 = vector.extract_strided_slice %460 {offsets = [0, 0], sizes = [8, 7], strides = [1, 1]} : vector<8x128xf32> to vector<8x7xf32>
    %525 = tpu.concatenate %523, %524 in 1 : vector<8x121xf32>, vector<8x7xf32> -> vector<8x128xf32>
    %c6_374 = arith.constant 6 : index
    %c0_375 = arith.constant 0 : index
    %c0_376 = arith.constant 0 : index
    %526 = vector.load %arg4[%c6_374, %c0_375, %c0_376] : memref<9x1x128xf32, #tpu.memory_space<vmem>>, vector<1x1x128xf32>
    %527 = vector.shape_cast %526 : vector<1x1x128xf32> to vector<1x128xf32>
    %528 = vector.broadcast %527 : vector<1x128xf32> to vector<8x128xf32>
    %529 = arith.mulf %525, %528 : vector<8x128xf32>
    %c4_377 = arith.constant 4 : index
    %c6_378 = arith.constant 6 : index
    %c0_379 = arith.constant 0 : index
    %c0_380 = arith.constant 0 : index
    %530 = vector.load %arg5[%c4_377, %c6_378, %c0_379, %c0_380] : memref<10x9x8x8xf32, #tpu.memory_space<vmem>>, vector<1x1x8x8xf32>
    %531 = vector.shape_cast %530 : vector<1x1x8x8xf32> to vector<8x8xf32>
    %cst_381 = arith.constant dense<0.000000e+00> : vector<8x128xf32>
    %532 = tpu.matmul %531, %529, %cst_381 {dimension_numbers = #tpu.dot_dimension_numbers<[1], [0], [0], [1], [0, 0, 1, 1], [], []>} : vector<8x8xf32>, vector<8x128xf32>, vector<8x128xf32> -> vector<8x128xf32>
    %533 = arith.addf %522, %532 : vector<8x128xf32>
    %534 = vector.extract_strided_slice %460 {offsets = [0, 8], sizes = [8, 120], strides = [1, 1]} : vector<8x128xf32> to vector<8x120xf32>
    %535 = vector.extract_strided_slice %460 {offsets = [0, 0], sizes = [8, 8], strides = [1, 1]} : vector<8x128xf32> to vector<8x8xf32>
    %536 = tpu.concatenate %534, %535 in 1 : vector<8x120xf32>, vector<8x8xf32> -> vector<8x128xf32>
    %c7_382 = arith.constant 7 : index
    %c0_383 = arith.constant 0 : index
    %c0_384 = arith.constant 0 : index
    %537 = vector.load %arg4[%c7_382, %c0_383, %c0_384] : memref<9x1x128xf32, #tpu.memory_space<vmem>>, vector<1x1x128xf32>
    %538 = vector.shape_cast %537 : vector<1x1x128xf32> to vector<1x128xf32>
    %539 = vector.broadcast %538 : vector<1x128xf32> to vector<8x128xf32>
    %540 = arith.mulf %536, %539 : vector<8x128xf32>
    %c4_385 = arith.constant 4 : index
    %c7_386 = arith.constant 7 : index
    %c0_387 = arith.constant 0 : index
    %c0_388 = arith.constant 0 : index
    %541 = vector.load %arg5[%c4_385, %c7_386, %c0_387, %c0_388] : memref<10x9x8x8xf32, #tpu.memory_space<vmem>>, vector<1x1x8x8xf32>
    %542 = vector.shape_cast %541 : vector<1x1x8x8xf32> to vector<8x8xf32>
    %cst_389 = arith.constant dense<0.000000e+00> : vector<8x128xf32>
    %543 = tpu.matmul %542, %540, %cst_389 {dimension_numbers = #tpu.dot_dimension_numbers<[1], [0], [0], [1], [0, 0, 1, 1], [], []>} : vector<8x8xf32>, vector<8x128xf32>, vector<8x128xf32> -> vector<8x128xf32>
    %544 = arith.addf %533, %543 : vector<8x128xf32>
    %545 = vector.extract_strided_slice %460 {offsets = [0, 9], sizes = [8, 119], strides = [1, 1]} : vector<8x128xf32> to vector<8x119xf32>
    %546 = vector.extract_strided_slice %460 {offsets = [0, 0], sizes = [8, 9], strides = [1, 1]} : vector<8x128xf32> to vector<8x9xf32>
    %547 = tpu.concatenate %545, %546 in 1 : vector<8x119xf32>, vector<8x9xf32> -> vector<8x128xf32>
    %c8_390 = arith.constant 8 : index
    %c0_391 = arith.constant 0 : index
    %c0_392 = arith.constant 0 : index
    %548 = vector.load %arg4[%c8_390, %c0_391, %c0_392] : memref<9x1x128xf32, #tpu.memory_space<vmem>>, vector<1x1x128xf32>
    %549 = vector.shape_cast %548 : vector<1x1x128xf32> to vector<1x128xf32>
    %550 = vector.broadcast %549 : vector<1x128xf32> to vector<8x128xf32>
    %551 = arith.mulf %547, %550 : vector<8x128xf32>
    %c4_393 = arith.constant 4 : index
    %c8_394 = arith.constant 8 : index
    %c0_395 = arith.constant 0 : index
    %c0_396 = arith.constant 0 : index
    %552 = vector.load %arg5[%c4_393, %c8_394, %c0_395, %c0_396] : memref<10x9x8x8xf32, #tpu.memory_space<vmem>>, vector<1x1x8x8xf32>
    %553 = vector.shape_cast %552 : vector<1x1x8x8xf32> to vector<8x8xf32>
    %cst_397 = arith.constant dense<0.000000e+00> : vector<8x128xf32>
    %554 = tpu.matmul %553, %551, %cst_397 {dimension_numbers = #tpu.dot_dimension_numbers<[1], [0], [0], [1], [0, 0, 1, 1], [], []>} : vector<8x8xf32>, vector<8x128xf32>, vector<8x128xf32> -> vector<8x128xf32>
    %555 = arith.addf %544, %554 : vector<8x128xf32>
    %cst_398 = arith.constant dense<0.000000e+00> : vector<8xf32>
    %556 = vector.multi_reduction <add>, %555, %cst_398 [1] : vector<8x128xf32> to vector<8xf32>
    %557 = vector.shape_cast %556 : vector<8xf32> to vector<8x1xf32>
    %cst_399 = arith.constant 7.812500e-03 : f32
    %558 = vector.broadcast %cst_399 : f32 to vector<8x1xf32>
    %559 = arith.mulf %557, %558 : vector<8x1xf32>
    %560 = vector.broadcast %559 : vector<8x1xf32> to vector<8x128xf32>
    %561 = arith.subf %555, %560 : vector<8x128xf32>
    %562 = arith.mulf %561, %561 : vector<8x128xf32>
    %cst_400 = arith.constant dense<0.000000e+00> : vector<8xf32>
    %563 = vector.multi_reduction <add>, %562, %cst_400 [1] : vector<8x128xf32> to vector<8xf32>
    %564 = vector.shape_cast %563 : vector<8xf32> to vector<8x1xf32>
    %cst_401 = arith.constant 7.812500e-03 : f32
    %565 = vector.broadcast %cst_401 : f32 to vector<8x1xf32>
    %566 = arith.mulf %564, %565 : vector<8x1xf32>
    %c3_402 = arith.constant 3 : index
    %c0_403 = arith.constant 0 : index
    %c0_404 = arith.constant 0 : index
    %c0_405 = arith.constant 0 : index
    %567 = vector.load %arg6[%c3_402, %c0_403, %c0_404, %c0_405] : memref<9x2x8x1xf32, #tpu.memory_space<vmem>>, vector<1x1x8x1xf32>
    %568 = vector.shape_cast %567 : vector<1x1x8x1xf32> to vector<8x1xf32>
    %cst_406 = arith.constant 9.99999974E-6 : f32
    %569 = vector.broadcast %cst_406 : f32 to vector<8x1xf32>
    %570 = arith.addf %566, %569 : vector<8x1xf32>
    %571 = math.rsqrt %570 : vector<8x1xf32>
    %572 = arith.mulf %568, %571 : vector<8x1xf32>
    %573 = vector.broadcast %572 : vector<8x1xf32> to vector<8x128xf32>
    %574 = arith.mulf %561, %573 : vector<8x128xf32>
    %c3_407 = arith.constant 3 : index
    %c1_408 = arith.constant 1 : index
    %c0_409 = arith.constant 0 : index
    %c0_410 = arith.constant 0 : index
    %575 = vector.load %arg6[%c3_407, %c1_408, %c0_409, %c0_410] : memref<9x2x8x1xf32, #tpu.memory_space<vmem>>, vector<1x1x8x1xf32>
    %576 = vector.shape_cast %575 : vector<1x1x8x1xf32> to vector<8x1xf32>
    %577 = vector.broadcast %576 : vector<8x1xf32> to vector<8x128xf32>
    %578 = arith.addf %574, %577 : vector<8x128xf32>
    %579 = arith.addf %578, %340 : vector<8x128xf32>
    %cst_411 = arith.constant 0.000000e+00 : f32
    %580 = vector.broadcast %cst_411 : f32 to vector<8x128xf32>
    %581 = arith.maximumf %579, %580 : vector<8x128xf32>
    %c0_412 = arith.constant 0 : index
    %c0_413 = arith.constant 0 : index
    %582 = vector.load %arg2[%c0_412, %c0_413] : memref<128x512xf32, #tpu.memory_space<vmem>>, vector<128x512xf32>
    %cst_414 = arith.constant dense<0.000000e+00> : vector<8x512xf32>
    %583 = tpu.matmul %581, %582, %cst_414 {dimension_numbers = #tpu.dot_dimension_numbers<[1], [0], [0], [1], [0, 0, 1, 1], [], []>} : vector<8x128xf32>, vector<128x512xf32>, vector<8x512xf32> -> vector<8x512xf32>
    %584 = vector.extract_strided_slice %583 {offsets = [0, 495], sizes = [8, 17], strides = [1, 1]} : vector<8x512xf32> to vector<8x17xf32>
    %585 = vector.extract_strided_slice %583 {offsets = [0, 0], sizes = [8, 495], strides = [1, 1]} : vector<8x512xf32> to vector<8x495xf32>
    %586 = tpu.concatenate %584, %585 in 1 : vector<8x17xf32>, vector<8x495xf32> -> vector<8x512xf32>
    %c0_415 = arith.constant 0 : index
    %c0_416 = arith.constant 0 : index
    %c0_417 = arith.constant 0 : index
    %587 = vector.load %arg3[%c0_415, %c0_416, %c0_417] : memref<9x1x512xf32, #tpu.memory_space<vmem>>, vector<1x1x512xf32>
    %588 = vector.shape_cast %587 : vector<1x1x512xf32> to vector<1x512xf32>
    %589 = vector.broadcast %588 : vector<1x512xf32> to vector<8x512xf32>
    %590 = arith.mulf %586, %589 : vector<8x512xf32>
    %c5_418 = arith.constant 5 : index
    %c0_419 = arith.constant 0 : index
    %c0_420 = arith.constant 0 : index
    %c0_421 = arith.constant 0 : index
    %591 = vector.load %arg5[%c5_418, %c0_419, %c0_420, %c0_421] : memref<10x9x8x8xf32, #tpu.memory_space<vmem>>, vector<1x1x8x8xf32>
    %592 = vector.shape_cast %591 : vector<1x1x8x8xf32> to vector<8x8xf32>
    %cst_422 = arith.constant dense<0.000000e+00> : vector<8x512xf32>
    %593 = tpu.matmul %592, %590, %cst_422 {dimension_numbers = #tpu.dot_dimension_numbers<[1], [0], [0], [1], [0, 0, 1, 1], [], []>} : vector<8x8xf32>, vector<8x512xf32>, vector<8x512xf32> -> vector<8x512xf32>
    %594 = vector.extract_strided_slice %583 {offsets = [0, 496], sizes = [8, 16], strides = [1, 1]} : vector<8x512xf32> to vector<8x16xf32>
    %595 = vector.extract_strided_slice %583 {offsets = [0, 0], sizes = [8, 496], strides = [1, 1]} : vector<8x512xf32> to vector<8x496xf32>
    %596 = tpu.concatenate %594, %595 in 1 : vector<8x16xf32>, vector<8x496xf32> -> vector<8x512xf32>
    %c1_423 = arith.constant 1 : index
    %c0_424 = arith.constant 0 : index
    %c0_425 = arith.constant 0 : index
    %597 = vector.load %arg3[%c1_423, %c0_424, %c0_425] : memref<9x1x512xf32, #tpu.memory_space<vmem>>, vector<1x1x512xf32>
    %598 = vector.shape_cast %597 : vector<1x1x512xf32> to vector<1x512xf32>
    %599 = vector.broadcast %598 : vector<1x512xf32> to vector<8x512xf32>
    %600 = arith.mulf %596, %599 : vector<8x512xf32>
    %c5_426 = arith.constant 5 : index
    %c1_427 = arith.constant 1 : index
    %c0_428 = arith.constant 0 : index
    %c0_429 = arith.constant 0 : index
    %601 = vector.load %arg5[%c5_426, %c1_427, %c0_428, %c0_429] : memref<10x9x8x8xf32, #tpu.memory_space<vmem>>, vector<1x1x8x8xf32>
    %602 = vector.shape_cast %601 : vector<1x1x8x8xf32> to vector<8x8xf32>
    %cst_430 = arith.constant dense<0.000000e+00> : vector<8x512xf32>
    %603 = tpu.matmul %602, %600, %cst_430 {dimension_numbers = #tpu.dot_dimension_numbers<[1], [0], [0], [1], [0, 0, 1, 1], [], []>} : vector<8x8xf32>, vector<8x512xf32>, vector<8x512xf32> -> vector<8x512xf32>
    %604 = arith.addf %593, %603 : vector<8x512xf32>
    %605 = vector.extract_strided_slice %583 {offsets = [0, 497], sizes = [8, 15], strides = [1, 1]} : vector<8x512xf32> to vector<8x15xf32>
    %606 = vector.extract_strided_slice %583 {offsets = [0, 0], sizes = [8, 497], strides = [1, 1]} : vector<8x512xf32> to vector<8x497xf32>
    %607 = tpu.concatenate %605, %606 in 1 : vector<8x15xf32>, vector<8x497xf32> -> vector<8x512xf32>
    %c2_431 = arith.constant 2 : index
    %c0_432 = arith.constant 0 : index
    %c0_433 = arith.constant 0 : index
    %608 = vector.load %arg3[%c2_431, %c0_432, %c0_433] : memref<9x1x512xf32, #tpu.memory_space<vmem>>, vector<1x1x512xf32>
    %609 = vector.shape_cast %608 : vector<1x1x512xf32> to vector<1x512xf32>
    %610 = vector.broadcast %609 : vector<1x512xf32> to vector<8x512xf32>
    %611 = arith.mulf %607, %610 : vector<8x512xf32>
    %c5_434 = arith.constant 5 : index
    %c2_435 = arith.constant 2 : index
    %c0_436 = arith.constant 0 : index
    %c0_437 = arith.constant 0 : index
    %612 = vector.load %arg5[%c5_434, %c2_435, %c0_436, %c0_437] : memref<10x9x8x8xf32, #tpu.memory_space<vmem>>, vector<1x1x8x8xf32>
    %613 = vector.shape_cast %612 : vector<1x1x8x8xf32> to vector<8x8xf32>
    %cst_438 = arith.constant dense<0.000000e+00> : vector<8x512xf32>
    %614 = tpu.matmul %613, %611, %cst_438 {dimension_numbers = #tpu.dot_dimension_numbers<[1], [0], [0], [1], [0, 0, 1, 1], [], []>} : vector<8x8xf32>, vector<8x512xf32>, vector<8x512xf32> -> vector<8x512xf32>
    %615 = arith.addf %604, %614 : vector<8x512xf32>
    %616 = vector.extract_strided_slice %583 {offsets = [0, 511], sizes = [8, 1], strides = [1, 1]} : vector<8x512xf32> to vector<8x1xf32>
    %617 = vector.extract_strided_slice %583 {offsets = [0, 0], sizes = [8, 511], strides = [1, 1]} : vector<8x512xf32> to vector<8x511xf32>
    %618 = tpu.concatenate %616, %617 in 1 : vector<8x1xf32>, vector<8x511xf32> -> vector<8x512xf32>
    %c3_439 = arith.constant 3 : index
    %c0_440 = arith.constant 0 : index
    %c0_441 = arith.constant 0 : index
    %619 = vector.load %arg3[%c3_439, %c0_440, %c0_441] : memref<9x1x512xf32, #tpu.memory_space<vmem>>, vector<1x1x512xf32>
    %620 = vector.shape_cast %619 : vector<1x1x512xf32> to vector<1x512xf32>
    %621 = vector.broadcast %620 : vector<1x512xf32> to vector<8x512xf32>
    %622 = arith.mulf %618, %621 : vector<8x512xf32>
    %c5_442 = arith.constant 5 : index
    %c3_443 = arith.constant 3 : index
    %c0_444 = arith.constant 0 : index
    %c0_445 = arith.constant 0 : index
    %623 = vector.load %arg5[%c5_442, %c3_443, %c0_444, %c0_445] : memref<10x9x8x8xf32, #tpu.memory_space<vmem>>, vector<1x1x8x8xf32>
    %624 = vector.shape_cast %623 : vector<1x1x8x8xf32> to vector<8x8xf32>
    %cst_446 = arith.constant dense<0.000000e+00> : vector<8x512xf32>
    %625 = tpu.matmul %624, %622, %cst_446 {dimension_numbers = #tpu.dot_dimension_numbers<[1], [0], [0], [1], [0, 0, 1, 1], [], []>} : vector<8x8xf32>, vector<8x512xf32>, vector<8x512xf32> -> vector<8x512xf32>
    %626 = arith.addf %615, %625 : vector<8x512xf32>
    %c4_447 = arith.constant 4 : index
    %c0_448 = arith.constant 0 : index
    %c0_449 = arith.constant 0 : index
    %627 = vector.load %arg3[%c4_447, %c0_448, %c0_449] : memref<9x1x512xf32, #tpu.memory_space<vmem>>, vector<1x1x512xf32>
    %628 = vector.shape_cast %627 : vector<1x1x512xf32> to vector<1x512xf32>
    %629 = vector.broadcast %628 : vector<1x512xf32> to vector<8x512xf32>
    %630 = arith.mulf %583, %629 : vector<8x512xf32>
    %c5_450 = arith.constant 5 : index
    %c4_451 = arith.constant 4 : index
    %c0_452 = arith.constant 0 : index
    %c0_453 = arith.constant 0 : index
    %631 = vector.load %arg5[%c5_450, %c4_451, %c0_452, %c0_453] : memref<10x9x8x8xf32, #tpu.memory_space<vmem>>, vector<1x1x8x8xf32>
    %632 = vector.shape_cast %631 : vector<1x1x8x8xf32> to vector<8x8xf32>
    %cst_454 = arith.constant dense<0.000000e+00> : vector<8x512xf32>
    %633 = tpu.matmul %632, %630, %cst_454 {dimension_numbers = #tpu.dot_dimension_numbers<[1], [0], [0], [1], [0, 0, 1, 1], [], []>} : vector<8x8xf32>, vector<8x512xf32>, vector<8x512xf32> -> vector<8x512xf32>
    %634 = arith.addf %626, %633 : vector<8x512xf32>
    %635 = vector.extract_strided_slice %583 {offsets = [0, 1], sizes = [8, 511], strides = [1, 1]} : vector<8x512xf32> to vector<8x511xf32>
    %636 = vector.extract_strided_slice %583 {offsets = [0, 0], sizes = [8, 1], strides = [1, 1]} : vector<8x512xf32> to vector<8x1xf32>
    %637 = tpu.concatenate %635, %636 in 1 : vector<8x511xf32>, vector<8x1xf32> -> vector<8x512xf32>
    %c5_455 = arith.constant 5 : index
    %c0_456 = arith.constant 0 : index
    %c0_457 = arith.constant 0 : index
    %638 = vector.load %arg3[%c5_455, %c0_456, %c0_457] : memref<9x1x512xf32, #tpu.memory_space<vmem>>, vector<1x1x512xf32>
    %639 = vector.shape_cast %638 : vector<1x1x512xf32> to vector<1x512xf32>
    %640 = vector.broadcast %639 : vector<1x512xf32> to vector<8x512xf32>
    %641 = arith.mulf %637, %640 : vector<8x512xf32>
    %c5_458 = arith.constant 5 : index
    %c5_459 = arith.constant 5 : index
    %c0_460 = arith.constant 0 : index
    %c0_461 = arith.constant 0 : index
    %642 = vector.load %arg5[%c5_458, %c5_459, %c0_460, %c0_461] : memref<10x9x8x8xf32, #tpu.memory_space<vmem>>, vector<1x1x8x8xf32>
    %643 = vector.shape_cast %642 : vector<1x1x8x8xf32> to vector<8x8xf32>
    %cst_462 = arith.constant dense<0.000000e+00> : vector<8x512xf32>
    %644 = tpu.matmul %643, %641, %cst_462 {dimension_numbers = #tpu.dot_dimension_numbers<[1], [0], [0], [1], [0, 0, 1, 1], [], []>} : vector<8x8xf32>, vector<8x512xf32>, vector<8x512xf32> -> vector<8x512xf32>
    %645 = arith.addf %634, %644 : vector<8x512xf32>
    %646 = vector.extract_strided_slice %583 {offsets = [0, 15], sizes = [8, 497], strides = [1, 1]} : vector<8x512xf32> to vector<8x497xf32>
    %647 = vector.extract_strided_slice %583 {offsets = [0, 0], sizes = [8, 15], strides = [1, 1]} : vector<8x512xf32> to vector<8x15xf32>
    %648 = tpu.concatenate %646, %647 in 1 : vector<8x497xf32>, vector<8x15xf32> -> vector<8x512xf32>
    %c6_463 = arith.constant 6 : index
    %c0_464 = arith.constant 0 : index
    %c0_465 = arith.constant 0 : index
    %649 = vector.load %arg3[%c6_463, %c0_464, %c0_465] : memref<9x1x512xf32, #tpu.memory_space<vmem>>, vector<1x1x512xf32>
    %650 = vector.shape_cast %649 : vector<1x1x512xf32> to vector<1x512xf32>
    %651 = vector.broadcast %650 : vector<1x512xf32> to vector<8x512xf32>
    %652 = arith.mulf %648, %651 : vector<8x512xf32>
    %c5_466 = arith.constant 5 : index
    %c6_467 = arith.constant 6 : index
    %c0_468 = arith.constant 0 : index
    %c0_469 = arith.constant 0 : index
    %653 = vector.load %arg5[%c5_466, %c6_467, %c0_468, %c0_469] : memref<10x9x8x8xf32, #tpu.memory_space<vmem>>, vector<1x1x8x8xf32>
    %654 = vector.shape_cast %653 : vector<1x1x8x8xf32> to vector<8x8xf32>
    %cst_470 = arith.constant dense<0.000000e+00> : vector<8x512xf32>
    %655 = tpu.matmul %654, %652, %cst_470 {dimension_numbers = #tpu.dot_dimension_numbers<[1], [0], [0], [1], [0, 0, 1, 1], [], []>} : vector<8x8xf32>, vector<8x512xf32>, vector<8x512xf32> -> vector<8x512xf32>
    %656 = arith.addf %645, %655 : vector<8x512xf32>
    %657 = vector.extract_strided_slice %583 {offsets = [0, 16], sizes = [8, 496], strides = [1, 1]} : vector<8x512xf32> to vector<8x496xf32>
    %658 = vector.extract_strided_slice %583 {offsets = [0, 0], sizes = [8, 16], strides = [1, 1]} : vector<8x512xf32> to vector<8x16xf32>
    %659 = tpu.concatenate %657, %658 in 1 : vector<8x496xf32>, vector<8x16xf32> -> vector<8x512xf32>
    %c7_471 = arith.constant 7 : index
    %c0_472 = arith.constant 0 : index
    %c0_473 = arith.constant 0 : index
    %660 = vector.load %arg3[%c7_471, %c0_472, %c0_473] : memref<9x1x512xf32, #tpu.memory_space<vmem>>, vector<1x1x512xf32>
    %661 = vector.shape_cast %660 : vector<1x1x512xf32> to vector<1x512xf32>
    %662 = vector.broadcast %661 : vector<1x512xf32> to vector<8x512xf32>
    %663 = arith.mulf %659, %662 : vector<8x512xf32>
    %c5_474 = arith.constant 5 : index
    %c7_475 = arith.constant 7 : index
    %c0_476 = arith.constant 0 : index
    %c0_477 = arith.constant 0 : index
    %664 = vector.load %arg5[%c5_474, %c7_475, %c0_476, %c0_477] : memref<10x9x8x8xf32, #tpu.memory_space<vmem>>, vector<1x1x8x8xf32>
    %665 = vector.shape_cast %664 : vector<1x1x8x8xf32> to vector<8x8xf32>
    %cst_478 = arith.constant dense<0.000000e+00> : vector<8x512xf32>
    %666 = tpu.matmul %665, %663, %cst_478 {dimension_numbers = #tpu.dot_dimension_numbers<[1], [0], [0], [1], [0, 0, 1, 1], [], []>} : vector<8x8xf32>, vector<8x512xf32>, vector<8x512xf32> -> vector<8x512xf32>
    %667 = arith.addf %656, %666 : vector<8x512xf32>
    %668 = vector.extract_strided_slice %583 {offsets = [0, 17], sizes = [8, 495], strides = [1, 1]} : vector<8x512xf32> to vector<8x495xf32>
    %669 = vector.extract_strided_slice %583 {offsets = [0, 0], sizes = [8, 17], strides = [1, 1]} : vector<8x512xf32> to vector<8x17xf32>
    %670 = tpu.concatenate %668, %669 in 1 : vector<8x495xf32>, vector<8x17xf32> -> vector<8x512xf32>
    %c8_479 = arith.constant 8 : index
    %c0_480 = arith.constant 0 : index
    %c0_481 = arith.constant 0 : index
    %671 = vector.load %arg3[%c8_479, %c0_480, %c0_481] : memref<9x1x512xf32, #tpu.memory_space<vmem>>, vector<1x1x512xf32>
    %672 = vector.shape_cast %671 : vector<1x1x512xf32> to vector<1x512xf32>
    %673 = vector.broadcast %672 : vector<1x512xf32> to vector<8x512xf32>
    %674 = arith.mulf %670, %673 : vector<8x512xf32>
    %c5_482 = arith.constant 5 : index
    %c8_483 = arith.constant 8 : index
    %c0_484 = arith.constant 0 : index
    %c0_485 = arith.constant 0 : index
    %675 = vector.load %arg5[%c5_482, %c8_483, %c0_484, %c0_485] : memref<10x9x8x8xf32, #tpu.memory_space<vmem>>, vector<1x1x8x8xf32>
    %676 = vector.shape_cast %675 : vector<1x1x8x8xf32> to vector<8x8xf32>
    %cst_486 = arith.constant dense<0.000000e+00> : vector<8x512xf32>
    %677 = tpu.matmul %676, %674, %cst_486 {dimension_numbers = #tpu.dot_dimension_numbers<[1], [0], [0], [1], [0, 0, 1, 1], [], []>} : vector<8x8xf32>, vector<8x512xf32>, vector<8x512xf32> -> vector<8x512xf32>
    %678 = arith.addf %667, %677 : vector<8x512xf32>
    %cst_487 = arith.constant dense<0.000000e+00> : vector<8xf32>
    %679 = vector.multi_reduction <add>, %678, %cst_487 [1] : vector<8x512xf32> to vector<8xf32>
    %680 = vector.shape_cast %679 : vector<8xf32> to vector<8x1xf32>
    %cst_488 = arith.constant 0.001953125 : f32
    %681 = vector.broadcast %cst_488 : f32 to vector<8x1xf32>
    %682 = arith.mulf %680, %681 : vector<8x1xf32>
    %683 = vector.broadcast %682 : vector<8x1xf32> to vector<8x512xf32>
    %684 = arith.subf %678, %683 : vector<8x512xf32>
    %685 = arith.mulf %684, %684 : vector<8x512xf32>
    %cst_489 = arith.constant dense<0.000000e+00> : vector<8xf32>
    %686 = vector.multi_reduction <add>, %685, %cst_489 [1] : vector<8x512xf32> to vector<8xf32>
    %687 = vector.shape_cast %686 : vector<8xf32> to vector<8x1xf32>
    %cst_490 = arith.constant 0.001953125 : f32
    %688 = vector.broadcast %cst_490 : f32 to vector<8x1xf32>
    %689 = arith.mulf %687, %688 : vector<8x1xf32>
    %c4_491 = arith.constant 4 : index
    %c0_492 = arith.constant 0 : index
    %c0_493 = arith.constant 0 : index
    %c0_494 = arith.constant 0 : index
    %690 = vector.load %arg6[%c4_491, %c0_492, %c0_493, %c0_494] : memref<9x2x8x1xf32, #tpu.memory_space<vmem>>, vector<1x1x8x1xf32>
    %691 = vector.shape_cast %690 : vector<1x1x8x1xf32> to vector<8x1xf32>
    %cst_495 = arith.constant 9.99999974E-6 : f32
    %692 = vector.broadcast %cst_495 : f32 to vector<8x1xf32>
    %693 = arith.addf %689, %692 : vector<8x1xf32>
    %694 = math.rsqrt %693 : vector<8x1xf32>
    %695 = arith.mulf %691, %694 : vector<8x1xf32>
    %696 = vector.broadcast %695 : vector<8x1xf32> to vector<8x512xf32>
    %697 = arith.mulf %684, %696 : vector<8x512xf32>
    %c4_496 = arith.constant 4 : index
    %c1_497 = arith.constant 1 : index
    %c0_498 = arith.constant 0 : index
    %c0_499 = arith.constant 0 : index
    %698 = vector.load %arg6[%c4_496, %c1_497, %c0_498, %c0_499] : memref<9x2x8x1xf32, #tpu.memory_space<vmem>>, vector<1x1x8x1xf32>
    %699 = vector.shape_cast %698 : vector<1x1x8x1xf32> to vector<8x1xf32>
    %700 = vector.broadcast %699 : vector<8x1xf32> to vector<8x512xf32>
    %701 = arith.addf %697, %700 : vector<8x512xf32>
    %cst_500 = arith.constant 0.000000e+00 : f32
    %702 = vector.broadcast %cst_500 : f32 to vector<8x512xf32>
    %703 = arith.maximumf %701, %702 : vector<8x512xf32>
    %704 = vector.extract_strided_slice %703 {offsets = [0, 495], sizes = [8, 17], strides = [1, 1]} : vector<8x512xf32> to vector<8x17xf32>
    %705 = vector.extract_strided_slice %703 {offsets = [0, 0], sizes = [8, 495], strides = [1, 1]} : vector<8x512xf32> to vector<8x495xf32>
    %706 = tpu.concatenate %704, %705 in 1 : vector<8x17xf32>, vector<8x495xf32> -> vector<8x512xf32>
    %c0_501 = arith.constant 0 : index
    %c0_502 = arith.constant 0 : index
    %c0_503 = arith.constant 0 : index
    %707 = vector.load %arg3[%c0_501, %c0_502, %c0_503] : memref<9x1x512xf32, #tpu.memory_space<vmem>>, vector<1x1x512xf32>
    %708 = vector.shape_cast %707 : vector<1x1x512xf32> to vector<1x512xf32>
    %709 = vector.broadcast %708 : vector<1x512xf32> to vector<8x512xf32>
    %710 = arith.mulf %706, %709 : vector<8x512xf32>
    %c6_504 = arith.constant 6 : index
    %c0_505 = arith.constant 0 : index
    %c0_506 = arith.constant 0 : index
    %c0_507 = arith.constant 0 : index
    %711 = vector.load %arg5[%c6_504, %c0_505, %c0_506, %c0_507] : memref<10x9x8x8xf32, #tpu.memory_space<vmem>>, vector<1x1x8x8xf32>
    %712 = vector.shape_cast %711 : vector<1x1x8x8xf32> to vector<8x8xf32>
    %cst_508 = arith.constant dense<0.000000e+00> : vector<8x512xf32>
    %713 = tpu.matmul %712, %710, %cst_508 {dimension_numbers = #tpu.dot_dimension_numbers<[1], [0], [0], [1], [0, 0, 1, 1], [], []>} : vector<8x8xf32>, vector<8x512xf32>, vector<8x512xf32> -> vector<8x512xf32>
    %714 = vector.extract_strided_slice %703 {offsets = [0, 496], sizes = [8, 16], strides = [1, 1]} : vector<8x512xf32> to vector<8x16xf32>
    %715 = vector.extract_strided_slice %703 {offsets = [0, 0], sizes = [8, 496], strides = [1, 1]} : vector<8x512xf32> to vector<8x496xf32>
    %716 = tpu.concatenate %714, %715 in 1 : vector<8x16xf32>, vector<8x496xf32> -> vector<8x512xf32>
    %c1_509 = arith.constant 1 : index
    %c0_510 = arith.constant 0 : index
    %c0_511 = arith.constant 0 : index
    %717 = vector.load %arg3[%c1_509, %c0_510, %c0_511] : memref<9x1x512xf32, #tpu.memory_space<vmem>>, vector<1x1x512xf32>
    %718 = vector.shape_cast %717 : vector<1x1x512xf32> to vector<1x512xf32>
    %719 = vector.broadcast %718 : vector<1x512xf32> to vector<8x512xf32>
    %720 = arith.mulf %716, %719 : vector<8x512xf32>
    %c6_512 = arith.constant 6 : index
    %c1_513 = arith.constant 1 : index
    %c0_514 = arith.constant 0 : index
    %c0_515 = arith.constant 0 : index
    %721 = vector.load %arg5[%c6_512, %c1_513, %c0_514, %c0_515] : memref<10x9x8x8xf32, #tpu.memory_space<vmem>>, vector<1x1x8x8xf32>
    %722 = vector.shape_cast %721 : vector<1x1x8x8xf32> to vector<8x8xf32>
    %cst_516 = arith.constant dense<0.000000e+00> : vector<8x512xf32>
    %723 = tpu.matmul %722, %720, %cst_516 {dimension_numbers = #tpu.dot_dimension_numbers<[1], [0], [0], [1], [0, 0, 1, 1], [], []>} : vector<8x8xf32>, vector<8x512xf32>, vector<8x512xf32> -> vector<8x512xf32>
    %724 = arith.addf %713, %723 : vector<8x512xf32>
    %725 = vector.extract_strided_slice %703 {offsets = [0, 497], sizes = [8, 15], strides = [1, 1]} : vector<8x512xf32> to vector<8x15xf32>
    %726 = vector.extract_strided_slice %703 {offsets = [0, 0], sizes = [8, 497], strides = [1, 1]} : vector<8x512xf32> to vector<8x497xf32>
    %727 = tpu.concatenate %725, %726 in 1 : vector<8x15xf32>, vector<8x497xf32> -> vector<8x512xf32>
    %c2_517 = arith.constant 2 : index
    %c0_518 = arith.constant 0 : index
    %c0_519 = arith.constant 0 : index
    %728 = vector.load %arg3[%c2_517, %c0_518, %c0_519] : memref<9x1x512xf32, #tpu.memory_space<vmem>>, vector<1x1x512xf32>
    %729 = vector.shape_cast %728 : vector<1x1x512xf32> to vector<1x512xf32>
    %730 = vector.broadcast %729 : vector<1x512xf32> to vector<8x512xf32>
    %731 = arith.mulf %727, %730 : vector<8x512xf32>
    %c6_520 = arith.constant 6 : index
    %c2_521 = arith.constant 2 : index
    %c0_522 = arith.constant 0 : index
    %c0_523 = arith.constant 0 : index
    %732 = vector.load %arg5[%c6_520, %c2_521, %c0_522, %c0_523] : memref<10x9x8x8xf32, #tpu.memory_space<vmem>>, vector<1x1x8x8xf32>
    %733 = vector.shape_cast %732 : vector<1x1x8x8xf32> to vector<8x8xf32>
    %cst_524 = arith.constant dense<0.000000e+00> : vector<8x512xf32>
    %734 = tpu.matmul %733, %731, %cst_524 {dimension_numbers = #tpu.dot_dimension_numbers<[1], [0], [0], [1], [0, 0, 1, 1], [], []>} : vector<8x8xf32>, vector<8x512xf32>, vector<8x512xf32> -> vector<8x512xf32>
    %735 = arith.addf %724, %734 : vector<8x512xf32>
    %736 = vector.extract_strided_slice %703 {offsets = [0, 511], sizes = [8, 1], strides = [1, 1]} : vector<8x512xf32> to vector<8x1xf32>
    %737 = vector.extract_strided_slice %703 {offsets = [0, 0], sizes = [8, 511], strides = [1, 1]} : vector<8x512xf32> to vector<8x511xf32>
    %738 = tpu.concatenate %736, %737 in 1 : vector<8x1xf32>, vector<8x511xf32> -> vector<8x512xf32>
    %c3_525 = arith.constant 3 : index
    %c0_526 = arith.constant 0 : index
    %c0_527 = arith.constant 0 : index
    %739 = vector.load %arg3[%c3_525, %c0_526, %c0_527] : memref<9x1x512xf32, #tpu.memory_space<vmem>>, vector<1x1x512xf32>
    %740 = vector.shape_cast %739 : vector<1x1x512xf32> to vector<1x512xf32>
    %741 = vector.broadcast %740 : vector<1x512xf32> to vector<8x512xf32>
    %742 = arith.mulf %738, %741 : vector<8x512xf32>
    %c6_528 = arith.constant 6 : index
    %c3_529 = arith.constant 3 : index
    %c0_530 = arith.constant 0 : index
    %c0_531 = arith.constant 0 : index
    %743 = vector.load %arg5[%c6_528, %c3_529, %c0_530, %c0_531] : memref<10x9x8x8xf32, #tpu.memory_space<vmem>>, vector<1x1x8x8xf32>
    %744 = vector.shape_cast %743 : vector<1x1x8x8xf32> to vector<8x8xf32>
    %cst_532 = arith.constant dense<0.000000e+00> : vector<8x512xf32>
    %745 = tpu.matmul %744, %742, %cst_532 {dimension_numbers = #tpu.dot_dimension_numbers<[1], [0], [0], [1], [0, 0, 1, 1], [], []>} : vector<8x8xf32>, vector<8x512xf32>, vector<8x512xf32> -> vector<8x512xf32>
    %746 = arith.addf %735, %745 : vector<8x512xf32>
    %c4_533 = arith.constant 4 : index
    %c0_534 = arith.constant 0 : index
    %c0_535 = arith.constant 0 : index
    %747 = vector.load %arg3[%c4_533, %c0_534, %c0_535] : memref<9x1x512xf32, #tpu.memory_space<vmem>>, vector<1x1x512xf32>
    %748 = vector.shape_cast %747 : vector<1x1x512xf32> to vector<1x512xf32>
    %749 = vector.broadcast %748 : vector<1x512xf32> to vector<8x512xf32>
    %750 = arith.mulf %703, %749 : vector<8x512xf32>
    %c6_536 = arith.constant 6 : index
    %c4_537 = arith.constant 4 : index
    %c0_538 = arith.constant 0 : index
    %c0_539 = arith.constant 0 : index
    %751 = vector.load %arg5[%c6_536, %c4_537, %c0_538, %c0_539] : memref<10x9x8x8xf32, #tpu.memory_space<vmem>>, vector<1x1x8x8xf32>
    %752 = vector.shape_cast %751 : vector<1x1x8x8xf32> to vector<8x8xf32>
    %cst_540 = arith.constant dense<0.000000e+00> : vector<8x512xf32>
    %753 = tpu.matmul %752, %750, %cst_540 {dimension_numbers = #tpu.dot_dimension_numbers<[1], [0], [0], [1], [0, 0, 1, 1], [], []>} : vector<8x8xf32>, vector<8x512xf32>, vector<8x512xf32> -> vector<8x512xf32>
    %754 = arith.addf %746, %753 : vector<8x512xf32>
    %755 = vector.extract_strided_slice %703 {offsets = [0, 1], sizes = [8, 511], strides = [1, 1]} : vector<8x512xf32> to vector<8x511xf32>
    %756 = vector.extract_strided_slice %703 {offsets = [0, 0], sizes = [8, 1], strides = [1, 1]} : vector<8x512xf32> to vector<8x1xf32>
    %757 = tpu.concatenate %755, %756 in 1 : vector<8x511xf32>, vector<8x1xf32> -> vector<8x512xf32>
    %c5_541 = arith.constant 5 : index
    %c0_542 = arith.constant 0 : index
    %c0_543 = arith.constant 0 : index
    %758 = vector.load %arg3[%c5_541, %c0_542, %c0_543] : memref<9x1x512xf32, #tpu.memory_space<vmem>>, vector<1x1x512xf32>
    %759 = vector.shape_cast %758 : vector<1x1x512xf32> to vector<1x512xf32>
    %760 = vector.broadcast %759 : vector<1x512xf32> to vector<8x512xf32>
    %761 = arith.mulf %757, %760 : vector<8x512xf32>
    %c6_544 = arith.constant 6 : index
    %c5_545 = arith.constant 5 : index
    %c0_546 = arith.constant 0 : index
    %c0_547 = arith.constant 0 : index
    %762 = vector.load %arg5[%c6_544, %c5_545, %c0_546, %c0_547] : memref<10x9x8x8xf32, #tpu.memory_space<vmem>>, vector<1x1x8x8xf32>
    %763 = vector.shape_cast %762 : vector<1x1x8x8xf32> to vector<8x8xf32>
    %cst_548 = arith.constant dense<0.000000e+00> : vector<8x512xf32>
    %764 = tpu.matmul %763, %761, %cst_548 {dimension_numbers = #tpu.dot_dimension_numbers<[1], [0], [0], [1], [0, 0, 1, 1], [], []>} : vector<8x8xf32>, vector<8x512xf32>, vector<8x512xf32> -> vector<8x512xf32>
    %765 = arith.addf %754, %764 : vector<8x512xf32>
    %766 = vector.extract_strided_slice %703 {offsets = [0, 15], sizes = [8, 497], strides = [1, 1]} : vector<8x512xf32> to vector<8x497xf32>
    %767 = vector.extract_strided_slice %703 {offsets = [0, 0], sizes = [8, 15], strides = [1, 1]} : vector<8x512xf32> to vector<8x15xf32>
    %768 = tpu.concatenate %766, %767 in 1 : vector<8x497xf32>, vector<8x15xf32> -> vector<8x512xf32>
    %c6_549 = arith.constant 6 : index
    %c0_550 = arith.constant 0 : index
    %c0_551 = arith.constant 0 : index
    %769 = vector.load %arg3[%c6_549, %c0_550, %c0_551] : memref<9x1x512xf32, #tpu.memory_space<vmem>>, vector<1x1x512xf32>
    %770 = vector.shape_cast %769 : vector<1x1x512xf32> to vector<1x512xf32>
    %771 = vector.broadcast %770 : vector<1x512xf32> to vector<8x512xf32>
    %772 = arith.mulf %768, %771 : vector<8x512xf32>
    %c6_552 = arith.constant 6 : index
    %c6_553 = arith.constant 6 : index
    %c0_554 = arith.constant 0 : index
    %c0_555 = arith.constant 0 : index
    %773 = vector.load %arg5[%c6_552, %c6_553, %c0_554, %c0_555] : memref<10x9x8x8xf32, #tpu.memory_space<vmem>>, vector<1x1x8x8xf32>
    %774 = vector.shape_cast %773 : vector<1x1x8x8xf32> to vector<8x8xf32>
    %cst_556 = arith.constant dense<0.000000e+00> : vector<8x512xf32>
    %775 = tpu.matmul %774, %772, %cst_556 {dimension_numbers = #tpu.dot_dimension_numbers<[1], [0], [0], [1], [0, 0, 1, 1], [], []>} : vector<8x8xf32>, vector<8x512xf32>, vector<8x512xf32> -> vector<8x512xf32>
    %776 = arith.addf %765, %775 : vector<8x512xf32>
    %777 = vector.extract_strided_slice %703 {offsets = [0, 16], sizes = [8, 496], strides = [1, 1]} : vector<8x512xf32> to vector<8x496xf32>
    %778 = vector.extract_strided_slice %703 {offsets = [0, 0], sizes = [8, 16], strides = [1, 1]} : vector<8x512xf32> to vector<8x16xf32>
    %779 = tpu.concatenate %777, %778 in 1 : vector<8x496xf32>, vector<8x16xf32> -> vector<8x512xf32>
    %c7_557 = arith.constant 7 : index
    %c0_558 = arith.constant 0 : index
    %c0_559 = arith.constant 0 : index
    %780 = vector.load %arg3[%c7_557, %c0_558, %c0_559] : memref<9x1x512xf32, #tpu.memory_space<vmem>>, vector<1x1x512xf32>
    %781 = vector.shape_cast %780 : vector<1x1x512xf32> to vector<1x512xf32>
    %782 = vector.broadcast %781 : vector<1x512xf32> to vector<8x512xf32>
    %783 = arith.mulf %779, %782 : vector<8x512xf32>
    %c6_560 = arith.constant 6 : index
    %c7_561 = arith.constant 7 : index
    %c0_562 = arith.constant 0 : index
    %c0_563 = arith.constant 0 : index
    %784 = vector.load %arg5[%c6_560, %c7_561, %c0_562, %c0_563] : memref<10x9x8x8xf32, #tpu.memory_space<vmem>>, vector<1x1x8x8xf32>
    %785 = vector.shape_cast %784 : vector<1x1x8x8xf32> to vector<8x8xf32>
    %cst_564 = arith.constant dense<0.000000e+00> : vector<8x512xf32>
    %786 = tpu.matmul %785, %783, %cst_564 {dimension_numbers = #tpu.dot_dimension_numbers<[1], [0], [0], [1], [0, 0, 1, 1], [], []>} : vector<8x8xf32>, vector<8x512xf32>, vector<8x512xf32> -> vector<8x512xf32>
    %787 = arith.addf %776, %786 : vector<8x512xf32>
    %788 = vector.extract_strided_slice %703 {offsets = [0, 17], sizes = [8, 495], strides = [1, 1]} : vector<8x512xf32> to vector<8x495xf32>
    %789 = vector.extract_strided_slice %703 {offsets = [0, 0], sizes = [8, 17], strides = [1, 1]} : vector<8x512xf32> to vector<8x17xf32>
    %790 = tpu.concatenate %788, %789 in 1 : vector<8x495xf32>, vector<8x17xf32> -> vector<8x512xf32>
    %c8_565 = arith.constant 8 : index
    %c0_566 = arith.constant 0 : index
    %c0_567 = arith.constant 0 : index
    %791 = vector.load %arg3[%c8_565, %c0_566, %c0_567] : memref<9x1x512xf32, #tpu.memory_space<vmem>>, vector<1x1x512xf32>
    %792 = vector.shape_cast %791 : vector<1x1x512xf32> to vector<1x512xf32>
    %793 = vector.broadcast %792 : vector<1x512xf32> to vector<8x512xf32>
    %794 = arith.mulf %790, %793 : vector<8x512xf32>
    %c6_568 = arith.constant 6 : index
    %c8_569 = arith.constant 8 : index
    %c0_570 = arith.constant 0 : index
    %c0_571 = arith.constant 0 : index
    %795 = vector.load %arg5[%c6_568, %c8_569, %c0_570, %c0_571] : memref<10x9x8x8xf32, #tpu.memory_space<vmem>>, vector<1x1x8x8xf32>
    %796 = vector.shape_cast %795 : vector<1x1x8x8xf32> to vector<8x8xf32>
    %cst_572 = arith.constant dense<0.000000e+00> : vector<8x512xf32>
    %797 = tpu.matmul %796, %794, %cst_572 {dimension_numbers = #tpu.dot_dimension_numbers<[1], [0], [0], [1], [0, 0, 1, 1], [], []>} : vector<8x8xf32>, vector<8x512xf32>, vector<8x512xf32> -> vector<8x512xf32>
    %798 = arith.addf %787, %797 : vector<8x512xf32>
    %cst_573 = arith.constant dense<0.000000e+00> : vector<8xf32>
    %799 = vector.multi_reduction <add>, %798, %cst_573 [1] : vector<8x512xf32> to vector<8xf32>
    %800 = vector.shape_cast %799 : vector<8xf32> to vector<8x1xf32>
    %cst_574 = arith.constant 0.001953125 : f32
    %801 = vector.broadcast %cst_574 : f32 to vector<8x1xf32>
    %802 = arith.mulf %800, %801 : vector<8x1xf32>
    %803 = vector.broadcast %802 : vector<8x1xf32> to vector<8x512xf32>
    %804 = arith.subf %798, %803 : vector<8x512xf32>
    %805 = arith.mulf %804, %804 : vector<8x512xf32>
    %cst_575 = arith.constant dense<0.000000e+00> : vector<8xf32>
    %806 = vector.multi_reduction <add>, %805, %cst_575 [1] : vector<8x512xf32> to vector<8xf32>
    %807 = vector.shape_cast %806 : vector<8xf32> to vector<8x1xf32>
    %cst_576 = arith.constant 0.001953125 : f32
    %808 = vector.broadcast %cst_576 : f32 to vector<8x1xf32>
    %809 = arith.mulf %807, %808 : vector<8x1xf32>
    %c5_577 = arith.constant 5 : index
    %c0_578 = arith.constant 0 : index
    %c0_579 = arith.constant 0 : index
    %c0_580 = arith.constant 0 : index
    %810 = vector.load %arg6[%c5_577, %c0_578, %c0_579, %c0_580] : memref<9x2x8x1xf32, #tpu.memory_space<vmem>>, vector<1x1x8x1xf32>
    %811 = vector.shape_cast %810 : vector<1x1x8x1xf32> to vector<8x1xf32>
    %cst_581 = arith.constant 9.99999974E-6 : f32
    %812 = vector.broadcast %cst_581 : f32 to vector<8x1xf32>
    %813 = arith.addf %809, %812 : vector<8x1xf32>
    %814 = math.rsqrt %813 : vector<8x1xf32>
    %815 = arith.mulf %811, %814 : vector<8x1xf32>
    %816 = vector.broadcast %815 : vector<8x1xf32> to vector<8x512xf32>
    %817 = arith.mulf %804, %816 : vector<8x512xf32>
    %c5_582 = arith.constant 5 : index
    %c1_583 = arith.constant 1 : index
    %c0_584 = arith.constant 0 : index
    %c0_585 = arith.constant 0 : index
    %818 = vector.load %arg6[%c5_582, %c1_583, %c0_584, %c0_585] : memref<9x2x8x1xf32, #tpu.memory_space<vmem>>, vector<1x1x8x1xf32>
    %819 = vector.shape_cast %818 : vector<1x1x8x1xf32> to vector<8x1xf32>
    %820 = vector.broadcast %819 : vector<8x1xf32> to vector<8x512xf32>
    %821 = arith.addf %817, %820 : vector<8x512xf32>
    %cst_586 = arith.constant 0.000000e+00 : f32
    %822 = vector.broadcast %cst_586 : f32 to vector<8x512xf32>
    %823 = arith.maximumf %821, %822 : vector<8x512xf32>
    %824 = vector.extract_strided_slice %823 {offsets = [0, 495], sizes = [8, 17], strides = [1, 1]} : vector<8x512xf32> to vector<8x17xf32>
    %825 = vector.extract_strided_slice %823 {offsets = [0, 0], sizes = [8, 495], strides = [1, 1]} : vector<8x512xf32> to vector<8x495xf32>
    %826 = tpu.concatenate %824, %825 in 1 : vector<8x17xf32>, vector<8x495xf32> -> vector<8x512xf32>
    %c0_587 = arith.constant 0 : index
    %c0_588 = arith.constant 0 : index
    %c0_589 = arith.constant 0 : index
    %827 = vector.load %arg3[%c0_587, %c0_588, %c0_589] : memref<9x1x512xf32, #tpu.memory_space<vmem>>, vector<1x1x512xf32>
    %828 = vector.shape_cast %827 : vector<1x1x512xf32> to vector<1x512xf32>
    %829 = vector.broadcast %828 : vector<1x512xf32> to vector<8x512xf32>
    %830 = arith.mulf %826, %829 : vector<8x512xf32>
    %c7_590 = arith.constant 7 : index
    %c0_591 = arith.constant 0 : index
    %c0_592 = arith.constant 0 : index
    %c0_593 = arith.constant 0 : index
    %831 = vector.load %arg5[%c7_590, %c0_591, %c0_592, %c0_593] : memref<10x9x8x8xf32, #tpu.memory_space<vmem>>, vector<1x1x8x8xf32>
    %832 = vector.shape_cast %831 : vector<1x1x8x8xf32> to vector<8x8xf32>
    %cst_594 = arith.constant dense<0.000000e+00> : vector<8x512xf32>
    %833 = tpu.matmul %832, %830, %cst_594 {dimension_numbers = #tpu.dot_dimension_numbers<[1], [0], [0], [1], [0, 0, 1, 1], [], []>} : vector<8x8xf32>, vector<8x512xf32>, vector<8x512xf32> -> vector<8x512xf32>
    %834 = vector.extract_strided_slice %823 {offsets = [0, 496], sizes = [8, 16], strides = [1, 1]} : vector<8x512xf32> to vector<8x16xf32>
    %835 = vector.extract_strided_slice %823 {offsets = [0, 0], sizes = [8, 496], strides = [1, 1]} : vector<8x512xf32> to vector<8x496xf32>
    %836 = tpu.concatenate %834, %835 in 1 : vector<8x16xf32>, vector<8x496xf32> -> vector<8x512xf32>
    %c1_595 = arith.constant 1 : index
    %c0_596 = arith.constant 0 : index
    %c0_597 = arith.constant 0 : index
    %837 = vector.load %arg3[%c1_595, %c0_596, %c0_597] : memref<9x1x512xf32, #tpu.memory_space<vmem>>, vector<1x1x512xf32>
    %838 = vector.shape_cast %837 : vector<1x1x512xf32> to vector<1x512xf32>
    %839 = vector.broadcast %838 : vector<1x512xf32> to vector<8x512xf32>
    %840 = arith.mulf %836, %839 : vector<8x512xf32>
    %c7_598 = arith.constant 7 : index
    %c1_599 = arith.constant 1 : index
    %c0_600 = arith.constant 0 : index
    %c0_601 = arith.constant 0 : index
    %841 = vector.load %arg5[%c7_598, %c1_599, %c0_600, %c0_601] : memref<10x9x8x8xf32, #tpu.memory_space<vmem>>, vector<1x1x8x8xf32>
    %842 = vector.shape_cast %841 : vector<1x1x8x8xf32> to vector<8x8xf32>
    %cst_602 = arith.constant dense<0.000000e+00> : vector<8x512xf32>
    %843 = tpu.matmul %842, %840, %cst_602 {dimension_numbers = #tpu.dot_dimension_numbers<[1], [0], [0], [1], [0, 0, 1, 1], [], []>} : vector<8x8xf32>, vector<8x512xf32>, vector<8x512xf32> -> vector<8x512xf32>
    %844 = arith.addf %833, %843 : vector<8x512xf32>
    %845 = vector.extract_strided_slice %823 {offsets = [0, 497], sizes = [8, 15], strides = [1, 1]} : vector<8x512xf32> to vector<8x15xf32>
    %846 = vector.extract_strided_slice %823 {offsets = [0, 0], sizes = [8, 497], strides = [1, 1]} : vector<8x512xf32> to vector<8x497xf32>
    %847 = tpu.concatenate %845, %846 in 1 : vector<8x15xf32>, vector<8x497xf32> -> vector<8x512xf32>
    %c2_603 = arith.constant 2 : index
    %c0_604 = arith.constant 0 : index
    %c0_605 = arith.constant 0 : index
    %848 = vector.load %arg3[%c2_603, %c0_604, %c0_605] : memref<9x1x512xf32, #tpu.memory_space<vmem>>, vector<1x1x512xf32>
    %849 = vector.shape_cast %848 : vector<1x1x512xf32> to vector<1x512xf32>
    %850 = vector.broadcast %849 : vector<1x512xf32> to vector<8x512xf32>
    %851 = arith.mulf %847, %850 : vector<8x512xf32>
    %c7_606 = arith.constant 7 : index
    %c2_607 = arith.constant 2 : index
    %c0_608 = arith.constant 0 : index
    %c0_609 = arith.constant 0 : index
    %852 = vector.load %arg5[%c7_606, %c2_607, %c0_608, %c0_609] : memref<10x9x8x8xf32, #tpu.memory_space<vmem>>, vector<1x1x8x8xf32>
    %853 = vector.shape_cast %852 : vector<1x1x8x8xf32> to vector<8x8xf32>
    %cst_610 = arith.constant dense<0.000000e+00> : vector<8x512xf32>
    %854 = tpu.matmul %853, %851, %cst_610 {dimension_numbers = #tpu.dot_dimension_numbers<[1], [0], [0], [1], [0, 0, 1, 1], [], []>} : vector<8x8xf32>, vector<8x512xf32>, vector<8x512xf32> -> vector<8x512xf32>
    %855 = arith.addf %844, %854 : vector<8x512xf32>
    %856 = vector.extract_strided_slice %823 {offsets = [0, 511], sizes = [8, 1], strides = [1, 1]} : vector<8x512xf32> to vector<8x1xf32>
    %857 = vector.extract_strided_slice %823 {offsets = [0, 0], sizes = [8, 511], strides = [1, 1]} : vector<8x512xf32> to vector<8x511xf32>
    %858 = tpu.concatenate %856, %857 in 1 : vector<8x1xf32>, vector<8x511xf32> -> vector<8x512xf32>
    %c3_611 = arith.constant 3 : index
    %c0_612 = arith.constant 0 : index
    %c0_613 = arith.constant 0 : index
    %859 = vector.load %arg3[%c3_611, %c0_612, %c0_613] : memref<9x1x512xf32, #tpu.memory_space<vmem>>, vector<1x1x512xf32>
    %860 = vector.shape_cast %859 : vector<1x1x512xf32> to vector<1x512xf32>
    %861 = vector.broadcast %860 : vector<1x512xf32> to vector<8x512xf32>
    %862 = arith.mulf %858, %861 : vector<8x512xf32>
    %c7_614 = arith.constant 7 : index
    %c3_615 = arith.constant 3 : index
    %c0_616 = arith.constant 0 : index
    %c0_617 = arith.constant 0 : index
    %863 = vector.load %arg5[%c7_614, %c3_615, %c0_616, %c0_617] : memref<10x9x8x8xf32, #tpu.memory_space<vmem>>, vector<1x1x8x8xf32>
    %864 = vector.shape_cast %863 : vector<1x1x8x8xf32> to vector<8x8xf32>
    %cst_618 = arith.constant dense<0.000000e+00> : vector<8x512xf32>
    %865 = tpu.matmul %864, %862, %cst_618 {dimension_numbers = #tpu.dot_dimension_numbers<[1], [0], [0], [1], [0, 0, 1, 1], [], []>} : vector<8x8xf32>, vector<8x512xf32>, vector<8x512xf32> -> vector<8x512xf32>
    %866 = arith.addf %855, %865 : vector<8x512xf32>
    %c4_619 = arith.constant 4 : index
    %c0_620 = arith.constant 0 : index
    %c0_621 = arith.constant 0 : index
    %867 = vector.load %arg3[%c4_619, %c0_620, %c0_621] : memref<9x1x512xf32, #tpu.memory_space<vmem>>, vector<1x1x512xf32>
    %868 = vector.shape_cast %867 : vector<1x1x512xf32> to vector<1x512xf32>
    %869 = vector.broadcast %868 : vector<1x512xf32> to vector<8x512xf32>
    %870 = arith.mulf %823, %869 : vector<8x512xf32>
    %c7_622 = arith.constant 7 : index
    %c4_623 = arith.constant 4 : index
    %c0_624 = arith.constant 0 : index
    %c0_625 = arith.constant 0 : index
    %871 = vector.load %arg5[%c7_622, %c4_623, %c0_624, %c0_625] : memref<10x9x8x8xf32, #tpu.memory_space<vmem>>, vector<1x1x8x8xf32>
    %872 = vector.shape_cast %871 : vector<1x1x8x8xf32> to vector<8x8xf32>
    %cst_626 = arith.constant dense<0.000000e+00> : vector<8x512xf32>
    %873 = tpu.matmul %872, %870, %cst_626 {dimension_numbers = #tpu.dot_dimension_numbers<[1], [0], [0], [1], [0, 0, 1, 1], [], []>} : vector<8x8xf32>, vector<8x512xf32>, vector<8x512xf32> -> vector<8x512xf32>
    %874 = arith.addf %866, %873 : vector<8x512xf32>
    %875 = vector.extract_strided_slice %823 {offsets = [0, 1], sizes = [8, 511], strides = [1, 1]} : vector<8x512xf32> to vector<8x511xf32>
    %876 = vector.extract_strided_slice %823 {offsets = [0, 0], sizes = [8, 1], strides = [1, 1]} : vector<8x512xf32> to vector<8x1xf32>
    %877 = tpu.concatenate %875, %876 in 1 : vector<8x511xf32>, vector<8x1xf32> -> vector<8x512xf32>
    %c5_627 = arith.constant 5 : index
    %c0_628 = arith.constant 0 : index
    %c0_629 = arith.constant 0 : index
    %878 = vector.load %arg3[%c5_627, %c0_628, %c0_629] : memref<9x1x512xf32, #tpu.memory_space<vmem>>, vector<1x1x512xf32>
    %879 = vector.shape_cast %878 : vector<1x1x512xf32> to vector<1x512xf32>
    %880 = vector.broadcast %879 : vector<1x512xf32> to vector<8x512xf32>
    %881 = arith.mulf %877, %880 : vector<8x512xf32>
    %c7_630 = arith.constant 7 : index
    %c5_631 = arith.constant 5 : index
    %c0_632 = arith.constant 0 : index
    %c0_633 = arith.constant 0 : index
    %882 = vector.load %arg5[%c7_630, %c5_631, %c0_632, %c0_633] : memref<10x9x8x8xf32, #tpu.memory_space<vmem>>, vector<1x1x8x8xf32>
    %883 = vector.shape_cast %882 : vector<1x1x8x8xf32> to vector<8x8xf32>
    %cst_634 = arith.constant dense<0.000000e+00> : vector<8x512xf32>
    %884 = tpu.matmul %883, %881, %cst_634 {dimension_numbers = #tpu.dot_dimension_numbers<[1], [0], [0], [1], [0, 0, 1, 1], [], []>} : vector<8x8xf32>, vector<8x512xf32>, vector<8x512xf32> -> vector<8x512xf32>
    %885 = arith.addf %874, %884 : vector<8x512xf32>
    %886 = vector.extract_strided_slice %823 {offsets = [0, 15], sizes = [8, 497], strides = [1, 1]} : vector<8x512xf32> to vector<8x497xf32>
    %887 = vector.extract_strided_slice %823 {offsets = [0, 0], sizes = [8, 15], strides = [1, 1]} : vector<8x512xf32> to vector<8x15xf32>
    %888 = tpu.concatenate %886, %887 in 1 : vector<8x497xf32>, vector<8x15xf32> -> vector<8x512xf32>
    %c6_635 = arith.constant 6 : index
    %c0_636 = arith.constant 0 : index
    %c0_637 = arith.constant 0 : index
    %889 = vector.load %arg3[%c6_635, %c0_636, %c0_637] : memref<9x1x512xf32, #tpu.memory_space<vmem>>, vector<1x1x512xf32>
    %890 = vector.shape_cast %889 : vector<1x1x512xf32> to vector<1x512xf32>
    %891 = vector.broadcast %890 : vector<1x512xf32> to vector<8x512xf32>
    %892 = arith.mulf %888, %891 : vector<8x512xf32>
    %c7_638 = arith.constant 7 : index
    %c6_639 = arith.constant 6 : index
    %c0_640 = arith.constant 0 : index
    %c0_641 = arith.constant 0 : index
    %893 = vector.load %arg5[%c7_638, %c6_639, %c0_640, %c0_641] : memref<10x9x8x8xf32, #tpu.memory_space<vmem>>, vector<1x1x8x8xf32>
    %894 = vector.shape_cast %893 : vector<1x1x8x8xf32> to vector<8x8xf32>
    %cst_642 = arith.constant dense<0.000000e+00> : vector<8x512xf32>
    %895 = tpu.matmul %894, %892, %cst_642 {dimension_numbers = #tpu.dot_dimension_numbers<[1], [0], [0], [1], [0, 0, 1, 1], [], []>} : vector<8x8xf32>, vector<8x512xf32>, vector<8x512xf32> -> vector<8x512xf32>
    %896 = arith.addf %885, %895 : vector<8x512xf32>
    %897 = vector.extract_strided_slice %823 {offsets = [0, 16], sizes = [8, 496], strides = [1, 1]} : vector<8x512xf32> to vector<8x496xf32>
    %898 = vector.extract_strided_slice %823 {offsets = [0, 0], sizes = [8, 16], strides = [1, 1]} : vector<8x512xf32> to vector<8x16xf32>
    %899 = tpu.concatenate %897, %898 in 1 : vector<8x496xf32>, vector<8x16xf32> -> vector<8x512xf32>
    %c7_643 = arith.constant 7 : index
    %c0_644 = arith.constant 0 : index
    %c0_645 = arith.constant 0 : index
    %900 = vector.load %arg3[%c7_643, %c0_644, %c0_645] : memref<9x1x512xf32, #tpu.memory_space<vmem>>, vector<1x1x512xf32>
    %901 = vector.shape_cast %900 : vector<1x1x512xf32> to vector<1x512xf32>
    %902 = vector.broadcast %901 : vector<1x512xf32> to vector<8x512xf32>
    %903 = arith.mulf %899, %902 : vector<8x512xf32>
    %c7_646 = arith.constant 7 : index
    %c7_647 = arith.constant 7 : index
    %c0_648 = arith.constant 0 : index
    %c0_649 = arith.constant 0 : index
    %904 = vector.load %arg5[%c7_646, %c7_647, %c0_648, %c0_649] : memref<10x9x8x8xf32, #tpu.memory_space<vmem>>, vector<1x1x8x8xf32>
    %905 = vector.shape_cast %904 : vector<1x1x8x8xf32> to vector<8x8xf32>
    %cst_650 = arith.constant dense<0.000000e+00> : vector<8x512xf32>
    %906 = tpu.matmul %905, %903, %cst_650 {dimension_numbers = #tpu.dot_dimension_numbers<[1], [0], [0], [1], [0, 0, 1, 1], [], []>} : vector<8x8xf32>, vector<8x512xf32>, vector<8x512xf32> -> vector<8x512xf32>
    %907 = arith.addf %896, %906 : vector<8x512xf32>
    %908 = vector.extract_strided_slice %823 {offsets = [0, 17], sizes = [8, 495], strides = [1, 1]} : vector<8x512xf32> to vector<8x495xf32>
    %909 = vector.extract_strided_slice %823 {offsets = [0, 0], sizes = [8, 17], strides = [1, 1]} : vector<8x512xf32> to vector<8x17xf32>
    %910 = tpu.concatenate %908, %909 in 1 : vector<8x495xf32>, vector<8x17xf32> -> vector<8x512xf32>
    %c8_651 = arith.constant 8 : index
    %c0_652 = arith.constant 0 : index
    %c0_653 = arith.constant 0 : index
    %911 = vector.load %arg3[%c8_651, %c0_652, %c0_653] : memref<9x1x512xf32, #tpu.memory_space<vmem>>, vector<1x1x512xf32>
    %912 = vector.shape_cast %911 : vector<1x1x512xf32> to vector<1x512xf32>
    %913 = vector.broadcast %912 : vector<1x512xf32> to vector<8x512xf32>
    %914 = arith.mulf %910, %913 : vector<8x512xf32>
    %c7_654 = arith.constant 7 : index
    %c8_655 = arith.constant 8 : index
    %c0_656 = arith.constant 0 : index
    %c0_657 = arith.constant 0 : index
    %915 = vector.load %arg5[%c7_654, %c8_655, %c0_656, %c0_657] : memref<10x9x8x8xf32, #tpu.memory_space<vmem>>, vector<1x1x8x8xf32>
    %916 = vector.shape_cast %915 : vector<1x1x8x8xf32> to vector<8x8xf32>
    %cst_658 = arith.constant dense<0.000000e+00> : vector<8x512xf32>
    %917 = tpu.matmul %916, %914, %cst_658 {dimension_numbers = #tpu.dot_dimension_numbers<[1], [0], [0], [1], [0, 0, 1, 1], [], []>} : vector<8x8xf32>, vector<8x512xf32>, vector<8x512xf32> -> vector<8x512xf32>
    %918 = arith.addf %907, %917 : vector<8x512xf32>
    %cst_659 = arith.constant dense<0.000000e+00> : vector<8xf32>
    %919 = vector.multi_reduction <add>, %918, %cst_659 [1] : vector<8x512xf32> to vector<8xf32>
    %920 = vector.shape_cast %919 : vector<8xf32> to vector<8x1xf32>
    %cst_660 = arith.constant 0.001953125 : f32
    %921 = vector.broadcast %cst_660 : f32 to vector<8x1xf32>
    %922 = arith.mulf %920, %921 : vector<8x1xf32>
    %923 = vector.broadcast %922 : vector<8x1xf32> to vector<8x512xf32>
    %924 = arith.subf %918, %923 : vector<8x512xf32>
    %925 = arith.mulf %924, %924 : vector<8x512xf32>
    %cst_661 = arith.constant dense<0.000000e+00> : vector<8xf32>
    %926 = vector.multi_reduction <add>, %925, %cst_661 [1] : vector<8x512xf32> to vector<8xf32>
    %927 = vector.shape_cast %926 : vector<8xf32> to vector<8x1xf32>
    %cst_662 = arith.constant 0.001953125 : f32
    %928 = vector.broadcast %cst_662 : f32 to vector<8x1xf32>
    %929 = arith.mulf %927, %928 : vector<8x1xf32>
    %c6_663 = arith.constant 6 : index
    %c0_664 = arith.constant 0 : index
    %c0_665 = arith.constant 0 : index
    %c0_666 = arith.constant 0 : index
    %930 = vector.load %arg6[%c6_663, %c0_664, %c0_665, %c0_666] : memref<9x2x8x1xf32, #tpu.memory_space<vmem>>, vector<1x1x8x1xf32>
    %931 = vector.shape_cast %930 : vector<1x1x8x1xf32> to vector<8x1xf32>
    %cst_667 = arith.constant 9.99999974E-6 : f32
    %932 = vector.broadcast %cst_667 : f32 to vector<8x1xf32>
    %933 = arith.addf %929, %932 : vector<8x1xf32>
    %934 = math.rsqrt %933 : vector<8x1xf32>
    %935 = arith.mulf %931, %934 : vector<8x1xf32>
    %936 = vector.broadcast %935 : vector<8x1xf32> to vector<8x512xf32>
    %937 = arith.mulf %924, %936 : vector<8x512xf32>
    %c6_668 = arith.constant 6 : index
    %c1_669 = arith.constant 1 : index
    %c0_670 = arith.constant 0 : index
    %c0_671 = arith.constant 0 : index
    %938 = vector.load %arg6[%c6_668, %c1_669, %c0_670, %c0_671] : memref<9x2x8x1xf32, #tpu.memory_space<vmem>>, vector<1x1x8x1xf32>
    %939 = vector.shape_cast %938 : vector<1x1x8x1xf32> to vector<8x1xf32>
    %940 = vector.broadcast %939 : vector<8x1xf32> to vector<8x512xf32>
    %941 = arith.addf %937, %940 : vector<8x512xf32>
    %942 = arith.addf %941, %703 : vector<8x512xf32>
    %cst_672 = arith.constant 0.000000e+00 : f32
    %943 = vector.broadcast %cst_672 : f32 to vector<8x512xf32>
    %944 = arith.maximumf %942, %943 : vector<8x512xf32>
    %945 = vector.extract_strided_slice %944 {offsets = [0, 495], sizes = [8, 17], strides = [1, 1]} : vector<8x512xf32> to vector<8x17xf32>
    %946 = vector.extract_strided_slice %944 {offsets = [0, 0], sizes = [8, 495], strides = [1, 1]} : vector<8x512xf32> to vector<8x495xf32>
    %947 = tpu.concatenate %945, %946 in 1 : vector<8x17xf32>, vector<8x495xf32> -> vector<8x512xf32>
    %c0_673 = arith.constant 0 : index
    %c0_674 = arith.constant 0 : index
    %c0_675 = arith.constant 0 : index
    %948 = vector.load %arg3[%c0_673, %c0_674, %c0_675] : memref<9x1x512xf32, #tpu.memory_space<vmem>>, vector<1x1x512xf32>
    %949 = vector.shape_cast %948 : vector<1x1x512xf32> to vector<1x512xf32>
    %950 = vector.broadcast %949 : vector<1x512xf32> to vector<8x512xf32>
    %951 = arith.mulf %947, %950 : vector<8x512xf32>
    %c8_676 = arith.constant 8 : index
    %c0_677 = arith.constant 0 : index
    %c0_678 = arith.constant 0 : index
    %c0_679 = arith.constant 0 : index
    %952 = vector.load %arg5[%c8_676, %c0_677, %c0_678, %c0_679] : memref<10x9x8x8xf32, #tpu.memory_space<vmem>>, vector<1x1x8x8xf32>
    %953 = vector.shape_cast %952 : vector<1x1x8x8xf32> to vector<8x8xf32>
    %cst_680 = arith.constant dense<0.000000e+00> : vector<8x512xf32>
    %954 = tpu.matmul %953, %951, %cst_680 {dimension_numbers = #tpu.dot_dimension_numbers<[1], [0], [0], [1], [0, 0, 1, 1], [], []>} : vector<8x8xf32>, vector<8x512xf32>, vector<8x512xf32> -> vector<8x512xf32>
    %955 = vector.extract_strided_slice %944 {offsets = [0, 496], sizes = [8, 16], strides = [1, 1]} : vector<8x512xf32> to vector<8x16xf32>
    %956 = vector.extract_strided_slice %944 {offsets = [0, 0], sizes = [8, 496], strides = [1, 1]} : vector<8x512xf32> to vector<8x496xf32>
    %957 = tpu.concatenate %955, %956 in 1 : vector<8x16xf32>, vector<8x496xf32> -> vector<8x512xf32>
    %c1_681 = arith.constant 1 : index
    %c0_682 = arith.constant 0 : index
    %c0_683 = arith.constant 0 : index
    %958 = vector.load %arg3[%c1_681, %c0_682, %c0_683] : memref<9x1x512xf32, #tpu.memory_space<vmem>>, vector<1x1x512xf32>
    %959 = vector.shape_cast %958 : vector<1x1x512xf32> to vector<1x512xf32>
    %960 = vector.broadcast %959 : vector<1x512xf32> to vector<8x512xf32>
    %961 = arith.mulf %957, %960 : vector<8x512xf32>
    %c8_684 = arith.constant 8 : index
    %c1_685 = arith.constant 1 : index
    %c0_686 = arith.constant 0 : index
    %c0_687 = arith.constant 0 : index
    %962 = vector.load %arg5[%c8_684, %c1_685, %c0_686, %c0_687] : memref<10x9x8x8xf32, #tpu.memory_space<vmem>>, vector<1x1x8x8xf32>
    %963 = vector.shape_cast %962 : vector<1x1x8x8xf32> to vector<8x8xf32>
    %cst_688 = arith.constant dense<0.000000e+00> : vector<8x512xf32>
    %964 = tpu.matmul %963, %961, %cst_688 {dimension_numbers = #tpu.dot_dimension_numbers<[1], [0], [0], [1], [0, 0, 1, 1], [], []>} : vector<8x8xf32>, vector<8x512xf32>, vector<8x512xf32> -> vector<8x512xf32>
    %965 = arith.addf %954, %964 : vector<8x512xf32>
    %966 = vector.extract_strided_slice %944 {offsets = [0, 497], sizes = [8, 15], strides = [1, 1]} : vector<8x512xf32> to vector<8x15xf32>
    %967 = vector.extract_strided_slice %944 {offsets = [0, 0], sizes = [8, 497], strides = [1, 1]} : vector<8x512xf32> to vector<8x497xf32>
    %968 = tpu.concatenate %966, %967 in 1 : vector<8x15xf32>, vector<8x497xf32> -> vector<8x512xf32>
    %c2_689 = arith.constant 2 : index
    %c0_690 = arith.constant 0 : index
    %c0_691 = arith.constant 0 : index
    %969 = vector.load %arg3[%c2_689, %c0_690, %c0_691] : memref<9x1x512xf32, #tpu.memory_space<vmem>>, vector<1x1x512xf32>
    %970 = vector.shape_cast %969 : vector<1x1x512xf32> to vector<1x512xf32>
    %971 = vector.broadcast %970 : vector<1x512xf32> to vector<8x512xf32>
    %972 = arith.mulf %968, %971 : vector<8x512xf32>
    %c8_692 = arith.constant 8 : index
    %c2_693 = arith.constant 2 : index
    %c0_694 = arith.constant 0 : index
    %c0_695 = arith.constant 0 : index
    %973 = vector.load %arg5[%c8_692, %c2_693, %c0_694, %c0_695] : memref<10x9x8x8xf32, #tpu.memory_space<vmem>>, vector<1x1x8x8xf32>
    %974 = vector.shape_cast %973 : vector<1x1x8x8xf32> to vector<8x8xf32>
    %cst_696 = arith.constant dense<0.000000e+00> : vector<8x512xf32>
    %975 = tpu.matmul %974, %972, %cst_696 {dimension_numbers = #tpu.dot_dimension_numbers<[1], [0], [0], [1], [0, 0, 1, 1], [], []>} : vector<8x8xf32>, vector<8x512xf32>, vector<8x512xf32> -> vector<8x512xf32>
    %976 = arith.addf %965, %975 : vector<8x512xf32>
    %977 = vector.extract_strided_slice %944 {offsets = [0, 511], sizes = [8, 1], strides = [1, 1]} : vector<8x512xf32> to vector<8x1xf32>
    %978 = vector.extract_strided_slice %944 {offsets = [0, 0], sizes = [8, 511], strides = [1, 1]} : vector<8x512xf32> to vector<8x511xf32>
    %979 = tpu.concatenate %977, %978 in 1 : vector<8x1xf32>, vector<8x511xf32> -> vector<8x512xf32>
    %c3_697 = arith.constant 3 : index
    %c0_698 = arith.constant 0 : index
    %c0_699 = arith.constant 0 : index
    %980 = vector.load %arg3[%c3_697, %c0_698, %c0_699] : memref<9x1x512xf32, #tpu.memory_space<vmem>>, vector<1x1x512xf32>
    %981 = vector.shape_cast %980 : vector<1x1x512xf32> to vector<1x512xf32>
    %982 = vector.broadcast %981 : vector<1x512xf32> to vector<8x512xf32>
    %983 = arith.mulf %979, %982 : vector<8x512xf32>
    %c8_700 = arith.constant 8 : index
    %c3_701 = arith.constant 3 : index
    %c0_702 = arith.constant 0 : index
    %c0_703 = arith.constant 0 : index
    %984 = vector.load %arg5[%c8_700, %c3_701, %c0_702, %c0_703] : memref<10x9x8x8xf32, #tpu.memory_space<vmem>>, vector<1x1x8x8xf32>
    %985 = vector.shape_cast %984 : vector<1x1x8x8xf32> to vector<8x8xf32>
    %cst_704 = arith.constant dense<0.000000e+00> : vector<8x512xf32>
    %986 = tpu.matmul %985, %983, %cst_704 {dimension_numbers = #tpu.dot_dimension_numbers<[1], [0], [0], [1], [0, 0, 1, 1], [], []>} : vector<8x8xf32>, vector<8x512xf32>, vector<8x512xf32> -> vector<8x512xf32>
    %987 = arith.addf %976, %986 : vector<8x512xf32>
    %c4_705 = arith.constant 4 : index
    %c0_706 = arith.constant 0 : index
    %c0_707 = arith.constant 0 : index
    %988 = vector.load %arg3[%c4_705, %c0_706, %c0_707] : memref<9x1x512xf32, #tpu.memory_space<vmem>>, vector<1x1x512xf32>
    %989 = vector.shape_cast %988 : vector<1x1x512xf32> to vector<1x512xf32>
    %990 = vector.broadcast %989 : vector<1x512xf32> to vector<8x512xf32>
    %991 = arith.mulf %944, %990 : vector<8x512xf32>
    %c8_708 = arith.constant 8 : index
    %c4_709 = arith.constant 4 : index
    %c0_710 = arith.constant 0 : index
    %c0_711 = arith.constant 0 : index
    %992 = vector.load %arg5[%c8_708, %c4_709, %c0_710, %c0_711] : memref<10x9x8x8xf32, #tpu.memory_space<vmem>>, vector<1x1x8x8xf32>
    %993 = vector.shape_cast %992 : vector<1x1x8x8xf32> to vector<8x8xf32>
    %cst_712 = arith.constant dense<0.000000e+00> : vector<8x512xf32>
    %994 = tpu.matmul %993, %991, %cst_712 {dimension_numbers = #tpu.dot_dimension_numbers<[1], [0], [0], [1], [0, 0, 1, 1], [], []>} : vector<8x8xf32>, vector<8x512xf32>, vector<8x512xf32> -> vector<8x512xf32>
    %995 = arith.addf %987, %994 : vector<8x512xf32>
    %996 = vector.extract_strided_slice %944 {offsets = [0, 1], sizes = [8, 511], strides = [1, 1]} : vector<8x512xf32> to vector<8x511xf32>
    %997 = vector.extract_strided_slice %944 {offsets = [0, 0], sizes = [8, 1], strides = [1, 1]} : vector<8x512xf32> to vector<8x1xf32>
    %998 = tpu.concatenate %996, %997 in 1 : vector<8x511xf32>, vector<8x1xf32> -> vector<8x512xf32>
    %c5_713 = arith.constant 5 : index
    %c0_714 = arith.constant 0 : index
    %c0_715 = arith.constant 0 : index
    %999 = vector.load %arg3[%c5_713, %c0_714, %c0_715] : memref<9x1x512xf32, #tpu.memory_space<vmem>>, vector<1x1x512xf32>
    %1000 = vector.shape_cast %999 : vector<1x1x512xf32> to vector<1x512xf32>
    %1001 = vector.broadcast %1000 : vector<1x512xf32> to vector<8x512xf32>
    %1002 = arith.mulf %998, %1001 : vector<8x512xf32>
    %c8_716 = arith.constant 8 : index
    %c5_717 = arith.constant 5 : index
    %c0_718 = arith.constant 0 : index
    %c0_719 = arith.constant 0 : index
    %1003 = vector.load %arg5[%c8_716, %c5_717, %c0_718, %c0_719] : memref<10x9x8x8xf32, #tpu.memory_space<vmem>>, vector<1x1x8x8xf32>
    %1004 = vector.shape_cast %1003 : vector<1x1x8x8xf32> to vector<8x8xf32>
    %cst_720 = arith.constant dense<0.000000e+00> : vector<8x512xf32>
    %1005 = tpu.matmul %1004, %1002, %cst_720 {dimension_numbers = #tpu.dot_dimension_numbers<[1], [0], [0], [1], [0, 0, 1, 1], [], []>} : vector<8x8xf32>, vector<8x512xf32>, vector<8x512xf32> -> vector<8x512xf32>
    %1006 = arith.addf %995, %1005 : vector<8x512xf32>
    %1007 = vector.extract_strided_slice %944 {offsets = [0, 15], sizes = [8, 497], strides = [1, 1]} : vector<8x512xf32> to vector<8x497xf32>
    %1008 = vector.extract_strided_slice %944 {offsets = [0, 0], sizes = [8, 15], strides = [1, 1]} : vector<8x512xf32> to vector<8x15xf32>
    %1009 = tpu.concatenate %1007, %1008 in 1 : vector<8x497xf32>, vector<8x15xf32> -> vector<8x512xf32>
    %c6_721 = arith.constant 6 : index
    %c0_722 = arith.constant 0 : index
    %c0_723 = arith.constant 0 : index
    %1010 = vector.load %arg3[%c6_721, %c0_722, %c0_723] : memref<9x1x512xf32, #tpu.memory_space<vmem>>, vector<1x1x512xf32>
    %1011 = vector.shape_cast %1010 : vector<1x1x512xf32> to vector<1x512xf32>
    %1012 = vector.broadcast %1011 : vector<1x512xf32> to vector<8x512xf32>
    %1013 = arith.mulf %1009, %1012 : vector<8x512xf32>
    %c8_724 = arith.constant 8 : index
    %c6_725 = arith.constant 6 : index
    %c0_726 = arith.constant 0 : index
    %c0_727 = arith.constant 0 : index
    %1014 = vector.load %arg5[%c8_724, %c6_725, %c0_726, %c0_727] : memref<10x9x8x8xf32, #tpu.memory_space<vmem>>, vector<1x1x8x8xf32>
    %1015 = vector.shape_cast %1014 : vector<1x1x8x8xf32> to vector<8x8xf32>
    %cst_728 = arith.constant dense<0.000000e+00> : vector<8x512xf32>
    %1016 = tpu.matmul %1015, %1013, %cst_728 {dimension_numbers = #tpu.dot_dimension_numbers<[1], [0], [0], [1], [0, 0, 1, 1], [], []>} : vector<8x8xf32>, vector<8x512xf32>, vector<8x512xf32> -> vector<8x512xf32>
    %1017 = arith.addf %1006, %1016 : vector<8x512xf32>
    %1018 = vector.extract_strided_slice %944 {offsets = [0, 16], sizes = [8, 496], strides = [1, 1]} : vector<8x512xf32> to vector<8x496xf32>
    %1019 = vector.extract_strided_slice %944 {offsets = [0, 0], sizes = [8, 16], strides = [1, 1]} : vector<8x512xf32> to vector<8x16xf32>
    %1020 = tpu.concatenate %1018, %1019 in 1 : vector<8x496xf32>, vector<8x16xf32> -> vector<8x512xf32>
    %c7_729 = arith.constant 7 : index
    %c0_730 = arith.constant 0 : index
    %c0_731 = arith.constant 0 : index
    %1021 = vector.load %arg3[%c7_729, %c0_730, %c0_731] : memref<9x1x512xf32, #tpu.memory_space<vmem>>, vector<1x1x512xf32>
    %1022 = vector.shape_cast %1021 : vector<1x1x512xf32> to vector<1x512xf32>
    %1023 = vector.broadcast %1022 : vector<1x512xf32> to vector<8x512xf32>
    %1024 = arith.mulf %1020, %1023 : vector<8x512xf32>
    %c8_732 = arith.constant 8 : index
    %c7_733 = arith.constant 7 : index
    %c0_734 = arith.constant 0 : index
    %c0_735 = arith.constant 0 : index
    %1025 = vector.load %arg5[%c8_732, %c7_733, %c0_734, %c0_735] : memref<10x9x8x8xf32, #tpu.memory_space<vmem>>, vector<1x1x8x8xf32>
    %1026 = vector.shape_cast %1025 : vector<1x1x8x8xf32> to vector<8x8xf32>
    %cst_736 = arith.constant dense<0.000000e+00> : vector<8x512xf32>
    %1027 = tpu.matmul %1026, %1024, %cst_736 {dimension_numbers = #tpu.dot_dimension_numbers<[1], [0], [0], [1], [0, 0, 1, 1], [], []>} : vector<8x8xf32>, vector<8x512xf32>, vector<8x512xf32> -> vector<8x512xf32>
    %1028 = arith.addf %1017, %1027 : vector<8x512xf32>
    %1029 = vector.extract_strided_slice %944 {offsets = [0, 17], sizes = [8, 495], strides = [1, 1]} : vector<8x512xf32> to vector<8x495xf32>
    %1030 = vector.extract_strided_slice %944 {offsets = [0, 0], sizes = [8, 17], strides = [1, 1]} : vector<8x512xf32> to vector<8x17xf32>
    %1031 = tpu.concatenate %1029, %1030 in 1 : vector<8x495xf32>, vector<8x17xf32> -> vector<8x512xf32>
    %c8_737 = arith.constant 8 : index
    %c0_738 = arith.constant 0 : index
    %c0_739 = arith.constant 0 : index
    %1032 = vector.load %arg3[%c8_737, %c0_738, %c0_739] : memref<9x1x512xf32, #tpu.memory_space<vmem>>, vector<1x1x512xf32>
    %1033 = vector.shape_cast %1032 : vector<1x1x512xf32> to vector<1x512xf32>
    %1034 = vector.broadcast %1033 : vector<1x512xf32> to vector<8x512xf32>
    %1035 = arith.mulf %1031, %1034 : vector<8x512xf32>
    %c8_740 = arith.constant 8 : index
    %c8_741 = arith.constant 8 : index
    %c0_742 = arith.constant 0 : index
    %c0_743 = arith.constant 0 : index
    %1036 = vector.load %arg5[%c8_740, %c8_741, %c0_742, %c0_743] : memref<10x9x8x8xf32, #tpu.memory_space<vmem>>, vector<1x1x8x8xf32>
    %1037 = vector.shape_cast %1036 : vector<1x1x8x8xf32> to vector<8x8xf32>
    %cst_744 = arith.constant dense<0.000000e+00> : vector<8x512xf32>
    %1038 = tpu.matmul %1037, %1035, %cst_744 {dimension_numbers = #tpu.dot_dimension_numbers<[1], [0], [0], [1], [0, 0, 1, 1], [], []>} : vector<8x8xf32>, vector<8x512xf32>, vector<8x512xf32> -> vector<8x512xf32>
    %1039 = arith.addf %1028, %1038 : vector<8x512xf32>
    %cst_745 = arith.constant dense<0.000000e+00> : vector<8xf32>
    %1040 = vector.multi_reduction <add>, %1039, %cst_745 [1] : vector<8x512xf32> to vector<8xf32>
    %1041 = vector.shape_cast %1040 : vector<8xf32> to vector<8x1xf32>
    %cst_746 = arith.constant 0.001953125 : f32
    %1042 = vector.broadcast %cst_746 : f32 to vector<8x1xf32>
    %1043 = arith.mulf %1041, %1042 : vector<8x1xf32>
    %1044 = vector.broadcast %1043 : vector<8x1xf32> to vector<8x512xf32>
    %1045 = arith.subf %1039, %1044 : vector<8x512xf32>
    %1046 = arith.mulf %1045, %1045 : vector<8x512xf32>
    %cst_747 = arith.constant dense<0.000000e+00> : vector<8xf32>
    %1047 = vector.multi_reduction <add>, %1046, %cst_747 [1] : vector<8x512xf32> to vector<8xf32>
    %1048 = vector.shape_cast %1047 : vector<8xf32> to vector<8x1xf32>
    %cst_748 = arith.constant 0.001953125 : f32
    %1049 = vector.broadcast %cst_748 : f32 to vector<8x1xf32>
    %1050 = arith.mulf %1048, %1049 : vector<8x1xf32>
    %c7_749 = arith.constant 7 : index
    %c0_750 = arith.constant 0 : index
    %c0_751 = arith.constant 0 : index
    %c0_752 = arith.constant 0 : index
    %1051 = vector.load %arg6[%c7_749, %c0_750, %c0_751, %c0_752] : memref<9x2x8x1xf32, #tpu.memory_space<vmem>>, vector<1x1x8x1xf32>
    %1052 = vector.shape_cast %1051 : vector<1x1x8x1xf32> to vector<8x1xf32>
    %cst_753 = arith.constant 9.99999974E-6 : f32
    %1053 = vector.broadcast %cst_753 : f32 to vector<8x1xf32>
    %1054 = arith.addf %1050, %1053 : vector<8x1xf32>
    %1055 = math.rsqrt %1054 : vector<8x1xf32>
    %1056 = arith.mulf %1052, %1055 : vector<8x1xf32>
    %1057 = vector.broadcast %1056 : vector<8x1xf32> to vector<8x512xf32>
    %1058 = arith.mulf %1045, %1057 : vector<8x512xf32>
    %c7_754 = arith.constant 7 : index
    %c1_755 = arith.constant 1 : index
    %c0_756 = arith.constant 0 : index
    %c0_757 = arith.constant 0 : index
    %1059 = vector.load %arg6[%c7_754, %c1_755, %c0_756, %c0_757] : memref<9x2x8x1xf32, #tpu.memory_space<vmem>>, vector<1x1x8x1xf32>
    %1060 = vector.shape_cast %1059 : vector<1x1x8x1xf32> to vector<8x1xf32>
    %1061 = vector.broadcast %1060 : vector<8x1xf32> to vector<8x512xf32>
    %1062 = arith.addf %1058, %1061 : vector<8x512xf32>
    %cst_758 = arith.constant 0.000000e+00 : f32
    %1063 = vector.broadcast %cst_758 : f32 to vector<8x512xf32>
    %1064 = arith.maximumf %1062, %1063 : vector<8x512xf32>
    %1065 = vector.extract_strided_slice %1064 {offsets = [0, 495], sizes = [8, 17], strides = [1, 1]} : vector<8x512xf32> to vector<8x17xf32>
    %1066 = vector.extract_strided_slice %1064 {offsets = [0, 0], sizes = [8, 495], strides = [1, 1]} : vector<8x512xf32> to vector<8x495xf32>
    %1067 = tpu.concatenate %1065, %1066 in 1 : vector<8x17xf32>, vector<8x495xf32> -> vector<8x512xf32>
    %c0_759 = arith.constant 0 : index
    %c0_760 = arith.constant 0 : index
    %c0_761 = arith.constant 0 : index
    %1068 = vector.load %arg3[%c0_759, %c0_760, %c0_761] : memref<9x1x512xf32, #tpu.memory_space<vmem>>, vector<1x1x512xf32>
    %1069 = vector.shape_cast %1068 : vector<1x1x512xf32> to vector<1x512xf32>
    %1070 = vector.broadcast %1069 : vector<1x512xf32> to vector<8x512xf32>
    %1071 = arith.mulf %1067, %1070 : vector<8x512xf32>
    %c9 = arith.constant 9 : index
    %c0_762 = arith.constant 0 : index
    %c0_763 = arith.constant 0 : index
    %c0_764 = arith.constant 0 : index
    %1072 = vector.load %arg5[%c9, %c0_762, %c0_763, %c0_764] : memref<10x9x8x8xf32, #tpu.memory_space<vmem>>, vector<1x1x8x8xf32>
    %1073 = vector.shape_cast %1072 : vector<1x1x8x8xf32> to vector<8x8xf32>
    %cst_765 = arith.constant dense<0.000000e+00> : vector<8x512xf32>
    %1074 = tpu.matmul %1073, %1071, %cst_765 {dimension_numbers = #tpu.dot_dimension_numbers<[1], [0], [0], [1], [0, 0, 1, 1], [], []>} : vector<8x8xf32>, vector<8x512xf32>, vector<8x512xf32> -> vector<8x512xf32>
    %1075 = vector.extract_strided_slice %1064 {offsets = [0, 496], sizes = [8, 16], strides = [1, 1]} : vector<8x512xf32> to vector<8x16xf32>
    %1076 = vector.extract_strided_slice %1064 {offsets = [0, 0], sizes = [8, 496], strides = [1, 1]} : vector<8x512xf32> to vector<8x496xf32>
    %1077 = tpu.concatenate %1075, %1076 in 1 : vector<8x16xf32>, vector<8x496xf32> -> vector<8x512xf32>
    %c1_766 = arith.constant 1 : index
    %c0_767 = arith.constant 0 : index
    %c0_768 = arith.constant 0 : index
    %1078 = vector.load %arg3[%c1_766, %c0_767, %c0_768] : memref<9x1x512xf32, #tpu.memory_space<vmem>>, vector<1x1x512xf32>
    %1079 = vector.shape_cast %1078 : vector<1x1x512xf32> to vector<1x512xf32>
    %1080 = vector.broadcast %1079 : vector<1x512xf32> to vector<8x512xf32>
    %1081 = arith.mulf %1077, %1080 : vector<8x512xf32>
    %c9_769 = arith.constant 9 : index
    %c1_770 = arith.constant 1 : index
    %c0_771 = arith.constant 0 : index
    %c0_772 = arith.constant 0 : index
    %1082 = vector.load %arg5[%c9_769, %c1_770, %c0_771, %c0_772] : memref<10x9x8x8xf32, #tpu.memory_space<vmem>>, vector<1x1x8x8xf32>
    %1083 = vector.shape_cast %1082 : vector<1x1x8x8xf32> to vector<8x8xf32>
    %cst_773 = arith.constant dense<0.000000e+00> : vector<8x512xf32>
    %1084 = tpu.matmul %1083, %1081, %cst_773 {dimension_numbers = #tpu.dot_dimension_numbers<[1], [0], [0], [1], [0, 0, 1, 1], [], []>} : vector<8x8xf32>, vector<8x512xf32>, vector<8x512xf32> -> vector<8x512xf32>
    %1085 = arith.addf %1074, %1084 : vector<8x512xf32>
    %1086 = vector.extract_strided_slice %1064 {offsets = [0, 497], sizes = [8, 15], strides = [1, 1]} : vector<8x512xf32> to vector<8x15xf32>
    %1087 = vector.extract_strided_slice %1064 {offsets = [0, 0], sizes = [8, 497], strides = [1, 1]} : vector<8x512xf32> to vector<8x497xf32>
    %1088 = tpu.concatenate %1086, %1087 in 1 : vector<8x15xf32>, vector<8x497xf32> -> vector<8x512xf32>
    %c2_774 = arith.constant 2 : index
    %c0_775 = arith.constant 0 : index
    %c0_776 = arith.constant 0 : index
    %1089 = vector.load %arg3[%c2_774, %c0_775, %c0_776] : memref<9x1x512xf32, #tpu.memory_space<vmem>>, vector<1x1x512xf32>
    %1090 = vector.shape_cast %1089 : vector<1x1x512xf32> to vector<1x512xf32>
    %1091 = vector.broadcast %1090 : vector<1x512xf32> to vector<8x512xf32>
    %1092 = arith.mulf %1088, %1091 : vector<8x512xf32>
    %c9_777 = arith.constant 9 : index
    %c2_778 = arith.constant 2 : index
    %c0_779 = arith.constant 0 : index
    %c0_780 = arith.constant 0 : index
    %1093 = vector.load %arg5[%c9_777, %c2_778, %c0_779, %c0_780] : memref<10x9x8x8xf32, #tpu.memory_space<vmem>>, vector<1x1x8x8xf32>
    %1094 = vector.shape_cast %1093 : vector<1x1x8x8xf32> to vector<8x8xf32>
    %cst_781 = arith.constant dense<0.000000e+00> : vector<8x512xf32>
    %1095 = tpu.matmul %1094, %1092, %cst_781 {dimension_numbers = #tpu.dot_dimension_numbers<[1], [0], [0], [1], [0, 0, 1, 1], [], []>} : vector<8x8xf32>, vector<8x512xf32>, vector<8x512xf32> -> vector<8x512xf32>
    %1096 = arith.addf %1085, %1095 : vector<8x512xf32>
    %1097 = vector.extract_strided_slice %1064 {offsets = [0, 511], sizes = [8, 1], strides = [1, 1]} : vector<8x512xf32> to vector<8x1xf32>
    %1098 = vector.extract_strided_slice %1064 {offsets = [0, 0], sizes = [8, 511], strides = [1, 1]} : vector<8x512xf32> to vector<8x511xf32>
    %1099 = tpu.concatenate %1097, %1098 in 1 : vector<8x1xf32>, vector<8x511xf32> -> vector<8x512xf32>
    %c3_782 = arith.constant 3 : index
    %c0_783 = arith.constant 0 : index
    %c0_784 = arith.constant 0 : index
    %1100 = vector.load %arg3[%c3_782, %c0_783, %c0_784] : memref<9x1x512xf32, #tpu.memory_space<vmem>>, vector<1x1x512xf32>
    %1101 = vector.shape_cast %1100 : vector<1x1x512xf32> to vector<1x512xf32>
    %1102 = vector.broadcast %1101 : vector<1x512xf32> to vector<8x512xf32>
    %1103 = arith.mulf %1099, %1102 : vector<8x512xf32>
    %c9_785 = arith.constant 9 : index
    %c3_786 = arith.constant 3 : index
    %c0_787 = arith.constant 0 : index
    %c0_788 = arith.constant 0 : index
    %1104 = vector.load %arg5[%c9_785, %c3_786, %c0_787, %c0_788] : memref<10x9x8x8xf32, #tpu.memory_space<vmem>>, vector<1x1x8x8xf32>
    %1105 = vector.shape_cast %1104 : vector<1x1x8x8xf32> to vector<8x8xf32>
    %cst_789 = arith.constant dense<0.000000e+00> : vector<8x512xf32>
    %1106 = tpu.matmul %1105, %1103, %cst_789 {dimension_numbers = #tpu.dot_dimension_numbers<[1], [0], [0], [1], [0, 0, 1, 1], [], []>} : vector<8x8xf32>, vector<8x512xf32>, vector<8x512xf32> -> vector<8x512xf32>
    %1107 = arith.addf %1096, %1106 : vector<8x512xf32>
    %c4_790 = arith.constant 4 : index
    %c0_791 = arith.constant 0 : index
    %c0_792 = arith.constant 0 : index
    %1108 = vector.load %arg3[%c4_790, %c0_791, %c0_792] : memref<9x1x512xf32, #tpu.memory_space<vmem>>, vector<1x1x512xf32>
    %1109 = vector.shape_cast %1108 : vector<1x1x512xf32> to vector<1x512xf32>
    %1110 = vector.broadcast %1109 : vector<1x512xf32> to vector<8x512xf32>
    %1111 = arith.mulf %1064, %1110 : vector<8x512xf32>
    %c9_793 = arith.constant 9 : index
    %c4_794 = arith.constant 4 : index
    %c0_795 = arith.constant 0 : index
    %c0_796 = arith.constant 0 : index
    %1112 = vector.load %arg5[%c9_793, %c4_794, %c0_795, %c0_796] : memref<10x9x8x8xf32, #tpu.memory_space<vmem>>, vector<1x1x8x8xf32>
    %1113 = vector.shape_cast %1112 : vector<1x1x8x8xf32> to vector<8x8xf32>
    %cst_797 = arith.constant dense<0.000000e+00> : vector<8x512xf32>
    %1114 = tpu.matmul %1113, %1111, %cst_797 {dimension_numbers = #tpu.dot_dimension_numbers<[1], [0], [0], [1], [0, 0, 1, 1], [], []>} : vector<8x8xf32>, vector<8x512xf32>, vector<8x512xf32> -> vector<8x512xf32>
    %1115 = arith.addf %1107, %1114 : vector<8x512xf32>
    %1116 = vector.extract_strided_slice %1064 {offsets = [0, 1], sizes = [8, 511], strides = [1, 1]} : vector<8x512xf32> to vector<8x511xf32>
    %1117 = vector.extract_strided_slice %1064 {offsets = [0, 0], sizes = [8, 1], strides = [1, 1]} : vector<8x512xf32> to vector<8x1xf32>
    %1118 = tpu.concatenate %1116, %1117 in 1 : vector<8x511xf32>, vector<8x1xf32> -> vector<8x512xf32>
    %c5_798 = arith.constant 5 : index
    %c0_799 = arith.constant 0 : index
    %c0_800 = arith.constant 0 : index
    %1119 = vector.load %arg3[%c5_798, %c0_799, %c0_800] : memref<9x1x512xf32, #tpu.memory_space<vmem>>, vector<1x1x512xf32>
    %1120 = vector.shape_cast %1119 : vector<1x1x512xf32> to vector<1x512xf32>
    %1121 = vector.broadcast %1120 : vector<1x512xf32> to vector<8x512xf32>
    %1122 = arith.mulf %1118, %1121 : vector<8x512xf32>
    %c9_801 = arith.constant 9 : index
    %c5_802 = arith.constant 5 : index
    %c0_803 = arith.constant 0 : index
    %c0_804 = arith.constant 0 : index
    %1123 = vector.load %arg5[%c9_801, %c5_802, %c0_803, %c0_804] : memref<10x9x8x8xf32, #tpu.memory_space<vmem>>, vector<1x1x8x8xf32>
    %1124 = vector.shape_cast %1123 : vector<1x1x8x8xf32> to vector<8x8xf32>
    %cst_805 = arith.constant dense<0.000000e+00> : vector<8x512xf32>
    %1125 = tpu.matmul %1124, %1122, %cst_805 {dimension_numbers = #tpu.dot_dimension_numbers<[1], [0], [0], [1], [0, 0, 1, 1], [], []>} : vector<8x8xf32>, vector<8x512xf32>, vector<8x512xf32> -> vector<8x512xf32>
    %1126 = arith.addf %1115, %1125 : vector<8x512xf32>
    %1127 = vector.extract_strided_slice %1064 {offsets = [0, 15], sizes = [8, 497], strides = [1, 1]} : vector<8x512xf32> to vector<8x497xf32>
    %1128 = vector.extract_strided_slice %1064 {offsets = [0, 0], sizes = [8, 15], strides = [1, 1]} : vector<8x512xf32> to vector<8x15xf32>
    %1129 = tpu.concatenate %1127, %1128 in 1 : vector<8x497xf32>, vector<8x15xf32> -> vector<8x512xf32>
    %c6_806 = arith.constant 6 : index
    %c0_807 = arith.constant 0 : index
    %c0_808 = arith.constant 0 : index
    %1130 = vector.load %arg3[%c6_806, %c0_807, %c0_808] : memref<9x1x512xf32, #tpu.memory_space<vmem>>, vector<1x1x512xf32>
    %1131 = vector.shape_cast %1130 : vector<1x1x512xf32> to vector<1x512xf32>
    %1132 = vector.broadcast %1131 : vector<1x512xf32> to vector<8x512xf32>
    %1133 = arith.mulf %1129, %1132 : vector<8x512xf32>
    %c9_809 = arith.constant 9 : index
    %c6_810 = arith.constant 6 : index
    %c0_811 = arith.constant 0 : index
    %c0_812 = arith.constant 0 : index
    %1134 = vector.load %arg5[%c9_809, %c6_810, %c0_811, %c0_812] : memref<10x9x8x8xf32, #tpu.memory_space<vmem>>, vector<1x1x8x8xf32>
    %1135 = vector.shape_cast %1134 : vector<1x1x8x8xf32> to vector<8x8xf32>
    %cst_813 = arith.constant dense<0.000000e+00> : vector<8x512xf32>
    %1136 = tpu.matmul %1135, %1133, %cst_813 {dimension_numbers = #tpu.dot_dimension_numbers<[1], [0], [0], [1], [0, 0, 1, 1], [], []>} : vector<8x8xf32>, vector<8x512xf32>, vector<8x512xf32> -> vector<8x512xf32>
    %1137 = arith.addf %1126, %1136 : vector<8x512xf32>
    %1138 = vector.extract_strided_slice %1064 {offsets = [0, 16], sizes = [8, 496], strides = [1, 1]} : vector<8x512xf32> to vector<8x496xf32>
    %1139 = vector.extract_strided_slice %1064 {offsets = [0, 0], sizes = [8, 16], strides = [1, 1]} : vector<8x512xf32> to vector<8x16xf32>
    %1140 = tpu.concatenate %1138, %1139 in 1 : vector<8x496xf32>, vector<8x16xf32> -> vector<8x512xf32>
    %c7_814 = arith.constant 7 : index
    %c0_815 = arith.constant 0 : index
    %c0_816 = arith.constant 0 : index
    %1141 = vector.load %arg3[%c7_814, %c0_815, %c0_816] : memref<9x1x512xf32, #tpu.memory_space<vmem>>, vector<1x1x512xf32>
    %1142 = vector.shape_cast %1141 : vector<1x1x512xf32> to vector<1x512xf32>
    %1143 = vector.broadcast %1142 : vector<1x512xf32> to vector<8x512xf32>
    %1144 = arith.mulf %1140, %1143 : vector<8x512xf32>
    %c9_817 = arith.constant 9 : index
    %c7_818 = arith.constant 7 : index
    %c0_819 = arith.constant 0 : index
    %c0_820 = arith.constant 0 : index
    %1145 = vector.load %arg5[%c9_817, %c7_818, %c0_819, %c0_820] : memref<10x9x8x8xf32, #tpu.memory_space<vmem>>, vector<1x1x8x8xf32>
    %1146 = vector.shape_cast %1145 : vector<1x1x8x8xf32> to vector<8x8xf32>
    %cst_821 = arith.constant dense<0.000000e+00> : vector<8x512xf32>
    %1147 = tpu.matmul %1146, %1144, %cst_821 {dimension_numbers = #tpu.dot_dimension_numbers<[1], [0], [0], [1], [0, 0, 1, 1], [], []>} : vector<8x8xf32>, vector<8x512xf32>, vector<8x512xf32> -> vector<8x512xf32>
    %1148 = arith.addf %1137, %1147 : vector<8x512xf32>
    %1149 = vector.extract_strided_slice %1064 {offsets = [0, 17], sizes = [8, 495], strides = [1, 1]} : vector<8x512xf32> to vector<8x495xf32>
    %1150 = vector.extract_strided_slice %1064 {offsets = [0, 0], sizes = [8, 17], strides = [1, 1]} : vector<8x512xf32> to vector<8x17xf32>
    %1151 = tpu.concatenate %1149, %1150 in 1 : vector<8x495xf32>, vector<8x17xf32> -> vector<8x512xf32>
    %c8_822 = arith.constant 8 : index
    %c0_823 = arith.constant 0 : index
    %c0_824 = arith.constant 0 : index
    %1152 = vector.load %arg3[%c8_822, %c0_823, %c0_824] : memref<9x1x512xf32, #tpu.memory_space<vmem>>, vector<1x1x512xf32>
    %1153 = vector.shape_cast %1152 : vector<1x1x512xf32> to vector<1x512xf32>
    %1154 = vector.broadcast %1153 : vector<1x512xf32> to vector<8x512xf32>
    %1155 = arith.mulf %1151, %1154 : vector<8x512xf32>
    %c9_825 = arith.constant 9 : index
    %c8_826 = arith.constant 8 : index
    %c0_827 = arith.constant 0 : index
    %c0_828 = arith.constant 0 : index
    %1156 = vector.load %arg5[%c9_825, %c8_826, %c0_827, %c0_828] : memref<10x9x8x8xf32, #tpu.memory_space<vmem>>, vector<1x1x8x8xf32>
    %1157 = vector.shape_cast %1156 : vector<1x1x8x8xf32> to vector<8x8xf32>
    %cst_829 = arith.constant dense<0.000000e+00> : vector<8x512xf32>
    %1158 = tpu.matmul %1157, %1155, %cst_829 {dimension_numbers = #tpu.dot_dimension_numbers<[1], [0], [0], [1], [0, 0, 1, 1], [], []>} : vector<8x8xf32>, vector<8x512xf32>, vector<8x512xf32> -> vector<8x512xf32>
    %1159 = arith.addf %1148, %1158 : vector<8x512xf32>
    %cst_830 = arith.constant dense<0.000000e+00> : vector<8xf32>
    %1160 = vector.multi_reduction <add>, %1159, %cst_830 [1] : vector<8x512xf32> to vector<8xf32>
    %1161 = vector.shape_cast %1160 : vector<8xf32> to vector<8x1xf32>
    %cst_831 = arith.constant 0.001953125 : f32
    %1162 = vector.broadcast %cst_831 : f32 to vector<8x1xf32>
    %1163 = arith.mulf %1161, %1162 : vector<8x1xf32>
    %1164 = vector.broadcast %1163 : vector<8x1xf32> to vector<8x512xf32>
    %1165 = arith.subf %1159, %1164 : vector<8x512xf32>
    %1166 = arith.mulf %1165, %1165 : vector<8x512xf32>
    %cst_832 = arith.constant dense<0.000000e+00> : vector<8xf32>
    %1167 = vector.multi_reduction <add>, %1166, %cst_832 [1] : vector<8x512xf32> to vector<8xf32>
    %1168 = vector.shape_cast %1167 : vector<8xf32> to vector<8x1xf32>
    %cst_833 = arith.constant 0.001953125 : f32
    %1169 = vector.broadcast %cst_833 : f32 to vector<8x1xf32>
    %1170 = arith.mulf %1168, %1169 : vector<8x1xf32>
    %c8_834 = arith.constant 8 : index
    %c0_835 = arith.constant 0 : index
    %c0_836 = arith.constant 0 : index
    %c0_837 = arith.constant 0 : index
    %1171 = vector.load %arg6[%c8_834, %c0_835, %c0_836, %c0_837] : memref<9x2x8x1xf32, #tpu.memory_space<vmem>>, vector<1x1x8x1xf32>
    %1172 = vector.shape_cast %1171 : vector<1x1x8x1xf32> to vector<8x1xf32>
    %cst_838 = arith.constant 9.99999974E-6 : f32
    %1173 = vector.broadcast %cst_838 : f32 to vector<8x1xf32>
    %1174 = arith.addf %1170, %1173 : vector<8x1xf32>
    %1175 = math.rsqrt %1174 : vector<8x1xf32>
    %1176 = arith.mulf %1172, %1175 : vector<8x1xf32>
    %1177 = vector.broadcast %1176 : vector<8x1xf32> to vector<8x512xf32>
    %1178 = arith.mulf %1165, %1177 : vector<8x512xf32>
    %c8_839 = arith.constant 8 : index
    %c1_840 = arith.constant 1 : index
    %c0_841 = arith.constant 0 : index
    %c0_842 = arith.constant 0 : index
    %1179 = vector.load %arg6[%c8_839, %c1_840, %c0_841, %c0_842] : memref<9x2x8x1xf32, #tpu.memory_space<vmem>>, vector<1x1x8x1xf32>
    %1180 = vector.shape_cast %1179 : vector<1x1x8x1xf32> to vector<8x1xf32>
    %1181 = vector.broadcast %1180 : vector<8x1xf32> to vector<8x512xf32>
    %1182 = arith.addf %1178, %1181 : vector<8x512xf32>
    %1183 = arith.addf %1182, %944 : vector<8x512xf32>
    %cst_843 = arith.constant 0.000000e+00 : f32
    %1184 = vector.broadcast %cst_843 : f32 to vector<8x512xf32>
    %1185 = arith.maximumf %1183, %1184 : vector<8x512xf32>
    %1186 = vector.extract_strided_slice %0 {offsets = [0, 0], sizes = [4, 512], strides = [1, 1]} : vector<8x512xf32> to vector<4x512xf32>
    %c0_844 = arith.constant 0 : index
    %c0_845 = arith.constant 0 : index
    %1187 = vector.load %arg7[%c0_844, %c0_845] : memref<8x512xf32, #tpu.memory_space<vmem>>, vector<4x512xf32>
    tpu.vector_store %arg7[%c0_844, %c0_845], %1186 {strides = array<i32>} : memref<8x512xf32, #tpu.memory_space<vmem>>, vector<4x512xf32>,
    %1188 = vector.extract_strided_slice %1185 {offsets = [0, 0], sizes = [4, 512], strides = [1, 1]} : vector<8x512xf32> to vector<4x512xf32>
    %c4_846 = arith.constant 4 : index
    %c0_847 = arith.constant 0 : index
    %1189 = vector.load %arg7[%c4_846, %c0_847] : memref<8x512xf32, #tpu.memory_space<vmem>>, vector<4x512xf32>
    tpu.vector_store %arg7[%c4_846, %c0_847], %1188 {strides = array<i32>} : memref<8x512xf32, #tpu.memory_space<vmem>>, vector<4x512xf32>,
    return
  }
}

</mosaic_0001>

<llo_original>
// kernel: res_unet_skip_block_forward.1
$region0: #{res_unet_skip_block_forward.1}
  #allocation0 [shape = 'u32[]', space=smem, size = 0x4, offset = 0x4, fixed_abs, tag = 'smem constant byte address 0x4 - core index']
  #allocation1 [shape = 'u32[72,128]{1,0:T(1,128)}', space=vmem, size = 0x9000, scoped, tag = 'internal scratch']
  %s0 = inlined_call_operand.vmem [shape: f32[8,512], index: 0, kind: input, shape index: {}]
  %s1 = inlined_call_operand.vmem [shape: f32[512,128], index: 1, kind: input, shape index: {}]
  %s2 = inlined_call_operand.vmem [shape: f32[128,512], index: 2, kind: input, shape index: {}]
  %s3 = inlined_call_operand.vmem [shape: f32[9,1,512], index: 3, kind: input, shape index: {}]
  %s4 = inlined_call_operand.vmem [shape: f32[9,1,128], index: 4, kind: input, shape index: {}]
  %s5 = inlined_call_operand.vmem [shape: f32[10,9,8,8], index: 5, kind: input, shape index: {}]
  %s6 = inlined_call_operand.vmem [shape: f32[9,2,8,1], index: 6, kind: input, shape index: {}]
  %s7 = inlined_call_operand.vmem [shape: f32[8,512], index: 7, kind: output, shape index: {}]
  %s8 = sld [smem:[#allocation0]]
  $region38: #{res_unet_skip_block_forward.1} parent=0
    _
  %s10 = ssub.s32 1, %s8
  %s11 = scalar_select 0, %s10, %s8
  // Predicated region
  $region2: #{res_unet_skip_block_forward.1} parent=0 // pred_check
    _
  $region3: #{res_unet_skip_block_forward.1} parent=0 // pred_check_branch
    %13 = sbr.rel (0) target = $region5
  $region4: #{res_unet_skip_block_forward.1} parent=0 // pred_region
    _
  $region5: #{res_unet_skip_block_forward.1} parent=0 // pred_fallthru
    _
  // Predicated region
  $region6: #{res_unet_skip_block_forward.1} parent=0 // pred_check
    _
  $region7: #{res_unet_skip_block_forward.1} parent=0 // pred_check_branch
    %15 = sbr.rel (0) target = $region9
  $region8: #{res_unet_skip_block_forward.1} parent=0 // pred_region
    _
  $region9: #{res_unet_skip_block_forward.1} parent=0 // pred_fallthru
    _
  // Predicated region
  $region10: #{res_unet_skip_block_forward.1} parent=0 // pred_check
    _
  $region11: #{res_unet_skip_block_forward.1} parent=0 // pred_check_branch
    %17 = sbr.rel (0) target = $region13
  $region12: #{res_unet_skip_block_forward.1} parent=0 // pred_region
    _
  $region13: #{res_unet_skip_block_forward.1} parent=0 // pred_fallthru
    _
  // Predicated region
  $region14: #{res_unet_skip_block_forward.1} parent=0 // pred_check
    _
  $region15: #{res_unet_skip_block_forward.1} parent=0 // pred_check_branch
    %19 = sbr.rel (0) target = $region17
  $region16: #{res_unet_skip_block_forward.1} parent=0 // pred_region
    _
  $region17: #{res_unet_skip_block_forward.1} parent=0 // pred_fallthru
    _
  // Predicated region
  $region18: #{res_unet_skip_block_forward.1} parent=0 // pred_check
    _
  $region19: #{res_unet_skip_block_forward.1} parent=0 // pred_check_branch
    %21 = sbr.rel (0) target = $region21
  $region20: #{res_unet_skip_block_forward.1} parent=0 // pred_region
    _
  $region21: #{res_unet_skip_block_forward.1} parent=0 // pred_fallthru
    _
  // Predicated region
  $region22: #{res_unet_skip_block_forward.1} parent=0 // pred_check
    _
  $region23: #{res_unet_skip_block_forward.1} parent=0 // pred_check_branch
    %23 = sbr.rel (0) target = $region25
  $region24: #{res_unet_skip_block_forward.1} parent=0 // pred_region
    _
  $region25: #{res_unet_skip_block_forward.1} parent=0 // pred_fallthru
    _
  // Predicated region
  $region26: #{res_unet_skip_block_forward.1} parent=0 // pred_check
    _
  $region27: #{res_unet_skip_block_forward.1} parent=0 // pred_check_branch
    %25 = sbr.rel (0) target = $region29
  $region28: #{res_unet_skip_block_forward.1} parent=0 // pred_region
    _
  $region29: #{res_unet_skip_block_forward.1} parent=0 // pred_fallthru
    _
  %v26 = vld [vmem:[%s0] sm:$0xff]
  %v27 = vld [vmem:[%s0 + $0x8] sm:$0xff]
  %v28 = vld [vmem:[%s0 + $0x10] sm:$0xff]
  %v29 = vld [vmem:[%s0 + $0x18] sm:$0xff]
  %31 = vrot.lane.b32.xlu0 %v29, 17
  %v32 = vpop.permute.xlu0 %31
  %37 = vrot.lane.b32.xlu0 %v26, 17
  %v38 = vpop.permute.xlu0 %37
  %39 = vrot.lane.b32.xlu0 %v27, 17
  %v40 = vpop.permute.xlu0 %39
  %41 = vrot.lane.b32.xlu0 %v28, 17
  %v42 = vpop.permute.xlu0 %41
  %vm43 = vcmask 138240
  %v44 = vsel %vm43, %v38, %v40
  %v45 = vsel %vm43, %v40, %v42
  %v46 = vsel %vm43, %v42, %v32
  %v51 = vsel %vm43, %v32, %v38
  %v52 = vld [vmem:[%s3] sm:$0xf]
  %v54 = vperm.slane %v52, 0
  %v55 = vperm.slane %v52, 1
  %v56 = vperm.slane %v52, 2
  %v57 = vperm.slane %v52, 3
  %v62 = vmul.f32 %v51, %v54
  %v63 = vmul.f32 %v44, %v55
  %v64 = vmul.f32 %v45, %v56
  %v65 = vmul.f32 %v46, %v57
  %v66 = vld [vmem:[%s5] sm:$0xff]
  %67 = vrot.lane.b32.xlu0 %v29, 16
  %v68 = vpop.permute.xlu0 %67
  %70 = vrot.lane.b32.xlu0 %v26, 16
  %v71 = vpop.permute.xlu0 %70
  %72 = vrot.lane.b32.xlu0 %v27, 16
  %v73 = vpop.permute.xlu0 %72
  %74 = vrot.lane.b32.xlu0 %v28, 16
  %v75 = vpop.permute.xlu0 %74
  %vm76 = vcmask 130048
  %v77 = vsel %vm76, %v71, %v73
  %v78 = vsel %vm76, %v73, %v75
  %v79 = vsel %vm76, %v75, %v68
  %v84 = vsel %vm76, %v68, %v71
  %s85 = scalar_lea.vmem %s3, 4
  %v86 = vld [vmem:[%s85] sm:$0xf]
  %v88 = vperm.slane %v86, 0
  %v89 = vperm.slane %v86, 1
  %v90 = vperm.slane %v86, 2
  %v91 = vperm.slane %v86, 3
  %v96 = vmul.f32 %v84, %v88
  %v97 = vmul.f32 %v77, %v89
  %v98 = vmul.f32 %v78, %v90
  %v99 = vmul.f32 %v79, %v91
  %s100 = scalar_lea.vmem %s5, 8
  %v101 = vld [vmem:[%s100] sm:$0xff]
  %vm102 = vcmask 64512
  %v104 = vsel %vm102, %v101, 0
  %106 = vmatpush.msra.mxu0 0.0
  %107 = vmatpush.msra.mxu0 0.0
  %108 = vmatpush.msra.mxu0 0.0
  %109 = vmatpush.msra.mxu0 0.0
  %110 = vmatpush.msra.mxu0 0.0
  %111 = vmatpush.msra.mxu0 0.0
  %112 = vmatpush.msra.mxu0 0.0
  %113 = vmatpush.msra.mxu0 0.0
  %114 = vmatpush.msra.mxu0 0.0
  %115 = vmatpush.msra.mxu0 0.0
  %116 = vmatpush.msra.mxu0 0.0
  %117 = vmatpush.msra.mxu0 0.0
  %118 = vmatpush.msra.mxu0 0.0
  %119 = vmatpush.msra.mxu0 0.0
  %120 = vmatpush.msra.mxu0 0.0
  %121 = vmatpush.msra.mxu0 %v96
  %122 = vmatmul.f32.gmra.mxu0 %v104
  %v123 = vpop.f32.mrf.mxu0
  %v124 = vadd.f32 0.0, %v123
  %125 = vdwg.mxu0
  %126 = vmatpush.msra.mxu0 0.0
  %127 = vmatpush.msra.mxu0 0.0
  %128 = vmatpush.msra.mxu0 0.0
  %129 = vmatpush.msra.mxu0 0.0
  %130 = vmatpush.msra.mxu0 0.0
  %131 = vmatpush.msra.mxu0 0.0
  %132 = vmatpush.msra.mxu0 0.0
  %133 = vmatpush.msra.mxu0 0.0
  %134 = vmatpush.msra.mxu0 0.0
  %135 = vmatpush.msra.mxu0 0.0
  %136 = vmatpush.msra.mxu0 0.0
  %137 = vmatpush.msra.mxu0 0.0
  %138 = vmatpush.msra.mxu0 0.0
  %139 = vmatpush.msra.mxu0 0.0
  %140 = vmatpush.msra.mxu0 0.0
  %141 = vmatpush.msra.mxu0 %v97
  %142 = vmatmul.f32.gmra.mxu0 %v104
  %v143 = vpop.f32.mrf.mxu0
  %v144 = vadd.f32 0.0, %v143
  %145 = vdwg.mxu0
  %146 = vmatpush.msra.mxu0 0.0
  %147 = vmatpush.msra.mxu0 0.0
  %148 = vmatpush.msra.mxu0 0.0
  %149 = vmatpush.msra.mxu0 0.0
  %150 = vmatpush.msra.mxu0 0.0
  %151 = vmatpush.msra.mxu0 0.0
  %152 = vmatpush.msra.mxu0 0.0
  %153 = vmatpush.msra.mxu0 0.0
  %154 = vmatpush.msra.mxu0 0.0
  %155 = vmatpush.msra.mxu0 0.0
  %156 = vmatpush.msra.mxu0 0.0
  %157 = vmatpush.msra.mxu0 0.0
  %158 = vmatpush.msra.mxu0 0.0
  %159 = vmatpush.msra.mxu0 0.0
  %160 = vmatpush.msra.mxu0 0.0
  %161 = vmatpush.msra.mxu0 %v98
  %162 = vmatmul.f32.gmra.mxu0 %v104
  %v163 = vpop.f32.mrf.mxu0
  %v164 = vadd.f32 0.0, %v163
  %165 = vdwg.mxu0
  %166 = vmatpush.msra.mxu0 0.0
  %167 = vmatpush.msra.mxu0 0.0
  %168 = vmatpush.msra.mxu0 0.0
  %169 = vmatpush.msra.mxu0 0.0
  %170 = vmatpush.msra.mxu0 0.0
  %171 = vmatpush.msra.mxu0 0.0
  %172 = vmatpush.msra.mxu0 0.0
  %173 = vmatpush.msra.mxu0 0.0
  %174 = vmatpush.msra.mxu0 0.0
  %175 = vmatpush.msra.mxu0 0.0
  %176 = vmatpush.msra.mxu0 0.0
  %177 = vmatpush.msra.mxu0 0.0
  %178 = vmatpush.msra.mxu0 0.0
  %179 = vmatpush.msra.mxu0 0.0
  %180 = vmatpush.msra.mxu0 0.0
  %181 = vmatpush.msra.mxu0 %v99
  %182 = vmatmul.f32.gmra.mxu0 %v104
  %v183 = vpop.f32.mrf.mxu0
  %v184 = vadd.f32 0.0, %v183
  %185 = vdwg.mxu0
  %v187 = vsel %vm102, %v66, 0
  %189 = vmatpush.msra.mxu0 0.0
  %190 = vmatpush.msra.mxu0 0.0
  %191 = vmatpush.msra.mxu0 0.0
  %192 = vmatpush.msra.mxu0 0.0
  %193 = vmatpush.msra.mxu0 0.0
  %194 = vmatpush.msra.mxu0 0.0
  %195 = vmatpush.msra.mxu0 0.0
  %196 = vmatpush.msra.mxu0 0.0
  %197 = vmatpush.msra.mxu0 0.0
  %198 = vmatpush.msra.mxu0 0.0
  %199 = vmatpush.msra.mxu0 0.0
  %200 = vmatpush.msra.mxu0 0.0
  %201 = vmatpush.msra.mxu0 0.0
  %202 = vmatpush.msra.mxu0 0.0
  %203 = vmatpush.msra.mxu0 0.0
  %204 = vmatpush.msra.mxu0 %v62
  %205 = vmatmul.f32.gmra.mxu0 %v187
  %v206 = vpop.f32.mrf.mxu0
  %v207 = vadd.f32 %v124, %v206
  %208 = vdwg.mxu0
  %209 = vmatpush.msra.mxu0 0.0
  %210 = vmatpush.msra.mxu0 0.0
  %211 = vmatpush.msra.mxu0 0.0
  %212 = vmatpush.msra.mxu0 0.0
  %213 = vmatpush.msra.mxu0 0.0
  %214 = vmatpush.msra.mxu0 0.0
  %215 = vmatpush.msra.mxu0 0.0
  %216 = vmatpush.msra.mxu0 0.0
  %217 = vmatpush.msra.mxu0 0.0
  %218 = vmatpush.msra.mxu0 0.0
  %219 = vmatpush.msra.mxu0 0.0
  %220 = vmatpush.msra.mxu0 0.0
  %221 = vmatpush.msra.mxu0 0.0
  %222 = vmatpush.msra.mxu0 0.0
  %223 = vmatpush.msra.mxu0 0.0
  %224 = vmatpush.msra.mxu0 %v63
  %225 = vmatmul.f32.gmra.mxu0 %v187
  %v226 = vpop.f32.mrf.mxu0
  %v227 = vadd.f32 %v144, %v226
  %228 = vdwg.mxu0
  %229 = vmatpush.msra.mxu0 0.0
  %230 = vmatpush.msra.mxu0 0.0
  %231 = vmatpush.msra.mxu0 0.0
  %232 = vmatpush.msra.mxu0 0.0
  %233 = vmatpush.msra.mxu0 0.0
  %234 = vmatpush.msra.mxu0 0.0
  %235 = vmatpush.msra.mxu0 0.0
  %236 = vmatpush.msra.mxu0 0.0
  %237 = vmatpush.msra.mxu0 0.0
  %238 = vmatpush.msra.mxu0 0.0
  %239 = vmatpush.msra.mxu0 0.0
  %240 = vmatpush.msra.mxu0 0.0
  %241 = vmatpush.msra.mxu0 0.0
  %242 = vmatpush.msra.mxu0 0.0
  %243 = vmatpush.msra.mxu0 0.0
  %244 = vmatpush.msra.mxu0 %v64
  %245 = vmatmul.f32.gmra.mxu0 %v187
  %v246 = vpop.f32.mrf.mxu0
  %v247 = vadd.f32 %v164, %v246
  %248 = vdwg.mxu0
  %249 = vmatpush.msra.mxu0 0.0
  %250 = vmatpush.msra.mxu0 0.0
  %251 = vmatpush.msra.mxu0 0.0
  %252 = vmatpush.msra.mxu0 0.0
  %253 = vmatpush.msra.mxu0 0.0
  %254 = vmatpush.msra.mxu0 0.0
  %255 = vmatpush.msra.mxu0 0.0
  %256 = vmatpush.msra.mxu0 0.0
  %257 = vmatpush.msra.mxu0 0.0
  %258 = vmatpush.msra.mxu0 0.0
  %259 = vmatpush.msra.mxu0 0.0
  %260 = vmatpush.msra.mxu0 0.0
  %261 = vmatpush.msra.mxu0 0.0
  %262 = vmatpush.msra.mxu0 0.0
  %263 = vmatpush.msra.mxu0 0.0
  %264 = vmatpush.msra.mxu0 %v65
  %265 = vmatmul.f32.gmra.mxu0 %v187
  %v266 = vpop.f32.mrf.mxu0
  %v267 = vadd.f32 %v184, %v266
  %268 = vdwg.mxu0
  %269 = vrot.lane.b32.xlu0 %v29, 15
  %v270 = vpop.permute.xlu0 %269
  %272 = vrot.lane.b32.xlu0 %v26, 15
  %v273 = vpop.permute.xlu0 %272
  %274 = vrot.lane.b32.xlu0 %v27, 15
  %v275 = vpop.permute.xlu0 %274
  %276 = vrot.lane.b32.xlu0 %v28, 15
  %v277 = vpop.permute.xlu0 %276
  %vm278 = vcmask 121856
  %v279 = vsel %vm278, %v273, %v275
  %v280 = vsel %vm278, %v275, %v277
  %v281 = vsel %vm278, %v277, %v270
  %v286 = vsel %vm278, %v270, %v273
  %s287 = scalar_lea.vmem %s3, 8
  %v288 = vld [vmem:[%s287] sm:$0xf]
  %v290 = vperm.slane %v288, 0
  %v291 = vperm.slane %v288, 1
  %v292 = vperm.slane %v288, 2
  %v293 = vperm.slane %v288, 3
  %v298 = vmul.f32 %v286, %v290
  %v299 = vmul.f32 %v279, %v291
  %v300 = vmul.f32 %v280, %v292
  %v301 = vmul.f32 %v281, %v293
  %s302 = scalar_lea.vmem %s5, 16
  %v303 = vld [vmem:[%s302] sm:$0xff]
  %v305 = vsel %vm102, %v303, 0
  %307 = vmatpush.msra.mxu0 0.0
  %308 = vmatpush.msra.mxu0 0.0
  %309 = vmatpush.msra.mxu0 0.0
  %310 = vmatpush.msra.mxu0 0.0
  %311 = vmatpush.msra.mxu0 0.0
  %312 = vmatpush.msra.mxu0 0.0
  %313 = vmatpush.msra.mxu0 0.0
  %314 = vmatpush.msra.mxu0 0.0
  %315 = vmatpush.msra.mxu0 0.0
  %316 = vmatpush.msra.mxu0 0.0
  %317 = vmatpush.msra.mxu0 0.0
  %318 = vmatpush.msra.mxu0 0.0
  %319 = vmatpush.msra.mxu0 0.0
  %320 = vmatpush.msra.mxu0 0.0
  %321 = vmatpush.msra.mxu0 0.0
  %322 = vmatpush.msra.mxu0 %v298
  %323 = vmatmul.f32.gmra.mxu0 %v305
  %v324 = vpop.f32.mrf.mxu0
  %v325 = vadd.f32 0.0, %v324
  %326 = vdwg.mxu0
  %327 = vmatpush.msra.mxu0 0.0
  %328 = vmatpush.msra.mxu0 0.0
  %329 = vmatpush.msra.mxu0 0.0
  %330 = vmatpush.msra.mxu0 0.0
  %331 = vmatpush.msra.mxu0 0.0
  %332 = vmatpush.msra.mxu0 0.0
  %333 = vmatpush.msra.mxu0 0.0
  %334 = vmatpush.msra.mxu0 0.0
  %335 = vmatpush.msra.mxu0 0.0
  %336 = vmatpush.msra.mxu0 0.0
  %337 = vmatpush.msra.mxu0 0.0
  %338 = vmatpush.msra.mxu0 0.0
  %339 = vmatpush.msra.mxu0 0.0
  %340 = vmatpush.msra.mxu0 0.0
  %341 = vmatpush.msra.mxu0 0.0
  %342 = vmatpush.msra.mxu0 %v299
  %343 = vmatmul.f32.gmra.mxu0 %v305
  %v344 = vpop.f32.mrf.mxu0
  %v345 = vadd.f32 0.0, %v344
  %346 = vdwg.mxu0
  %347 = vmatpush.msra.mxu0 0.0
  %348 = vmatpush.msra.mxu0 0.0
  %349 = vmatpush.msra.mxu0 0.0
  %350 = vmatpush.msra.mxu0 0.0
  %351 = vmatpush.msra.mxu0 0.0
  %352 = vmatpush.msra.mxu0 0.0
  %353 = vmatpush.msra.mxu0 0.0
  %354 = vmatpush.msra.mxu0 0.0
  %355 = vmatpush.msra.mxu0 0.0
  %356 = vmatpush.msra.mxu0 0.0
  %357 = vmatpush.msra.mxu0 0.0
  %358 = vmatpush.msra.mxu0 0.0
  %359 = vmatpush.msra.mxu0 0.0
  %360 = vmatpush.msra.mxu0 0.0
  %361 = vmatpush.msra.mxu0 0.0
  %362 = vmatpush.msra.mxu0 %v300
  %363 = vmatmul.f32.gmra.mxu0 %v305
  %v364 = vpop.f32.mrf.mxu0
  %v365 = vadd.f32 0.0, %v364
  %366 = vdwg.mxu0
  %367 = vmatpush.msra.mxu0 0.0
  %368 = vmatpush.msra.mxu0 0.0
  %369 = vmatpush.msra.mxu0 0.0
  %370 = vmatpush.msra.mxu0 0.0
  %371 = vmatpush.msra.mxu0 0.0
  %372 = vmatpush.msra.mxu0 0.0
  %373 = vmatpush.msra.mxu0 0.0
  %374 = vmatpush.msra.mxu0 0.0
  %375 = vmatpush.msra.mxu0 0.0
  %376 = vmatpush.msra.mxu0 0.0
  %377 = vmatpush.msra.mxu0 0.0
  %378 = vmatpush.msra.mxu0 0.0
  %379 = vmatpush.msra.mxu0 0.0
  %380 = vmatpush.msra.mxu0 0.0
  %381 = vmatpush.msra.mxu0 0.0
  %382 = vmatpush.msra.mxu0 %v301
  %383 = vmatmul.f32.gmra.mxu0 %v305
  %v384 = vpop.f32.mrf.mxu0
  %v385 = vadd.f32 0.0, %v384
  %386 = vdwg.mxu0
  %v387 = vadd.f32 %v207, %v325
  %v388 = vadd.f32 %v227, %v345
  %v389 = vadd.f32 %v247, %v365
  %v390 = vadd.f32 %v267, %v385
  %391 = vrot.lane.b32.xlu0 %v29, 1
  %v392 = vpop.permute.xlu0 %391
  %394 = vrot.lane.b32.xlu0 %v26, 1
  %v395 = vpop.permute.xlu0 %394
  %396 = vrot.lane.b32.xlu0 %v27, 1
  %v397 = vpop.permute.xlu0 %396
  %398 = vrot.lane.b32.xlu0 %v28, 1
  %v399 = vpop.permute.xlu0 %398
  %vm400 = vcmask 7168
  %v401 = vsel %vm400, %v395, %v397
  %v402 = vsel %vm400, %v397, %v399
  %v403 = vsel %vm400, %v399, %v392
  %v408 = vsel %vm400, %v392, %v395
  %s409 = scalar_lea.vmem %s3, 12
  %v410 = vld [vmem:[%s409] sm:$0xf]
  %v412 = vperm.slane %v410, 0
  %v413 = vperm.slane %v410, 1
  %v414 = vperm.slane %v410, 2
  %v415 = vperm.slane %v410, 3
  %v420 = vmul.f32 %v408, %v412
  %v421 = vmul.f32 %v401, %v413
  %v422 = vmul.f32 %v402, %v414
  %v423 = vmul.f32 %v403, %v415
  %s424 = scalar_lea.vmem %s5, 24
  %v425 = vld [vmem:[%s424] sm:$0xff]
  %v427 = vsel %vm102, %v425, 0
  %429 = vmatpush.msra.mxu0 0.0
  %430 = vmatpush.msra.mxu0 0.0
  %431 = vmatpush.msra.mxu0 0.0
  %432 = vmatpush.msra.mxu0 0.0
  %433 = vmatpush.msra.mxu0 0.0
  %434 = vmatpush.msra.mxu0 0.0
  %435 = vmatpush.msra.mxu0 0.0
  %436 = vmatpush.msra.mxu0 0.0
  %437 = vmatpush.msra.mxu0 0.0
  %438 = vmatpush.msra.mxu0 0.0
  %439 = vmatpush.msra.mxu0 0.0
  %440 = vmatpush.msra.mxu0 0.0
  %441 = vmatpush.msra.mxu0 0.0
  %442 = vmatpush.msra.mxu0 0.0
  %443 = vmatpush.msra.mxu0 0.0
  %444 = vmatpush.msra.mxu0 %v420
  %445 = vmatmul.f32.gmra.mxu0 %v427
  %v446 = vpop.f32.mrf.mxu0
  %v447 = vadd.f32 0.0, %v446
  %448 = vdwg.mxu0
  %449 = vmatpush.msra.mxu0 0.0
  %450 = vmatpush.msra.mxu0 0.0
  %451 = vmatpush.msra.mxu0 0.0
  %452 = vmatpush.msra.mxu0 0.0
  %453 = vmatpush.msra.mxu0 0.0
  %454 = vmatpush.msra.mxu0 0.0
  %455 = vmatpush.msra.mxu0 0.0
  %456 = vmatpush.msra.mxu0 0.0
  %457 = vmatpush.msra.mxu0 0.0
  %458 = vmatpush.msra.mxu0 0.0
  %459 = vmatpush.msra.mxu0 0.0
  %460 = vmatpush.msra.mxu0 0.0
  %461 = vmatpush.msra.mxu0 0.0
  %462 = vmatpush.msra.mxu0 0.0
  %463 = vmatpush.msra.mxu0 0.0
  %464 = vmatpush.msra.mxu0 %v421
  %465 = vmatmul.f32.gmra.mxu0 %v427
  %v466 = vpop.f32.mrf.mxu0
  %v467 = vadd.f32 0.0, %v466
  %468 = vdwg.mxu0
  %469 = vmatpush.msra.mxu0 0.0
  %470 = vmatpush.msra.mxu0 0.0
  %471 = vmatpush.msra.mxu0 0.0
  %472 = vmatpush.msra.mxu0 0.0
  %473 = vmatpush.msra.mxu0 0.0
  %474 = vmatpush.msra.mxu0 0.0
  %475 = vmatpush.msra.mxu0 0.0
  %476 = vmatpush.msra.mxu0 0.0
  %477 = vmatpush.msra.mxu0 0.0
  %478 = vmatpush.msra.mxu0 0.0
  %479 = vmatpush.msra.mxu0 0.0
  %480 = vmatpush.msra.mxu0 0.0
  %481 = vmatpush.msra.mxu0 0.0
  %482 = vmatpush.msra.mxu0 0.0
  %483 = vmatpush.msra.mxu0 0.0
  %484 = vmatpush.msra.mxu0 %v422
  %485 = vmatmul.f32.gmra.mxu0 %v427
  %v486 = vpop.f32.mrf.mxu0
  %v487 = vadd.f32 0.0, %v486
  %488 = vdwg.mxu0
  %489 = vmatpush.msra.mxu0 0.0
  %490 = vmatpush.msra.mxu0 0.0
  %491 = vmatpush.msra.mxu0 0.0
  %492 = vmatpush.msra.mxu0 0.0
  %493 = vmatpush.msra.mxu0 0.0
  %494 = vmatpush.msra.mxu0 0.0
  %495 = vmatpush.msra.mxu0 0.0
  %496 = vmatpush.msra.mxu0 0.0
  %497 = vmatpush.msra.mxu0 0.0
  %498 = vmatpush.msra.mxu0 0.0
  %499 = vmatpush.msra.mxu0 0.0
  %500 = vmatpush.msra.mxu0 0.0
  %501 = vmatpush.msra.mxu0 0.0
  %502 = vmatpush.msra.mxu0 0.0
  %503 = vmatpush.msra.mxu0 0.0
  %504 = vmatpush.msra.mxu0 %v423
  %505 = vmatmul.f32.gmra.mxu0 %v427
  %v506 = vpop.f32.mrf.mxu0
  %v507 = vadd.f32 0.0, %v506
  %508 = vdwg.mxu0
  %v509 = vadd.f32 %v387, %v447
  %v510 = vadd.f32 %v388, %v467
  %v511 = vadd.f32 %v389, %v487
  %v512 = vadd.f32 %v390, %v507
  %s513 = scalar_lea.vmem %s3, 16
  %v514 = vld [vmem:[%s513] sm:$0xf]
  %v516 = vperm.slane %v514, 0
  %v517 = vperm.slane %v514, 1
  %v518 = vperm.slane %v514, 2
  %v519 = vperm.slane %v514, 3
  %v524 = vmul.f32 %v26, %v516
  %v525 = vmul.f32 %v27, %v517
  %v526 = vmul.f32 %v28, %v518
  %v527 = vmul.f32 %v29, %v519
  %s528 = scalar_lea.vmem %s5, 32
  %v529 = vld [vmem:[%s528] sm:$0xff]
  %v531 = vsel %vm102, %v529, 0
  %533 = vmatpush.msra.mxu0 0.0
  %534 = vmatpush.msra.mxu0 0.0
  %535 = vmatpush.msra.mxu0 0.0
  %536 = vmatpush.msra.mxu0 0.0
  %537 = vmatpush.msra.mxu0 0.0
  %538 = vmatpush.msra.mxu0 0.0
  %539 = vmatpush.msra.mxu0 0.0
  %540 = vmatpush.msra.mxu0 0.0
  %541 = vmatpush.msra.mxu0 0.0
  %542 = vmatpush.msra.mxu0 0.0
  %543 = vmatpush.msra.mxu0 0.0
  %544 = vmatpush.msra.mxu0 0.0
  %545 = vmatpush.msra.mxu0 0.0
  %546 = vmatpush.msra.mxu0 0.0
  %547 = vmatpush.msra.mxu0 0.0
  %548 = vmatpush.msra.mxu0 %v524
  %549 = vmatmul.f32.gmra.mxu0 %v531
  %v550 = vpop.f32.mrf.mxu0
  %v551 = vadd.f32 0.0, %v550
  %552 = vdwg.mxu0
  %553 = vmatpush.msra.mxu0 0.0
  %554 = vmatpush.msra.mxu0 0.0
  %555 = vmatpush.msra.mxu0 0.0
  %556 = vmatpush.msra.mxu0 0.0
  %557 = vmatpush.msra.mxu0 0.0
  %558 = vmatpush.msra.mxu0 0.0
  %559 = vmatpush.msra.mxu0 0.0
  %560 = vmatpush.msra.mxu0 0.0
  %561 = vmatpush.msra.mxu0 0.0
  %562 = vmatpush.msra.mxu0 0.0
  %563 = vmatpush.msra.mxu0 0.0
  %564 = vmatpush.msra.mxu0 0.0
  %565 = vmatpush.msra.mxu0 0.0
  %566 = vmatpush.msra.mxu0 0.0
  %567 = vmatpush.msra.mxu0 0.0
  %568 = vmatpush.msra.mxu0 %v525
  %569 = vmatmul.f32.gmra.mxu0 %v531
  %v570 = vpop.f32.mrf.mxu0
  %v571 = vadd.f32 0.0, %v570
  %572 = vdwg.mxu0
  %573 = vmatpush.msra.mxu0 0.0
  %574 = vmatpush.msra.mxu0 0.0
  %575 = vmatpush.msra.mxu0 0.0
  %576 = vmatpush.msra.mxu0 0.0
  %577 = vmatpush.msra.mxu0 0.0
  %578 = vmatpush.msra.mxu0 0.0
  %579 = vmatpush.msra.mxu0 0.0
  %580 = vmatpush.msra.mxu0 0.0
  %581 = vmatpush.msra.mxu0 0.0
  %582 = vmatpush.msra.mxu0 0.0
  %583 = vmatpush.msra.mxu0 0.0
  %584 = vmatpush.msra.mxu0 0.0
  %585 = vmatpush.msra.mxu0 0.0
  %586 = vmatpush.msra.mxu0 0.0
  %587 = vmatpush.msra.mxu0 0.0
  %588 = vmatpush.msra.mxu0 %v526
  %589 = vmatmul.f32.gmra.mxu0 %v531
  %v590 = vpop.f32.mrf.mxu0
  %v591 = vadd.f32 0.0, %v590
  %592 = vdwg.mxu0
  %593 = vmatpush.msra.mxu0 0.0
  %594 = vmatpush.msra.mxu0 0.0
  %595 = vmatpush.msra.mxu0 0.0
  %596 = vmatpush.msra.mxu0 0.0
  %597 = vmatpush.msra.mxu0 0.0
  %598 = vmatpush.msra.mxu0 0.0
  %599 = vmatpush.msra.mxu0 0.0
  %600 = vmatpush.msra.mxu0 0.0
  %601 = vmatpush.msra.mxu0 0.0
  %602 = vmatpush.msra.mxu0 0.0
  %603 = vmatpush.msra.mxu0 0.0
  %604 = vmatpush.msra.mxu0 0.0
  %605 = vmatpush.msra.mxu0 0.0
  %606 = vmatpush.msra.mxu0 0.0
  %607 = vmatpush.msra.mxu0 0.0
  %608 = vmatpush.msra.mxu0 %v527
  %609 = vmatmul.f32.gmra.mxu0 %v531
  %v610 = vpop.f32.mrf.mxu0
  %v611 = vadd.f32 0.0, %v610
  %612 = vdwg.mxu0
  %v613 = vadd.f32 %v509, %v551
  %v614 = vadd.f32 %v510, %v571
  %v615 = vadd.f32 %v511, %v591
  %v616 = vadd.f32 %v512, %v611
  %617 = vrot.lane.b32.xlu0 %v26, 127
  %v618 = vpop.permute.xlu0 %617
  %619 = vrot.lane.b32.xlu0 %v27, 127
  %v620 = vpop.permute.xlu0 %619
  %621 = vrot.lane.b32.xlu0 %v28, 127
  %v622 = vpop.permute.xlu0 %621
  %623 = vrot.lane.b32.xlu0 %v29, 127
  %v624 = vpop.permute.xlu0 %623
  %vm625 = vcmask 1039360
  %v626 = vsel %vm625, %v618, %v620
  %v627 = vsel %vm625, %v620, %v622
  %v628 = vsel %vm625, %v622, %v624
  %v634 = vsel %vm625, %v624, %v618
  %s635 = scalar_lea.vmem %s3, 20
  %v636 = vld [vmem:[%s635] sm:$0xf]
  %v638 = vperm.slane %v636, 0
  %v639 = vperm.slane %v636, 1
  %v640 = vperm.slane %v636, 2
  %v641 = vperm.slane %v636, 3
  %v646 = vmul.f32 %v626, %v638
  %v647 = vmul.f32 %v627, %v639
  %v648 = vmul.f32 %v628, %v640
  %v649 = vmul.f32 %v634, %v641
  %s650 = scalar_lea.vmem %s5, 40
  %v651 = vld [vmem:[%s650] sm:$0xff]
  %v653 = vsel %vm102, %v651, 0
  %655 = vmatpush.msra.mxu0 0.0
  %656 = vmatpush.msra.mxu0 0.0
  %657 = vmatpush.msra.mxu0 0.0
  %658 = vmatpush.msra.mxu0 0.0
  %659 = vmatpush.msra.mxu0 0.0
  %660 = vmatpush.msra.mxu0 0.0
  %661 = vmatpush.msra.mxu0 0.0
  %662 = vmatpush.msra.mxu0 0.0
  %663 = vmatpush.msra.mxu0 0.0
  %664 = vmatpush.msra.mxu0 0.0
  %665 = vmatpush.msra.mxu0 0.0
  %666 = vmatpush.msra.mxu0 0.0
  %667 = vmatpush.msra.mxu0 0.0
  %668 = vmatpush.msra.mxu0 0.0
  %669 = vmatpush.msra.mxu0 0.0
  %670 = vmatpush.msra.mxu0 %v646
  %671 = vmatmul.f32.gmra.mxu0 %v653
  %v672 = vpop.f32.mrf.mxu0
  %v673 = vadd.f32 0.0, %v672
  %674 = vdwg.mxu0
  %675 = vmatpush.msra.mxu0 0.0
  %676 = vmatpush.msra.mxu0 0.0
  %677 = vmatpush.msra.mxu0 0.0
  %678 = vmatpush.msra.mxu0 0.0
  %679 = vmatpush.msra.mxu0 0.0
  %680 = vmatpush.msra.mxu0 0.0
  %681 = vmatpush.msra.mxu0 0.0
  %682 = vmatpush.msra.mxu0 0.0
  %683 = vmatpush.msra.mxu0 0.0
  %684 = vmatpush.msra.mxu0 0.0
  %685 = vmatpush.msra.mxu0 0.0
  %686 = vmatpush.msra.mxu0 0.0
  %687 = vmatpush.msra.mxu0 0.0
  %688 = vmatpush.msra.mxu0 0.0
  %689 = vmatpush.msra.mxu0 0.0
  %690 = vmatpush.msra.mxu0 %v647
  %691 = vmatmul.f32.gmra.mxu0 %v653
  %v692 = vpop.f32.mrf.mxu0
  %v693 = vadd.f32 0.0, %v692
  %694 = vdwg.mxu0
  %695 = vmatpush.msra.mxu0 0.0
  %696 = vmatpush.msra.mxu0 0.0
  %697 = vmatpush.msra.mxu0 0.0
  %698 = vmatpush.msra.mxu0 0.0
  %699 = vmatpush.msra.mxu0 0.0
  %700 = vmatpush.msra.mxu0 0.0
  %701 = vmatpush.msra.mxu0 0.0
  %702 = vmatpush.msra.mxu0 0.0
  %703 = vmatpush.msra.mxu0 0.0
  %704 = vmatpush.msra.mxu0 0.0
  %705 = vmatpush.msra.mxu0 0.0
  %706 = vmatpush.msra.mxu0 0.0
  %707 = vmatpush.msra.mxu0 0.0
  %708 = vmatpush.msra.mxu0 0.0
  %709 = vmatpush.msra.mxu0 0.0
  %710 = vmatpush.msra.mxu0 %v648
  %711 = vmatmul.f32.gmra.mxu0 %v653
  %v712 = vpop.f32.mrf.mxu0
  %v713 = vadd.f32 0.0, %v712
  %714 = vdwg.mxu0
  %715 = vmatpush.msra.mxu0 0.0
  %716 = vmatpush.msra.mxu0 0.0
  %717 = vmatpush.msra.mxu0 0.0
  %718 = vmatpush.msra.mxu0 0.0
  %719 = vmatpush.msra.mxu0 0.0
  %720 = vmatpush.msra.mxu0 0.0
  %721 = vmatpush.msra.mxu0 0.0
  %722 = vmatpush.msra.mxu0 0.0
  %723 = vmatpush.msra.mxu0 0.0
  %724 = vmatpush.msra.mxu0 0.0
  %725 = vmatpush.msra.mxu0 0.0
  %726 = vmatpush.msra.mxu0 0.0
  %727 = vmatpush.msra.mxu0 0.0
  %728 = vmatpush.msra.mxu0 0.0
  %729 = vmatpush.msra.mxu0 0.0
  %730 = vmatpush.msra.mxu0 %v649
  %731 = vmatmul.f32.gmra.mxu0 %v653
  %v732 = vpop.f32.mrf.mxu0
  %v733 = vadd.f32 0.0, %v732
  %734 = vdwg.mxu0
  %v735 = vadd.f32 %v613, %v673
  %v736 = vadd.f32 %v614, %v693
  %v737 = vadd.f32 %v615, %v713
  %v738 = vadd.f32 %v616, %v733
  %739 = vrot.lane.b32.xlu0 %v26, 113
  %v740 = vpop.permute.xlu0 %739
  %741 = vrot.lane.b32.xlu0 %v27, 113
  %v742 = vpop.permute.xlu0 %741
  %743 = vrot.lane.b32.xlu0 %v28, 113
  %v744 = vpop.permute.xlu0 %743
  %745 = vrot.lane.b32.xlu0 %v29, 113
  %v746 = vpop.permute.xlu0 %745
  %vm747 = vcmask 924672
  %v748 = vsel %vm747, %v740, %v742
  %v749 = vsel %vm747, %v742, %v744
  %v750 = vsel %vm747, %v744, %v746
  %v756 = vsel %vm747, %v746, %v740
  %s757 = scalar_lea.vmem %s3, 24
  %v758 = vld [vmem:[%s757] sm:$0xf]
  %v760 = vperm.slane %v758, 0
  %v761 = vperm.slane %v758, 1
  %v762 = vperm.slane %v758, 2
  %v763 = vperm.slane %v758, 3
  %v768 = vmul.f32 %v748, %v760
  %v769 = vmul.f32 %v749, %v761
  %v770 = vmul.f32 %v750, %v762
  %v771 = vmul.f32 %v756, %v763
  %s772 = scalar_lea.vmem %s5, 48
  %v773 = vld [vmem:[%s772] sm:$0xff]
  %v775 = vsel %vm102, %v773, 0
  %777 = vmatpush.msra.mxu0 0.0
  %778 = vmatpush.msra.mxu0 0.0
  %779 = vmatpush.msra.mxu0 0.0
  %780 = vmatpush.msra.mxu0 0.0
  %781 = vmatpush.msra.mxu0 0.0
  %782 = vmatpush.msra.mxu0 0.0
  %783 = vmatpush.msra.mxu0 0.0
  %784 = vmatpush.msra.mxu0 0.0
  %785 = vmatpush.msra.mxu0 0.0
  %786 = vmatpush.msra.mxu0 0.0
  %787 = vmatpush.msra.mxu0 0.0
  %788 = vmatpush.msra.mxu0 0.0
  %789 = vmatpush.msra.mxu0 0.0
  %790 = vmatpush.msra.mxu0 0.0
  %791 = vmatpush.msra.mxu0 0.0
  %792 = vmatpush.msra.mxu0 %v768
  %793 = vmatmul.f32.gmra.mxu0 %v775
  %v794 = vpop.f32.mrf.mxu0
  %v795 = vadd.f32 0.0, %v794
  %796 = vdwg.mxu0
  %797 = vmatpush.msra.mxu0 0.0
  %798 = vmatpush.msra.mxu0 0.0
  %799 = vmatpush.msra.mxu0 0.0
  %800 = vmatpush.msra.mxu0 0.0
  %801 = vmatpush.msra.mxu0 0.0
  %802 = vmatpush.msra.mxu0 0.0
  %803 = vmatpush.msra.mxu0 0.0
  %804 = vmatpush.msra.mxu0 0.0
  %805 = vmatpush.msra.mxu0 0.0
  %806 = vmatpush.msra.mxu0 0.0
  %807 = vmatpush.msra.mxu0 0.0
  %808 = vmatpush.msra.mxu0 0.0
  %809 = vmatpush.msra.mxu0 0.0
  %810 = vmatpush.msra.mxu0 0.0
  %811 = vmatpush.msra.mxu0 0.0
  %812 = vmatpush.msra.mxu0 %v769
  %813 = vmatmul.f32.gmra.mxu0 %v775
  %v814 = vpop.f32.mrf.mxu0
  %v815 = vadd.f32 0.0, %v814
  %816 = vdwg.mxu0
  %817 = vmatpush.msra.mxu0 0.0
  %818 = vmatpush.msra.mxu0 0.0
  %819 = vmatpush.msra.mxu0 0.0
  %820 = vmatpush.msra.mxu0 0.0
  %821 = vmatpush.msra.mxu0 0.0
  %822 = vmatpush.msra.mxu0 0.0
  %823 = vmatpush.msra.mxu0 0.0
  %824 = vmatpush.msra.mxu0 0.0
  %825 = vmatpush.msra.mxu0 0.0
  %826 = vmatpush.msra.mxu0 0.0
  %827 = vmatpush.msra.mxu0 0.0
  %828 = vmatpush.msra.mxu0 0.0
  %829 = vmatpush.msra.mxu0 0.0
  %830 = vmatpush.msra.mxu0 0.0
  %831 = vmatpush.msra.mxu0 0.0
  %832 = vmatpush.msra.mxu0 %v770
  %833 = vmatmul.f32.gmra.mxu0 %v775
  %v834 = vpop.f32.mrf.mxu0
  %v835 = vadd.f32 0.0, %v834
  %836 = vdwg.mxu0
  %837 = vmatpush.msra.mxu0 0.0
  %838 = vmatpush.msra.mxu0 0.0
  %839 = vmatpush.msra.mxu0 0.0
  %840 = vmatpush.msra.mxu0 0.0
  %841 = vmatpush.msra.mxu0 0.0
  %842 = vmatpush.msra.mxu0 0.0
  %843 = vmatpush.msra.mxu0 0.0
  %844 = vmatpush.msra.mxu0 0.0
  %845 = vmatpush.msra.mxu0 0.0
  %846 = vmatpush.msra.mxu0 0.0
  %847 = vmatpush.msra.mxu0 0.0
  %848 = vmatpush.msra.mxu0 0.0
  %849 = vmatpush.msra.mxu0 0.0
  %850 = vmatpush.msra.mxu0 0.0
  %851 = vmatpush.msra.mxu0 0.0
  %852 = vmatpush.msra.mxu0 %v771
  %853 = vmatmul.f32.gmra.mxu0 %v775
  %v854 = vpop.f32.mrf.mxu0
  %v855 = vadd.f32 0.0, %v854
  %856 = vdwg.mxu0
  %v857 = vadd.f32 %v735, %v795
  %v858 = vadd.f32 %v736, %v815
  %v859 = vadd.f32 %v737, %v835
  %v860 = vadd.f32 %v738, %v855
  %861 = vrot.lane.b32.xlu0 %v26, 112
  %v862 = vpop.permute.xlu0 %861
  %863 = vrot.lane.b32.xlu0 %v27, 112
  %v864 = vpop.permute.xlu0 %863
  %865 = vrot.lane.b32.xlu0 %v28, 112
  %v866 = vpop.permute.xlu0 %865
  %867 = vrot.lane.b32.xlu0 %v29, 112
  %v868 = vpop.permute.xlu0 %867
  %vm869 = vcmask 916480
  %v870 = vsel %vm869, %v862, %v864
  %v871 = vsel %vm869, %v864, %v866
  %v872 = vsel %vm869, %v866, %v868
  %v878 = vsel %vm869, %v868, %v862
  %s879 = scalar_lea.vmem %s3, 28
  %v880 = vld [vmem:[%s879] sm:$0xf]
  %v882 = vperm.slane %v880, 0
  %v883 = vperm.slane %v880, 1
  %v884 = vperm.slane %v880, 2
  %v885 = vperm.slane %v880, 3
  %v890 = vmul.f32 %v870, %v882
  %v891 = vmul.f32 %v871, %v883
  %v892 = vmul.f32 %v872, %v884
  %v893 = vmul.f32 %v878, %v885
  %s894 = scalar_lea.vmem %s5, 56
  %v895 = vld [vmem:[%s894] sm:$0xff]
  %v897 = vsel %vm102, %v895, 0
  %899 = vmatpush.msra.mxu0 0.0
  %900 = vmatpush.msra.mxu0 0.0
  %901 = vmatpush.msra.mxu0 0.0
  %902 = vmatpush.msra.mxu0 0.0
  %903 = vmatpush.msra.mxu0 0.0
  %904 = vmatpush.msra.mxu0 0.0
  %905 = vmatpush.msra.mxu0 0.0
  %906 = vmatpush.msra.mxu0 0.0
  %907 = vmatpush.msra.mxu0 0.0
  %908 = vmatpush.msra.mxu0 0.0
  %909 = vmatpush.msra.mxu0 0.0
  %910 = vmatpush.msra.mxu0 0.0
  %911 = vmatpush.msra.mxu0 0.0
  %912 = vmatpush.msra.mxu0 0.0
  %913 = vmatpush.msra.mxu0 0.0
  %914 = vmatpush.msra.mxu0 %v890
  %915 = vmatmul.f32.gmra.mxu0 %v897
  %v916 = vpop.f32.mrf.mxu0
  %v917 = vadd.f32 0.0, %v916
  %918 = vdwg.mxu0
  %919 = vmatpush.msra.mxu0 0.0
  %920 = vmatpush.msra.mxu0 0.0
  %921 = vmatpush.msra.mxu0 0.0
  %922 = vmatpush.msra.mxu0 0.0
  %923 = vmatpush.msra.mxu0 0.0
  %924 = vmatpush.msra.mxu0 0.0
  %925 = vmatpush.msra.mxu0 0.0
  %926 = vmatpush.msra.mxu0 0.0
  %927 = vmatpush.msra.mxu0 0.0
  %928 = vmatpush.msra.mxu0 0.0
  %929 = vmatpush.msra.mxu0 0.0
  %930 = vmatpush.msra.mxu0 0.0
  %931 = vmatpush.msra.mxu0 0.0
  %932 = vmatpush.msra.mxu0 0.0
  %933 = vmatpush.msra.mxu0 0.0
  %934 = vmatpush.msra.mxu0 %v891
  %935 = vmatmul.f32.gmra.mxu0 %v897
  %v936 = vpop.f32.mrf.mxu0
  %v937 = vadd.f32 0.0, %v936
  %938 = vdwg.mxu0
  %939 = vmatpush.msra.mxu0 0.0
  %940 = vmatpush.msra.mxu0 0.0
  %941 = vmatpush.msra.mxu0 0.0
  %942 = vmatpush.msra.mxu0 0.0
  %943 = vmatpush.msra.mxu0 0.0
  %944 = vmatpush.msra.mxu0 0.0
  %945 = vmatpush.msra.mxu0 0.0
  %946 = vmatpush.msra.mxu0 0.0
  %947 = vmatpush.msra.mxu0 0.0
  %948 = vmatpush.msra.mxu0 0.0
  %949 = vmatpush.msra.mxu0 0.0
  %950 = vmatpush.msra.mxu0 0.0
  %951 = vmatpush.msra.mxu0 0.0
  %952 = vmatpush.msra.mxu0 0.0
  %953 = vmatpush.msra.mxu0 0.0
  %954 = vmatpush.msra.mxu0 %v892
  %955 = vmatmul.f32.gmra.mxu0 %v897
  %v956 = vpop.f32.mrf.mxu0
  %v957 = vadd.f32 0.0, %v956
  %958 = vdwg.mxu0
  %959 = vmatpush.msra.mxu0 0.0
  %960 = vmatpush.msra.mxu0 0.0
  %961 = vmatpush.msra.mxu0 0.0
  %962 = vmatpush.msra.mxu0 0.0
  %963 = vmatpush.msra.mxu0 0.0
  %964 = vmatpush.msra.mxu0 0.0
  %965 = vmatpush.msra.mxu0 0.0
  %966 = vmatpush.msra.mxu0 0.0
  %967 = vmatpush.msra.mxu0 0.0
  %968 = vmatpush.msra.mxu0 0.0
  %969 = vmatpush.msra.mxu0 0.0
  %970 = vmatpush.msra.mxu0 0.0
  %971 = vmatpush.msra.mxu0 0.0
  %972 = vmatpush.msra.mxu0 0.0
  %973 = vmatpush.msra.mxu0 0.0
  %974 = vmatpush.msra.mxu0 %v893
  %975 = vmatmul.f32.gmra.mxu0 %v897
  %v976 = vpop.f32.mrf.mxu0
  %v977 = vadd.f32 0.0, %v976
  %978 = vdwg.mxu0
  %v979 = vadd.f32 %v857, %v917
  %v980 = vadd.f32 %v858, %v937
  %v981 = vadd.f32 %v859, %v957
  %v982 = vadd.f32 %v860, %v977
  %983 = vrot.lane.b32.xlu0 %v26, 111
  %v984 = vpop.permute.xlu0 %983
  %985 = vrot.lane.b32.xlu0 %v27, 111
  %v986 = vpop.permute.xlu0 %985
  %987 = vrot.lane.b32.xlu0 %v28, 111
  %v988 = vpop.permute.xlu0 %987
  %989 = vrot.lane.b32.xlu0 %v29, 111
  %v990 = vpop.permute.xlu0 %989
  %vm991 = vcmask 908288
  %v992 = vsel %vm991, %v984, %v986
  %v993 = vsel %vm991, %v986, %v988
  %v994 = vsel %vm991, %v988, %v990
  %v1000 = vsel %vm991, %v990, %v984
  %s1001 = scalar_lea.vmem %s3, 32
  %v1002 = vld [vmem:[%s1001] sm:$0xf]
  %v1004 = vperm.slane %v1002, 0
  %v1005 = vperm.slane %v1002, 1
  %v1006 = vperm.slane %v1002, 2
  %v1007 = vperm.slane %v1002, 3
  %v1012 = vmul.f32 %v992, %v1004
  %v1013 = vmul.f32 %v993, %v1005
  %v1014 = vmul.f32 %v994, %v1006
  %v1015 = vmul.f32 %v1000, %v1007
  %s1016 = scalar_lea.vmem %s5, 64
  %v1017 = vld [vmem:[%s1016] sm:$0xff]
  %v1019 = vsel %vm102, %v1017, 0
  %1021 = vmatpush.msra.mxu0 0.0
  %1022 = vmatpush.msra.mxu0 0.0
  %1023 = vmatpush.msra.mxu0 0.0
  %1024 = vmatpush.msra.mxu0 0.0
  %1025 = vmatpush.msra.mxu0 0.0
  %1026 = vmatpush.msra.mxu0 0.0
  %1027 = vmatpush.msra.mxu0 0.0
  %1028 = vmatpush.msra.mxu0 0.0
  %1029 = vmatpush.msra.mxu0 0.0
  %1030 = vmatpush.msra.mxu0 0.0
  %1031 = vmatpush.msra.mxu0 0.0
  %1032 = vmatpush.msra.mxu0 0.0
  %1033 = vmatpush.msra.mxu0 0.0
  %1034 = vmatpush.msra.mxu0 0.0
  %1035 = vmatpush.msra.mxu0 0.0
  %1036 = vmatpush.msra.mxu0 %v1012
  %1037 = vmatmul.f32.gmra.mxu0 %v1019
  %v1038 = vpop.f32.mrf.mxu0
  %v1039 = vadd.f32 0.0, %v1038
  %1040 = vdwg.mxu0
  %1041 = vmatpush.msra.mxu0 0.0
  %1042 = vmatpush.msra.mxu0 0.0
  %1043 = vmatpush.msra.mxu0 0.0
  %1044 = vmatpush.msra.mxu0 0.0
  %1045 = vmatpush.msra.mxu0 0.0
  %1046 = vmatpush.msra.mxu0 0.0
  %1047 = vmatpush.msra.mxu0 0.0
  %1048 = vmatpush.msra.mxu0 0.0
  %1049 = vmatpush.msra.mxu0 0.0
  %1050 = vmatpush.msra.mxu0 0.0
  %1051 = vmatpush.msra.mxu0 0.0
  %1052 = vmatpush.msra.mxu0 0.0
  %1053 = vmatpush.msra.mxu0 0.0
  %1054 = vmatpush.msra.mxu0 0.0
  %1055 = vmatpush.msra.mxu0 0.0
  %1056 = vmatpush.msra.mxu0 %v1013
  %1057 = vmatmul.f32.gmra.mxu0 %v1019
  %v1058 = vpop.f32.mrf.mxu0
  %v1059 = vadd.f32 0.0, %v1058
  %1060 = vdwg.mxu0
  %1061 = vmatpush.msra.mxu0 0.0
  %1062 = vmatpush.msra.mxu0 0.0
  %1063 = vmatpush.msra.mxu0 0.0
  %1064 = vmatpush.msra.mxu0 0.0
  %1065 = vmatpush.msra.mxu0 0.0
  %1066 = vmatpush.msra.mxu0 0.0
  %1067 = vmatpush.msra.mxu0 0.0
  %1068 = vmatpush.msra.mxu0 0.0
  %1069 = vmatpush.msra.mxu0 0.0
  %1070 = vmatpush.msra.mxu0 0.0
  %1071 = vmatpush.msra.mxu0 0.0
  %1072 = vmatpush.msra.mxu0 0.0
  %1073 = vmatpush.msra.mxu0 0.0
  %1074 = vmatpush.msra.mxu0 0.0
  %1075 = vmatpush.msra.mxu0 0.0
  %1076 = vmatpush.msra.mxu0 %v1014
  %1077 = vmatmul.f32.gmra.mxu0 %v1019
  %v1078 = vpop.f32.mrf.mxu0
  %v1079 = vadd.f32 0.0, %v1078
  %1080 = vdwg.mxu0
  %1081 = vmatpush.msra.mxu0 0.0
  %1082 = vmatpush.msra.mxu0 0.0
  %1083 = vmatpush.msra.mxu0 0.0
  %1084 = vmatpush.msra.mxu0 0.0
  %1085 = vmatpush.msra.mxu0 0.0
  %1086 = vmatpush.msra.mxu0 0.0
  %1087 = vmatpush.msra.mxu0 0.0
  %1088 = vmatpush.msra.mxu0 0.0
  %1089 = vmatpush.msra.mxu0 0.0
  %1090 = vmatpush.msra.mxu0 0.0
  %1091 = vmatpush.msra.mxu0 0.0
  %1092 = vmatpush.msra.mxu0 0.0
  %1093 = vmatpush.msra.mxu0 0.0
  %1094 = vmatpush.msra.mxu0 0.0
  %1095 = vmatpush.msra.mxu0 0.0
  %1096 = vmatpush.msra.mxu0 %v1015
  %1097 = vmatmul.f32.gmra.mxu0 %v1019
  %v1098 = vpop.f32.mrf.mxu0
  %v1099 = vadd.f32 0.0, %v1098
  %1100 = vdwg.mxu0
  %v1101 = vadd.f32 %v979, %v1039
  %v1102 = vadd.f32 %v980, %v1059
  %v1103 = vadd.f32 %v981, %v1079
  %v1104 = vadd.f32 %v982, %v1099
  %v1105 = vld [vmem:[%s1] sm:$0xff]
  %v1106 = vld [vmem:[%s1 + $0x8] sm:$0xff]
  %v1107 = vld [vmem:[%s1 + $0x10] sm:$0xff]
  %v1108 = vld [vmem:[%s1 + $0x18] sm:$0xff]
  %v1109 = vld [vmem:[%s1 + $0x20] sm:$0xff]
  %v1110 = vld [vmem:[%s1 + $0x28] sm:$0xff]
  %v1111 = vld [vmem:[%s1 + $0x30] sm:$0xff]
  %v1112 = vld [vmem:[%s1 + $0x38] sm:$0xff]
  %v1113 = vld [vmem:[%s1 + $0x40] sm:$0xff]
  %v1114 = vld [vmem:[%s1 + $0x48] sm:$0xff]
  %v1115 = vld [vmem:[%s1 + $0x50] sm:$0xff]
  %v1116 = vld [vmem:[%s1 + $0x58] sm:$0xff]
  %v1117 = vld [vmem:[%s1 + $0x60] sm:$0xff]
  %v1118 = vld [vmem:[%s1 + $0x68] sm:$0xff]
  %v1119 = vld [vmem:[%s1 + $0x70] sm:$0xff]
  %v1120 = vld [vmem:[%s1 + $0x78] sm:$0xff]
  %v1121 = vld [vmem:[%s1 + $0x80] sm:$0xff]
  %v1122 = vld [vmem:[%s1 + $0x88] sm:$0xff]
  %v1123 = vld [vmem:[%s1 + $0x90] sm:$0xff]
  %v1124 = vld [vmem:[%s1 + $0x98] sm:$0xff]
  %v1125 = vld [vmem:[%s1 + $0xa0] sm:$0xff]
  %v1126 = vld [vmem:[%s1 + $0xa8] sm:$0xff]
  %v1127 = vld [vmem:[%s1 + $0xb0] sm:$0xff]
  %v1128 = vld [vmem:[%s1 + $0xb8] sm:$0xff]
  %v1129 = vld [vmem:[%s1 + $0xc0] sm:$0xff]
  %v1130 = vld [vmem:[%s1 + $0xc8] sm:$0xff]
  %v1131 = vld [vmem:[%s1 + $0xd0] sm:$0xff]
  %v1132 = vld [vmem:[%s1 + $0xd8] sm:$0xff]
  %v1133 = vld [vmem:[%s1 + $0xe0] sm:$0xff]
  %v1134 = vld [vmem:[%s1 + $0xe8] sm:$0xff]
  %v1135 = vld [vmem:[%s1 + $0xf0] sm:$0xff]
  %v1136 = vld [vmem:[%s1 + $0xf8] sm:$0xff]
  %v1137 = vld [vmem:[%s1 + $0x100] sm:$0xff]
  %v1138 = vld [vmem:[%s1 + $0x108] sm:$0xff]
  %v1139 = vld [vmem:[%s1 + $0x110] sm:$0xff]
  %v1140 = vld [vmem:[%s1 + $0x118] sm:$0xff]
  %v1141 = vld [vmem:[%s1 + $0x120] sm:$0xff]
  %v1142 = vld [vmem:[%s1 + $0x128] sm:$0xff]
  %v1143 = vld [vmem:[%s1 + $0x130] sm:$0xff]
  %v1144 = vld [vmem:[%s1 + $0x138] sm:$0xff]
  %v1145 = vld [vmem:[%s1 + $0x140] sm:$0xff]
  %v1146 = vld [vmem:[%s1 + $0x148] sm:$0xff]
  %v1147 = vld [vmem:[%s1 + $0x150] sm:$0xff]
  %v1148 = vld [vmem:[%s1 + $0x158] sm:$0xff]
  %v1149 = vld [vmem:[%s1 + $0x160] sm:$0xff]
  %v1150 = vld [vmem:[%s1 + $0x168] sm:$0xff]
  %v1151 = vld [vmem:[%s1 + $0x170] sm:$0xff]
  %v1152 = vld [vmem:[%s1 + $0x178] sm:$0xff]
  %v1153 = vld [vmem:[%s1 + $0x180] sm:$0xff]
  %v1154 = vld [vmem:[%s1 + $0x188] sm:$0xff]
  %v1155 = vld [vmem:[%s1 + $0x190] sm:$0xff]
  %v1156 = vld [vmem:[%s1 + $0x198] sm:$0xff]
  %v1157 = vld [vmem:[%s1 + $0x1a0] sm:$0xff]
  %v1158 = vld [vmem:[%s1 + $0x1a8] sm:$0xff]
  %v1159 = vld [vmem:[%s1 + $0x1b0] sm:$0xff]
  %v1160 = vld [vmem:[%s1 + $0x1b8] sm:$0xff]
  %v1161 = vld [vmem:[%s1 + $0x1c0] sm:$0xff]
  %v1162 = vld [vmem:[%s1 + $0x1c8] sm:$0xff]
  %v1163 = vld [vmem:[%s1 + $0x1d0] sm:$0xff]
  %v1164 = vld [vmem:[%s1 + $0x1d8] sm:$0xff]
  %v1165 = vld [vmem:[%s1 + $0x1e0] sm:$0xff]
  %v1166 = vld [vmem:[%s1 + $0x1e8] sm:$0xff]
  %v1167 = vld [vmem:[%s1 + $0x1f0] sm:$0xff]
  %v1168 = vld [vmem:[%s1 + $0x1f8] sm:$0xff]
  %1169 = vmatpush.msra.mxu0 %v1120
  %1170 = vmatpush.msra.mxu0 %v1119
  %1171 = vmatpush.msra.mxu0 %v1118
  %1172 = vmatpush.msra.mxu0 %v1117
  %1173 = vmatpush.msra.mxu0 %v1116
  %1174 = vmatpush.msra.mxu0 %v1115
  %1175 = vmatpush.msra.mxu0 %v1114
  %1176 = vmatpush.msra.mxu0 %v1113
  %1177 = vmatpush.msra.mxu0 %v1112
  %1178 = vmatpush.msra.mxu0 %v1111
  %1179 = vmatpush.msra.mxu0 %v1110
  %1180 = vmatpush.msra.mxu0 %v1109
  %1181 = vmatpush.msra.mxu0 %v1108
  %1182 = vmatpush.msra.mxu0 %v1107
  %1183 = vmatpush.msra.mxu0 %v1106
  %1184 = vmatpush.msra.mxu0 %v1105
  %1185 = vmatmul.f32.gmra.mxu0 %v1101
  %v1186 = vpop.f32.mrf.mxu0
  %v1187 = vadd.f32 0.0, %v1186
  %1188 = vdwg.mxu0
  %1189 = vmatpush.msra.mxu0 %v1136
  %1190 = vmatpush.msra.mxu0 %v1135
  %1191 = vmatpush.msra.mxu0 %v1134
  %1192 = vmatpush.msra.mxu0 %v1133
  %1193 = vmatpush.msra.mxu0 %v1132
  %1194 = vmatpush.msra.mxu0 %v1131
  %1195 = vmatpush.msra.mxu0 %v1130
  %1196 = vmatpush.msra.mxu0 %v1129
  %1197 = vmatpush.msra.mxu0 %v1128
  %1198 = vmatpush.msra.mxu0 %v1127
  %1199 = vmatpush.msra.mxu0 %v1126
  %1200 = vmatpush.msra.mxu0 %v1125
  %1201 = vmatpush.msra.mxu0 %v1124
  %1202 = vmatpush.msra.mxu0 %v1123
  %1203 = vmatpush.msra.mxu0 %v1122
  %1204 = vmatpush.msra.mxu0 %v1121
  %1205 = vmatmul.f32.gmra.mxu0 %v1102
  %v1206 = vpop.f32.mrf.mxu0
  %v1207 = vadd.f32 %v1187, %v1206
  %1208 = vdwg.mxu0
  %1209 = vmatpush.msra.mxu0 %v1152
  %1210 = vmatpush.msra.mxu0 %v1151
  %1211 = vmatpush.msra.mxu0 %v1150
  %1212 = vmatpush.msra.mxu0 %v1149
  %1213 = vmatpush.msra.mxu0 %v1148
  %1214 = vmatpush.msra.mxu0 %v1147
  %1215 = vmatpush.msra.mxu0 %v1146
  %1216 = vmatpush.msra.mxu0 %v1145
  %1217 = vmatpush.msra.mxu0 %v1144
  %1218 = vmatpush.msra.mxu0 %v1143
  %1219 = vmatpush.msra.mxu0 %v1142
  %1220 = vmatpush.msra.mxu0 %v1141
  %1221 = vmatpush.msra.mxu0 %v1140
  %1222 = vmatpush.msra.mxu0 %v1139
  %1223 = vmatpush.msra.mxu0 %v1138
  %1224 = vmatpush.msra.mxu0 %v1137
  %1225 = vmatmul.f32.gmra.mxu0 %v1103
  %v1226 = vpop.f32.mrf.mxu0
  %v1227 = vadd.f32 %v1207, %v1226
  %1228 = vdwg.mxu0
  %1229 = vmatpush.msra.mxu0 %v1168
  %1230 = vmatpush.msra.mxu0 %v1167
  %1231 = vmatpush.msra.mxu0 %v1166
  %1232 = vmatpush.msra.mxu0 %v1165
  %1233 = vmatpush.msra.mxu0 %v1164
  %1234 = vmatpush.msra.mxu0 %v1163
  %1235 = vmatpush.msra.mxu0 %v1162
  %1236 = vmatpush.msra.mxu0 %v1161
  %1237 = vmatpush.msra.mxu0 %v1160
  %1238 = vmatpush.msra.mxu0 %v1159
  %1239 = vmatpush.msra.mxu0 %v1158
  %1240 = vmatpush.msra.mxu0 %v1157
  %1241 = vmatpush.msra.mxu0 %v1156
  %1242 = vmatpush.msra.mxu0 %v1155
  %1243 = vmatpush.msra.mxu0 %v1154
  %1244 = vmatpush.msra.mxu0 %v1153
  %1245 = vmatmul.f32.gmra.mxu0 %v1104
  %v1246 = vpop.f32.mrf.mxu0
  %v1247 = vadd.f32 %v1227, %v1246
  %1248 = vdwg.mxu0
  %v1249 = vmax.f32 %v1247, 0.0
  %1251 = vrot.lane.b32.xlu0 %v1249, 9
  %v1252 = vpop.permute.xlu0 %1251
  %v1254 = vld [vmem:[%s4] sm:$0x1]
  %v1256 = vperm.slane %v1254, 0
  %v1258 = vmul.f32 %v1252, %v1256
  %s1259 = scalar_lea.vmem %s5, 72
  %v1260 = vld [vmem:[%s1259] sm:$0xff]
  %1261 = vrot.lane.b32.xlu0 %v1249, 8
  %v1262 = vpop.permute.xlu0 %1261
  %s1264 = scalar_lea.vmem %s4, 1
  %v1265 = vld [vmem:[%s1264] sm:$0x1]
  %v1267 = vperm.slane %v1265, 0
  %v1269 = vmul.f32 %v1262, %v1267
  %s1270 = scalar_lea.vmem %s5, 80
  %v1271 = vld [vmem:[%s1270] sm:$0xff]
  %v1273 = vsel %vm102, %v1271, 0
  %1275 = vmatpush.msra.mxu0 0.0
  %1276 = vmatpush.msra.mxu0 0.0
  %1277 = vmatpush.msra.mxu0 0.0
  %1278 = vmatpush.msra.mxu0 0.0
  %1279 = vmatpush.msra.mxu0 0.0
  %1280 = vmatpush.msra.mxu0 0.0
  %1281 = vmatpush.msra.mxu0 0.0
  %1282 = vmatpush.msra.mxu0 0.0
  %1283 = vmatpush.msra.mxu0 0.0
  %1284 = vmatpush.msra.mxu0 0.0
  %1285 = vmatpush.msra.mxu0 0.0
  %1286 = vmatpush.msra.mxu0 0.0
  %1287 = vmatpush.msra.mxu0 0.0
  %1288 = vmatpush.msra.mxu0 0.0
  %1289 = vmatpush.msra.mxu0 0.0
  %1290 = vmatpush.msra.mxu0 %v1269
  %1291 = vmatmul.f32.gmra.mxu0 %v1273
  %v1292 = vpop.f32.mrf.mxu0
  %v1293 = vadd.f32 0.0, %v1292
  %1294 = vdwg.mxu0
  %v1296 = vsel %vm102, %v1260, 0
  %1298 = vmatpush.msra.mxu0 0.0
  %1299 = vmatpush.msra.mxu0 0.0
  %1300 = vmatpush.msra.mxu0 0.0
  %1301 = vmatpush.msra.mxu0 0.0
  %1302 = vmatpush.msra.mxu0 0.0
  %1303 = vmatpush.msra.mxu0 0.0
  %1304 = vmatpush.msra.mxu0 0.0
  %1305 = vmatpush.msra.mxu0 0.0
  %1306 = vmatpush.msra.mxu0 0.0
  %1307 = vmatpush.msra.mxu0 0.0
  %1308 = vmatpush.msra.mxu0 0.0
  %1309 = vmatpush.msra.mxu0 0.0
  %1310 = vmatpush.msra.mxu0 0.0
  %1311 = vmatpush.msra.mxu0 0.0
  %1312 = vmatpush.msra.mxu0 0.0
  %1313 = vmatpush.msra.mxu0 %v1258
  %1314 = vmatmul.f32.gmra.mxu0 %v1296
  %v1315 = vpop.f32.mrf.mxu0
  %v1316 = vadd.f32 %v1293, %v1315
  %1317 = vdwg.mxu0
  %1318 = vrot.lane.b32.xlu0 %v1249, 7
  %v1319 = vpop.permute.xlu0 %1318
  %s1321 = scalar_lea.vmem %s4, 2
  %v1322 = vld [vmem:[%s1321] sm:$0x1]
  %v1324 = vperm.slane %v1322, 0
  %v1326 = vmul.f32 %v1319, %v1324
  %s1327 = scalar_lea.vmem %s5, 88
  %v1328 = vld [vmem:[%s1327] sm:$0xff]
  %v1330 = vsel %vm102, %v1328, 0
  %1332 = vmatpush.msra.mxu0 0.0
  %1333 = vmatpush.msra.mxu0 0.0
  %1334 = vmatpush.msra.mxu0 0.0
  %1335 = vmatpush.msra.mxu0 0.0
  %1336 = vmatpush.msra.mxu0 0.0
  %1337 = vmatpush.msra.mxu0 0.0
  %1338 = vmatpush.msra.mxu0 0.0
  %1339 = vmatpush.msra.mxu0 0.0
  %1340 = vmatpush.msra.mxu0 0.0
  %1341 = vmatpush.msra.mxu0 0.0
  %1342 = vmatpush.msra.mxu0 0.0
  %1343 = vmatpush.msra.mxu0 0.0
  %1344 = vmatpush.msra.mxu0 0.0
  %1345 = vmatpush.msra.mxu0 0.0
  %1346 = vmatpush.msra.mxu0 0.0
  %1347 = vmatpush.msra.mxu0 %v1326
  %1348 = vmatmul.f32.gmra.mxu0 %v1330
  %v1349 = vpop.f32.mrf.mxu0
  %v1350 = vadd.f32 0.0, %v1349
  %1351 = vdwg.mxu0
  %v1352 = vadd.f32 %v1316, %v1350
  %1353 = vrot.lane.b32.xlu0 %v1249, 1
  %v1354 = vpop.permute.xlu0 %1353
  %s1356 = scalar_lea.vmem %s4, 3
  %v1357 = vld [vmem:[%s1356] sm:$0x1]
  %v1359 = vperm.slane %v1357, 0
  %v1361 = vmul.f32 %v1354, %v1359
  %s1362 = scalar_lea.vmem %s5, 96
  %v1363 = vld [vmem:[%s1362] sm:$0xff]
  %v1365 = vsel %vm102, %v1363, 0
  %1367 = vmatpush.msra.mxu0 0.0
  %1368 = vmatpush.msra.mxu0 0.0
  %1369 = vmatpush.msra.mxu0 0.0
  %1370 = vmatpush.msra.mxu0 0.0
  %1371 = vmatpush.msra.mxu0 0.0
  %1372 = vmatpush.msra.mxu0 0.0
  %1373 = vmatpush.msra.mxu0 0.0
  %1374 = vmatpush.msra.mxu0 0.0
  %1375 = vmatpush.msra.mxu0 0.0
  %1376 = vmatpush.msra.mxu0 0.0
  %1377 = vmatpush.msra.mxu0 0.0
  %1378 = vmatpush.msra.mxu0 0.0
  %1379 = vmatpush.msra.mxu0 0.0
  %1380 = vmatpush.msra.mxu0 0.0
  %1381 = vmatpush.msra.mxu0 0.0
  %1382 = vmatpush.msra.mxu0 %v1361
  %1383 = vmatmul.f32.gmra.mxu0 %v1365
  %v1384 = vpop.f32.mrf.mxu0
  %v1385 = vadd.f32 0.0, %v1384
  %1386 = vdwg.mxu0
  %v1387 = vadd.f32 %v1352, %v1385
  %s1388 = scalar_lea.vmem %s4, 4
  %v1389 = vld [vmem:[%s1388] sm:$0x1]
  %v1391 = vperm.slane %v1389, 0
  %v1393 = vmul.f32 %v1249, %v1391
  %s1394 = scalar_lea.vmem %s5, 104
  %v1395 = vld [vmem:[%s1394] sm:$0xff]
  %v1397 = vsel %vm102, %v1395, 0
  %1399 = vmatpush.msra.mxu0 0.0
  %1400 = vmatpush.msra.mxu0 0.0
  %1401 = vmatpush.msra.mxu0 0.0
  %1402 = vmatpush.msra.mxu0 0.0
  %1403 = vmatpush.msra.mxu0 0.0
  %1404 = vmatpush.msra.mxu0 0.0
  %1405 = vmatpush.msra.mxu0 0.0
  %1406 = vmatpush.msra.mxu0 0.0
  %1407 = vmatpush.msra.mxu0 0.0
  %1408 = vmatpush.msra.mxu0 0.0
  %1409 = vmatpush.msra.mxu0 0.0
  %1410 = vmatpush.msra.mxu0 0.0
  %1411 = vmatpush.msra.mxu0 0.0
  %1412 = vmatpush.msra.mxu0 0.0
  %1413 = vmatpush.msra.mxu0 0.0
  %1414 = vmatpush.msra.mxu0 %v1393
  %1415 = vmatmul.f32.gmra.mxu0 %v1397
  %v1416 = vpop.f32.mrf.mxu0
  %v1417 = vadd.f32 0.0, %v1416
  %1418 = vdwg.mxu0
  %v1419 = vadd.f32 %v1387, %v1417
  %1420 = vrot.lane.b32.xlu0 %v1249, 127
  %v1421 = vpop.permute.xlu0 %1420
  %s1423 = scalar_lea.vmem %s4, 5
  %v1424 = vld [vmem:[%s1423] sm:$0x1]
  %v1426 = vperm.slane %v1424, 0
  %v1428 = vmul.f32 %v1421, %v1426
  %s1429 = scalar_lea.vmem %s5, 112
  %v1430 = vld [vmem:[%s1429] sm:$0xff]
  %v1432 = vsel %vm102, %v1430, 0
  %1434 = vmatpush.msra.mxu0 0.0
  %1435 = vmatpush.msra.mxu0 0.0
  %1436 = vmatpush.msra.mxu0 0.0
  %1437 = vmatpush.msra.mxu0 0.0
  %1438 = vmatpush.msra.mxu0 0.0
  %1439 = vmatpush.msra.mxu0 0.0
  %1440 = vmatpush.msra.mxu0 0.0
  %1441 = vmatpush.msra.mxu0 0.0
  %1442 = vmatpush.msra.mxu0 0.0
  %1443 = vmatpush.msra.mxu0 0.0
  %1444 = vmatpush.msra.mxu0 0.0
  %1445 = vmatpush.msra.mxu0 0.0
  %1446 = vmatpush.msra.mxu0 0.0
  %1447 = vmatpush.msra.mxu0 0.0
  %1448 = vmatpush.msra.mxu0 0.0
  %1449 = vmatpush.msra.mxu0 %v1428
  %1450 = vmatmul.f32.gmra.mxu0 %v1432
  %v1451 = vpop.f32.mrf.mxu0
  %v1452 = vadd.f32 0.0, %v1451
  %1453 = vdwg.mxu0
  %v1454 = vadd.f32 %v1419, %v1452
  %1455 = vrot.lane.b32.xlu0 %v1249, 121
  %v1456 = vpop.permute.xlu0 %1455
  %s1458 = scalar_lea.vmem %s4, 6
  %v1459 = vld [vmem:[%s1458] sm:$0x1]
  %v1461 = vperm.slane %v1459, 0
  %v1463 = vmul.f32 %v1456, %v1461
  %s1464 = scalar_lea.vmem %s5, 120
  %v1465 = vld [vmem:[%s1464] sm:$0xff]
  %v1467 = vsel %vm102, %v1465, 0
  %1469 = vmatpush.msra.mxu0 0.0
  %1470 = vmatpush.msra.mxu0 0.0
  %1471 = vmatpush.msra.mxu0 0.0
  %1472 = vmatpush.msra.mxu0 0.0
  %1473 = vmatpush.msra.mxu0 0.0
  %1474 = vmatpush.msra.mxu0 0.0
  %1475 = vmatpush.msra.mxu0 0.0
  %1476 = vmatpush.msra.mxu0 0.0
  %1477 = vmatpush.msra.mxu0 0.0
  %1478 = vmatpush.msra.mxu0 0.0
  %1479 = vmatpush.msra.mxu0 0.0
  %1480 = vmatpush.msra.mxu0 0.0
  %1481 = vmatpush.msra.mxu0 0.0
  %1482 = vmatpush.msra.mxu0 0.0
  %1483 = vmatpush.msra.mxu0 0.0
  %1484 = vmatpush.msra.mxu0 %v1463
  %1485 = vmatmul.f32.gmra.mxu0 %v1467
  %v1486 = vpop.f32.mrf.mxu0
  %v1487 = vadd.f32 0.0, %v1486
  %1488 = vdwg.mxu0
  %v1489 = vadd.f32 %v1454, %v1487
  %1490 = vrot.lane.b32.xlu0 %v1249, 120
  %v1491 = vpop.permute.xlu0 %1490
  %s1493 = scalar_lea.vmem %s4, 7
  %v1494 = vld [vmem:[%s1493] sm:$0x1]
  %v1496 = vperm.slane %v1494, 0
  %v1498 = vmul.f32 %v1491, %v1496
  %s1499 = scalar_lea.vmem %s5, 128
  %v1500 = vld [vmem:[%s1499] sm:$0xff]
  %v1502 = vsel %vm102, %v1500, 0
  %1504 = vmatpush.msra.mxu0 0.0
  %1505 = vmatpush.msra.mxu0 0.0
  %1506 = vmatpush.msra.mxu0 0.0
  %1507 = vmatpush.msra.mxu0 0.0
  %1508 = vmatpush.msra.mxu0 0.0
  %1509 = vmatpush.msra.mxu0 0.0
  %1510 = vmatpush.msra.mxu0 0.0
  %1511 = vmatpush.msra.mxu0 0.0
  %1512 = vmatpush.msra.mxu0 0.0
  %1513 = vmatpush.msra.mxu0 0.0
  %1514 = vmatpush.msra.mxu0 0.0
  %1515 = vmatpush.msra.mxu0 0.0
  %1516 = vmatpush.msra.mxu0 0.0
  %1517 = vmatpush.msra.mxu0 0.0
  %1518 = vmatpush.msra.mxu0 0.0
  %1519 = vmatpush.msra.mxu0 %v1498
  %1520 = vmatmul.f32.gmra.mxu0 %v1502
  %v1521 = vpop.f32.mrf.mxu0
  %v1522 = vadd.f32 0.0, %v1521
  %1523 = vdwg.mxu0
  %v1524 = vadd.f32 %v1489, %v1522
  %1525 = vrot.lane.b32.xlu0 %v1249, 119
  %v1526 = vpop.permute.xlu0 %1525
  %s1528 = scalar_lea.vmem %s4, 8
  %v1529 = vld [vmem:[%s1528] sm:$0x1]
  %v1531 = vperm.slane %v1529, 0
  %v1533 = vmul.f32 %v1526, %v1531
  %s1534 = scalar_lea.vmem %s5, 136
  %v1535 = vld [vmem:[%s1534] sm:$0xff]
  %v1537 = vsel %vm102, %v1535, 0
  %1539 = vmatpush.msra.mxu0 0.0
  %1540 = vmatpush.msra.mxu0 0.0
  %1541 = vmatpush.msra.mxu0 0.0
  %1542 = vmatpush.msra.mxu0 0.0
  %1543 = vmatpush.msra.mxu0 0.0
  %1544 = vmatpush.msra.mxu0 0.0
  %1545 = vmatpush.msra.mxu0 0.0
  %1546 = vmatpush.msra.mxu0 0.0
  %1547 = vmatpush.msra.mxu0 0.0
  %1548 = vmatpush.msra.mxu0 0.0
  %1549 = vmatpush.msra.mxu0 0.0
  %1550 = vmatpush.msra.mxu0 0.0
  %1551 = vmatpush.msra.mxu0 0.0
  %1552 = vmatpush.msra.mxu0 0.0
  %1553 = vmatpush.msra.mxu0 0.0
  %1554 = vmatpush.msra.mxu0 %v1533
  %1555 = vmatmul.f32.gmra.mxu0 %v1537
  %v1556 = vpop.f32.mrf.mxu0
  %v1557 = vadd.f32 0.0, %v1556
  %1558 = vdwg.mxu0
  %v1559 = vadd.f32 %v1524, %v1557
  %1560 = vadd.xlane.f32.xlu0 %v1559
  %v1561 = vpop.xlane.xlu0 %1560
  %v1562 = vmul.f32 %v1561, 0.0078125
  %v1563 = vsub.f32 %v1559, %v1562
  %v1564 = vmul.f32 %v1563, %v1563
  %1565 = vadd.xlane.f32.xlu0 %v1564
  %v1566 = vpop.xlane.xlu0 %1565
  %v1567 = vmul.f32 %v1566, 0.0078125
  %v1568 = vld [vmem:[%s6] sm:$0xff]
  %v1569 = vadd.f32 %v1567, 1e-05
  %v1570 = vrsqrt.pop %v1569
  %v1571 = vmul.f32 %v1570, %v1569
  %v1572 = vmul.f32 %v1571, %v1570
  %v1573 = vmul.f32 0.5, %v1572
  %v1574 = vsub.f32 1.5, %v1573
  %v1575 = vmul.f32 %v1570, %v1574
  %vm1576 = vweird.f32 %v1569
  %vm1577 = vweird.f32 %v1570
  %vm1578 = vmor %vm1576, %vm1577
  %v1579 = vsel %vm1578, %v1570, %v1575
  %v1580 = vmul.f32 %v1568, %v1579
  %1582 = vset.pattern.permute.xlu0 0
  %1583 = vperm.xlu0 %1582, %v1580
  %v1584 = vpop.permute.xlu0 %1583
  %v1586 = vmul.f32 %v1563, %v1584
  %s1587 = scalar_lea.vmem %s6, 8
  %v1588 = vld [vmem:[%s1587] sm:$0xff]
  %1590 = vset.pattern.permute.xlu0 0
  %1591 = vperm.xlu0 %1590, %v1588
  %v1592 = vpop.permute.xlu0 %1591
  %v1594 = vadd.f32 %v1586, %v1592
  %v1595 = vmax.f32 %v1594, 0.0
  %1597 = vrot.lane.b32.xlu0 %v1595, 9
  %v1598 = vpop.permute.xlu0 %1597
  %v1600 = vmul.f32 %v1598, %v1256
  %s1601 = scalar_lea.vmem %s5, 144
  %v1602 = vld [vmem:[%s1601] sm:$0xff]
  %1603 = vrot.lane.b32.xlu0 %v1595, 8
  %v1604 = vpop.permute.xlu0 %1603
  %v1606 = vmul.f32 %v1604, %v1267
  %s1607 = scalar_lea.vmem %s5, 152
  %v1608 = vld [vmem:[%s1607] sm:$0xff]
  %v1610 = vsel %vm102, %v1608, 0
  %1612 = vmatpush.msra.mxu0 0.0
  %1613 = vmatpush.msra.mxu0 0.0
  %1614 = vmatpush.msra.mxu0 0.0
  %1615 = vmatpush.msra.mxu0 0.0
  %1616 = vmatpush.msra.mxu0 0.0
  %1617 = vmatpush.msra.mxu0 0.0
  %1618 = vmatpush.msra.mxu0 0.0
  %1619 = vmatpush.msra.mxu0 0.0
  %1620 = vmatpush.msra.mxu0 0.0
  %1621 = vmatpush.msra.mxu0 0.0
  %1622 = vmatpush.msra.mxu0 0.0
  %1623 = vmatpush.msra.mxu0 0.0
  %1624 = vmatpush.msra.mxu0 0.0
  %1625 = vmatpush.msra.mxu0 0.0
  %1626 = vmatpush.msra.mxu0 0.0
  %1627 = vmatpush.msra.mxu0 %v1606
  %1628 = vmatmul.f32.gmra.mxu0 %v1610
  %v1629 = vpop.f32.mrf.mxu0
  %v1630 = vadd.f32 0.0, %v1629
  %1631 = vdwg.mxu0
  %v1633 = vsel %vm102, %v1602, 0
  %1635 = vmatpush.msra.mxu0 0.0
  %1636 = vmatpush.msra.mxu0 0.0
  %1637 = vmatpush.msra.mxu0 0.0
  %1638 = vmatpush.msra.mxu0 0.0
  %1639 = vmatpush.msra.mxu0 0.0
  %1640 = vmatpush.msra.mxu0 0.0
  %1641 = vmatpush.msra.mxu0 0.0
  %1642 = vmatpush.msra.mxu0 0.0
  %1643 = vmatpush.msra.mxu0 0.0
  %1644 = vmatpush.msra.mxu0 0.0
  %1645 = vmatpush.msra.mxu0 0.0
  %1646 = vmatpush.msra.mxu0 0.0
  %1647 = vmatpush.msra.mxu0 0.0
  %1648 = vmatpush.msra.mxu0 0.0
  %1649 = vmatpush.msra.mxu0 0.0
  %1650 = vmatpush.msra.mxu0 %v1600
  %1651 = vmatmul.f32.gmra.mxu0 %v1633
  %v1652 = vpop.f32.mrf.mxu0
  %v1653 = vadd.f32 %v1630, %v1652
  %1654 = vdwg.mxu0
  %1655 = vrot.lane.b32.xlu0 %v1595, 7
  %v1656 = vpop.permute.xlu0 %1655
  %v1658 = vmul.f32 %v1656, %v1324
  %s1659 = scalar_lea.vmem %s5, 160
  %v1660 = vld [vmem:[%s1659] sm:$0xff]
  %v1662 = vsel %vm102, %v1660, 0
  %1664 = vmatpush.msra.mxu0 0.0
  %1665 = vmatpush.msra.mxu0 0.0
  %1666 = vmatpush.msra.mxu0 0.0
  %1667 = vmatpush.msra.mxu0 0.0
  %1668 = vmatpush.msra.mxu0 0.0
  %1669 = vmatpush.msra.mxu0 0.0
  %1670 = vmatpush.msra.mxu0 0.0
  %1671 = vmatpush.msra.mxu0 0.0
  %1672 = vmatpush.msra.mxu0 0.0
  %1673 = vmatpush.msra.mxu0 0.0
  %1674 = vmatpush.msra.mxu0 0.0
  %1675 = vmatpush.msra.mxu0 0.0
  %1676 = vmatpush.msra.mxu0 0.0
  %1677 = vmatpush.msra.mxu0 0.0
  %1678 = vmatpush.msra.mxu0 0.0
  %1679 = vmatpush.msra.mxu0 %v1658
  %1680 = vmatmul.f32.gmra.mxu0 %v1662
  %v1681 = vpop.f32.mrf.mxu0
  %v1682 = vadd.f32 0.0, %v1681
  %1683 = vdwg.mxu0
  %v1684 = vadd.f32 %v1653, %v1682
  %1685 = vrot.lane.b32.xlu0 %v1595, 1
  %v1686 = vpop.permute.xlu0 %1685
  %v1688 = vmul.f32 %v1686, %v1359
  %s1689 = scalar_lea.vmem %s5, 168
  %v1690 = vld [vmem:[%s1689] sm:$0xff]
  %v1692 = vsel %vm102, %v1690, 0
  %1694 = vmatpush.msra.mxu0 0.0
  %1695 = vmatpush.msra.mxu0 0.0
  %1696 = vmatpush.msra.mxu0 0.0
  %1697 = vmatpush.msra.mxu0 0.0
  %1698 = vmatpush.msra.mxu0 0.0
  %1699 = vmatpush.msra.mxu0 0.0
  %1700 = vmatpush.msra.mxu0 0.0
  %1701 = vmatpush.msra.mxu0 0.0
  %1702 = vmatpush.msra.mxu0 0.0
  %1703 = vmatpush.msra.mxu0 0.0
  %1704 = vmatpush.msra.mxu0 0.0
  %1705 = vmatpush.msra.mxu0 0.0
  %1706 = vmatpush.msra.mxu0 0.0
  %1707 = vmatpush.msra.mxu0 0.0
  %1708 = vmatpush.msra.mxu0 0.0
  %1709 = vmatpush.msra.mxu0 %v1688
  %1710 = vmatmul.f32.gmra.mxu0 %v1692
  %v1711 = vpop.f32.mrf.mxu0
  %v1712 = vadd.f32 0.0, %v1711
  %1713 = vdwg.mxu0
  %v1714 = vadd.f32 %v1684, %v1712
  %v1715 = vmul.f32 %v1595, %v1391
  %s1716 = scalar_lea.vmem %s5, 176
  %v1717 = vld [vmem:[%s1716] sm:$0xff]
  %v1719 = vsel %vm102, %v1717, 0
  %1721 = vmatpush.msra.mxu0 0.0
  %1722 = vmatpush.msra.mxu0 0.0
  %1723 = vmatpush.msra.mxu0 0.0
  %1724 = vmatpush.msra.mxu0 0.0
  %1725 = vmatpush.msra.mxu0 0.0
  %1726 = vmatpush.msra.mxu0 0.0
  %1727 = vmatpush.msra.mxu0 0.0
  %1728 = vmatpush.msra.mxu0 0.0
  %1729 = vmatpush.msra.mxu0 0.0
  %1730 = vmatpush.msra.mxu0 0.0
  %1731 = vmatpush.msra.mxu0 0.0
  %1732 = vmatpush.msra.mxu0 0.0
  %1733 = vmatpush.msra.mxu0 0.0
  %1734 = vmatpush.msra.mxu0 0.0
  %1735 = vmatpush.msra.mxu0 0.0
  %1736 = vmatpush.msra.mxu0 %v1715
  %1737 = vmatmul.f32.gmra.mxu0 %v1719
  %v1738 = vpop.f32.mrf.mxu0
  %v1739 = vadd.f32 0.0, %v1738
  %1740 = vdwg.mxu0
  %v1741 = vadd.f32 %v1714, %v1739
  %1742 = vrot.lane.b32.xlu0 %v1595, 127
  %v1743 = vpop.permute.xlu0 %1742
  %v1745 = vmul.f32 %v1743, %v1426
  %s1746 = scalar_lea.vmem %s5, 184
  %v1747 = vld [vmem:[%s1746] sm:$0xff]
  %v1749 = vsel %vm102, %v1747, 0
  %1751 = vmatpush.msra.mxu0 0.0
  %1752 = vmatpush.msra.mxu0 0.0
  %1753 = vmatpush.msra.mxu0 0.0
  %1754 = vmatpush.msra.mxu0 0.0
  %1755 = vmatpush.msra.mxu0 0.0
  %1756 = vmatpush.msra.mxu0 0.0
  %1757 = vmatpush.msra.mxu0 0.0
  %1758 = vmatpush.msra.mxu0 0.0
  %1759 = vmatpush.msra.mxu0 0.0
  %1760 = vmatpush.msra.mxu0 0.0
  %1761 = vmatpush.msra.mxu0 0.0
  %1762 = vmatpush.msra.mxu0 0.0
  %1763 = vmatpush.msra.mxu0 0.0
  %1764 = vmatpush.msra.mxu0 0.0
  %1765 = vmatpush.msra.mxu0 0.0
  %1766 = vmatpush.msra.mxu0 %v1745
  %1767 = vmatmul.f32.gmra.mxu0 %v1749
  %v1768 = vpop.f32.mrf.mxu0
  %v1769 = vadd.f32 0.0, %v1768
  %1770 = vdwg.mxu0
  %v1771 = vadd.f32 %v1741, %v1769
  %1772 = vrot.lane.b32.xlu0 %v1595, 121
  %v1773 = vpop.permute.xlu0 %1772
  %v1775 = vmul.f32 %v1773, %v1461
  %s1776 = scalar_lea.vmem %s5, 192
  %v1777 = vld [vmem:[%s1776] sm:$0xff]
  %v1779 = vsel %vm102, %v1777, 0
  %1781 = vmatpush.msra.mxu0 0.0
  %1782 = vmatpush.msra.mxu0 0.0
  %1783 = vmatpush.msra.mxu0 0.0
  %1784 = vmatpush.msra.mxu0 0.0
  %1785 = vmatpush.msra.mxu0 0.0
  %1786 = vmatpush.msra.mxu0 0.0
  %1787 = vmatpush.msra.mxu0 0.0
  %1788 = vmatpush.msra.mxu0 0.0
  %1789 = vmatpush.msra.mxu0 0.0
  %1790 = vmatpush.msra.mxu0 0.0
  %1791 = vmatpush.msra.mxu0 0.0
  %1792 = vmatpush.msra.mxu0 0.0
  %1793 = vmatpush.msra.mxu0 0.0
  %1794 = vmatpush.msra.mxu0 0.0
  %1795 = vmatpush.msra.mxu0 0.0
  %1796 = vmatpush.msra.mxu0 %v1775
  %1797 = vmatmul.f32.gmra.mxu0 %v1779
  %v1798 = vpop.f32.mrf.mxu0
  %v1799 = vadd.f32 0.0, %v1798
  %1800 = vdwg.mxu0
  %v1801 = vadd.f32 %v1771, %v1799
  %1802 = vrot.lane.b32.xlu0 %v1595, 120
  %v1803 = vpop.permute.xlu0 %1802
  %v1805 = vmul.f32 %v1803, %v1496
  %s1806 = scalar_lea.vmem %s5, 200
  %v1807 = vld [vmem:[%s1806] sm:$0xff]
  %v1809 = vsel %vm102, %v1807, 0
  %1811 = vmatpush.msra.mxu0 0.0
  %1812 = vmatpush.msra.mxu0 0.0
  %1813 = vmatpush.msra.mxu0 0.0
  %1814 = vmatpush.msra.mxu0 0.0
  %1815 = vmatpush.msra.mxu0 0.0
  %1816 = vmatpush.msra.mxu0 0.0
  %1817 = vmatpush.msra.mxu0 0.0
  %1818 = vmatpush.msra.mxu0 0.0
  %1819 = vmatpush.msra.mxu0 0.0
  %1820 = vmatpush.msra.mxu0 0.0
  %1821 = vmatpush.msra.mxu0 0.0
  %1822 = vmatpush.msra.mxu0 0.0
  %1823 = vmatpush.msra.mxu0 0.0
  %1824 = vmatpush.msra.mxu0 0.0
  %1825 = vmatpush.msra.mxu0 0.0
  %1826 = vmatpush.msra.mxu0 %v1805
  %1827 = vmatmul.f32.gmra.mxu0 %v1809
  %v1828 = vpop.f32.mrf.mxu0
  %v1829 = vadd.f32 0.0, %v1828
  %1830 = vdwg.mxu0
  %v1831 = vadd.f32 %v1801, %v1829
  %1832 = vrot.lane.b32.xlu0 %v1595, 119
  %v1833 = vpop.permute.xlu0 %1832
  %v1835 = vmul.f32 %v1833, %v1531
  %s1836 = scalar_lea.vmem %s5, 208
  %v1837 = vld [vmem:[%s1836] sm:$0xff]
  %v1839 = vsel %vm102, %v1837, 0
  %1841 = vmatpush.msra.mxu0 0.0
  %1842 = vmatpush.msra.mxu0 0.0
  %1843 = vmatpush.msra.mxu0 0.0
  %1844 = vmatpush.msra.mxu0 0.0
  %1845 = vmatpush.msra.mxu0 0.0
  %1846 = vmatpush.msra.mxu0 0.0
  %1847 = vmatpush.msra.mxu0 0.0
  %1848 = vmatpush.msra.mxu0 0.0
  %1849 = vmatpush.msra.mxu0 0.0
  %1850 = vmatpush.msra.mxu0 0.0
  %1851 = vmatpush.msra.mxu0 0.0
  %1852 = vmatpush.msra.mxu0 0.0
  %1853 = vmatpush.msra.mxu0 0.0
  %1854 = vmatpush.msra.mxu0 0.0
  %1855 = vmatpush.msra.mxu0 0.0
  %1856 = vmatpush.msra.mxu0 %v1835
  %1857 = vmatmul.f32.gmra.mxu0 %v1839
  %v1858 = vpop.f32.mrf.mxu0
  %v1859 = vadd.f32 0.0, %v1858
  %1860 = vdwg.mxu0
  %v1861 = vadd.f32 %v1831, %v1859
  %1862 = vadd.xlane.f32.xlu0 %v1861
  %v1863 = vpop.xlane.xlu0 %1862
  %v1864 = vmul.f32 %v1863, 0.0078125
  %v1865 = vsub.f32 %v1861, %v1864
  %v1866 = vmul.f32 %v1865, %v1865
  %1867 = vadd.xlane.f32.xlu0 %v1866
  %v1868 = vpop.xlane.xlu0 %1867
  %v1869 = vmul.f32 %v1868, 0.0078125
  %s1870 = scalar_lea.vmem %s6, 16
  %v1871 = vld [vmem:[%s1870] sm:$0xff]
  %v1872 = vadd.f32 %v1869, 1e-05
  %v1873 = vrsqrt.pop %v1872
  %v1874 = vmul.f32 %v1873, %v1872
  %v1875 = vmul.f32 %v1874, %v1873
  %v1876 = vmul.f32 0.5, %v1875
  %v1877 = vsub.f32 1.5, %v1876
  %v1878 = vmul.f32 %v1873, %v1877
  %vm1879 = vweird.f32 %v1872
  %vm1880 = vweird.f32 %v1873
  %vm1881 = vmor %vm1879, %vm1880
  %v1882 = vsel %vm1881, %v1873, %v1878
  %v1883 = vmul.f32 %v1871, %v1882
  %1885 = vset.pattern.permute.xlu0 0
  %1886 = vperm.xlu0 %1885, %v1883
  %v1887 = vpop.permute.xlu0 %1886
  %v1889 = vmul.f32 %v1865, %v1887
  %s1890 = scalar_lea.vmem %s6, 24
  %v1891 = vld [vmem:[%s1890] sm:$0xff]
  %1893 = vset.pattern.permute.xlu0 0
  %1894 = vperm.xlu0 %1893, %v1891
  %v1895 = vpop.permute.xlu0 %1894
  %v1897 = vadd.f32 %v1889, %v1895
  %v1898 = vadd.f32 %v1897, %v1249
  %v1899 = vmax.f32 %v1898, 0.0
  %1901 = vrot.lane.b32.xlu0 %v1899, 9
  %v1902 = vpop.permute.xlu0 %1901
  %v1904 = vmul.f32 %v1902, %v1256
  %s1905 = scalar_lea.vmem %s5, 216
  %v1906 = vld [vmem:[%s1905] sm:$0xff]
  %1907 = vrot.lane.b32.xlu0 %v1899, 8
  %v1908 = vpop.permute.xlu0 %1907
  %v1910 = vmul.f32 %v1908, %v1267
  %s1911 = scalar_lea.vmem %s5, 224
  %v1912 = vld [vmem:[%s1911] sm:$0xff]
  %v1914 = vsel %vm102, %v1912, 0
  %1916 = vmatpush.msra.mxu0 0.0
  %1917 = vmatpush.msra.mxu0 0.0
  %1918 = vmatpush.msra.mxu0 0.0
  %1919 = vmatpush.msra.mxu0 0.0
  %1920 = vmatpush.msra.mxu0 0.0
  %1921 = vmatpush.msra.mxu0 0.0
  %1922 = vmatpush.msra.mxu0 0.0
  %1923 = vmatpush.msra.mxu0 0.0
  %1924 = vmatpush.msra.mxu0 0.0
  %1925 = vmatpush.msra.mxu0 0.0
  %1926 = vmatpush.msra.mxu0 0.0
  %1927 = vmatpush.msra.mxu0 0.0
  %1928 = vmatpush.msra.mxu0 0.0
  %1929 = vmatpush.msra.mxu0 0.0
  %1930 = vmatpush.msra.mxu0 0.0
  %1931 = vmatpush.msra.mxu0 %v1910
  %1932 = vmatmul.f32.gmra.mxu0 %v1914
  %v1933 = vpop.f32.mrf.mxu0
  %v1934 = vadd.f32 0.0, %v1933
  %1935 = vdwg.mxu0
  %v1937 = vsel %vm102, %v1906, 0
  %1939 = vmatpush.msra.mxu0 0.0
  %1940 = vmatpush.msra.mxu0 0.0
  %1941 = vmatpush.msra.mxu0 0.0
  %1942 = vmatpush.msra.mxu0 0.0
  %1943 = vmatpush.msra.mxu0 0.0
  %1944 = vmatpush.msra.mxu0 0.0
  %1945 = vmatpush.msra.mxu0 0.0
  %1946 = vmatpush.msra.mxu0 0.0
  %1947 = vmatpush.msra.mxu0 0.0
  %1948 = vmatpush.msra.mxu0 0.0
  %1949 = vmatpush.msra.mxu0 0.0
  %1950 = vmatpush.msra.mxu0 0.0
  %1951 = vmatpush.msra.mxu0 0.0
  %1952 = vmatpush.msra.mxu0 0.0
  %1953 = vmatpush.msra.mxu0 0.0
  %1954 = vmatpush.msra.mxu0 %v1904
  %1955 = vmatmul.f32.gmra.mxu0 %v1937
  %v1956 = vpop.f32.mrf.mxu0
  %v1957 = vadd.f32 %v1934, %v1956
  %1958 = vdwg.mxu0
  %1959 = vrot.lane.b32.xlu0 %v1899, 7
  %v1960 = vpop.permute.xlu0 %1959
  %v1962 = vmul.f32 %v1960, %v1324
  %s1963 = scalar_lea.vmem %s5, 232
  %v1964 = vld [vmem:[%s1963] sm:$0xff]
  %v1966 = vsel %vm102, %v1964, 0
  %1968 = vmatpush.msra.mxu0 0.0
  %1969 = vmatpush.msra.mxu0 0.0
  %1970 = vmatpush.msra.mxu0 0.0
  %1971 = vmatpush.msra.mxu0 0.0
  %1972 = vmatpush.msra.mxu0 0.0
  %1973 = vmatpush.msra.mxu0 0.0
  %1974 = vmatpush.msra.mxu0 0.0
  %1975 = vmatpush.msra.mxu0 0.0
  %1976 = vmatpush.msra.mxu0 0.0
  %1977 = vmatpush.msra.mxu0 0.0
  %1978 = vmatpush.msra.mxu0 0.0
  %1979 = vmatpush.msra.mxu0 0.0
  %1980 = vmatpush.msra.mxu0 0.0
  %1981 = vmatpush.msra.mxu0 0.0
  %1982 = vmatpush.msra.mxu0 0.0
  %1983 = vmatpush.msra.mxu0 %v1962
  %1984 = vmatmul.f32.gmra.mxu0 %v1966
  %v1985 = vpop.f32.mrf.mxu0
  %v1986 = vadd.f32 0.0, %v1985
  %1987 = vdwg.mxu0
  %v1988 = vadd.f32 %v1957, %v1986
  %1989 = vrot.lane.b32.xlu0 %v1899, 1
  %v1990 = vpop.permute.xlu0 %1989
  %v1992 = vmul.f32 %v1990, %v1359
  %s1993 = scalar_lea.vmem %s5, 240
  %v1994 = vld [vmem:[%s1993] sm:$0xff]
  %v1996 = vsel %vm102, %v1994, 0
  %1998 = vmatpush.msra.mxu0 0.0
  %1999 = vmatpush.msra.mxu0 0.0
  %2000 = vmatpush.msra.mxu0 0.0
  %2001 = vmatpush.msra.mxu0 0.0
  %2002 = vmatpush.msra.mxu0 0.0
  %2003 = vmatpush.msra.mxu0 0.0
  %2004 = vmatpush.msra.mxu0 0.0
  %2005 = vmatpush.msra.mxu0 0.0
  %2006 = vmatpush.msra.mxu0 0.0
  %2007 = vmatpush.msra.mxu0 0.0
  %2008 = vmatpush.msra.mxu0 0.0
  %2009 = vmatpush.msra.mxu0 0.0
  %2010 = vmatpush.msra.mxu0 0.0
  %2011 = vmatpush.msra.mxu0 0.0
  %2012 = vmatpush.msra.mxu0 0.0
  %2013 = vmatpush.msra.mxu0 %v1992
  %2014 = vmatmul.f32.gmra.mxu0 %v1996
  %v2015 = vpop.f32.mrf.mxu0
  %v2016 = vadd.f32 0.0, %v2015
  %2017 = vdwg.mxu0
  %v2018 = vadd.f32 %v1988, %v2016
  %v2019 = vmul.f32 %v1899, %v1391
  %s2020 = scalar_lea.vmem %s5, 248
  %v2021 = vld [vmem:[%s2020] sm:$0xff]
  %v2023 = vsel %vm102, %v2021, 0
  %2025 = vmatpush.msra.mxu0 0.0
  %2026 = vmatpush.msra.mxu0 0.0
  %2027 = vmatpush.msra.mxu0 0.0
  %2028 = vmatpush.msra.mxu0 0.0
  %2029 = vmatpush.msra.mxu0 0.0
  %2030 = vmatpush.msra.mxu0 0.0
  %2031 = vmatpush.msra.mxu0 0.0
  %2032 = vmatpush.msra.mxu0 0.0
  %2033 = vmatpush.msra.mxu0 0.0
  %2034 = vmatpush.msra.mxu0 0.0
  %2035 = vmatpush.msra.mxu0 0.0
  %2036 = vmatpush.msra.mxu0 0.0
  %2037 = vmatpush.msra.mxu0 0.0
  %2038 = vmatpush.msra.mxu0 0.0
  %2039 = vmatpush.msra.mxu0 0.0
  %2040 = vmatpush.msra.mxu0 %v2019
  %2041 = vmatmul.f32.gmra.mxu0 %v2023
  %v2042 = vpop.f32.mrf.mxu0
  %v2043 = vadd.f32 0.0, %v2042
  %2044 = vdwg.mxu0
  %v2045 = vadd.f32 %v2018, %v2043
  %2046 = vrot.lane.b32.xlu0 %v1899, 127
  %v2047 = vpop.permute.xlu0 %2046
  %v2049 = vmul.f32 %v2047, %v1426
  %s2050 = scalar_lea.vmem %s5, 256
  %v2051 = vld [vmem:[%s2050] sm:$0xff]
  %v2053 = vsel %vm102, %v2051, 0
  %2055 = vmatpush.msra.mxu0 0.0
  %2056 = vmatpush.msra.mxu0 0.0
  %2057 = vmatpush.msra.mxu0 0.0
  %2058 = vmatpush.msra.mxu0 0.0
  %2059 = vmatpush.msra.mxu0 0.0
  %2060 = vmatpush.msra.mxu0 0.0
  %2061 = vmatpush.msra.mxu0 0.0
  %2062 = vmatpush.msra.mxu0 0.0
  %2063 = vmatpush.msra.mxu0 0.0
  %2064 = vmatpush.msra.mxu0 0.0
  %2065 = vmatpush.msra.mxu0 0.0
  %2066 = vmatpush.msra.mxu0 0.0
  %2067 = vmatpush.msra.mxu0 0.0
  %2068 = vmatpush.msra.mxu0 0.0
  %2069 = vmatpush.msra.mxu0 0.0
  %2070 = vmatpush.msra.mxu0 %v2049
  %2071 = vmatmul.f32.gmra.mxu0 %v2053
  %v2072 = vpop.f32.mrf.mxu0
  %v2073 = vadd.f32 0.0, %v2072
  %2074 = vdwg.mxu0
  %v2075 = vadd.f32 %v2045, %v2073
  %2076 = vrot.lane.b32.xlu0 %v1899, 121
  %v2077 = vpop.permute.xlu0 %2076
  %v2079 = vmul.f32 %v2077, %v1461
  %s2080 = scalar_lea.vmem %s5, 264
  %v2081 = vld [vmem:[%s2080] sm:$0xff]
  %v2083 = vsel %vm102, %v2081, 0
  %2085 = vmatpush.msra.mxu0 0.0
  %2086 = vmatpush.msra.mxu0 0.0
  %2087 = vmatpush.msra.mxu0 0.0
  %2088 = vmatpush.msra.mxu0 0.0
  %2089 = vmatpush.msra.mxu0 0.0
  %2090 = vmatpush.msra.mxu0 0.0
  %2091 = vmatpush.msra.mxu0 0.0
  %2092 = vmatpush.msra.mxu0 0.0
  %2093 = vmatpush.msra.mxu0 0.0
  %2094 = vmatpush.msra.mxu0 0.0
  %2095 = vmatpush.msra.mxu0 0.0
  %2096 = vmatpush.msra.mxu0 0.0
  %2097 = vmatpush.msra.mxu0 0.0
  %2098 = vmatpush.msra.mxu0 0.0
  %2099 = vmatpush.msra.mxu0 0.0
  %2100 = vmatpush.msra.mxu0 %v2079
  %2101 = vmatmul.f32.gmra.mxu0 %v2083
  %v2102 = vpop.f32.mrf.mxu0
  %v2103 = vadd.f32 0.0, %v2102
  %2104 = vdwg.mxu0
  %v2105 = vadd.f32 %v2075, %v2103
  %2106 = vrot.lane.b32.xlu0 %v1899, 120
  %v2107 = vpop.permute.xlu0 %2106
  %v2109 = vmul.f32 %v2107, %v1496
  %s2110 = scalar_lea.vmem %s5, 272
  %v2111 = vld [vmem:[%s2110] sm:$0xff]
  %v2113 = vsel %vm102, %v2111, 0
  %2115 = vmatpush.msra.mxu0 0.0
  %2116 = vmatpush.msra.mxu0 0.0
  %2117 = vmatpush.msra.mxu0 0.0
  %2118 = vmatpush.msra.mxu0 0.0
  %2119 = vmatpush.msra.mxu0 0.0
  %2120 = vmatpush.msra.mxu0 0.0
  %2121 = vmatpush.msra.mxu0 0.0
  %2122 = vmatpush.msra.mxu0 0.0
  %2123 = vmatpush.msra.mxu0 0.0
  %2124 = vmatpush.msra.mxu0 0.0
  %2125 = vmatpush.msra.mxu0 0.0
  %2126 = vmatpush.msra.mxu0 0.0
  %2127 = vmatpush.msra.mxu0 0.0
  %2128 = vmatpush.msra.mxu0 0.0
  %2129 = vmatpush.msra.mxu0 0.0
  %2130 = vmatpush.msra.mxu0 %v2109
  %2131 = vmatmul.f32.gmra.mxu0 %v2113
  %v2132 = vpop.f32.mrf.mxu0
  %v2133 = vadd.f32 0.0, %v2132
  %2134 = vdwg.mxu0
  %v2135 = vadd.f32 %v2105, %v2133
  %2136 = vrot.lane.b32.xlu0 %v1899, 119
  %v2137 = vpop.permute.xlu0 %2136
  %v2139 = vmul.f32 %v2137, %v1531
  %s2140 = scalar_lea.vmem %s5, 280
  %v2141 = vld [vmem:[%s2140] sm:$0xff]
  %v2143 = vsel %vm102, %v2141, 0
  %2145 = vmatpush.msra.mxu0 0.0
  %2146 = vmatpush.msra.mxu0 0.0
  %2147 = vmatpush.msra.mxu0 0.0
  %2148 = vmatpush.msra.mxu0 0.0
  %2149 = vmatpush.msra.mxu0 0.0
  %2150 = vmatpush.msra.mxu0 0.0
  %2151 = vmatpush.msra.mxu0 0.0
  %2152 = vmatpush.msra.mxu0 0.0
  %2153 = vmatpush.msra.mxu0 0.0
  %2154 = vmatpush.msra.mxu0 0.0
  %2155 = vmatpush.msra.mxu0 0.0
  %2156 = vmatpush.msra.mxu0 0.0
  %2157 = vmatpush.msra.mxu0 0.0
  %2158 = vmatpush.msra.mxu0 0.0
  %2159 = vmatpush.msra.mxu0 0.0
  %2160 = vmatpush.msra.mxu0 %v2139
  %2161 = vmatmul.f32.gmra.mxu0 %v2143
  %v2162 = vpop.f32.mrf.mxu0
  %v2163 = vadd.f32 0.0, %v2162
  %2164 = vdwg.mxu0
  %v2165 = vadd.f32 %v2135, %v2163
  %2166 = vadd.xlane.f32.xlu0 %v2165
  %v2167 = vpop.xlane.xlu0 %2166
  %v2168 = vmul.f32 %v2167, 0.0078125
  %v2169 = vsub.f32 %v2165, %v2168
  %v2170 = vmul.f32 %v2169, %v2169
  %2171 = vadd.xlane.f32.xlu0 %v2170
  %v2172 = vpop.xlane.xlu0 %2171
  %v2173 = vmul.f32 %v2172, 0.0078125
  %s2174 = scalar_lea.vmem %s6, 32
  %v2175 = vld [vmem:[%s2174] sm:$0xff]
  %v2176 = vadd.f32 %v2173, 1e-05
  %v2177 = vrsqrt.pop %v2176
  %v2178 = vmul.f32 %v2177, %v2176
  %v2179 = vmul.f32 %v2178, %v2177
  %v2180 = vmul.f32 0.5, %v2179
  %v2181 = vsub.f32 1.5, %v2180
  %v2182 = vmul.f32 %v2177, %v2181
  %vm2183 = vweird.f32 %v2176
  %vm2184 = vweird.f32 %v2177
  %vm2185 = vmor %vm2183, %vm2184
  %v2186 = vsel %vm2185, %v2177, %v2182
  %v2187 = vmul.f32 %v2175, %v2186
  %2189 = vset.pattern.permute.xlu0 0
  %2190 = vperm.xlu0 %2189, %v2187
  %v2191 = vpop.permute.xlu0 %2190
  %v2193 = vmul.f32 %v2169, %v2191
  %s2194 = scalar_lea.vmem %s6, 40
  %v2195 = vld [vmem:[%s2194] sm:$0xff]
  %2197 = vset.pattern.permute.xlu0 0
  %2198 = vperm.xlu0 %2197, %v2195
  %v2199 = vpop.permute.xlu0 %2198
  %v2201 = vadd.f32 %v2193, %v2199
  %v2202 = vmax.f32 %v2201, 0.0
  %2204 = vrot.lane.b32.xlu0 %v2202, 9
  %v2205 = vpop.permute.xlu0 %2204
  %v2207 = vmul.f32 %v2205, %v1256
  %s2208 = scalar_lea.vmem %s5, 288
  %v2209 = vld [vmem:[%s2208] sm:$0xff]
  %2210 = vrot.lane.b32.xlu0 %v2202, 8
  %v2211 = vpop.permute.xlu0 %2210
  %v2213 = vmul.f32 %v2211, %v1267
  %s2214 = scalar_lea.vmem %s5, 296
  %v2215 = vld [vmem:[%s2214] sm:$0xff]
  %v2217 = vsel %vm102, %v2215, 0
  %2219 = vmatpush.msra.mxu0 0.0
  %2220 = vmatpush.msra.mxu0 0.0
  %2221 = vmatpush.msra.mxu0 0.0
  %2222 = vmatpush.msra.mxu0 0.0
  %2223 = vmatpush.msra.mxu0 0.0
  %2224 = vmatpush.msra.mxu0 0.0
  %2225 = vmatpush.msra.mxu0 0.0
  %2226 = vmatpush.msra.mxu0 0.0
  %2227 = vmatpush.msra.mxu0 0.0
  %2228 = vmatpush.msra.mxu0 0.0
  %2229 = vmatpush.msra.mxu0 0.0
  %2230 = vmatpush.msra.mxu0 0.0
  %2231 = vmatpush.msra.mxu0 0.0
  %2232 = vmatpush.msra.mxu0 0.0
  %2233 = vmatpush.msra.mxu0 0.0
  %2234 = vmatpush.msra.mxu0 %v2213
  %2235 = vmatmul.f32.gmra.mxu0 %v2217
  %v2236 = vpop.f32.mrf.mxu0
  %v2237 = vadd.f32 0.0, %v2236
  %2238 = vdwg.mxu0
  %v2240 = vsel %vm102, %v2209, 0
  %2242 = vmatpush.msra.mxu0 0.0
  %2243 = vmatpush.msra.mxu0 0.0
  %2244 = vmatpush.msra.mxu0 0.0
  %2245 = vmatpush.msra.mxu0 0.0
  %2246 = vmatpush.msra.mxu0 0.0
  %2247 = vmatpush.msra.mxu0 0.0
  %2248 = vmatpush.msra.mxu0 0.0
  %2249 = vmatpush.msra.mxu0 0.0
  %2250 = vmatpush.msra.mxu0 0.0
  %2251 = vmatpush.msra.mxu0 0.0
  %2252 = vmatpush.msra.mxu0 0.0
  %2253 = vmatpush.msra.mxu0 0.0
  %2254 = vmatpush.msra.mxu0 0.0
  %2255 = vmatpush.msra.mxu0 0.0
  %2256 = vmatpush.msra.mxu0 0.0
  %2257 = vmatpush.msra.mxu0 %v2207
  %2258 = vmatmul.f32.gmra.mxu0 %v2240
  %v2259 = vpop.f32.mrf.mxu0
  %v2260 = vadd.f32 %v2237, %v2259
  %2261 = vdwg.mxu0
  %2262 = vrot.lane.b32.xlu0 %v2202, 7
  %v2263 = vpop.permute.xlu0 %2262
  %v2265 = vmul.f32 %v2263, %v1324
  %s2266 = scalar_lea.vmem %s5, 304
  %v2267 = vld [vmem:[%s2266] sm:$0xff]
  %v2269 = vsel %vm102, %v2267, 0
  %2271 = vmatpush.msra.mxu0 0.0
  %2272 = vmatpush.msra.mxu0 0.0
  %2273 = vmatpush.msra.mxu0 0.0
  %2274 = vmatpush.msra.mxu0 0.0
  %2275 = vmatpush.msra.mxu0 0.0
  %2276 = vmatpush.msra.mxu0 0.0
  %2277 = vmatpush.msra.mxu0 0.0
  %2278 = vmatpush.msra.mxu0 0.0
  %2279 = vmatpush.msra.mxu0 0.0
  %2280 = vmatpush.msra.mxu0 0.0
  %2281 = vmatpush.msra.mxu0 0.0
  %2282 = vmatpush.msra.mxu0 0.0
  %2283 = vmatpush.msra.mxu0 0.0
  %2284 = vmatpush.msra.mxu0 0.0
  %2285 = vmatpush.msra.mxu0 0.0
  %2286 = vmatpush.msra.mxu0 %v2265
  %2287 = vmatmul.f32.gmra.mxu0 %v2269
  %v2288 = vpop.f32.mrf.mxu0
  %v2289 = vadd.f32 0.0, %v2288
  %2290 = vdwg.mxu0
  %v2291 = vadd.f32 %v2260, %v2289
  %2292 = vrot.lane.b32.xlu0 %v2202, 1
  %v2293 = vpop.permute.xlu0 %2292
  %v2295 = vmul.f32 %v2293, %v1359
  %s2296 = scalar_lea.vmem %s5, 312
  %v2297 = vld [vmem:[%s2296] sm:$0xff]
  %v2299 = vsel %vm102, %v2297, 0
  %2301 = vmatpush.msra.mxu0 0.0
  %2302 = vmatpush.msra.mxu0 0.0
  %2303 = vmatpush.msra.mxu0 0.0
  %2304 = vmatpush.msra.mxu0 0.0
  %2305 = vmatpush.msra.mxu0 0.0
  %2306 = vmatpush.msra.mxu0 0.0
  %2307 = vmatpush.msra.mxu0 0.0
  %2308 = vmatpush.msra.mxu0 0.0
  %2309 = vmatpush.msra.mxu0 0.0
  %2310 = vmatpush.msra.mxu0 0.0
  %2311 = vmatpush.msra.mxu0 0.0
  %2312 = vmatpush.msra.mxu0 0.0
  %2313 = vmatpush.msra.mxu0 0.0
  %2314 = vmatpush.msra.mxu0 0.0
  %2315 = vmatpush.msra.mxu0 0.0
  %2316 = vmatpush.msra.mxu0 %v2295
  %2317 = vmatmul.f32.gmra.mxu0 %v2299
  %v2318 = vpop.f32.mrf.mxu0
  %v2319 = vadd.f32 0.0, %v2318
  %2320 = vdwg.mxu0
  %v2321 = vadd.f32 %v2291, %v2319
  %v2322 = vmul.f32 %v2202, %v1391
  %s2323 = scalar_lea.vmem %s5, 320
  %v2324 = vld [vmem:[%s2323] sm:$0xff]
  %v2326 = vsel %vm102, %v2324, 0
  %2328 = vmatpush.msra.mxu0 0.0
  %2329 = vmatpush.msra.mxu0 0.0
  %2330 = vmatpush.msra.mxu0 0.0
  %2331 = vmatpush.msra.mxu0 0.0
  %2332 = vmatpush.msra.mxu0 0.0
  %2333 = vmatpush.msra.mxu0 0.0
  %2334 = vmatpush.msra.mxu0 0.0
  %2335 = vmatpush.msra.mxu0 0.0
  %2336 = vmatpush.msra.mxu0 0.0
  %2337 = vmatpush.msra.mxu0 0.0
  %2338 = vmatpush.msra.mxu0 0.0
  %2339 = vmatpush.msra.mxu0 0.0
  %2340 = vmatpush.msra.mxu0 0.0
  %2341 = vmatpush.msra.mxu0 0.0
  %2342 = vmatpush.msra.mxu0 0.0
  %2343 = vmatpush.msra.mxu0 %v2322
  %2344 = vmatmul.f32.gmra.mxu0 %v2326
  %v2345 = vpop.f32.mrf.mxu0
  %v2346 = vadd.f32 0.0, %v2345
  %2347 = vdwg.mxu0
  %v2348 = vadd.f32 %v2321, %v2346
  %2349 = vrot.lane.b32.xlu0 %v2202, 127
  %v2350 = vpop.permute.xlu0 %2349
  %v2352 = vmul.f32 %v2350, %v1426
  %s2353 = scalar_lea.vmem %s5, 328
  %v2354 = vld [vmem:[%s2353] sm:$0xff]
  %v2356 = vsel %vm102, %v2354, 0
  %2358 = vmatpush.msra.mxu0 0.0
  %2359 = vmatpush.msra.mxu0 0.0
  %2360 = vmatpush.msra.mxu0 0.0
  %2361 = vmatpush.msra.mxu0 0.0
  %2362 = vmatpush.msra.mxu0 0.0
  %2363 = vmatpush.msra.mxu0 0.0
  %2364 = vmatpush.msra.mxu0 0.0
  %2365 = vmatpush.msra.mxu0 0.0
  %2366 = vmatpush.msra.mxu0 0.0
  %2367 = vmatpush.msra.mxu0 0.0
  %2368 = vmatpush.msra.mxu0 0.0
  %2369 = vmatpush.msra.mxu0 0.0
  %2370 = vmatpush.msra.mxu0 0.0
  %2371 = vmatpush.msra.mxu0 0.0
  %2372 = vmatpush.msra.mxu0 0.0
  %2373 = vmatpush.msra.mxu0 %v2352
  %2374 = vmatmul.f32.gmra.mxu0 %v2356
  %v2375 = vpop.f32.mrf.mxu0
  %v2376 = vadd.f32 0.0, %v2375
  %2377 = vdwg.mxu0
  %v2378 = vadd.f32 %v2348, %v2376
  %2379 = vrot.lane.b32.xlu0 %v2202, 121
  %v2380 = vpop.permute.xlu0 %2379
  %v2382 = vmul.f32 %v2380, %v1461
  %s2383 = scalar_lea.vmem %s5, 336
  %v2384 = vld [vmem:[%s2383] sm:$0xff]
  %v2386 = vsel %vm102, %v2384, 0
  %2388 = vmatpush.msra.mxu0 0.0
  %2389 = vmatpush.msra.mxu0 0.0
  %2390 = vmatpush.msra.mxu0 0.0
  %2391 = vmatpush.msra.mxu0 0.0
  %2392 = vmatpush.msra.mxu0 0.0
  %2393 = vmatpush.msra.mxu0 0.0
  %2394 = vmatpush.msra.mxu0 0.0
  %2395 = vmatpush.msra.mxu0 0.0
  %2396 = vmatpush.msra.mxu0 0.0
  %2397 = vmatpush.msra.mxu0 0.0
  %2398 = vmatpush.msra.mxu0 0.0
  %2399 = vmatpush.msra.mxu0 0.0
  %2400 = vmatpush.msra.mxu0 0.0
  %2401 = vmatpush.msra.mxu0 0.0
  %2402 = vmatpush.msra.mxu0 0.0
  %2403 = vmatpush.msra.mxu0 %v2382
  %2404 = vmatmul.f32.gmra.mxu0 %v2386
  %v2405 = vpop.f32.mrf.mxu0
  %v2406 = vadd.f32 0.0, %v2405
  %2407 = vdwg.mxu0
  %v2408 = vadd.f32 %v2378, %v2406
  %2409 = vrot.lane.b32.xlu0 %v2202, 120
  %v2410 = vpop.permute.xlu0 %2409
  %v2412 = vmul.f32 %v2410, %v1496
  %s2413 = scalar_lea.vmem %s5, 344
  %v2414 = vld [vmem:[%s2413] sm:$0xff]
  %v2416 = vsel %vm102, %v2414, 0
  %2418 = vmatpush.msra.mxu0 0.0
  %2419 = vmatpush.msra.mxu0 0.0
  %2420 = vmatpush.msra.mxu0 0.0
  %2421 = vmatpush.msra.mxu0 0.0
  %2422 = vmatpush.msra.mxu0 0.0
  %2423 = vmatpush.msra.mxu0 0.0
  %2424 = vmatpush.msra.mxu0 0.0
  %2425 = vmatpush.msra.mxu0 0.0
  %2426 = vmatpush.msra.mxu0 0.0
  %2427 = vmatpush.msra.mxu0 0.0
  %2428 = vmatpush.msra.mxu0 0.0
  %2429 = vmatpush.msra.mxu0 0.0
  %2430 = vmatpush.msra.mxu0 0.0
  %2431 = vmatpush.msra.mxu0 0.0
  %2432 = vmatpush.msra.mxu0 0.0
  %2433 = vmatpush.msra.mxu0 %v2412
  %2434 = vmatmul.f32.gmra.mxu0 %v2416
  %v2435 = vpop.f32.mrf.mxu0
  %v2436 = vadd.f32 0.0, %v2435
  %2437 = vdwg.mxu0
  %v2438 = vadd.f32 %v2408, %v2436
  %2439 = vrot.lane.b32.xlu0 %v2202, 119
  %v2440 = vpop.permute.xlu0 %2439
  %v2442 = vmul.f32 %v2440, %v1531
  %s2443 = scalar_lea.vmem %s5, 352
  %v2444 = vld [vmem:[%s2443] sm:$0xff]
  %v2446 = vsel %vm102, %v2444, 0
  %2448 = vmatpush.msra.mxu0 0.0
  %2449 = vmatpush.msra.mxu0 0.0
  %2450 = vmatpush.msra.mxu0 0.0
  %2451 = vmatpush.msra.mxu0 0.0
  %2452 = vmatpush.msra.mxu0 0.0
  %2453 = vmatpush.msra.mxu0 0.0
  %2454 = vmatpush.msra.mxu0 0.0
  %2455 = vmatpush.msra.mxu0 0.0
  %2456 = vmatpush.msra.mxu0 0.0
  %2457 = vmatpush.msra.mxu0 0.0
  %2458 = vmatpush.msra.mxu0 0.0
  %2459 = vmatpush.msra.mxu0 0.0
  %2460 = vmatpush.msra.mxu0 0.0
  %2461 = vmatpush.msra.mxu0 0.0
  %2462 = vmatpush.msra.mxu0 0.0
  %2463 = vmatpush.msra.mxu0 %v2442
  %2464 = vmatmul.f32.gmra.mxu0 %v2446
  %v2465 = vpop.f32.mrf.mxu0
  %v2466 = vadd.f32 0.0, %v2465
  %2467 = vdwg.mxu0
  %v2468 = vadd.f32 %v2438, %v2466
  %2469 = vadd.xlane.f32.xlu0 %v2468
  %v2470 = vpop.xlane.xlu0 %2469
  %v2471 = vmul.f32 %v2470, 0.0078125
  %v2472 = vsub.f32 %v2468, %v2471
  %v2473 = vmul.f32 %v2472, %v2472
  %2474 = vadd.xlane.f32.xlu0 %v2473
  %v2475 = vpop.xlane.xlu0 %2474
  %v2476 = vmul.f32 %v2475, 0.0078125
  %s2477 = scalar_lea.vmem %s6, 48
  %v2478 = vld [vmem:[%s2477] sm:$0xff]
  %v2479 = vadd.f32 %v2476, 1e-05
  %v2480 = vrsqrt.pop %v2479
  %v2481 = vmul.f32 %v2480, %v2479
  %v2482 = vmul.f32 %v2481, %v2480
  %v2483 = vmul.f32 0.5, %v2482
  %v2484 = vsub.f32 1.5, %v2483
  %v2485 = vmul.f32 %v2480, %v2484
  %vm2486 = vweird.f32 %v2479
  %vm2487 = vweird.f32 %v2480
  %vm2488 = vmor %vm2486, %vm2487
  %v2489 = vsel %vm2488, %v2480, %v2485
  %v2490 = vmul.f32 %v2478, %v2489
  %2492 = vset.pattern.permute.xlu0 0
  %2493 = vperm.xlu0 %2492, %v2490
  %v2494 = vpop.permute.xlu0 %2493
  %v2496 = vmul.f32 %v2472, %v2494
  %s2497 = scalar_lea.vmem %s6, 56
  %v2498 = vld [vmem:[%s2497] sm:$0xff]
  %2500 = vset.pattern.permute.xlu0 0
  %2501 = vperm.xlu0 %2500, %v2498
  %v2502 = vpop.permute.xlu0 %2501
  %v2504 = vadd.f32 %v2496, %v2502
  %v2505 = vadd.f32 %v2504, %v1899
  %v2506 = vmax.f32 %v2505, 0.0
  %v2507 = vld [vmem:[%s2] sm:$0xff]
  %v2508 = vld [vmem:[%s2 + $0x8] sm:$0xff]
  %v2509 = vld [vmem:[%s2 + $0x10] sm:$0xff]
  %v2510 = vld [vmem:[%s2 + $0x18] sm:$0xff]
  %v2511 = vld [vmem:[%s2 + $0x20] sm:$0xff]
  %v2512 = vld [vmem:[%s2 + $0x28] sm:$0xff]
  %v2513 = vld [vmem:[%s2 + $0x30] sm:$0xff]
  %v2514 = vld [vmem:[%s2 + $0x38] sm:$0xff]
  %v2515 = vld [vmem:[%s2 + $0x40] sm:$0xff]
  %v2516 = vld [vmem:[%s2 + $0x48] sm:$0xff]
  %v2517 = vld [vmem:[%s2 + $0x50] sm:$0xff]
  %v2518 = vld [vmem:[%s2 + $0x58] sm:$0xff]
  %v2519 = vld [vmem:[%s2 + $0x60] sm:$0xff]
  %v2520 = vld [vmem:[%s2 + $0x68] sm:$0xff]
  %v2521 = vld [vmem:[%s2 + $0x70] sm:$0xff]
  %v2522 = vld [vmem:[%s2 + $0x78] sm:$0xff]
  %v2523 = vld [vmem:[%s2 + $0x80] sm:$0xff]
  %v2524 = vld [vmem:[%s2 + $0x88] sm:$0xff]
  %v2525 = vld [vmem:[%s2 + $0x90] sm:$0xff]
  %v2526 = vld [vmem:[%s2 + $0x98] sm:$0xff]
  %v2527 = vld [vmem:[%s2 + $0xa0] sm:$0xff]
  %v2528 = vld [vmem:[%s2 + $0xa8] sm:$0xff]
  %v2529 = vld [vmem:[%s2 + $0xb0] sm:$0xff]
  %v2530 = vld [vmem:[%s2 + $0xb8] sm:$0xff]
  %v2531 = vld [vmem:[%s2 + $0xc0] sm:$0xff]
  %v2532 = vld [vmem:[%s2 + $0xc8] sm:$0xff]
  %v2533 = vld [vmem:[%s2 + $0xd0] sm:$0xff]
  %v2534 = vld [vmem:[%s2 + $0xd8] sm:$0xff]
  %v2535 = vld [vmem:[%s2 + $0xe0] sm:$0xff]
  %v2536 = vld [vmem:[%s2 + $0xe8] sm:$0xff]
  %v2537 = vld [vmem:[%s2 + $0xf0] sm:$0xff]
  %v2538 = vld [vmem:[%s2 + $0xf8] sm:$0xff]
  %v2539 = vld [vmem:[%s2 + $0x100] sm:$0xff]
  %v2540 = vld [vmem:[%s2 + $0x108] sm:$0xff]
  %v2541 = vld [vmem:[%s2 + $0x110] sm:$0xff]
  %v2542 = vld [vmem:[%s2 + $0x118] sm:$0xff]
  %v2543 = vld [vmem:[%s2 + $0x120] sm:$0xff]
  %v2544 = vld [vmem:[%s2 + $0x128] sm:$0xff]
  %v2545 = vld [vmem:[%s2 + $0x130] sm:$0xff]
  %v2546 = vld [vmem:[%s2 + $0x138] sm:$0xff]
  %v2547 = vld [vmem:[%s2 + $0x140] sm:$0xff]
  %v2548 = vld [vmem:[%s2 + $0x148] sm:$0xff]
  %v2549 = vld [vmem:[%s2 + $0x150] sm:$0xff]
  %v2550 = vld [vmem:[%s2 + $0x158] sm:$0xff]
  %v2551 = vld [vmem:[%s2 + $0x160] sm:$0xff]
  %v2552 = vld [vmem:[%s2 + $0x168] sm:$0xff]
  %v2553 = vld [vmem:[%s2 + $0x170] sm:$0xff]
  %v2554 = vld [vmem:[%s2 + $0x178] sm:$0xff]
  %v2555 = vld [vmem:[%s2 + $0x180] sm:$0xff]
  %v2556 = vld [vmem:[%s2 + $0x188] sm:$0xff]
  %v2557 = vld [vmem:[%s2 + $0x190] sm:$0xff]
  %v2558 = vld [vmem:[%s2 + $0x198] sm:$0xff]
  %v2559 = vld [vmem:[%s2 + $0x1a0] sm:$0xff]
  %v2560 = vld [vmem:[%s2 + $0x1a8] sm:$0xff]
  %v2561 = vld [vmem:[%s2 + $0x1b0] sm:$0xff]
  %v2562 = vld [vmem:[%s2 + $0x1b8] sm:$0xff]
  %v2563 = vld [vmem:[%s2 + $0x1c0] sm:$0xff]
  %v2564 = vld [vmem:[%s2 + $0x1c8] sm:$0xff]
  %v2565 = vld [vmem:[%s2 + $0x1d0] sm:$0xff]
  %v2566 = vld [vmem:[%s2 + $0x1d8] sm:$0xff]
  %v2567 = vld [vmem:[%s2 + $0x1e0] sm:$0xff]
  %v2568 = vld [vmem:[%s2 + $0x1e8] sm:$0xff]
  %v2569 = vld [vmem:[%s2 + $0x1f0] sm:$0xff]
  %v2570 = vld [vmem:[%s2 + $0x1f8] sm:$0xff]
  %2571 = vmatpush.msra.mxu0 %v2567
  %2572 = vmatpush.msra.mxu0 %v2563
  %2573 = vmatpush.msra.mxu0 %v2559
  %2574 = vmatpush.msra.mxu0 %v2555
  %2575 = vmatpush.msra.mxu0 %v2551
  %2576 = vmatpush.msra.mxu0 %v2547
  %2577 = vmatpush.msra.mxu0 %v2543
  %2578 = vmatpush.msra.mxu0 %v2539
  %2579 = vmatpush.msra.mxu0 %v2535
  %2580 = vmatpush.msra.mxu0 %v2531
  %2581 = vmatpush.msra.mxu0 %v2527
  %2582 = vmatpush.msra.mxu0 %v2523
  %2583 = vmatpush.msra.mxu0 %v2519
  %2584 = vmatpush.msra.mxu0 %v2515
  %2585 = vmatpush.msra.mxu0 %v2511
  %2586 = vmatpush.msra.mxu0 %v2507
  %2587 = vmatmul.f32.gmra.mxu0 %v2506
  %v2588 = vpop.f32.mrf.mxu0
  %v2589 = vadd.f32 0.0, %v2588
  %2590 = vdwg.mxu0
  %2591 = vmatpush.msra.mxu0 %v2568
  %2592 = vmatpush.msra.mxu0 %v2564
  %2593 = vmatpush.msra.mxu0 %v2560
  %2594 = vmatpush.msra.mxu0 %v2556
  %2595 = vmatpush.msra.mxu0 %v2552
  %2596 = vmatpush.msra.mxu0 %v2548
  %2597 = vmatpush.msra.mxu0 %v2544
  %2598 = vmatpush.msra.mxu0 %v2540
  %2599 = vmatpush.msra.mxu0 %v2536
  %2600 = vmatpush.msra.mxu0 %v2532
  %2601 = vmatpush.msra.mxu0 %v2528
  %2602 = vmatpush.msra.mxu0 %v2524
  %2603 = vmatpush.msra.mxu0 %v2520
  %2604 = vmatpush.msra.mxu0 %v2516
  %2605 = vmatpush.msra.mxu0 %v2512
  %2606 = vmatpush.msra.mxu0 %v2508
  %2607 = vmatmul.f32.gmra.mxu0 %v2506
  %v2608 = vpop.f32.mrf.mxu0
  %v2609 = vadd.f32 0.0, %v2608
  %2610 = vdwg.mxu0
  %2611 = vmatpush.msra.mxu0 %v2569
  %2612 = vmatpush.msra.mxu0 %v2565
  %2613 = vmatpush.msra.mxu0 %v2561
  %2614 = vmatpush.msra.mxu0 %v2557
  %2615 = vmatpush.msra.mxu0 %v2553
  %2616 = vmatpush.msra.mxu0 %v2549
  %2617 = vmatpush.msra.mxu0 %v2545
  %2618 = vmatpush.msra.mxu0 %v2541
  %2619 = vmatpush.msra.mxu0 %v2537
  %2620 = vmatpush.msra.mxu0 %v2533
  %2621 = vmatpush.msra.mxu0 %v2529
  %2622 = vmatpush.msra.mxu0 %v2525
  %2623 = vmatpush.msra.mxu0 %v2521
  %2624 = vmatpush.msra.mxu0 %v2517
  %2625 = vmatpush.msra.mxu0 %v2513
  %2626 = vmatpush.msra.mxu0 %v2509
  %2627 = vmatmul.f32.gmra.mxu0 %v2506
  %v2628 = vpop.f32.mrf.mxu0
  %v2629 = vadd.f32 0.0, %v2628
  %2630 = vdwg.mxu0
  %2631 = vmatpush.msra.mxu0 %v2570
  %2632 = vmatpush.msra.mxu0 %v2566
  %2633 = vmatpush.msra.mxu0 %v2562
  %2634 = vmatpush.msra.mxu0 %v2558
  %2635 = vmatpush.msra.mxu0 %v2554
  %2636 = vmatpush.msra.mxu0 %v2550
  %2637 = vmatpush.msra.mxu0 %v2546
  %2638 = vmatpush.msra.mxu0 %v2542
  %2639 = vmatpush.msra.mxu0 %v2538
  %2640 = vmatpush.msra.mxu0 %v2534
  %2641 = vmatpush.msra.mxu0 %v2530
  %2642 = vmatpush.msra.mxu0 %v2526
  %2643 = vmatpush.msra.mxu0 %v2522
  %2644 = vmatpush.msra.mxu0 %v2518
  %2645 = vmatpush.msra.mxu0 %v2514
  %2646 = vmatpush.msra.mxu0 %v2510
  %2647 = vmatmul.f32.gmra.mxu0 %v2506
  %v2648 = vpop.f32.mrf.mxu0
  %v2649 = vadd.f32 0.0, %v2648
  %2650 = vdwg.mxu0
  %2652 = vrot.lane.b32.xlu0 %v2649, 17
  %v2653 = vpop.permute.xlu0 %2652
  %2658 = vrot.lane.b32.xlu0 %v2589, 17
  %v2659 = vpop.permute.xlu0 %2658
  %2660 = vrot.lane.b32.xlu0 %v2609, 17
  %v2661 = vpop.permute.xlu0 %2660
  %2662 = vrot.lane.b32.xlu0 %v2629, 17
  %v2663 = vpop.permute.xlu0 %2662
  %v2664 = vsel %vm43, %v2659, %v2661
  %v2665 = vsel %vm43, %v2661, %v2663
  %v2666 = vsel %vm43, %v2663, %v2653
  %v2671 = vsel %vm43, %v2653, %v2659
  %v2672 = vmul.f32 %v2671, %v54
  %v2673 = vmul.f32 %v2664, %v55
  %v2674 = vmul.f32 %v2665, %v56
  %v2675 = vmul.f32 %v2666, %v57
  %s2676 = scalar_lea.vmem %s5, 360
  %v2677 = vld [vmem:[%s2676] sm:$0xff]
  %2678 = vrot.lane.b32.xlu0 %v2649, 16
  %v2679 = vpop.permute.xlu0 %2678
  %2681 = vrot.lane.b32.xlu0 %v2589, 16
  %v2682 = vpop.permute.xlu0 %2681
  %2683 = vrot.lane.b32.xlu0 %v2609, 16
  %v2684 = vpop.permute.xlu0 %2683
  %2685 = vrot.lane.b32.xlu0 %v2629, 16
  %v2686 = vpop.permute.xlu0 %2685
  %v2687 = vsel %vm76, %v2682, %v2684
  %v2688 = vsel %vm76, %v2684, %v2686
  %v2689 = vsel %vm76, %v2686, %v2679
  %v2694 = vsel %vm76, %v2679, %v2682
  %v2695 = vmul.f32 %v2694, %v88
  %v2696 = vmul.f32 %v2687, %v89
  %v2697 = vmul.f32 %v2688, %v90
  %v2698 = vmul.f32 %v2689, %v91
  %s2699 = scalar_lea.vmem %s5, 368
  %v2700 = vld [vmem:[%s2699] sm:$0xff]
  %v2702 = vsel %vm102, %v2700, 0
  %2704 = vmatpush.msra.mxu0 0.0
  %2705 = vmatpush.msra.mxu0 0.0
  %2706 = vmatpush.msra.mxu0 0.0
  %2707 = vmatpush.msra.mxu0 0.0
  %2708 = vmatpush.msra.mxu0 0.0
  %2709 = vmatpush.msra.mxu0 0.0
  %2710 = vmatpush.msra.mxu0 0.0
  %2711 = vmatpush.msra.mxu0 0.0
  %2712 = vmatpush.msra.mxu0 0.0
  %2713 = vmatpush.msra.mxu0 0.0
  %2714 = vmatpush.msra.mxu0 0.0
  %2715 = vmatpush.msra.mxu0 0.0
  %2716 = vmatpush.msra.mxu0 0.0
  %2717 = vmatpush.msra.mxu0 0.0
  %2718 = vmatpush.msra.mxu0 0.0
  %2719 = vmatpush.msra.mxu0 %v2695
  %2720 = vmatmul.f32.gmra.mxu0 %v2702
  %v2721 = vpop.f32.mrf.mxu0
  %v2722 = vadd.f32 0.0, %v2721
  %2723 = vdwg.mxu0
  %2724 = vmatpush.msra.mxu0 0.0
  %2725 = vmatpush.msra.mxu0 0.0
  %2726 = vmatpush.msra.mxu0 0.0
  %2727 = vmatpush.msra.mxu0 0.0
  %2728 = vmatpush.msra.mxu0 0.0
  %2729 = vmatpush.msra.mxu0 0.0
  %2730 = vmatpush.msra.mxu0 0.0
  %2731 = vmatpush.msra.mxu0 0.0
  %2732 = vmatpush.msra.mxu0 0.0
  %2733 = vmatpush.msra.mxu0 0.0
  %2734 = vmatpush.msra.mxu0 0.0
  %2735 = vmatpush.msra.mxu0 0.0
  %2736 = vmatpush.msra.mxu0 0.0
  %2737 = vmatpush.msra.mxu0 0.0
  %2738 = vmatpush.msra.mxu0 0.0
  %2739 = vmatpush.msra.mxu0 %v2696
  %2740 = vmatmul.f32.gmra.mxu0 %v2702
  %v2741 = vpop.f32.mrf.mxu0
  %v2742 = vadd.f32 0.0, %v2741
  %2743 = vdwg.mxu0
  %2744 = vmatpush.msra.mxu0 0.0
  %2745 = vmatpush.msra.mxu0 0.0
  %2746 = vmatpush.msra.mxu0 0.0
  %2747 = vmatpush.msra.mxu0 0.0
  %2748 = vmatpush.msra.mxu0 0.0
  %2749 = vmatpush.msra.mxu0 0.0
  %2750 = vmatpush.msra.mxu0 0.0
  %2751 = vmatpush.msra.mxu0 0.0
  %2752 = vmatpush.msra.mxu0 0.0
  %2753 = vmatpush.msra.mxu0 0.0
  %2754 = vmatpush.msra.mxu0 0.0
  %2755 = vmatpush.msra.mxu0 0.0
  %2756 = vmatpush.msra.mxu0 0.0
  %2757 = vmatpush.msra.mxu0 0.0
  %2758 = vmatpush.msra.mxu0 0.0
  %2759 = vmatpush.msra.mxu0 %v2697
  %2760 = vmatmul.f32.gmra.mxu0 %v2702
  %v2761 = vpop.f32.mrf.mxu0
  %v2762 = vadd.f32 0.0, %v2761
  %2763 = vdwg.mxu0
  %2764 = vmatpush.msra.mxu0 0.0
  %2765 = vmatpush.msra.mxu0 0.0
  %2766 = vmatpush.msra.mxu0 0.0
  %2767 = vmatpush.msra.mxu0 0.0
  %2768 = vmatpush.msra.mxu0 0.0
  %2769 = vmatpush.msra.mxu0 0.0
  %2770 = vmatpush.msra.mxu0 0.0
  %2771 = vmatpush.msra.mxu0 0.0
  %2772 = vmatpush.msra.mxu0 0.0
  %2773 = vmatpush.msra.mxu0 0.0
  %2774 = vmatpush.msra.mxu0 0.0
  %2775 = vmatpush.msra.mxu0 0.0
  %2776 = vmatpush.msra.mxu0 0.0
  %2777 = vmatpush.msra.mxu0 0.0
  %2778 = vmatpush.msra.mxu0 0.0
  %2779 = vmatpush.msra.mxu0 %v2698
  %2780 = vmatmul.f32.gmra.mxu0 %v2702
  %v2781 = vpop.f32.mrf.mxu0
  %v2782 = vadd.f32 0.0, %v2781
  %2783 = vdwg.mxu0
  %v2785 = vsel %vm102, %v2677, 0
  %2787 = vmatpush.msra.mxu0 0.0
  %2788 = vmatpush.msra.mxu0 0.0
  %2789 = vmatpush.msra.mxu0 0.0
  %2790 = vmatpush.msra.mxu0 0.0
  %2791 = vmatpush.msra.mxu0 0.0
  %2792 = vmatpush.msra.mxu0 0.0
  %2793 = vmatpush.msra.mxu0 0.0
  %2794 = vmatpush.msra.mxu0 0.0
  %2795 = vmatpush.msra.mxu0 0.0
  %2796 = vmatpush.msra.mxu0 0.0
  %2797 = vmatpush.msra.mxu0 0.0
  %2798 = vmatpush.msra.mxu0 0.0
  %2799 = vmatpush.msra.mxu0 0.0
  %2800 = vmatpush.msra.mxu0 0.0
  %2801 = vmatpush.msra.mxu0 0.0
  %2802 = vmatpush.msra.mxu0 %v2672
  %2803 = vmatmul.f32.gmra.mxu0 %v2785
  %v2804 = vpop.f32.mrf.mxu0
  %v2805 = vadd.f32 %v2722, %v2804
  %2806 = vdwg.mxu0
  %2807 = vmatpush.msra.mxu0 0.0
  %2808 = vmatpush.msra.mxu0 0.0
  %2809 = vmatpush.msra.mxu0 0.0
  %2810 = vmatpush.msra.mxu0 0.0
  %2811 = vmatpush.msra.mxu0 0.0
  %2812 = vmatpush.msra.mxu0 0.0
  %2813 = vmatpush.msra.mxu0 0.0
  %2814 = vmatpush.msra.mxu0 0.0
  %2815 = vmatpush.msra.mxu0 0.0
  %2816 = vmatpush.msra.mxu0 0.0
  %2817 = vmatpush.msra.mxu0 0.0
  %2818 = vmatpush.msra.mxu0 0.0
  %2819 = vmatpush.msra.mxu0 0.0
  %2820 = vmatpush.msra.mxu0 0.0
  %2821 = vmatpush.msra.mxu0 0.0
  %2822 = vmatpush.msra.mxu0 %v2673
  %2823 = vmatmul.f32.gmra.mxu0 %v2785
  %v2824 = vpop.f32.mrf.mxu0
  %v2825 = vadd.f32 %v2742, %v2824
  %2826 = vdwg.mxu0
  %2827 = vmatpush.msra.mxu0 0.0
  %2828 = vmatpush.msra.mxu0 0.0
  %2829 = vmatpush.msra.mxu0 0.0
  %2830 = vmatpush.msra.mxu0 0.0
  %2831 = vmatpush.msra.mxu0 0.0
  %2832 = vmatpush.msra.mxu0 0.0
  %2833 = vmatpush.msra.mxu0 0.0
  %2834 = vmatpush.msra.mxu0 0.0
  %2835 = vmatpush.msra.mxu0 0.0
  %2836 = vmatpush.msra.mxu0 0.0
  %2837 = vmatpush.msra.mxu0 0.0
  %2838 = vmatpush.msra.mxu0 0.0
  %2839 = vmatpush.msra.mxu0 0.0
  %2840 = vmatpush.msra.mxu0 0.0
  %2841 = vmatpush.msra.mxu0 0.0
  %2842 = vmatpush.msra.mxu0 %v2674
  %2843 = vmatmul.f32.gmra.mxu0 %v2785
  %v2844 = vpop.f32.mrf.mxu0
  %v2845 = vadd.f32 %v2762, %v2844
  %2846 = vdwg.mxu0
  %2847 = vmatpush.msra.mxu0 0.0
  %2848 = vmatpush.msra.mxu0 0.0
  %2849 = vmatpush.msra.mxu0 0.0
  %2850 = vmatpush.msra.mxu0 0.0
  %2851 = vmatpush.msra.mxu0 0.0
  %2852 = vmatpush.msra.mxu0 0.0
  %2853 = vmatpush.msra.mxu0 0.0
  %2854 = vmatpush.msra.mxu0 0.0
  %2855 = vmatpush.msra.mxu0 0.0
  %2856 = vmatpush.msra.mxu0 0.0
  %2857 = vmatpush.msra.mxu0 0.0
  %2858 = vmatpush.msra.mxu0 0.0
  %2859 = vmatpush.msra.mxu0 0.0
  %2860 = vmatpush.msra.mxu0 0.0
  %2861 = vmatpush.msra.mxu0 0.0
  %2862 = vmatpush.msra.mxu0 %v2675
  %2863 = vmatmul.f32.gmra.mxu0 %v2785
  %v2864 = vpop.f32.mrf.mxu0
  %v2865 = vadd.f32 %v2782, %v2864
  %2866 = vdwg.mxu0
  %2867 = vrot.lane.b32.xlu0 %v2649, 15
  %v2868 = vpop.permute.xlu0 %2867
  %2870 = vrot.lane.b32.xlu0 %v2589, 15
  %v2871 = vpop.permute.xlu0 %2870
  %2872 = vrot.lane.b32.xlu0 %v2609, 15
  %v2873 = vpop.permute.xlu0 %2872
  %2874 = vrot.lane.b32.xlu0 %v2629, 15
  %v2875 = vpop.permute.xlu0 %2874
  %v2876 = vsel %vm278, %v2871, %v2873
  %v2877 = vsel %vm278, %v2873, %v2875
  %v2878 = vsel %vm278, %v2875, %v2868
  %v2883 = vsel %vm278, %v2868, %v2871
  %v2884 = vmul.f32 %v2883, %v290
  %v2885 = vmul.f32 %v2876, %v291
  %v2886 = vmul.f32 %v2877, %v292
  %v2887 = vmul.f32 %v2878, %v293
  %s2888 = scalar_lea.vmem %s5, 376
  %v2889 = vld [vmem:[%s2888] sm:$0xff]
  %v2891 = vsel %vm102, %v2889, 0
  %2893 = vmatpush.msra.mxu0 0.0
  %2894 = vmatpush.msra.mxu0 0.0
  %2895 = vmatpush.msra.mxu0 0.0
  %2896 = vmatpush.msra.mxu0 0.0
  %2897 = vmatpush.msra.mxu0 0.0
  %2898 = vmatpush.msra.mxu0 0.0
  %2899 = vmatpush.msra.mxu0 0.0
  %2900 = vmatpush.msra.mxu0 0.0
  %2901 = vmatpush.msra.mxu0 0.0
  %2902 = vmatpush.msra.mxu0 0.0
  %2903 = vmatpush.msra.mxu0 0.0
  %2904 = vmatpush.msra.mxu0 0.0
  %2905 = vmatpush.msra.mxu0 0.0
  %2906 = vmatpush.msra.mxu0 0.0
  %2907 = vmatpush.msra.mxu0 0.0
  %2908 = vmatpush.msra.mxu0 %v2884
  %2909 = vmatmul.f32.gmra.mxu0 %v2891
  %v2910 = vpop.f32.mrf.mxu0
  %v2911 = vadd.f32 0.0, %v2910
  %2912 = vdwg.mxu0
  %2913 = vmatpush.msra.mxu0 0.0
  %2914 = vmatpush.msra.mxu0 0.0
  %2915 = vmatpush.msra.mxu0 0.0
  %2916 = vmatpush.msra.mxu0 0.0
  %2917 = vmatpush.msra.mxu0 0.0
  %2918 = vmatpush.msra.mxu0 0.0
  %2919 = vmatpush.msra.mxu0 0.0
  %2920 = vmatpush.msra.mxu0 0.0
  %2921 = vmatpush.msra.mxu0 0.0
  %2922 = vmatpush.msra.mxu0 0.0
  %2923 = vmatpush.msra.mxu0 0.0
  %2924 = vmatpush.msra.mxu0 0.0
  %2925 = vmatpush.msra.mxu0 0.0
  %2926 = vmatpush.msra.mxu0 0.0
  %2927 = vmatpush.msra.mxu0 0.0
  %2928 = vmatpush.msra.mxu0 %v2885
  %2929 = vmatmul.f32.gmra.mxu0 %v2891
  %v2930 = vpop.f32.mrf.mxu0
  %v2931 = vadd.f32 0.0, %v2930
  %2932 = vdwg.mxu0
  %2933 = vmatpush.msra.mxu0 0.0
  %2934 = vmatpush.msra.mxu0 0.0
  %2935 = vmatpush.msra.mxu0 0.0
  %2936 = vmatpush.msra.mxu0 0.0
  %2937 = vmatpush.msra.mxu0 0.0
  %2938 = vmatpush.msra.mxu0 0.0
  %2939 = vmatpush.msra.mxu0 0.0
  %2940 = vmatpush.msra.mxu0 0.0
  %2941 = vmatpush.msra.mxu0 0.0
  %2942 = vmatpush.msra.mxu0 0.0
  %2943 = vmatpush.msra.mxu0 0.0
  %2944 = vmatpush.msra.mxu0 0.0
  %2945 = vmatpush.msra.mxu0 0.0
  %2946 = vmatpush.msra.mxu0 0.0
  %2947 = vmatpush.msra.mxu0 0.0
  %2948 = vmatpush.msra.mxu0 %v2886
  %2949 = vmatmul.f32.gmra.mxu0 %v2891
  %v2950 = vpop.f32.mrf.mxu0
  %v2951 = vadd.f32 0.0, %v2950
  %2952 = vdwg.mxu0
  %2953 = vmatpush.msra.mxu0 0.0
  %2954 = vmatpush.msra.mxu0 0.0
  %2955 = vmatpush.msra.mxu0 0.0
  %2956 = vmatpush.msra.mxu0 0.0
  %2957 = vmatpush.msra.mxu0 0.0
  %2958 = vmatpush.msra.mxu0 0.0
  %2959 = vmatpush.msra.mxu0 0.0
  %2960 = vmatpush.msra.mxu0 0.0
  %2961 = vmatpush.msra.mxu0 0.0
  %2962 = vmatpush.msra.mxu0 0.0
  %2963 = vmatpush.msra.mxu0 0.0
  %2964 = vmatpush.msra.mxu0 0.0
  %2965 = vmatpush.msra.mxu0 0.0
  %2966 = vmatpush.msra.mxu0 0.0
  %2967 = vmatpush.msra.mxu0 0.0
  %2968 = vmatpush.msra.mxu0 %v2887
  %2969 = vmatmul.f32.gmra.mxu0 %v2891
  %v2970 = vpop.f32.mrf.mxu0
  %v2971 = vadd.f32 0.0, %v2970
  %2972 = vdwg.mxu0
  %v2973 = vadd.f32 %v2805, %v2911
  %v2974 = vadd.f32 %v2825, %v2931
  %v2975 = vadd.f32 %v2845, %v2951
  %v2976 = vadd.f32 %v2865, %v2971
  %2977 = vrot.lane.b32.xlu0 %v2649, 1
  %v2978 = vpop.permute.xlu0 %2977
  %2980 = vrot.lane.b32.xlu0 %v2589, 1
  %v2981 = vpop.permute.xlu0 %2980
  %2982 = vrot.lane.b32.xlu0 %v2609, 1
  %v2983 = vpop.permute.xlu0 %2982
  %2984 = vrot.lane.b32.xlu0 %v2629, 1
  %v2985 = vpop.permute.xlu0 %2984
  %v2986 = vsel %vm400, %v2981, %v2983
  %v2987 = vsel %vm400, %v2983, %v2985
  %v2988 = vsel %vm400, %v2985, %v2978
  %v2993 = vsel %vm400, %v2978, %v2981
  %v2994 = vmul.f32 %v2993, %v412
  %v2995 = vmul.f32 %v2986, %v413
  %v2996 = vmul.f32 %v2987, %v414
  %v2997 = vmul.f32 %v2988, %v415
  %s2998 = scalar_lea.vmem %s5, 384
  %v2999 = vld [vmem:[%s2998] sm:$0xff]
  %v3001 = vsel %vm102, %v2999, 0
  %3003 = vmatpush.msra.mxu0 0.0
  %3004 = vmatpush.msra.mxu0 0.0
  %3005 = vmatpush.msra.mxu0 0.0
  %3006 = vmatpush.msra.mxu0 0.0
  %3007 = vmatpush.msra.mxu0 0.0
  %3008 = vmatpush.msra.mxu0 0.0
  %3009 = vmatpush.msra.mxu0 0.0
  %3010 = vmatpush.msra.mxu0 0.0
  %3011 = vmatpush.msra.mxu0 0.0
  %3012 = vmatpush.msra.mxu0 0.0
  %3013 = vmatpush.msra.mxu0 0.0
  %3014 = vmatpush.msra.mxu0 0.0
  %3015 = vmatpush.msra.mxu0 0.0
  %3016 = vmatpush.msra.mxu0 0.0
  %3017 = vmatpush.msra.mxu0 0.0
  %3018 = vmatpush.msra.mxu0 %v2994
  %3019 = vmatmul.f32.gmra.mxu0 %v3001
  %v3020 = vpop.f32.mrf.mxu0
  %v3021 = vadd.f32 0.0, %v3020
  %3022 = vdwg.mxu0
  %3023 = vmatpush.msra.mxu0 0.0
  %3024 = vmatpush.msra.mxu0 0.0
  %3025 = vmatpush.msra.mxu0 0.0
  %3026 = vmatpush.msra.mxu0 0.0
  %3027 = vmatpush.msra.mxu0 0.0
  %3028 = vmatpush.msra.mxu0 0.0
  %3029 = vmatpush.msra.mxu0 0.0
  %3030 = vmatpush.msra.mxu0 0.0
  %3031 = vmatpush.msra.mxu0 0.0
  %3032 = vmatpush.msra.mxu0 0.0
  %3033 = vmatpush.msra.mxu0 0.0
  %3034 = vmatpush.msra.mxu0 0.0
  %3035 = vmatpush.msra.mxu0 0.0
  %3036 = vmatpush.msra.mxu0 0.0
  %3037 = vmatpush.msra.mxu0 0.0
  %3038 = vmatpush.msra.mxu0 %v2995
  %3039 = vmatmul.f32.gmra.mxu0 %v3001
  %v3040 = vpop.f32.mrf.mxu0
  %v3041 = vadd.f32 0.0, %v3040
  %3042 = vdwg.mxu0
  %3043 = vmatpush.msra.mxu0 0.0
  %3044 = vmatpush.msra.mxu0 0.0
  %3045 = vmatpush.msra.mxu0 0.0
  %3046 = vmatpush.msra.mxu0 0.0
  %3047 = vmatpush.msra.mxu0 0.0
  %3048 = vmatpush.msra.mxu0 0.0
  %3049 = vmatpush.msra.mxu0 0.0
  %3050 = vmatpush.msra.mxu0 0.0
  %3051 = vmatpush.msra.mxu0 0.0
  %3052 = vmatpush.msra.mxu0 0.0
  %3053 = vmatpush.msra.mxu0 0.0
  %3054 = vmatpush.msra.mxu0 0.0
  %3055 = vmatpush.msra.mxu0 0.0
  %3056 = vmatpush.msra.mxu0 0.0
  %3057 = vmatpush.msra.mxu0 0.0
  %3058 = vmatpush.msra.mxu0 %v2996
  %3059 = vmatmul.f32.gmra.mxu0 %v3001
  %v3060 = vpop.f32.mrf.mxu0
  %v3061 = vadd.f32 0.0, %v3060
  %3062 = vdwg.mxu0
  %3063 = vmatpush.msra.mxu0 0.0
  %3064 = vmatpush.msra.mxu0 0.0
  %3065 = vmatpush.msra.mxu0 0.0
  %3066 = vmatpush.msra.mxu0 0.0
  %3067 = vmatpush.msra.mxu0 0.0
  %3068 = vmatpush.msra.mxu0 0.0
  %3069 = vmatpush.msra.mxu0 0.0
  %3070 = vmatpush.msra.mxu0 0.0
  %3071 = vmatpush.msra.mxu0 0.0
  %3072 = vmatpush.msra.mxu0 0.0
  %3073 = vmatpush.msra.mxu0 0.0
  %3074 = vmatpush.msra.mxu0 0.0
  %3075 = vmatpush.msra.mxu0 0.0
  %3076 = vmatpush.msra.mxu0 0.0
  %3077 = vmatpush.msra.mxu0 0.0
  %3078 = vmatpush.msra.mxu0 %v2997
  %3079 = vmatmul.f32.gmra.mxu0 %v3001
  %v3080 = vpop.f32.mrf.mxu0
  %v3081 = vadd.f32 0.0, %v3080
  %3082 = vdwg.mxu0
  %v3083 = vadd.f32 %v2973, %v3021
  %v3084 = vadd.f32 %v2974, %v3041
  %v3085 = vadd.f32 %v2975, %v3061
  %v3086 = vadd.f32 %v2976, %v3081
  %v3087 = vmul.f32 %v2589, %v516
  %v3088 = vmul.f32 %v2609, %v517
  %v3089 = vmul.f32 %v2629, %v518
  %v3090 = vmul.f32 %v2649, %v519
  %s3091 = scalar_lea.vmem %s5, 392
  %v3092 = vld [vmem:[%s3091] sm:$0xff]
  %v3094 = vsel %vm102, %v3092, 0
  %3096 = vmatpush.msra.mxu0 0.0
  %3097 = vmatpush.msra.mxu0 0.0
  %3098 = vmatpush.msra.mxu0 0.0
  %3099 = vmatpush.msra.mxu0 0.0
  %3100 = vmatpush.msra.mxu0 0.0
  %3101 = vmatpush.msra.mxu0 0.0
  %3102 = vmatpush.msra.mxu0 0.0
  %3103 = vmatpush.msra.mxu0 0.0
  %3104 = vmatpush.msra.mxu0 0.0
  %3105 = vmatpush.msra.mxu0 0.0
  %3106 = vmatpush.msra.mxu0 0.0
  %3107 = vmatpush.msra.mxu0 0.0
  %3108 = vmatpush.msra.mxu0 0.0
  %3109 = vmatpush.msra.mxu0 0.0
  %3110 = vmatpush.msra.mxu0 0.0
  %3111 = vmatpush.msra.mxu0 %v3087
  %3112 = vmatmul.f32.gmra.mxu0 %v3094
  %v3113 = vpop.f32.mrf.mxu0
  %v3114 = vadd.f32 0.0, %v3113
  %3115 = vdwg.mxu0
  %3116 = vmatpush.msra.mxu0 0.0
  %3117 = vmatpush.msra.mxu0 0.0
  %3118 = vmatpush.msra.mxu0 0.0
  %3119 = vmatpush.msra.mxu0 0.0
  %3120 = vmatpush.msra.mxu0 0.0
  %3121 = vmatpush.msra.mxu0 0.0
  %3122 = vmatpush.msra.mxu0 0.0
  %3123 = vmatpush.msra.mxu0 0.0
  %3124 = vmatpush.msra.mxu0 0.0
  %3125 = vmatpush.msra.mxu0 0.0
  %3126 = vmatpush.msra.mxu0 0.0
  %3127 = vmatpush.msra.mxu0 0.0
  %3128 = vmatpush.msra.mxu0 0.0
  %3129 = vmatpush.msra.mxu0 0.0
  %3130 = vmatpush.msra.mxu0 0.0
  %3131 = vmatpush.msra.mxu0 %v3088
  %3132 = vmatmul.f32.gmra.mxu0 %v3094
  %v3133 = vpop.f32.mrf.mxu0
  %v3134 = vadd.f32 0.0, %v3133
  %3135 = vdwg.mxu0
  %3136 = vmatpush.msra.mxu0 0.0
  %3137 = vmatpush.msra.mxu0 0.0
  %3138 = vmatpush.msra.mxu0 0.0
  %3139 = vmatpush.msra.mxu0 0.0
  %3140 = vmatpush.msra.mxu0 0.0
  %3141 = vmatpush.msra.mxu0 0.0
  %3142 = vmatpush.msra.mxu0 0.0
  %3143 = vmatpush.msra.mxu0 0.0
  %3144 = vmatpush.msra.mxu0 0.0
  %3145 = vmatpush.msra.mxu0 0.0
  %3146 = vmatpush.msra.mxu0 0.0
  %3147 = vmatpush.msra.mxu0 0.0
  %3148 = vmatpush.msra.mxu0 0.0
  %3149 = vmatpush.msra.mxu0 0.0
  %3150 = vmatpush.msra.mxu0 0.0
  %3151 = vmatpush.msra.mxu0 %v3089
  %3152 = vmatmul.f32.gmra.mxu0 %v3094
  %v3153 = vpop.f32.mrf.mxu0
  %v3154 = vadd.f32 0.0, %v3153
  %3155 = vdwg.mxu0
  %3156 = vmatpush.msra.mxu0 0.0
  %3157 = vmatpush.msra.mxu0 0.0
  %3158 = vmatpush.msra.mxu0 0.0
  %3159 = vmatpush.msra.mxu0 0.0
  %3160 = vmatpush.msra.mxu0 0.0
  %3161 = vmatpush.msra.mxu0 0.0
  %3162 = vmatpush.msra.mxu0 0.0
  %3163 = vmatpush.msra.mxu0 0.0
  %3164 = vmatpush.msra.mxu0 0.0
  %3165 = vmatpush.msra.mxu0 0.0
  %3166 = vmatpush.msra.mxu0 0.0
  %3167 = vmatpush.msra.mxu0 0.0
  %3168 = vmatpush.msra.mxu0 0.0
  %3169 = vmatpush.msra.mxu0 0.0
  %3170 = vmatpush.msra.mxu0 0.0
  %3171 = vmatpush.msra.mxu0 %v3090
  %3172 = vmatmul.f32.gmra.mxu0 %v3094
  %v3173 = vpop.f32.mrf.mxu0
  %v3174 = vadd.f32 0.0, %v3173
  %3175 = vdwg.mxu0
  %v3176 = vadd.f32 %v3083, %v3114
  %v3177 = vadd.f32 %v3084, %v3134
  %v3178 = vadd.f32 %v3085, %v3154
  %v3179 = vadd.f32 %v3086, %v3174
  %3180 = vrot.lane.b32.xlu0 %v2589, 127
  %v3181 = vpop.permute.xlu0 %3180
  %3182 = vrot.lane.b32.xlu0 %v2609, 127
  %v3183 = vpop.permute.xlu0 %3182
  %3184 = vrot.lane.b32.xlu0 %v2629, 127
  %v3185 = vpop.permute.xlu0 %3184
  %3186 = vrot.lane.b32.xlu0 %v2649, 127
  %v3187 = vpop.permute.xlu0 %3186
  %v3188 = vsel %vm625, %v3181, %v3183
  %v3189 = vsel %vm625, %v3183, %v3185
  %v3190 = vsel %vm625, %v3185, %v3187
  %v3196 = vsel %vm625, %v3187, %v3181
  %v3197 = vmul.f32 %v3188, %v638
  %v3198 = vmul.f32 %v3189, %v639
  %v3199 = vmul.f32 %v3190, %v640
  %v3200 = vmul.f32 %v3196, %v641
  %s3201 = scalar_lea.vmem %s5, 400
  %v3202 = vld [vmem:[%s3201] sm:$0xff]
  %v3204 = vsel %vm102, %v3202, 0
  %3206 = vmatpush.msra.mxu0 0.0
  %3207 = vmatpush.msra.mxu0 0.0
  %3208 = vmatpush.msra.mxu0 0.0
  %3209 = vmatpush.msra.mxu0 0.0
  %3210 = vmatpush.msra.mxu0 0.0
  %3211 = vmatpush.msra.mxu0 0.0
  %3212 = vmatpush.msra.mxu0 0.0
  %3213 = vmatpush.msra.mxu0 0.0
  %3214 = vmatpush.msra.mxu0 0.0
  %3215 = vmatpush.msra.mxu0 0.0
  %3216 = vmatpush.msra.mxu0 0.0
  %3217 = vmatpush.msra.mxu0 0.0
  %3218 = vmatpush.msra.mxu0 0.0
  %3219 = vmatpush.msra.mxu0 0.0
  %3220 = vmatpush.msra.mxu0 0.0
  %3221 = vmatpush.msra.mxu0 %v3197
  %3222 = vmatmul.f32.gmra.mxu0 %v3204
  %v3223 = vpop.f32.mrf.mxu0
  %v3224 = vadd.f32 0.0, %v3223
  %3225 = vdwg.mxu0
  %3226 = vmatpush.msra.mxu0 0.0
  %3227 = vmatpush.msra.mxu0 0.0
  %3228 = vmatpush.msra.mxu0 0.0
  %3229 = vmatpush.msra.mxu0 0.0
  %3230 = vmatpush.msra.mxu0 0.0
  %3231 = vmatpush.msra.mxu0 0.0
  %3232 = vmatpush.msra.mxu0 0.0
  %3233 = vmatpush.msra.mxu0 0.0
  %3234 = vmatpush.msra.mxu0 0.0
  %3235 = vmatpush.msra.mxu0 0.0
  %3236 = vmatpush.msra.mxu0 0.0
  %3237 = vmatpush.msra.mxu0 0.0
  %3238 = vmatpush.msra.mxu0 0.0
  %3239 = vmatpush.msra.mxu0 0.0
  %3240 = vmatpush.msra.mxu0 0.0
  %3241 = vmatpush.msra.mxu0 %v3198
  %3242 = vmatmul.f32.gmra.mxu0 %v3204
  %v3243 = vpop.f32.mrf.mxu0
  %v3244 = vadd.f32 0.0, %v3243
  %3245 = vdwg.mxu0
  %3246 = vmatpush.msra.mxu0 0.0
  %3247 = vmatpush.msra.mxu0 0.0
  %3248 = vmatpush.msra.mxu0 0.0
  %3249 = vmatpush.msra.mxu0 0.0
  %3250 = vmatpush.msra.mxu0 0.0
  %3251 = vmatpush.msra.mxu0 0.0
  %3252 = vmatpush.msra.mxu0 0.0
  %3253 = vmatpush.msra.mxu0 0.0
  %3254 = vmatpush.msra.mxu0 0.0
  %3255 = vmatpush.msra.mxu0 0.0
  %3256 = vmatpush.msra.mxu0 0.0
  %3257 = vmatpush.msra.mxu0 0.0
  %3258 = vmatpush.msra.mxu0 0.0
  %3259 = vmatpush.msra.mxu0 0.0
  %3260 = vmatpush.msra.mxu0 0.0
  %3261 = vmatpush.msra.mxu0 %v3199
  %3262 = vmatmul.f32.gmra.mxu0 %v3204
  %v3263 = vpop.f32.mrf.mxu0
  %v3264 = vadd.f32 0.0, %v3263
  %3265 = vdwg.mxu0
  %3266 = vmatpush.msra.mxu0 0.0
  %3267 = vmatpush.msra.mxu0 0.0
  %3268 = vmatpush.msra.mxu0 0.0
  %3269 = vmatpush.msra.mxu0 0.0
  %3270 = vmatpush.msra.mxu0 0.0
  %3271 = vmatpush.msra.mxu0 0.0
  %3272 = vmatpush.msra.mxu0 0.0
  %3273 = vmatpush.msra.mxu0 0.0
  %3274 = vmatpush.msra.mxu0 0.0
  %3275 = vmatpush.msra.mxu0 0.0
  %3276 = vmatpush.msra.mxu0 0.0
  %3277 = vmatpush.msra.mxu0 0.0
  %3278 = vmatpush.msra.mxu0 0.0
  %3279 = vmatpush.msra.mxu0 0.0
  %3280 = vmatpush.msra.mxu0 0.0
  %3281 = vmatpush.msra.mxu0 %v3200
  %3282 = vmatmul.f32.gmra.mxu0 %v3204
  %v3283 = vpop.f32.mrf.mxu0
  %v3284 = vadd.f32 0.0, %v3283
  %3285 = vdwg.mxu0
  %v3286 = vadd.f32 %v3176, %v3224
  %v3287 = vadd.f32 %v3177, %v3244
  %v3288 = vadd.f32 %v3178, %v3264
  %v3289 = vadd.f32 %v3179, %v3284
  %3290 = vrot.lane.b32.xlu0 %v2589, 113
  %v3291 = vpop.permute.xlu0 %3290
  %3292 = vrot.lane.b32.xlu0 %v2609, 113
  %v3293 = vpop.permute.xlu0 %3292
  %3294 = vrot.lane.b32.xlu0 %v2629, 113
  %v3295 = vpop.permute.xlu0 %3294
  %3296 = vrot.lane.b32.xlu0 %v2649, 113
  %v3297 = vpop.permute.xlu0 %3296
  %v3298 = vsel %vm747, %v3291, %v3293
  %v3299 = vsel %vm747, %v3293, %v3295
  %v3300 = vsel %vm747, %v3295, %v3297
  %v3306 = vsel %vm747, %v3297, %v3291
  %v3307 = vmul.f32 %v3298, %v760
  %v3308 = vmul.f32 %v3299, %v761
  %v3309 = vmul.f32 %v3300, %v762
  %v3310 = vmul.f32 %v3306, %v763
  %s3311 = scalar_lea.vmem %s5, 408
  %v3312 = vld [vmem:[%s3311] sm:$0xff]
  %v3314 = vsel %vm102, %v3312, 0
  %3316 = vmatpush.msra.mxu0 0.0
  %3317 = vmatpush.msra.mxu0 0.0
  %3318 = vmatpush.msra.mxu0 0.0
  %3319 = vmatpush.msra.mxu0 0.0
  %3320 = vmatpush.msra.mxu0 0.0
  %3321 = vmatpush.msra.mxu0 0.0
  %3322 = vmatpush.msra.mxu0 0.0
  %3323 = vmatpush.msra.mxu0 0.0
  %3324 = vmatpush.msra.mxu0 0.0
  %3325 = vmatpush.msra.mxu0 0.0
  %3326 = vmatpush.msra.mxu0 0.0
  %3327 = vmatpush.msra.mxu0 0.0
  %3328 = vmatpush.msra.mxu0 0.0
  %3329 = vmatpush.msra.mxu0 0.0
  %3330 = vmatpush.msra.mxu0 0.0
  %3331 = vmatpush.msra.mxu0 %v3307
  %3332 = vmatmul.f32.gmra.mxu0 %v3314
  %v3333 = vpop.f32.mrf.mxu0
  %v3334 = vadd.f32 0.0, %v3333
  %3335 = vdwg.mxu0
  %3336 = vmatpush.msra.mxu0 0.0
  %3337 = vmatpush.msra.mxu0 0.0
  %3338 = vmatpush.msra.mxu0 0.0
  %3339 = vmatpush.msra.mxu0 0.0
  %3340 = vmatpush.msra.mxu0 0.0
  %3341 = vmatpush.msra.mxu0 0.0
  %3342 = vmatpush.msra.mxu0 0.0
  %3343 = vmatpush.msra.mxu0 0.0
  %3344 = vmatpush.msra.mxu0 0.0
  %3345 = vmatpush.msra.mxu0 0.0
  %3346 = vmatpush.msra.mxu0 0.0
  %3347 = vmatpush.msra.mxu0 0.0
  %3348 = vmatpush.msra.mxu0 0.0
  %3349 = vmatpush.msra.mxu0 0.0
  %3350 = vmatpush.msra.mxu0 0.0
  %3351 = vmatpush.msra.mxu0 %v3308
  %3352 = vmatmul.f32.gmra.mxu0 %v3314
  %v3353 = vpop.f32.mrf.mxu0
  %v3354 = vadd.f32 0.0, %v3353
  %3355 = vdwg.mxu0
  %3356 = vmatpush.msra.mxu0 0.0
  %3357 = vmatpush.msra.mxu0 0.0
  %3358 = vmatpush.msra.mxu0 0.0
  %3359 = vmatpush.msra.mxu0 0.0
  %3360 = vmatpush.msra.mxu0 0.0
  %3361 = vmatpush.msra.mxu0 0.0
  %3362 = vmatpush.msra.mxu0 0.0
  %3363 = vmatpush.msra.mxu0 0.0
  %3364 = vmatpush.msra.mxu0 0.0
  %3365 = vmatpush.msra.mxu0 0.0
  %3366 = vmatpush.msra.mxu0 0.0
  %3367 = vmatpush.msra.mxu0 0.0
  %3368 = vmatpush.msra.mxu0 0.0
  %3369 = vmatpush.msra.mxu0 0.0
  %3370 = vmatpush.msra.mxu0 0.0
  %3371 = vmatpush.msra.mxu0 %v3309
  %3372 = vmatmul.f32.gmra.mxu0 %v3314
  %v3373 = vpop.f32.mrf.mxu0
  %v3374 = vadd.f32 0.0, %v3373
  %3375 = vdwg.mxu0
  %3376 = vmatpush.msra.mxu0 0.0
  %3377 = vmatpush.msra.mxu0 0.0
  %3378 = vmatpush.msra.mxu0 0.0
  %3379 = vmatpush.msra.mxu0 0.0
  %3380 = vmatpush.msra.mxu0 0.0
  %3381 = vmatpush.msra.mxu0 0.0
  %3382 = vmatpush.msra.mxu0 0.0
  %3383 = vmatpush.msra.mxu0 0.0
  %3384 = vmatpush.msra.mxu0 0.0
  %3385 = vmatpush.msra.mxu0 0.0
  %3386 = vmatpush.msra.mxu0 0.0
  %3387 = vmatpush.msra.mxu0 0.0
  %3388 = vmatpush.msra.mxu0 0.0
  %3389 = vmatpush.msra.mxu0 0.0
  %3390 = vmatpush.msra.mxu0 0.0
  %3391 = vmatpush.msra.mxu0 %v3310
  %3392 = vmatmul.f32.gmra.mxu0 %v3314
  %v3393 = vpop.f32.mrf.mxu0
  %v3394 = vadd.f32 0.0, %v3393
  %3395 = vdwg.mxu0
  %v3396 = vadd.f32 %v3286, %v3334
  %v3397 = vadd.f32 %v3287, %v3354
  %v3398 = vadd.f32 %v3288, %v3374
  %v3399 = vadd.f32 %v3289, %v3394
  %3400 = vrot.lane.b32.xlu0 %v2589, 112
  %v3401 = vpop.permute.xlu0 %3400
  %3402 = vrot.lane.b32.xlu0 %v2609, 112
  %v3403 = vpop.permute.xlu0 %3402
  %3404 = vrot.lane.b32.xlu0 %v2629, 112
  %v3405 = vpop.permute.xlu0 %3404
  %3406 = vrot.lane.b32.xlu0 %v2649, 112
  %v3407 = vpop.permute.xlu0 %3406
  %v3408 = vsel %vm869, %v3401, %v3403
  %v3409 = vsel %vm869, %v3403, %v3405
  %v3410 = vsel %vm869, %v3405, %v3407
  %v3416 = vsel %vm869, %v3407, %v3401
  %v3417 = vmul.f32 %v3408, %v882
  %v3418 = vmul.f32 %v3409, %v883
  %v3419 = vmul.f32 %v3410, %v884
  %v3420 = vmul.f32 %v3416, %v885
  %s3421 = scalar_lea.vmem %s5, 416
  %v3422 = vld [vmem:[%s3421] sm:$0xff]
  %v3424 = vsel %vm102, %v3422, 0
  %3426 = vmatpush.msra.mxu0 0.0
  %3427 = vmatpush.msra.mxu0 0.0
  %3428 = vmatpush.msra.mxu0 0.0
  %3429 = vmatpush.msra.mxu0 0.0
  %3430 = vmatpush.msra.mxu0 0.0
  %3431 = vmatpush.msra.mxu0 0.0
  %3432 = vmatpush.msra.mxu0 0.0
  %3433 = vmatpush.msra.mxu0 0.0
  %3434 = vmatpush.msra.mxu0 0.0
  %3435 = vmatpush.msra.mxu0 0.0
  %3436 = vmatpush.msra.mxu0 0.0
  %3437 = vmatpush.msra.mxu0 0.0
  %3438 = vmatpush.msra.mxu0 0.0
  %3439 = vmatpush.msra.mxu0 0.0
  %3440 = vmatpush.msra.mxu0 0.0
  %3441 = vmatpush.msra.mxu0 %v3417
  %3442 = vmatmul.f32.gmra.mxu0 %v3424
  %v3443 = vpop.f32.mrf.mxu0
  %v3444 = vadd.f32 0.0, %v3443
  %3445 = vdwg.mxu0
  %3446 = vmatpush.msra.mxu0 0.0
  %3447 = vmatpush.msra.mxu0 0.0
  %3448 = vmatpush.msra.mxu0 0.0
  %3449 = vmatpush.msra.mxu0 0.0
  %3450 = vmatpush.msra.mxu0 0.0
  %3451 = vmatpush.msra.mxu0 0.0
  %3452 = vmatpush.msra.mxu0 0.0
  %3453 = vmatpush.msra.mxu0 0.0
  %3454 = vmatpush.msra.mxu0 0.0
  %3455 = vmatpush.msra.mxu0 0.0
  %3456 = vmatpush.msra.mxu0 0.0
  %3457 = vmatpush.msra.mxu0 0.0
  %3458 = vmatpush.msra.mxu0 0.0
  %3459 = vmatpush.msra.mxu0 0.0
  %3460 = vmatpush.msra.mxu0 0.0
  %3461 = vmatpush.msra.mxu0 %v3418
  %3462 = vmatmul.f32.gmra.mxu0 %v3424
  %v3463 = vpop.f32.mrf.mxu0
  %v3464 = vadd.f32 0.0, %v3463
  %3465 = vdwg.mxu0
  %3466 = vmatpush.msra.mxu0 0.0
  %3467 = vmatpush.msra.mxu0 0.0
  %3468 = vmatpush.msra.mxu0 0.0
  %3469 = vmatpush.msra.mxu0 0.0
  %3470 = vmatpush.msra.mxu0 0.0
  %3471 = vmatpush.msra.mxu0 0.0
  %3472 = vmatpush.msra.mxu0 0.0
  %3473 = vmatpush.msra.mxu0 0.0
  %3474 = vmatpush.msra.mxu0 0.0
  %3475 = vmatpush.msra.mxu0 0.0
  %3476 = vmatpush.msra.mxu0 0.0
  %3477 = vmatpush.msra.mxu0 0.0
  %3478 = vmatpush.msra.mxu0 0.0
  %3479 = vmatpush.msra.mxu0 0.0
  %3480 = vmatpush.msra.mxu0 0.0
  %3481 = vmatpush.msra.mxu0 %v3419
  %3482 = vmatmul.f32.gmra.mxu0 %v3424
  %v3483 = vpop.f32.mrf.mxu0
  %v3484 = vadd.f32 0.0, %v3483
  %3485 = vdwg.mxu0
  %3486 = vmatpush.msra.mxu0 0.0
  %3487 = vmatpush.msra.mxu0 0.0
  %3488 = vmatpush.msra.mxu0 0.0
  %3489 = vmatpush.msra.mxu0 0.0
  %3490 = vmatpush.msra.mxu0 0.0
  %3491 = vmatpush.msra.mxu0 0.0
  %3492 = vmatpush.msra.mxu0 0.0
  %3493 = vmatpush.msra.mxu0 0.0
  %3494 = vmatpush.msra.mxu0 0.0
  %3495 = vmatpush.msra.mxu0 0.0
  %3496 = vmatpush.msra.mxu0 0.0
  %3497 = vmatpush.msra.mxu0 0.0
  %3498 = vmatpush.msra.mxu0 0.0
  %3499 = vmatpush.msra.mxu0 0.0
  %3500 = vmatpush.msra.mxu0 0.0
  %3501 = vmatpush.msra.mxu0 %v3420
  %3502 = vmatmul.f32.gmra.mxu0 %v3424
  %v3503 = vpop.f32.mrf.mxu0
  %v3504 = vadd.f32 0.0, %v3503
  %3505 = vdwg.mxu0
  %v3506 = vadd.f32 %v3396, %v3444
  %v3507 = vadd.f32 %v3397, %v3464
  %v3508 = vadd.f32 %v3398, %v3484
  %v3509 = vadd.f32 %v3399, %v3504
  %3510 = vrot.lane.b32.xlu0 %v2589, 111
  %v3511 = vpop.permute.xlu0 %3510
  %3512 = vrot.lane.b32.xlu0 %v2609, 111
  %v3513 = vpop.permute.xlu0 %3512
  %3514 = vrot.lane.b32.xlu0 %v2629, 111
  %v3515 = vpop.permute.xlu0 %3514
  %3516 = vrot.lane.b32.xlu0 %v2649, 111
  %v3517 = vpop.permute.xlu0 %3516
  %v3518 = vsel %vm991, %v3511, %v3513
  %v3519 = vsel %vm991, %v3513, %v3515
  %v3520 = vsel %vm991, %v3515, %v3517
  %v3526 = vsel %vm991, %v3517, %v3511
  %v3527 = vmul.f32 %v3518, %v1004
  %v3528 = vmul.f32 %v3519, %v1005
  %v3529 = vmul.f32 %v3520, %v1006
  %v3530 = vmul.f32 %v3526, %v1007
  %s3531 = scalar_lea.vmem %s5, 424
  %v3532 = vld [vmem:[%s3531] sm:$0xff]
  %v3534 = vsel %vm102, %v3532, 0
  %3536 = vmatpush.msra.mxu0 0.0
  %3537 = vmatpush.msra.mxu0 0.0
  %3538 = vmatpush.msra.mxu0 0.0
  %3539 = vmatpush.msra.mxu0 0.0
  %3540 = vmatpush.msra.mxu0 0.0
  %3541 = vmatpush.msra.mxu0 0.0
  %3542 = vmatpush.msra.mxu0 0.0
  %3543 = vmatpush.msra.mxu0 0.0
  %3544 = vmatpush.msra.mxu0 0.0
  %3545 = vmatpush.msra.mxu0 0.0
  %3546 = vmatpush.msra.mxu0 0.0
  %3547 = vmatpush.msra.mxu0 0.0
  %3548 = vmatpush.msra.mxu0 0.0
  %3549 = vmatpush.msra.mxu0 0.0
  %3550 = vmatpush.msra.mxu0 0.0
  %3551 = vmatpush.msra.mxu0 %v3527
  %3552 = vmatmul.f32.gmra.mxu0 %v3534
  %v3553 = vpop.f32.mrf.mxu0
  %v3554 = vadd.f32 0.0, %v3553
  %3555 = vdwg.mxu0
  %3556 = vmatpush.msra.mxu0 0.0
  %3557 = vmatpush.msra.mxu0 0.0
  %3558 = vmatpush.msra.mxu0 0.0
  %3559 = vmatpush.msra.mxu0 0.0
  %3560 = vmatpush.msra.mxu0 0.0
  %3561 = vmatpush.msra.mxu0 0.0
  %3562 = vmatpush.msra.mxu0 0.0
  %3563 = vmatpush.msra.mxu0 0.0
  %3564 = vmatpush.msra.mxu0 0.0
  %3565 = vmatpush.msra.mxu0 0.0
  %3566 = vmatpush.msra.mxu0 0.0
  %3567 = vmatpush.msra.mxu0 0.0
  %3568 = vmatpush.msra.mxu0 0.0
  %3569 = vmatpush.msra.mxu0 0.0
  %3570 = vmatpush.msra.mxu0 0.0
  %3571 = vmatpush.msra.mxu0 %v3528
  %3572 = vmatmul.f32.gmra.mxu0 %v3534
  %v3573 = vpop.f32.mrf.mxu0
  %v3574 = vadd.f32 0.0, %v3573
  %3575 = vdwg.mxu0
  %3576 = vmatpush.msra.mxu0 0.0
  %3577 = vmatpush.msra.mxu0 0.0
  %3578 = vmatpush.msra.mxu0 0.0
  %3579 = vmatpush.msra.mxu0 0.0
  %3580 = vmatpush.msra.mxu0 0.0
  %3581 = vmatpush.msra.mxu0 0.0
  %3582 = vmatpush.msra.mxu0 0.0
  %3583 = vmatpush.msra.mxu0 0.0
  %3584 = vmatpush.msra.mxu0 0.0
  %3585 = vmatpush.msra.mxu0 0.0
  %3586 = vmatpush.msra.mxu0 0.0
  %3587 = vmatpush.msra.mxu0 0.0
  %3588 = vmatpush.msra.mxu0 0.0
  %3589 = vmatpush.msra.mxu0 0.0
  %3590 = vmatpush.msra.mxu0 0.0
  %3591 = vmatpush.msra.mxu0 %v3529
  %3592 = vmatmul.f32.gmra.mxu0 %v3534
  %v3593 = vpop.f32.mrf.mxu0
  %v3594 = vadd.f32 0.0, %v3593
  %3595 = vdwg.mxu0
  %3596 = vmatpush.msra.mxu0 0.0
  %3597 = vmatpush.msra.mxu0 0.0
  %3598 = vmatpush.msra.mxu0 0.0
  %3599 = vmatpush.msra.mxu0 0.0
  %3600 = vmatpush.msra.mxu0 0.0
  %3601 = vmatpush.msra.mxu0 0.0
  %3602 = vmatpush.msra.mxu0 0.0
  %3603 = vmatpush.msra.mxu0 0.0
  %3604 = vmatpush.msra.mxu0 0.0
  %3605 = vmatpush.msra.mxu0 0.0
  %3606 = vmatpush.msra.mxu0 0.0
  %3607 = vmatpush.msra.mxu0 0.0
  %3608 = vmatpush.msra.mxu0 0.0
  %3609 = vmatpush.msra.mxu0 0.0
  %3610 = vmatpush.msra.mxu0 0.0
  %3611 = vmatpush.msra.mxu0 %v3530
  %3612 = vmatmul.f32.gmra.mxu0 %v3534
  %v3613 = vpop.f32.mrf.mxu0
  %v3614 = vadd.f32 0.0, %v3613
  %3615 = vdwg.mxu0
  %v3616 = vadd.f32 %v3506, %v3554
  %v3617 = vadd.f32 %v3507, %v3574
  %v3618 = vadd.f32 %v3508, %v3594
  %v3619 = vadd.f32 %v3509, %v3614
  %v3620 = vadd.f32 %v3616, %v3617
  %v3621 = vadd.f32 %v3620, %v3618
  %v3622 = vadd.f32 %v3621, %v3619
  %3623 = vadd.xlane.f32.xlu0 %v3622
  %v3624 = vpop.xlane.xlu0 %3623
  %v3625 = vmul.f32 %v3624, 0.001953125
  %v3626 = vsub.f32 %v3616, %v3625
  %v3627 = vsub.f32 %v3617, %v3625
  %v3628 = vsub.f32 %v3618, %v3625
  %v3629 = vsub.f32 %v3619, %v3625
  %v3630 = vmul.f32 %v3626, %v3626
  %v3631 = vmul.f32 %v3627, %v3627
  %v3632 = vmul.f32 %v3628, %v3628
  %v3633 = vmul.f32 %v3629, %v3629
  %v3634 = vadd.f32 %v3630, %v3631
  %v3635 = vadd.f32 %v3634, %v3632
  %v3636 = vadd.f32 %v3635, %v3633
  %3637 = vadd.xlane.f32.xlu0 %v3636
  %v3638 = vpop.xlane.xlu0 %3637
  %v3639 = vmul.f32 %v3638, 0.001953125
  %s3640 = scalar_lea.vmem %s6, 64
  %v3641 = vld [vmem:[%s3640] sm:$0xff]
  %v3642 = vadd.f32 %v3639, 1e-05
  %v3643 = vrsqrt.pop %v3642
  %v3644 = vmul.f32 %v3643, %v3642
  %v3645 = vmul.f32 %v3644, %v3643
  %v3646 = vmul.f32 0.5, %v3645
  %v3647 = vsub.f32 1.5, %v3646
  %v3648 = vmul.f32 %v3643, %v3647
  %vm3649 = vweird.f32 %v3642
  %vm3650 = vweird.f32 %v3643
  %vm3651 = vmor %vm3649, %vm3650
  %v3652 = vsel %vm3651, %v3643, %v3648
  %v3653 = vmul.f32 %v3641, %v3652
  %3655 = vset.pattern.permute.xlu0 0
  %3656 = vperm.xlu0 %3655, %v3653
  %v3657 = vpop.permute.xlu0 %3656
  %v3659 = vmul.f32 %v3626, %v3657
  %v3660 = vmul.f32 %v3627, %v3657
  %v3661 = vmul.f32 %v3628, %v3657
  %v3662 = vmul.f32 %v3629, %v3657
  %s3663 = scalar_lea.vmem %s6, 72
  %v3664 = vld [vmem:[%s3663] sm:$0xff]
  %3666 = vset.pattern.permute.xlu0 0
  %3667 = vperm.xlu0 %3666, %v3664
  %v3668 = vpop.permute.xlu0 %3667
  %v3670 = vadd.f32 %v3659, %v3668
  %v3671 = vadd.f32 %v3660, %v3668
  %v3672 = vadd.f32 %v3661, %v3668
  %v3673 = vadd.f32 %v3662, %v3668
  %v3674 = vmax.f32 %v3670, 0.0
  %v3675 = vmax.f32 %v3671, 0.0
  %v3676 = vmax.f32 %v3672, 0.0
  %v3677 = vmax.f32 %v3673, 0.0
  %3679 = vrot.lane.b32.xlu0 %v3677, 17
  %v3680 = vpop.permute.xlu0 %3679
  %3685 = vrot.lane.b32.xlu0 %v3674, 17
  %v3686 = vpop.permute.xlu0 %3685
  %3687 = vrot.lane.b32.xlu0 %v3675, 17
  %v3688 = vpop.permute.xlu0 %3687
  %3689 = vrot.lane.b32.xlu0 %v3676, 17
  %v3690 = vpop.permute.xlu0 %3689
  %v3691 = vsel %vm43, %v3686, %v3688
  %v3692 = vsel %vm43, %v3688, %v3690
  %v3693 = vsel %vm43, %v3690, %v3680
  %v3698 = vsel %vm43, %v3680, %v3686
  %v3699 = vmul.f32 %v3698, %v54
  %v3700 = vmul.f32 %v3691, %v55
  %v3701 = vmul.f32 %v3692, %v56
  %v3702 = vmul.f32 %v3693, %v57
  %s3703 = scalar_lea.vmem %s5, 432
  %v3704 = vld [vmem:[%s3703] sm:$0xff]
  %3705 = vrot.lane.b32.xlu0 %v3677, 16
  %v3706 = vpop.permute.xlu0 %3705
  %3708 = vrot.lane.b32.xlu0 %v3674, 16
  %v3709 = vpop.permute.xlu0 %3708
  %3710 = vrot.lane.b32.xlu0 %v3675, 16
  %v3711 = vpop.permute.xlu0 %3710
  %3712 = vrot.lane.b32.xlu0 %v3676, 16
  %v3713 = vpop.permute.xlu0 %3712
  %v3714 = vsel %vm76, %v3709, %v3711
  %v3715 = vsel %vm76, %v3711, %v3713
  %v3716 = vsel %vm76, %v3713, %v3706
  %v3721 = vsel %vm76, %v3706, %v3709
  %v3722 = vmul.f32 %v3721, %v88
  %v3723 = vmul.f32 %v3714, %v89
  %v3724 = vmul.f32 %v3715, %v90
  %v3725 = vmul.f32 %v3716, %v91
  %s3726 = scalar_lea.vmem %s5, 440
  %v3727 = vld [vmem:[%s3726] sm:$0xff]
  %v3729 = vsel %vm102, %v3727, 0
  %3731 = vmatpush.msra.mxu0 0.0
  %3732 = vmatpush.msra.mxu0 0.0
  %3733 = vmatpush.msra.mxu0 0.0
  %3734 = vmatpush.msra.mxu0 0.0
  %3735 = vmatpush.msra.mxu0 0.0
  %3736 = vmatpush.msra.mxu0 0.0
  %3737 = vmatpush.msra.mxu0 0.0
  %3738 = vmatpush.msra.mxu0 0.0
  %3739 = vmatpush.msra.mxu0 0.0
  %3740 = vmatpush.msra.mxu0 0.0
  %3741 = vmatpush.msra.mxu0 0.0
  %3742 = vmatpush.msra.mxu0 0.0
  %3743 = vmatpush.msra.mxu0 0.0
  %3744 = vmatpush.msra.mxu0 0.0
  %3745 = vmatpush.msra.mxu0 0.0
  %3746 = vmatpush.msra.mxu0 %v3722
  %3747 = vmatmul.f32.gmra.mxu0 %v3729
  %v3748 = vpop.f32.mrf.mxu0
  %v3749 = vadd.f32 0.0, %v3748
  %3750 = vdwg.mxu0
  %3751 = vmatpush.msra.mxu0 0.0
  %3752 = vmatpush.msra.mxu0 0.0
  %3753 = vmatpush.msra.mxu0 0.0
  %3754 = vmatpush.msra.mxu0 0.0
  %3755 = vmatpush.msra.mxu0 0.0
  %3756 = vmatpush.msra.mxu0 0.0
  %3757 = vmatpush.msra.mxu0 0.0
  %3758 = vmatpush.msra.mxu0 0.0
  %3759 = vmatpush.msra.mxu0 0.0
  %3760 = vmatpush.msra.mxu0 0.0
  %3761 = vmatpush.msra.mxu0 0.0
  %3762 = vmatpush.msra.mxu0 0.0
  %3763 = vmatpush.msra.mxu0 0.0
  %3764 = vmatpush.msra.mxu0 0.0
  %3765 = vmatpush.msra.mxu0 0.0
  %3766 = vmatpush.msra.mxu0 %v3723
  %3767 = vmatmul.f32.gmra.mxu0 %v3729
  %v3768 = vpop.f32.mrf.mxu0
  %v3769 = vadd.f32 0.0, %v3768
  %3770 = vdwg.mxu0
  %3771 = vmatpush.msra.mxu0 0.0
  %3772 = vmatpush.msra.mxu0 0.0
  %3773 = vmatpush.msra.mxu0 0.0
  %3774 = vmatpush.msra.mxu0 0.0
  %3775 = vmatpush.msra.mxu0 0.0
  %3776 = vmatpush.msra.mxu0 0.0
  %3777 = vmatpush.msra.mxu0 0.0
  %3778 = vmatpush.msra.mxu0 0.0
  %3779 = vmatpush.msra.mxu0 0.0
  %3780 = vmatpush.msra.mxu0 0.0
  %3781 = vmatpush.msra.mxu0 0.0
  %3782 = vmatpush.msra.mxu0 0.0
  %3783 = vmatpush.msra.mxu0 0.0
  %3784 = vmatpush.msra.mxu0 0.0
  %3785 = vmatpush.msra.mxu0 0.0
  %3786 = vmatpush.msra.mxu0 %v3724
  %3787 = vmatmul.f32.gmra.mxu0 %v3729
  %v3788 = vpop.f32.mrf.mxu0
  %v3789 = vadd.f32 0.0, %v3788
  %3790 = vdwg.mxu0
  %3791 = vmatpush.msra.mxu0 0.0
  %3792 = vmatpush.msra.mxu0 0.0
  %3793 = vmatpush.msra.mxu0 0.0
  %3794 = vmatpush.msra.mxu0 0.0
  %3795 = vmatpush.msra.mxu0 0.0
  %3796 = vmatpush.msra.mxu0 0.0
  %3797 = vmatpush.msra.mxu0 0.0
  %3798 = vmatpush.msra.mxu0 0.0
  %3799 = vmatpush.msra.mxu0 0.0
  %3800 = vmatpush.msra.mxu0 0.0
  %3801 = vmatpush.msra.mxu0 0.0
  %3802 = vmatpush.msra.mxu0 0.0
  %3803 = vmatpush.msra.mxu0 0.0
  %3804 = vmatpush.msra.mxu0 0.0
  %3805 = vmatpush.msra.mxu0 0.0
  %3806 = vmatpush.msra.mxu0 %v3725
  %3807 = vmatmul.f32.gmra.mxu0 %v3729
  %v3808 = vpop.f32.mrf.mxu0
  %v3809 = vadd.f32 0.0, %v3808
  %3810 = vdwg.mxu0
  %v3812 = vsel %vm102, %v3704, 0
  %3814 = vmatpush.msra.mxu0 0.0
  %3815 = vmatpush.msra.mxu0 0.0
  %3816 = vmatpush.msra.mxu0 0.0
  %3817 = vmatpush.msra.mxu0 0.0
  %3818 = vmatpush.msra.mxu0 0.0
  %3819 = vmatpush.msra.mxu0 0.0
  %3820 = vmatpush.msra.mxu0 0.0
  %3821 = vmatpush.msra.mxu0 0.0
  %3822 = vmatpush.msra.mxu0 0.0
  %3823 = vmatpush.msra.mxu0 0.0
  %3824 = vmatpush.msra.mxu0 0.0
  %3825 = vmatpush.msra.mxu0 0.0
  %3826 = vmatpush.msra.mxu0 0.0
  %3827 = vmatpush.msra.mxu0 0.0
  %3828 = vmatpush.msra.mxu0 0.0
  %3829 = vmatpush.msra.mxu0 %v3699
  %3830 = vmatmul.f32.gmra.mxu0 %v3812
  %v3831 = vpop.f32.mrf.mxu0
  %v3832 = vadd.f32 %v3749, %v3831
  %3833 = vdwg.mxu0
  %3834 = vmatpush.msra.mxu0 0.0
  %3835 = vmatpush.msra.mxu0 0.0
  %3836 = vmatpush.msra.mxu0 0.0
  %3837 = vmatpush.msra.mxu0 0.0
  %3838 = vmatpush.msra.mxu0 0.0
  %3839 = vmatpush.msra.mxu0 0.0
  %3840 = vmatpush.msra.mxu0 0.0
  %3841 = vmatpush.msra.mxu0 0.0
  %3842 = vmatpush.msra.mxu0 0.0
  %3843 = vmatpush.msra.mxu0 0.0
  %3844 = vmatpush.msra.mxu0 0.0
  %3845 = vmatpush.msra.mxu0 0.0
  %3846 = vmatpush.msra.mxu0 0.0
  %3847 = vmatpush.msra.mxu0 0.0
  %3848 = vmatpush.msra.mxu0 0.0
  %3849 = vmatpush.msra.mxu0 %v3700
  %3850 = vmatmul.f32.gmra.mxu0 %v3812
  %v3851 = vpop.f32.mrf.mxu0
  %v3852 = vadd.f32 %v3769, %v3851
  %3853 = vdwg.mxu0
  %3854 = vmatpush.msra.mxu0 0.0
  %3855 = vmatpush.msra.mxu0 0.0
  %3856 = vmatpush.msra.mxu0 0.0
  %3857 = vmatpush.msra.mxu0 0.0
  %3858 = vmatpush.msra.mxu0 0.0
  %3859 = vmatpush.msra.mxu0 0.0
  %3860 = vmatpush.msra.mxu0 0.0
  %3861 = vmatpush.msra.mxu0 0.0
  %3862 = vmatpush.msra.mxu0 0.0
  %3863 = vmatpush.msra.mxu0 0.0
  %3864 = vmatpush.msra.mxu0 0.0
  %3865 = vmatpush.msra.mxu0 0.0
  %3866 = vmatpush.msra.mxu0 0.0
  %3867 = vmatpush.msra.mxu0 0.0
  %3868 = vmatpush.msra.mxu0 0.0
  %3869 = vmatpush.msra.mxu0 %v3701
  %3870 = vmatmul.f32.gmra.mxu0 %v3812
  %v3871 = vpop.f32.mrf.mxu0
  %v3872 = vadd.f32 %v3789, %v3871
  %3873 = vdwg.mxu0
  %3874 = vmatpush.msra.mxu0 0.0
  %3875 = vmatpush.msra.mxu0 0.0
  %3876 = vmatpush.msra.mxu0 0.0
  %3877 = vmatpush.msra.mxu0 0.0
  %3878 = vmatpush.msra.mxu0 0.0
  %3879 = vmatpush.msra.mxu0 0.0
  %3880 = vmatpush.msra.mxu0 0.0
  %3881 = vmatpush.msra.mxu0 0.0
  %3882 = vmatpush.msra.mxu0 0.0
  %3883 = vmatpush.msra.mxu0 0.0
  %3884 = vmatpush.msra.mxu0 0.0
  %3885 = vmatpush.msra.mxu0 0.0
  %3886 = vmatpush.msra.mxu0 0.0
  %3887 = vmatpush.msra.mxu0 0.0
  %3888 = vmatpush.msra.mxu0 0.0
  %3889 = vmatpush.msra.mxu0 %v3702
  %3890 = vmatmul.f32.gmra.mxu0 %v3812
  %v3891 = vpop.f32.mrf.mxu0
  %v3892 = vadd.f32 %v3809, %v3891
  %3893 = vdwg.mxu0
  %3894 = vrot.lane.b32.xlu0 %v3677, 15
  %v3895 = vpop.permute.xlu0 %3894
  %3897 = vrot.lane.b32.xlu0 %v3674, 15
  %v3898 = vpop.permute.xlu0 %3897
  %3899 = vrot.lane.b32.xlu0 %v3675, 15
  %v3900 = vpop.permute.xlu0 %3899
  %3901 = vrot.lane.b32.xlu0 %v3676, 15
  %v3902 = vpop.permute.xlu0 %3901
  %v3903 = vsel %vm278, %v3898, %v3900
  %v3904 = vsel %vm278, %v3900, %v3902
  %v3905 = vsel %vm278, %v3902, %v3895
  %v3910 = vsel %vm278, %v3895, %v3898
  %v3911 = vmul.f32 %v3910, %v290
  %v3912 = vmul.f32 %v3903, %v291
  %v3913 = vmul.f32 %v3904, %v292
  %v3914 = vmul.f32 %v3905, %v293
  %s3915 = scalar_lea.vmem %s5, 448
  %v3916 = vld [vmem:[%s3915] sm:$0xff]
  %v3918 = vsel %vm102, %v3916, 0
  %3920 = vmatpush.msra.mxu0 0.0
  %3921 = vmatpush.msra.mxu0 0.0
  %3922 = vmatpush.msra.mxu0 0.0
  %3923 = vmatpush.msra.mxu0 0.0
  %3924 = vmatpush.msra.mxu0 0.0
  %3925 = vmatpush.msra.mxu0 0.0
  %3926 = vmatpush.msra.mxu0 0.0
  %3927 = vmatpush.msra.mxu0 0.0
  %3928 = vmatpush.msra.mxu0 0.0
  %3929 = vmatpush.msra.mxu0 0.0
  %3930 = vmatpush.msra.mxu0 0.0
  %3931 = vmatpush.msra.mxu0 0.0
  %3932 = vmatpush.msra.mxu0 0.0
  %3933 = vmatpush.msra.mxu0 0.0
  %3934 = vmatpush.msra.mxu0 0.0
  %3935 = vmatpush.msra.mxu0 %v3911
  %3936 = vmatmul.f32.gmra.mxu0 %v3918
  %v3937 = vpop.f32.mrf.mxu0
  %v3938 = vadd.f32 0.0, %v3937
  %3939 = vdwg.mxu0
  %3940 = vmatpush.msra.mxu0 0.0
  %3941 = vmatpush.msra.mxu0 0.0
  %3942 = vmatpush.msra.mxu0 0.0
  %3943 = vmatpush.msra.mxu0 0.0
  %3944 = vmatpush.msra.mxu0 0.0
  %3945 = vmatpush.msra.mxu0 0.0
  %3946 = vmatpush.msra.mxu0 0.0
  %3947 = vmatpush.msra.mxu0 0.0
  %3948 = vmatpush.msra.mxu0 0.0
  %3949 = vmatpush.msra.mxu0 0.0
  %3950 = vmatpush.msra.mxu0 0.0
  %3951 = vmatpush.msra.mxu0 0.0
  %3952 = vmatpush.msra.mxu0 0.0
  %3953 = vmatpush.msra.mxu0 0.0
  %3954 = vmatpush.msra.mxu0 0.0
  %3955 = vmatpush.msra.mxu0 %v3912
  %3956 = vmatmul.f32.gmra.mxu0 %v3918
  %v3957 = vpop.f32.mrf.mxu0
  %v3958 = vadd.f32 0.0, %v3957
  %3959 = vdwg.mxu0
  %3960 = vmatpush.msra.mxu0 0.0
  %3961 = vmatpush.msra.mxu0 0.0
  %3962 = vmatpush.msra.mxu0 0.0
  %3963 = vmatpush.msra.mxu0 0.0
  %3964 = vmatpush.msra.mxu0 0.0
  %3965 = vmatpush.msra.mxu0 0.0
  %3966 = vmatpush.msra.mxu0 0.0
  %3967 = vmatpush.msra.mxu0 0.0
  %3968 = vmatpush.msra.mxu0 0.0
  %3969 = vmatpush.msra.mxu0 0.0
  %3970 = vmatpush.msra.mxu0 0.0
  %3971 = vmatpush.msra.mxu0 0.0
  %3972 = vmatpush.msra.mxu0 0.0
  %3973 = vmatpush.msra.mxu0 0.0
  %3974 = vmatpush.msra.mxu0 0.0
  %3975 = vmatpush.msra.mxu0 %v3913
  %3976 = vmatmul.f32.gmra.mxu0 %v3918
  %v3977 = vpop.f32.mrf.mxu0
  %v3978 = vadd.f32 0.0, %v3977
  %3979 = vdwg.mxu0
  %3980 = vmatpush.msra.mxu0 0.0
  %3981 = vmatpush.msra.mxu0 0.0
  %3982 = vmatpush.msra.mxu0 0.0
  %3983 = vmatpush.msra.mxu0 0.0
  %3984 = vmatpush.msra.mxu0 0.0
  %3985 = vmatpush.msra.mxu0 0.0
  %3986 = vmatpush.msra.mxu0 0.0
  %3987 = vmatpush.msra.mxu0 0.0
  %3988 = vmatpush.msra.mxu0 0.0
  %3989 = vmatpush.msra.mxu0 0.0
  %3990 = vmatpush.msra.mxu0 0.0
  %3991 = vmatpush.msra.mxu0 0.0
  %3992 = vmatpush.msra.mxu0 0.0
  %3993 = vmatpush.msra.mxu0 0.0
  %3994 = vmatpush.msra.mxu0 0.0
  %3995 = vmatpush.msra.mxu0 %v3914
  %3996 = vmatmul.f32.gmra.mxu0 %v3918
  %v3997 = vpop.f32.mrf.mxu0
  %v3998 = vadd.f32 0.0, %v3997
  %3999 = vdwg.mxu0
  %v4000 = vadd.f32 %v3832, %v3938
  %v4001 = vadd.f32 %v3852, %v3958
  %v4002 = vadd.f32 %v3872, %v3978
  %v4003 = vadd.f32 %v3892, %v3998
  %4004 = vrot.lane.b32.xlu0 %v3677, 1
  %v4005 = vpop.permute.xlu0 %4004
  %4007 = vrot.lane.b32.xlu0 %v3674, 1
  %v4008 = vpop.permute.xlu0 %4007
  %4009 = vrot.lane.b32.xlu0 %v3675, 1
  %v4010 = vpop.permute.xlu0 %4009
  %4011 = vrot.lane.b32.xlu0 %v3676, 1
  %v4012 = vpop.permute.xlu0 %4011
  %v4013 = vsel %vm400, %v4008, %v4010
  %v4014 = vsel %vm400, %v4010, %v4012
  %v4015 = vsel %vm400, %v4012, %v4005
  %v4020 = vsel %vm400, %v4005, %v4008
  %v4021 = vmul.f32 %v4020, %v412
  %v4022 = vmul.f32 %v4013, %v413
  %v4023 = vmul.f32 %v4014, %v414
  %v4024 = vmul.f32 %v4015, %v415
  %s4025 = scalar_lea.vmem %s5, 456
  %v4026 = vld [vmem:[%s4025] sm:$0xff]
  %v4028 = vsel %vm102, %v4026, 0
  %4030 = vmatpush.msra.mxu0 0.0
  %4031 = vmatpush.msra.mxu0 0.0
  %4032 = vmatpush.msra.mxu0 0.0
  %4033 = vmatpush.msra.mxu0 0.0
  %4034 = vmatpush.msra.mxu0 0.0
  %4035 = vmatpush.msra.mxu0 0.0
  %4036 = vmatpush.msra.mxu0 0.0
  %4037 = vmatpush.msra.mxu0 0.0
  %4038 = vmatpush.msra.mxu0 0.0
  %4039 = vmatpush.msra.mxu0 0.0
  %4040 = vmatpush.msra.mxu0 0.0
  %4041 = vmatpush.msra.mxu0 0.0
  %4042 = vmatpush.msra.mxu0 0.0
  %4043 = vmatpush.msra.mxu0 0.0
  %4044 = vmatpush.msra.mxu0 0.0
  %4045 = vmatpush.msra.mxu0 %v4021
  %4046 = vmatmul.f32.gmra.mxu0 %v4028
  %v4047 = vpop.f32.mrf.mxu0
  %v4048 = vadd.f32 0.0, %v4047
  %4049 = vdwg.mxu0
  %4050 = vmatpush.msra.mxu0 0.0
  %4051 = vmatpush.msra.mxu0 0.0
  %4052 = vmatpush.msra.mxu0 0.0
  %4053 = vmatpush.msra.mxu0 0.0
  %4054 = vmatpush.msra.mxu0 0.0
  %4055 = vmatpush.msra.mxu0 0.0
  %4056 = vmatpush.msra.mxu0 0.0
  %4057 = vmatpush.msra.mxu0 0.0
  %4058 = vmatpush.msra.mxu0 0.0
  %4059 = vmatpush.msra.mxu0 0.0
  %4060 = vmatpush.msra.mxu0 0.0
  %4061 = vmatpush.msra.mxu0 0.0
  %4062 = vmatpush.msra.mxu0 0.0
  %4063 = vmatpush.msra.mxu0 0.0
  %4064 = vmatpush.msra.mxu0 0.0
  %4065 = vmatpush.msra.mxu0 %v4022
  %4066 = vmatmul.f32.gmra.mxu0 %v4028
  %v4067 = vpop.f32.mrf.mxu0
  %v4068 = vadd.f32 0.0, %v4067
  %4069 = vdwg.mxu0
  %4070 = vmatpush.msra.mxu0 0.0
  %4071 = vmatpush.msra.mxu0 0.0
  %4072 = vmatpush.msra.mxu0 0.0
  %4073 = vmatpush.msra.mxu0 0.0
  %4074 = vmatpush.msra.mxu0 0.0
  %4075 = vmatpush.msra.mxu0 0.0
  %4076 = vmatpush.msra.mxu0 0.0
  %4077 = vmatpush.msra.mxu0 0.0
  %4078 = vmatpush.msra.mxu0 0.0
  %4079 = vmatpush.msra.mxu0 0.0
  %4080 = vmatpush.msra.mxu0 0.0
  %4081 = vmatpush.msra.mxu0 0.0
  %4082 = vmatpush.msra.mxu0 0.0
  %4083 = vmatpush.msra.mxu0 0.0
  %4084 = vmatpush.msra.mxu0 0.0
  %4085 = vmatpush.msra.mxu0 %v4023
  %4086 = vmatmul.f32.gmra.mxu0 %v4028
  %v4087 = vpop.f32.mrf.mxu0
  %v4088 = vadd.f32 0.0, %v4087
  %4089 = vdwg.mxu0
  %4090 = vmatpush.msra.mxu0 0.0
  %4091 = vmatpush.msra.mxu0 0.0
  %4092 = vmatpush.msra.mxu0 0.0
  %4093 = vmatpush.msra.mxu0 0.0
  %4094 = vmatpush.msra.mxu0 0.0
  %4095 = vmatpush.msra.mxu0 0.0
  %4096 = vmatpush.msra.mxu0 0.0
  %4097 = vmatpush.msra.mxu0 0.0
  %4098 = vmatpush.msra.mxu0 0.0
  %4099 = vmatpush.msra.mxu0 0.0
  %4100 = vmatpush.msra.mxu0 0.0
  %4101 = vmatpush.msra.mxu0 0.0
  %4102 = vmatpush.msra.mxu0 0.0
  %4103 = vmatpush.msra.mxu0 0.0
  %4104 = vmatpush.msra.mxu0 0.0
  %4105 = vmatpush.msra.mxu0 %v4024
  %4106 = vmatmul.f32.gmra.mxu0 %v4028
  %v4107 = vpop.f32.mrf.mxu0
  %v4108 = vadd.f32 0.0, %v4107
  %4109 = vdwg.mxu0
  %v4110 = vadd.f32 %v4000, %v4048
  %v4111 = vadd.f32 %v4001, %v4068
  %v4112 = vadd.f32 %v4002, %v4088
  %v4113 = vadd.f32 %v4003, %v4108
  %v4114 = vmul.f32 %v3674, %v516
  %v4115 = vmul.f32 %v3675, %v517
  %v4116 = vmul.f32 %v3676, %v518
  %v4117 = vmul.f32 %v3677, %v519
  %s4118 = scalar_lea.vmem %s5, 464
  %v4119 = vld [vmem:[%s4118] sm:$0xff]
  %v4121 = vsel %vm102, %v4119, 0
  %4123 = vmatpush.msra.mxu0 0.0
  %4124 = vmatpush.msra.mxu0 0.0
  %4125 = vmatpush.msra.mxu0 0.0
  %4126 = vmatpush.msra.mxu0 0.0
  %4127 = vmatpush.msra.mxu0 0.0
  %4128 = vmatpush.msra.mxu0 0.0
  %4129 = vmatpush.msra.mxu0 0.0
  %4130 = vmatpush.msra.mxu0 0.0
  %4131 = vmatpush.msra.mxu0 0.0
  %4132 = vmatpush.msra.mxu0 0.0
  %4133 = vmatpush.msra.mxu0 0.0
  %4134 = vmatpush.msra.mxu0 0.0
  %4135 = vmatpush.msra.mxu0 0.0
  %4136 = vmatpush.msra.mxu0 0.0
  %4137 = vmatpush.msra.mxu0 0.0
  %4138 = vmatpush.msra.mxu0 %v4114
  %4139 = vmatmul.f32.gmra.mxu0 %v4121
  %v4140 = vpop.f32.mrf.mxu0
  %v4141 = vadd.f32 0.0, %v4140
  %4142 = vdwg.mxu0
  %4143 = vmatpush.msra.mxu0 0.0
  %4144 = vmatpush.msra.mxu0 0.0
  %4145 = vmatpush.msra.mxu0 0.0
  %4146 = vmatpush.msra.mxu0 0.0
  %4147 = vmatpush.msra.mxu0 0.0
  %4148 = vmatpush.msra.mxu0 0.0
  %4149 = vmatpush.msra.mxu0 0.0
  %4150 = vmatpush.msra.mxu0 0.0
  %4151 = vmatpush.msra.mxu0 0.0
  %4152 = vmatpush.msra.mxu0 0.0
  %4153 = vmatpush.msra.mxu0 0.0
  %4154 = vmatpush.msra.mxu0 0.0
  %4155 = vmatpush.msra.mxu0 0.0
  %4156 = vmatpush.msra.mxu0 0.0
  %4157 = vmatpush.msra.mxu0 0.0
  %4158 = vmatpush.msra.mxu0 %v4115
  %4159 = vmatmul.f32.gmra.mxu0 %v4121
  %v4160 = vpop.f32.mrf.mxu0
  %v4161 = vadd.f32 0.0, %v4160
  %4162 = vdwg.mxu0
  %4163 = vmatpush.msra.mxu0 0.0
  %4164 = vmatpush.msra.mxu0 0.0
  %4165 = vmatpush.msra.mxu0 0.0
  %4166 = vmatpush.msra.mxu0 0.0
  %4167 = vmatpush.msra.mxu0 0.0
  %4168 = vmatpush.msra.mxu0 0.0
  %4169 = vmatpush.msra.mxu0 0.0
  %4170 = vmatpush.msra.mxu0 0.0
  %4171 = vmatpush.msra.mxu0 0.0
  %4172 = vmatpush.msra.mxu0 0.0
  %4173 = vmatpush.msra.mxu0 0.0
  %4174 = vmatpush.msra.mxu0 0.0
  %4175 = vmatpush.msra.mxu0 0.0
  %4176 = vmatpush.msra.mxu0 0.0
  %4177 = vmatpush.msra.mxu0 0.0
  %4178 = vmatpush.msra.mxu0 %v4116
  %4179 = vmatmul.f32.gmra.mxu0 %v4121
  %v4180 = vpop.f32.mrf.mxu0
  %v4181 = vadd.f32 0.0, %v4180
  %4182 = vdwg.mxu0
  %4183 = vmatpush.msra.mxu0 0.0
  %4184 = vmatpush.msra.mxu0 0.0
  %4185 = vmatpush.msra.mxu0 0.0
  %4186 = vmatpush.msra.mxu0 0.0
  %4187 = vmatpush.msra.mxu0 0.0
  %4188 = vmatpush.msra.mxu0 0.0
  %4189 = vmatpush.msra.mxu0 0.0
  %4190 = vmatpush.msra.mxu0 0.0
  %4191 = vmatpush.msra.mxu0 0.0
  %4192 = vmatpush.msra.mxu0 0.0
  %4193 = vmatpush.msra.mxu0 0.0
  %4194 = vmatpush.msra.mxu0 0.0
  %4195 = vmatpush.msra.mxu0 0.0
  %4196 = vmatpush.msra.mxu0 0.0
  %4197 = vmatpush.msra.mxu0 0.0
  %4198 = vmatpush.msra.mxu0 %v4117
  %4199 = vmatmul.f32.gmra.mxu0 %v4121
  %v4200 = vpop.f32.mrf.mxu0
  %v4201 = vadd.f32 0.0, %v4200
  %4202 = vdwg.mxu0
  %v4203 = vadd.f32 %v4110, %v4141
  %v4204 = vadd.f32 %v4111, %v4161
  %v4205 = vadd.f32 %v4112, %v4181
  %v4206 = vadd.f32 %v4113, %v4201
  %4207 = vrot.lane.b32.xlu0 %v3674, 127
  %v4208 = vpop.permute.xlu0 %4207
  %4209 = vrot.lane.b32.xlu0 %v3675, 127
  %v4210 = vpop.permute.xlu0 %4209
  %4211 = vrot.lane.b32.xlu0 %v3676, 127
  %v4212 = vpop.permute.xlu0 %4211
  %4213 = vrot.lane.b32.xlu0 %v3677, 127
  %v4214 = vpop.permute.xlu0 %4213
  %v4215 = vsel %vm625, %v4208, %v4210
  %v4216 = vsel %vm625, %v4210, %v4212
  %v4217 = vsel %vm625, %v4212, %v4214
  %v4223 = vsel %vm625, %v4214, %v4208
  %v4224 = vmul.f32 %v4215, %v638
  %v4225 = vmul.f32 %v4216, %v639
  %v4226 = vmul.f32 %v4217, %v640
  %v4227 = vmul.f32 %v4223, %v641
  %s4228 = scalar_lea.vmem %s5, 472
  %v4229 = vld [vmem:[%s4228] sm:$0xff]
  %v4231 = vsel %vm102, %v4229, 0
  %4233 = vmatpush.msra.mxu0 0.0
  %4234 = vmatpush.msra.mxu0 0.0
  %4235 = vmatpush.msra.mxu0 0.0
  %4236 = vmatpush.msra.mxu0 0.0
  %4237 = vmatpush.msra.mxu0 0.0
  %4238 = vmatpush.msra.mxu0 0.0
  %4239 = vmatpush.msra.mxu0 0.0
  %4240 = vmatpush.msra.mxu0 0.0
  %4241 = vmatpush.msra.mxu0 0.0
  %4242 = vmatpush.msra.mxu0 0.0
  %4243 = vmatpush.msra.mxu0 0.0
  %4244 = vmatpush.msra.mxu0 0.0
  %4245 = vmatpush.msra.mxu0 0.0
  %4246 = vmatpush.msra.mxu0 0.0
  %4247 = vmatpush.msra.mxu0 0.0
  %4248 = vmatpush.msra.mxu0 %v4224
  %4249 = vmatmul.f32.gmra.mxu0 %v4231
  %v4250 = vpop.f32.mrf.mxu0
  %v4251 = vadd.f32 0.0, %v4250
  %4252 = vdwg.mxu0
  %4253 = vmatpush.msra.mxu0 0.0
  %4254 = vmatpush.msra.mxu0 0.0
  %4255 = vmatpush.msra.mxu0 0.0
  %4256 = vmatpush.msra.mxu0 0.0
  %4257 = vmatpush.msra.mxu0 0.0
  %4258 = vmatpush.msra.mxu0 0.0
  %4259 = vmatpush.msra.mxu0 0.0
  %4260 = vmatpush.msra.mxu0 0.0
  %4261 = vmatpush.msra.mxu0 0.0
  %4262 = vmatpush.msra.mxu0 0.0
  %4263 = vmatpush.msra.mxu0 0.0
  %4264 = vmatpush.msra.mxu0 0.0
  %4265 = vmatpush.msra.mxu0 0.0
  %4266 = vmatpush.msra.mxu0 0.0
  %4267 = vmatpush.msra.mxu0 0.0
  %4268 = vmatpush.msra.mxu0 %v4225
  %4269 = vmatmul.f32.gmra.mxu0 %v4231
  %v4270 = vpop.f32.mrf.mxu0
  %v4271 = vadd.f32 0.0, %v4270
  %4272 = vdwg.mxu0
  %4273 = vmatpush.msra.mxu0 0.0
  %4274 = vmatpush.msra.mxu0 0.0
  %4275 = vmatpush.msra.mxu0 0.0
  %4276 = vmatpush.msra.mxu0 0.0
  %4277 = vmatpush.msra.mxu0 0.0
  %4278 = vmatpush.msra.mxu0 0.0
  %4279 = vmatpush.msra.mxu0 0.0
  %4280 = vmatpush.msra.mxu0 0.0
  %4281 = vmatpush.msra.mxu0 0.0
  %4282 = vmatpush.msra.mxu0 0.0
  %4283 = vmatpush.msra.mxu0 0.0
  %4284 = vmatpush.msra.mxu0 0.0
  %4285 = vmatpush.msra.mxu0 0.0
  %4286 = vmatpush.msra.mxu0 0.0
  %4287 = vmatpush.msra.mxu0 0.0
  %4288 = vmatpush.msra.mxu0 %v4226
  %4289 = vmatmul.f32.gmra.mxu0 %v4231
  %v4290 = vpop.f32.mrf.mxu0
  %v4291 = vadd.f32 0.0, %v4290
  %4292 = vdwg.mxu0
  %4293 = vmatpush.msra.mxu0 0.0
  %4294 = vmatpush.msra.mxu0 0.0
  %4295 = vmatpush.msra.mxu0 0.0
  %4296 = vmatpush.msra.mxu0 0.0
  %4297 = vmatpush.msra.mxu0 0.0
  %4298 = vmatpush.msra.mxu0 0.0
  %4299 = vmatpush.msra.mxu0 0.0
  %4300 = vmatpush.msra.mxu0 0.0
  %4301 = vmatpush.msra.mxu0 0.0
  %4302 = vmatpush.msra.mxu0 0.0
  %4303 = vmatpush.msra.mxu0 0.0
  %4304 = vmatpush.msra.mxu0 0.0
  %4305 = vmatpush.msra.mxu0 0.0
  %4306 = vmatpush.msra.mxu0 0.0
  %4307 = vmatpush.msra.mxu0 0.0
  %4308 = vmatpush.msra.mxu0 %v4227
  %4309 = vmatmul.f32.gmra.mxu0 %v4231
  %v4310 = vpop.f32.mrf.mxu0
  %v4311 = vadd.f32 0.0, %v4310
  %4312 = vdwg.mxu0
  %v4313 = vadd.f32 %v4203, %v4251
  %v4314 = vadd.f32 %v4204, %v4271
  %v4315 = vadd.f32 %v4205, %v4291
  %v4316 = vadd.f32 %v4206, %v4311
  %4317 = vrot.lane.b32.xlu0 %v3674, 113
  %v4318 = vpop.permute.xlu0 %4317
  %4319 = vrot.lane.b32.xlu0 %v3675, 113
  %v4320 = vpop.permute.xlu0 %4319
  %4321 = vrot.lane.b32.xlu0 %v3676, 113
  %v4322 = vpop.permute.xlu0 %4321
  %4323 = vrot.lane.b32.xlu0 %v3677, 113
  %v4324 = vpop.permute.xlu0 %4323
  %v4325 = vsel %vm747, %v4318, %v4320
  %v4326 = vsel %vm747, %v4320, %v4322
  %v4327 = vsel %vm747, %v4322, %v4324
  %v4333 = vsel %vm747, %v4324, %v4318
  %v4334 = vmul.f32 %v4325, %v760
  %v4335 = vmul.f32 %v4326, %v761
  %v4336 = vmul.f32 %v4327, %v762
  %v4337 = vmul.f32 %v4333, %v763
  %s4338 = scalar_lea.vmem %s5, 480
  %v4339 = vld [vmem:[%s4338] sm:$0xff]
  %v4341 = vsel %vm102, %v4339, 0
  %4343 = vmatpush.msra.mxu0 0.0
  %4344 = vmatpush.msra.mxu0 0.0
  %4345 = vmatpush.msra.mxu0 0.0
  %4346 = vmatpush.msra.mxu0 0.0
  %4347 = vmatpush.msra.mxu0 0.0
  %4348 = vmatpush.msra.mxu0 0.0
  %4349 = vmatpush.msra.mxu0 0.0
  %4350 = vmatpush.msra.mxu0 0.0
  %4351 = vmatpush.msra.mxu0 0.0
  %4352 = vmatpush.msra.mxu0 0.0
  %4353 = vmatpush.msra.mxu0 0.0
  %4354 = vmatpush.msra.mxu0 0.0
  %4355 = vmatpush.msra.mxu0 0.0
  %4356 = vmatpush.msra.mxu0 0.0
  %4357 = vmatpush.msra.mxu0 0.0
  %4358 = vmatpush.msra.mxu0 %v4334
  %4359 = vmatmul.f32.gmra.mxu0 %v4341
  %v4360 = vpop.f32.mrf.mxu0
  %v4361 = vadd.f32 0.0, %v4360
  %4362 = vdwg.mxu0
  %4363 = vmatpush.msra.mxu0 0.0
  %4364 = vmatpush.msra.mxu0 0.0
  %4365 = vmatpush.msra.mxu0 0.0
  %4366 = vmatpush.msra.mxu0 0.0
  %4367 = vmatpush.msra.mxu0 0.0
  %4368 = vmatpush.msra.mxu0 0.0
  %4369 = vmatpush.msra.mxu0 0.0
  %4370 = vmatpush.msra.mxu0 0.0
  %4371 = vmatpush.msra.mxu0 0.0
  %4372 = vmatpush.msra.mxu0 0.0
  %4373 = vmatpush.msra.mxu0 0.0
  %4374 = vmatpush.msra.mxu0 0.0
  %4375 = vmatpush.msra.mxu0 0.0
  %4376 = vmatpush.msra.mxu0 0.0
  %4377 = vmatpush.msra.mxu0 0.0
  %4378 = vmatpush.msra.mxu0 %v4335
  %4379 = vmatmul.f32.gmra.mxu0 %v4341
  %v4380 = vpop.f32.mrf.mxu0
  %v4381 = vadd.f32 0.0, %v4380
  %4382 = vdwg.mxu0
  %4383 = vmatpush.msra.mxu0 0.0
  %4384 = vmatpush.msra.mxu0 0.0
  %4385 = vmatpush.msra.mxu0 0.0
  %4386 = vmatpush.msra.mxu0 0.0
  %4387 = vmatpush.msra.mxu0 0.0
  %4388 = vmatpush.msra.mxu0 0.0
  %4389 = vmatpush.msra.mxu0 0.0
  %4390 = vmatpush.msra.mxu0 0.0
  %4391 = vmatpush.msra.mxu0 0.0
  %4392 = vmatpush.msra.mxu0 0.0
  %4393 = vmatpush.msra.mxu0 0.0
  %4394 = vmatpush.msra.mxu0 0.0
  %4395 = vmatpush.msra.mxu0 0.0
  %4396 = vmatpush.msra.mxu0 0.0
  %4397 = vmatpush.msra.mxu0 0.0
  %4398 = vmatpush.msra.mxu0 %v4336
  %4399 = vmatmul.f32.gmra.mxu0 %v4341
  %v4400 = vpop.f32.mrf.mxu0
  %v4401 = vadd.f32 0.0, %v4400
  %4402 = vdwg.mxu0
  %4403 = vmatpush.msra.mxu0 0.0
  %4404 = vmatpush.msra.mxu0 0.0
  %4405 = vmatpush.msra.mxu0 0.0
  %4406 = vmatpush.msra.mxu0 0.0
  %4407 = vmatpush.msra.mxu0 0.0
  %4408 = vmatpush.msra.mxu0 0.0
  %4409 = vmatpush.msra.mxu0 0.0
  %4410 = vmatpush.msra.mxu0 0.0
  %4411 = vmatpush.msra.mxu0 0.0
  %4412 = vmatpush.msra.mxu0 0.0
  %4413 = vmatpush.msra.mxu0 0.0
  %4414 = vmatpush.msra.mxu0 0.0
  %4415 = vmatpush.msra.mxu0 0.0
  %4416 = vmatpush.msra.mxu0 0.0
  %4417 = vmatpush.msra.mxu0 0.0
  %4418 = vmatpush.msra.mxu0 %v4337
  %4419 = vmatmul.f32.gmra.mxu0 %v4341
  %v4420 = vpop.f32.mrf.mxu0
  %v4421 = vadd.f32 0.0, %v4420
  %4422 = vdwg.mxu0
  %v4423 = vadd.f32 %v4313, %v4361
  %v4424 = vadd.f32 %v4314, %v4381
  %v4425 = vadd.f32 %v4315, %v4401
  %v4426 = vadd.f32 %v4316, %v4421
  %4427 = vrot.lane.b32.xlu0 %v3674, 112
  %v4428 = vpop.permute.xlu0 %4427
  %4429 = vrot.lane.b32.xlu0 %v3675, 112
  %v4430 = vpop.permute.xlu0 %4429
  %4431 = vrot.lane.b32.xlu0 %v3676, 112
  %v4432 = vpop.permute.xlu0 %4431
  %4433 = vrot.lane.b32.xlu0 %v3677, 112
  %v4434 = vpop.permute.xlu0 %4433
  %v4435 = vsel %vm869, %v4428, %v4430
  %v4436 = vsel %vm869, %v4430, %v4432
  %v4437 = vsel %vm869, %v4432, %v4434
  %v4443 = vsel %vm869, %v4434, %v4428
  %v4444 = vmul.f32 %v4435, %v882
  %v4445 = vmul.f32 %v4436, %v883
  %v4446 = vmul.f32 %v4437, %v884
  %v4447 = vmul.f32 %v4443, %v885
  %s4448 = scalar_lea.vmem %s5, 488
  %v4449 = vld [vmem:[%s4448] sm:$0xff]
  %v4451 = vsel %vm102, %v4449, 0
  %4453 = vmatpush.msra.mxu0 0.0
  %4454 = vmatpush.msra.mxu0 0.0
  %4455 = vmatpush.msra.mxu0 0.0
  %4456 = vmatpush.msra.mxu0 0.0
  %4457 = vmatpush.msra.mxu0 0.0
  %4458 = vmatpush.msra.mxu0 0.0
  %4459 = vmatpush.msra.mxu0 0.0
  %4460 = vmatpush.msra.mxu0 0.0
  %4461 = vmatpush.msra.mxu0 0.0
  %4462 = vmatpush.msra.mxu0 0.0
  %4463 = vmatpush.msra.mxu0 0.0
  %4464 = vmatpush.msra.mxu0 0.0
  %4465 = vmatpush.msra.mxu0 0.0
  %4466 = vmatpush.msra.mxu0 0.0
  %4467 = vmatpush.msra.mxu0 0.0
  %4468 = vmatpush.msra.mxu0 %v4444
  %4469 = vmatmul.f32.gmra.mxu0 %v4451
  %v4470 = vpop.f32.mrf.mxu0
  %v4471 = vadd.f32 0.0, %v4470
  %4472 = vdwg.mxu0
  %4473 = vmatpush.msra.mxu0 0.0
  %4474 = vmatpush.msra.mxu0 0.0
  %4475 = vmatpush.msra.mxu0 0.0
  %4476 = vmatpush.msra.mxu0 0.0
  %4477 = vmatpush.msra.mxu0 0.0
  %4478 = vmatpush.msra.mxu0 0.0
  %4479 = vmatpush.msra.mxu0 0.0
  %4480 = vmatpush.msra.mxu0 0.0
  %4481 = vmatpush.msra.mxu0 0.0
  %4482 = vmatpush.msra.mxu0 0.0
  %4483 = vmatpush.msra.mxu0 0.0
  %4484 = vmatpush.msra.mxu0 0.0
  %4485 = vmatpush.msra.mxu0 0.0
  %4486 = vmatpush.msra.mxu0 0.0
  %4487 = vmatpush.msra.mxu0 0.0
  %4488 = vmatpush.msra.mxu0 %v4445
  %4489 = vmatmul.f32.gmra.mxu0 %v4451
  %v4490 = vpop.f32.mrf.mxu0
  %v4491 = vadd.f32 0.0, %v4490
  %4492 = vdwg.mxu0
  %4493 = vmatpush.msra.mxu0 0.0
  %4494 = vmatpush.msra.mxu0 0.0
  %4495 = vmatpush.msra.mxu0 0.0
  %4496 = vmatpush.msra.mxu0 0.0
  %4497 = vmatpush.msra.mxu0 0.0
  %4498 = vmatpush.msra.mxu0 0.0
  %4499 = vmatpush.msra.mxu0 0.0
  %4500 = vmatpush.msra.mxu0 0.0
  %4501 = vmatpush.msra.mxu0 0.0
  %4502 = vmatpush.msra.mxu0 0.0
  %4503 = vmatpush.msra.mxu0 0.0
  %4504 = vmatpush.msra.mxu0 0.0
  %4505 = vmatpush.msra.mxu0 0.0
  %4506 = vmatpush.msra.mxu0 0.0
  %4507 = vmatpush.msra.mxu0 0.0
  %4508 = vmatpush.msra.mxu0 %v4446
  %4509 = vmatmul.f32.gmra.mxu0 %v4451
  %v4510 = vpop.f32.mrf.mxu0
  %v4511 = vadd.f32 0.0, %v4510
  %4512 = vdwg.mxu0
  %4513 = vmatpush.msra.mxu0 0.0
  %4514 = vmatpush.msra.mxu0 0.0
  %4515 = vmatpush.msra.mxu0 0.0
  %4516 = vmatpush.msra.mxu0 0.0
  %4517 = vmatpush.msra.mxu0 0.0
  %4518 = vmatpush.msra.mxu0 0.0
  %4519 = vmatpush.msra.mxu0 0.0
  %4520 = vmatpush.msra.mxu0 0.0
  %4521 = vmatpush.msra.mxu0 0.0
  %4522 = vmatpush.msra.mxu0 0.0
  %4523 = vmatpush.msra.mxu0 0.0
  %4524 = vmatpush.msra.mxu0 0.0
  %4525 = vmatpush.msra.mxu0 0.0
  %4526 = vmatpush.msra.mxu0 0.0
  %4527 = vmatpush.msra.mxu0 0.0
  %4528 = vmatpush.msra.mxu0 %v4447
  %4529 = vmatmul.f32.gmra.mxu0 %v4451
  %v4530 = vpop.f32.mrf.mxu0
  %v4531 = vadd.f32 0.0, %v4530
  %4532 = vdwg.mxu0
  %v4533 = vadd.f32 %v4423, %v4471
  %v4534 = vadd.f32 %v4424, %v4491
  %v4535 = vadd.f32 %v4425, %v4511
  %v4536 = vadd.f32 %v4426, %v4531
  %4537 = vrot.lane.b32.xlu0 %v3674, 111
  %v4538 = vpop.permute.xlu0 %4537
  %4539 = vrot.lane.b32.xlu0 %v3675, 111
  %v4540 = vpop.permute.xlu0 %4539
  %4541 = vrot.lane.b32.xlu0 %v3676, 111
  %v4542 = vpop.permute.xlu0 %4541
  %4543 = vrot.lane.b32.xlu0 %v3677, 111
  %v4544 = vpop.permute.xlu0 %4543
  %v4545 = vsel %vm991, %v4538, %v4540
  %v4546 = vsel %vm991, %v4540, %v4542
  %v4547 = vsel %vm991, %v4542, %v4544
  %v4553 = vsel %vm991, %v4544, %v4538
  %v4554 = vmul.f32 %v4545, %v1004
  %v4555 = vmul.f32 %v4546, %v1005
  %v4556 = vmul.f32 %v4547, %v1006
  %v4557 = vmul.f32 %v4553, %v1007
  %s4558 = scalar_lea.vmem %s5, 496
  %v4559 = vld [vmem:[%s4558] sm:$0xff]
  %v4561 = vsel %vm102, %v4559, 0
  %4563 = vmatpush.msra.mxu0 0.0
  %4564 = vmatpush.msra.mxu0 0.0
  %4565 = vmatpush.msra.mxu0 0.0
  %4566 = vmatpush.msra.mxu0 0.0
  %4567 = vmatpush.msra.mxu0 0.0
  %4568 = vmatpush.msra.mxu0 0.0
  %4569 = vmatpush.msra.mxu0 0.0
  %4570 = vmatpush.msra.mxu0 0.0
  %4571 = vmatpush.msra.mxu0 0.0
  %4572 = vmatpush.msra.mxu0 0.0
  %4573 = vmatpush.msra.mxu0 0.0
  %4574 = vmatpush.msra.mxu0 0.0
  %4575 = vmatpush.msra.mxu0 0.0
  %4576 = vmatpush.msra.mxu0 0.0
  %4577 = vmatpush.msra.mxu0 0.0
  %4578 = vmatpush.msra.mxu0 %v4554
  %4579 = vmatmul.f32.gmra.mxu0 %v4561
  %v4580 = vpop.f32.mrf.mxu0
  %v4581 = vadd.f32 0.0, %v4580
  %4582 = vdwg.mxu0
  %4583 = vmatpush.msra.mxu0 0.0
  %4584 = vmatpush.msra.mxu0 0.0
  %4585 = vmatpush.msra.mxu0 0.0
  %4586 = vmatpush.msra.mxu0 0.0
  %4587 = vmatpush.msra.mxu0 0.0
  %4588 = vmatpush.msra.mxu0 0.0
  %4589 = vmatpush.msra.mxu0 0.0
  %4590 = vmatpush.msra.mxu0 0.0
  %4591 = vmatpush.msra.mxu0 0.0
  %4592 = vmatpush.msra.mxu0 0.0
  %4593 = vmatpush.msra.mxu0 0.0
  %4594 = vmatpush.msra.mxu0 0.0
  %4595 = vmatpush.msra.mxu0 0.0
  %4596 = vmatpush.msra.mxu0 0.0
  %4597 = vmatpush.msra.mxu0 0.0
  %4598 = vmatpush.msra.mxu0 %v4555
  %4599 = vmatmul.f32.gmra.mxu0 %v4561
  %v4600 = vpop.f32.mrf.mxu0
  %v4601 = vadd.f32 0.0, %v4600
  %4602 = vdwg.mxu0
  %4603 = vmatpush.msra.mxu0 0.0
  %4604 = vmatpush.msra.mxu0 0.0
  %4605 = vmatpush.msra.mxu0 0.0
  %4606 = vmatpush.msra.mxu0 0.0
  %4607 = vmatpush.msra.mxu0 0.0
  %4608 = vmatpush.msra.mxu0 0.0
  %4609 = vmatpush.msra.mxu0 0.0
  %4610 = vmatpush.msra.mxu0 0.0
  %4611 = vmatpush.msra.mxu0 0.0
  %4612 = vmatpush.msra.mxu0 0.0
  %4613 = vmatpush.msra.mxu0 0.0
  %4614 = vmatpush.msra.mxu0 0.0
  %4615 = vmatpush.msra.mxu0 0.0
  %4616 = vmatpush.msra.mxu0 0.0
  %4617 = vmatpush.msra.mxu0 0.0
  %4618 = vmatpush.msra.mxu0 %v4556
  %4619 = vmatmul.f32.gmra.mxu0 %v4561
  %v4620 = vpop.f32.mrf.mxu0
  %v4621 = vadd.f32 0.0, %v4620
  %4622 = vdwg.mxu0
  %4623 = vmatpush.msra.mxu0 0.0
  %4624 = vmatpush.msra.mxu0 0.0
  %4625 = vmatpush.msra.mxu0 0.0
  %4626 = vmatpush.msra.mxu0 0.0
  %4627 = vmatpush.msra.mxu0 0.0
  %4628 = vmatpush.msra.mxu0 0.0
  %4629 = vmatpush.msra.mxu0 0.0
  %4630 = vmatpush.msra.mxu0 0.0
  %4631 = vmatpush.msra.mxu0 0.0
  %4632 = vmatpush.msra.mxu0 0.0
  %4633 = vmatpush.msra.mxu0 0.0
  %4634 = vmatpush.msra.mxu0 0.0
  %4635 = vmatpush.msra.mxu0 0.0
  %4636 = vmatpush.msra.mxu0 0.0
  %4637 = vmatpush.msra.mxu0 0.0
  %4638 = vmatpush.msra.mxu0 %v4557
  %4639 = vmatmul.f32.gmra.mxu0 %v4561
  %v4640 = vpop.f32.mrf.mxu0
  %v4641 = vadd.f32 0.0, %v4640
  %4642 = vdwg.mxu0
  %v4643 = vadd.f32 %v4533, %v4581
  %v4644 = vadd.f32 %v4534, %v4601
  %v4645 = vadd.f32 %v4535, %v4621
  %v4646 = vadd.f32 %v4536, %v4641
  %v4647 = vadd.f32 %v4643, %v4644
  %v4648 = vadd.f32 %v4647, %v4645
  %v4649 = vadd.f32 %v4648, %v4646
  %4650 = vadd.xlane.f32.xlu0 %v4649
  %v4651 = vpop.xlane.xlu0 %4650
  %v4652 = vmul.f32 %v4651, 0.001953125
  %v4653 = vsub.f32 %v4643, %v4652
  %v4654 = vsub.f32 %v4644, %v4652
  %v4655 = vsub.f32 %v4645, %v4652
  %v4656 = vsub.f32 %v4646, %v4652
  %v4657 = vmul.f32 %v4653, %v4653
  %v4658 = vmul.f32 %v4654, %v4654
  %v4659 = vmul.f32 %v4655, %v4655
  %v4660 = vmul.f32 %v4656, %v4656
  %v4661 = vadd.f32 %v4657, %v4658
  %v4662 = vadd.f32 %v4661, %v4659
  %v4663 = vadd.f32 %v4662, %v4660
  %4664 = vadd.xlane.f32.xlu0 %v4663
  %v4665 = vpop.xlane.xlu0 %4664
  %v4666 = vmul.f32 %v4665, 0.001953125
  %s4667 = scalar_lea.vmem %s6, 80
  %v4668 = vld [vmem:[%s4667] sm:$0xff]
  %v4669 = vadd.f32 %v4666, 1e-05
  %v4670 = vrsqrt.pop %v4669
  %v4671 = vmul.f32 %v4670, %v4669
  %v4672 = vmul.f32 %v4671, %v4670
  %v4673 = vmul.f32 0.5, %v4672
  %v4674 = vsub.f32 1.5, %v4673
  %v4675 = vmul.f32 %v4670, %v4674
  %vm4676 = vweird.f32 %v4669
  %vm4677 = vweird.f32 %v4670
  %vm4678 = vmor %vm4676, %vm4677
  %v4679 = vsel %vm4678, %v4670, %v4675
  %v4680 = vmul.f32 %v4668, %v4679
  %4682 = vset.pattern.permute.xlu0 0
  %4683 = vperm.xlu0 %4682, %v4680
  %v4684 = vpop.permute.xlu0 %4683
  %v4686 = vmul.f32 %v4653, %v4684
  %v4687 = vmul.f32 %v4654, %v4684
  %v4688 = vmul.f32 %v4655, %v4684
  %v4689 = vmul.f32 %v4656, %v4684
  %s4690 = scalar_lea.vmem %s6, 88
  %v4691 = vld [vmem:[%s4690] sm:$0xff]
  %4693 = vset.pattern.permute.xlu0 0
  %4694 = vperm.xlu0 %4693, %v4691
  %v4695 = vpop.permute.xlu0 %4694
  %v4697 = vadd.f32 %v4686, %v4695
  %v4698 = vadd.f32 %v4687, %v4695
  %v4699 = vadd.f32 %v4688, %v4695
  %v4700 = vadd.f32 %v4689, %v4695
  %v4701 = vmax.f32 %v4697, 0.0
  %v4702 = vmax.f32 %v4698, 0.0
  %v4703 = vmax.f32 %v4699, 0.0
  %v4704 = vmax.f32 %v4700, 0.0
  %4706 = vrot.lane.b32.xlu0 %v4704, 17
  %v4707 = vpop.permute.xlu0 %4706
  %4712 = vrot.lane.b32.xlu0 %v4701, 17
  %v4713 = vpop.permute.xlu0 %4712
  %4714 = vrot.lane.b32.xlu0 %v4702, 17
  %v4715 = vpop.permute.xlu0 %4714
  %4716 = vrot.lane.b32.xlu0 %v4703, 17
  %v4717 = vpop.permute.xlu0 %4716
  %v4718 = vsel %vm43, %v4713, %v4715
  %v4719 = vsel %vm43, %v4715, %v4717
  %v4720 = vsel %vm43, %v4717, %v4707
  %v4725 = vsel %vm43, %v4707, %v4713
  %v4726 = vmul.f32 %v4725, %v54
  %v4727 = vmul.f32 %v4718, %v55
  %v4728 = vmul.f32 %v4719, %v56
  %v4729 = vmul.f32 %v4720, %v57
  %s4730 = scalar_lea.vmem %s5, 504
  %v4731 = vld [vmem:[%s4730] sm:$0xff]
  %4732 = vrot.lane.b32.xlu0 %v4704, 16
  %v4733 = vpop.permute.xlu0 %4732
  %4735 = vrot.lane.b32.xlu0 %v4701, 16
  %v4736 = vpop.permute.xlu0 %4735
  %4737 = vrot.lane.b32.xlu0 %v4702, 16
  %v4738 = vpop.permute.xlu0 %4737
  %4739 = vrot.lane.b32.xlu0 %v4703, 16
  %v4740 = vpop.permute.xlu0 %4739
  %v4741 = vsel %vm76, %v4736, %v4738
  %v4742 = vsel %vm76, %v4738, %v4740
  %v4743 = vsel %vm76, %v4740, %v4733
  %v4748 = vsel %vm76, %v4733, %v4736
  %v4749 = vmul.f32 %v4748, %v88
  %v4750 = vmul.f32 %v4741, %v89
  %v4751 = vmul.f32 %v4742, %v90
  %v4752 = vmul.f32 %v4743, %v91
  %s4753 = scalar_lea.vmem %s5, 512
  %v4754 = vld [vmem:[%s4753] sm:$0xff]
  %v4756 = vsel %vm102, %v4754, 0
  %4758 = vmatpush.msra.mxu0 0.0
  %4759 = vmatpush.msra.mxu0 0.0
  %4760 = vmatpush.msra.mxu0 0.0
  %4761 = vmatpush.msra.mxu0 0.0
  %4762 = vmatpush.msra.mxu0 0.0
  %4763 = vmatpush.msra.mxu0 0.0
  %4764 = vmatpush.msra.mxu0 0.0
  %4765 = vmatpush.msra.mxu0 0.0
  %4766 = vmatpush.msra.mxu0 0.0
  %4767 = vmatpush.msra.mxu0 0.0
  %4768 = vmatpush.msra.mxu0 0.0
  %4769 = vmatpush.msra.mxu0 0.0
  %4770 = vmatpush.msra.mxu0 0.0
  %4771 = vmatpush.msra.mxu0 0.0
  %4772 = vmatpush.msra.mxu0 0.0
  %4773 = vmatpush.msra.mxu0 %v4749
  %4774 = vmatmul.f32.gmra.mxu0 %v4756
  %v4775 = vpop.f32.mrf.mxu0
  %v4776 = vadd.f32 0.0, %v4775
  %4777 = vdwg.mxu0
  %4778 = vmatpush.msra.mxu0 0.0
  %4779 = vmatpush.msra.mxu0 0.0
  %4780 = vmatpush.msra.mxu0 0.0
  %4781 = vmatpush.msra.mxu0 0.0
  %4782 = vmatpush.msra.mxu0 0.0
  %4783 = vmatpush.msra.mxu0 0.0
  %4784 = vmatpush.msra.mxu0 0.0
  %4785 = vmatpush.msra.mxu0 0.0
  %4786 = vmatpush.msra.mxu0 0.0
  %4787 = vmatpush.msra.mxu0 0.0
  %4788 = vmatpush.msra.mxu0 0.0
  %4789 = vmatpush.msra.mxu0 0.0
  %4790 = vmatpush.msra.mxu0 0.0
  %4791 = vmatpush.msra.mxu0 0.0
  %4792 = vmatpush.msra.mxu0 0.0
  %4793 = vmatpush.msra.mxu0 %v4750
  %4794 = vmatmul.f32.gmra.mxu0 %v4756
  %v4795 = vpop.f32.mrf.mxu0
  %v4796 = vadd.f32 0.0, %v4795
  %4797 = vdwg.mxu0
  %4798 = vmatpush.msra.mxu0 0.0
  %4799 = vmatpush.msra.mxu0 0.0
  %4800 = vmatpush.msra.mxu0 0.0
  %4801 = vmatpush.msra.mxu0 0.0
  %4802 = vmatpush.msra.mxu0 0.0
  %4803 = vmatpush.msra.mxu0 0.0
  %4804 = vmatpush.msra.mxu0 0.0
  %4805 = vmatpush.msra.mxu0 0.0
  %4806 = vmatpush.msra.mxu0 0.0
  %4807 = vmatpush.msra.mxu0 0.0
  %4808 = vmatpush.msra.mxu0 0.0
  %4809 = vmatpush.msra.mxu0 0.0
  %4810 = vmatpush.msra.mxu0 0.0
  %4811 = vmatpush.msra.mxu0 0.0
  %4812 = vmatpush.msra.mxu0 0.0
  %4813 = vmatpush.msra.mxu0 %v4751
  %4814 = vmatmul.f32.gmra.mxu0 %v4756
  %v4815 = vpop.f32.mrf.mxu0
  %v4816 = vadd.f32 0.0, %v4815
  %4817 = vdwg.mxu0
  %4818 = vmatpush.msra.mxu0 0.0
  %4819 = vmatpush.msra.mxu0 0.0
  %4820 = vmatpush.msra.mxu0 0.0
  %4821 = vmatpush.msra.mxu0 0.0
  %4822 = vmatpush.msra.mxu0 0.0
  %4823 = vmatpush.msra.mxu0 0.0
  %4824 = vmatpush.msra.mxu0 0.0
  %4825 = vmatpush.msra.mxu0 0.0
  %4826 = vmatpush.msra.mxu0 0.0
  %4827 = vmatpush.msra.mxu0 0.0
  %4828 = vmatpush.msra.mxu0 0.0
  %4829 = vmatpush.msra.mxu0 0.0
  %4830 = vmatpush.msra.mxu0 0.0
  %4831 = vmatpush.msra.mxu0 0.0
  %4832 = vmatpush.msra.mxu0 0.0
  %4833 = vmatpush.msra.mxu0 %v4752
  %4834 = vmatmul.f32.gmra.mxu0 %v4756
  %v4835 = vpop.f32.mrf.mxu0
  %v4836 = vadd.f32 0.0, %v4835
  %4837 = vdwg.mxu0
  %v4839 = vsel %vm102, %v4731, 0
  %4841 = vmatpush.msra.mxu0 0.0
  %4842 = vmatpush.msra.mxu0 0.0
  %4843 = vmatpush.msra.mxu0 0.0
  %4844 = vmatpush.msra.mxu0 0.0
  %4845 = vmatpush.msra.mxu0 0.0
  %4846 = vmatpush.msra.mxu0 0.0
  %4847 = vmatpush.msra.mxu0 0.0
  %4848 = vmatpush.msra.mxu0 0.0
  %4849 = vmatpush.msra.mxu0 0.0
  %4850 = vmatpush.msra.mxu0 0.0
  %4851 = vmatpush.msra.mxu0 0.0
  %4852 = vmatpush.msra.mxu0 0.0
  %4853 = vmatpush.msra.mxu0 0.0
  %4854 = vmatpush.msra.mxu0 0.0
  %4855 = vmatpush.msra.mxu0 0.0
  %4856 = vmatpush.msra.mxu0 %v4726
  %4857 = vmatmul.f32.gmra.mxu0 %v4839
  %v4858 = vpop.f32.mrf.mxu0
  %v4859 = vadd.f32 %v4776, %v4858
  %4860 = vdwg.mxu0
  %4861 = vmatpush.msra.mxu0 0.0
  %4862 = vmatpush.msra.mxu0 0.0
  %4863 = vmatpush.msra.mxu0 0.0
  %4864 = vmatpush.msra.mxu0 0.0
  %4865 = vmatpush.msra.mxu0 0.0
  %4866 = vmatpush.msra.mxu0 0.0
  %4867 = vmatpush.msra.mxu0 0.0
  %4868 = vmatpush.msra.mxu0 0.0
  %4869 = vmatpush.msra.mxu0 0.0
  %4870 = vmatpush.msra.mxu0 0.0
  %4871 = vmatpush.msra.mxu0 0.0
  %4872 = vmatpush.msra.mxu0 0.0
  %4873 = vmatpush.msra.mxu0 0.0
  %4874 = vmatpush.msra.mxu0 0.0
  %4875 = vmatpush.msra.mxu0 0.0
  %4876 = vmatpush.msra.mxu0 %v4727
  %4877 = vmatmul.f32.gmra.mxu0 %v4839
  %v4878 = vpop.f32.mrf.mxu0
  %v4879 = vadd.f32 %v4796, %v4878
  %4880 = vdwg.mxu0
  %4881 = vmatpush.msra.mxu0 0.0
  %4882 = vmatpush.msra.mxu0 0.0
  %4883 = vmatpush.msra.mxu0 0.0
  %4884 = vmatpush.msra.mxu0 0.0
  %4885 = vmatpush.msra.mxu0 0.0
  %4886 = vmatpush.msra.mxu0 0.0
  %4887 = vmatpush.msra.mxu0 0.0
  %4888 = vmatpush.msra.mxu0 0.0
  %4889 = vmatpush.msra.mxu0 0.0
  %4890 = vmatpush.msra.mxu0 0.0
  %4891 = vmatpush.msra.mxu0 0.0
  %4892 = vmatpush.msra.mxu0 0.0
  %4893 = vmatpush.msra.mxu0 0.0
  %4894 = vmatpush.msra.mxu0 0.0
  %4895 = vmatpush.msra.mxu0 0.0
  %4896 = vmatpush.msra.mxu0 %v4728
  %4897 = vmatmul.f32.gmra.mxu0 %v4839
  %v4898 = vpop.f32.mrf.mxu0
  %v4899 = vadd.f32 %v4816, %v4898
  %4900 = vdwg.mxu0
  %4901 = vmatpush.msra.mxu0 0.0
  %4902 = vmatpush.msra.mxu0 0.0
  %4903 = vmatpush.msra.mxu0 0.0
  %4904 = vmatpush.msra.mxu0 0.0
  %4905 = vmatpush.msra.mxu0 0.0
  %4906 = vmatpush.msra.mxu0 0.0
  %4907 = vmatpush.msra.mxu0 0.0
  %4908 = vmatpush.msra.mxu0 0.0
  %4909 = vmatpush.msra.mxu0 0.0
  %4910 = vmatpush.msra.mxu0 0.0
  %4911 = vmatpush.msra.mxu0 0.0
  %4912 = vmatpush.msra.mxu0 0.0
  %4913 = vmatpush.msra.mxu0 0.0
  %4914 = vmatpush.msra.mxu0 0.0
  %4915 = vmatpush.msra.mxu0 0.0
  %4916 = vmatpush.msra.mxu0 %v4729
  %4917 = vmatmul.f32.gmra.mxu0 %v4839
  %v4918 = vpop.f32.mrf.mxu0
  %v4919 = vadd.f32 %v4836, %v4918
  %4920 = vdwg.mxu0
  %4921 = vrot.lane.b32.xlu0 %v4704, 15
  %v4922 = vpop.permute.xlu0 %4921
  %4924 = vrot.lane.b32.xlu0 %v4701, 15
  %v4925 = vpop.permute.xlu0 %4924
  %4926 = vrot.lane.b32.xlu0 %v4702, 15
  %v4927 = vpop.permute.xlu0 %4926
  %4928 = vrot.lane.b32.xlu0 %v4703, 15
  %v4929 = vpop.permute.xlu0 %4928
  %v4930 = vsel %vm278, %v4925, %v4927
  %v4931 = vsel %vm278, %v4927, %v4929
  %v4932 = vsel %vm278, %v4929, %v4922
  %v4937 = vsel %vm278, %v4922, %v4925
  %v4938 = vmul.f32 %v4937, %v290
  %v4939 = vmul.f32 %v4930, %v291
  %v4940 = vmul.f32 %v4931, %v292
  %v4941 = vmul.f32 %v4932, %v293
  %s4942 = scalar_lea.vmem %s5, 520
  %v4943 = vld [vmem:[%s4942] sm:$0xff]
  %v4945 = vsel %vm102, %v4943, 0
  %4947 = vmatpush.msra.mxu0 0.0
  %4948 = vmatpush.msra.mxu0 0.0
  %4949 = vmatpush.msra.mxu0 0.0
  %4950 = vmatpush.msra.mxu0 0.0
  %4951 = vmatpush.msra.mxu0 0.0
  %4952 = vmatpush.msra.mxu0 0.0
  %4953 = vmatpush.msra.mxu0 0.0
  %4954 = vmatpush.msra.mxu0 0.0
  %4955 = vmatpush.msra.mxu0 0.0
  %4956 = vmatpush.msra.mxu0 0.0
  %4957 = vmatpush.msra.mxu0 0.0
  %4958 = vmatpush.msra.mxu0 0.0
  %4959 = vmatpush.msra.mxu0 0.0
  %4960 = vmatpush.msra.mxu0 0.0
  %4961 = vmatpush.msra.mxu0 0.0
  %4962 = vmatpush.msra.mxu0 %v4938
  %4963 = vmatmul.f32.gmra.mxu0 %v4945
  %v4964 = vpop.f32.mrf.mxu0
  %v4965 = vadd.f32 0.0, %v4964
  %4966 = vdwg.mxu0
  %4967 = vmatpush.msra.mxu0 0.0
  %4968 = vmatpush.msra.mxu0 0.0
  %4969 = vmatpush.msra.mxu0 0.0
  %4970 = vmatpush.msra.mxu0 0.0
  %4971 = vmatpush.msra.mxu0 0.0
  %4972 = vmatpush.msra.mxu0 0.0
  %4973 = vmatpush.msra.mxu0 0.0
  %4974 = vmatpush.msra.mxu0 0.0
  %4975 = vmatpush.msra.mxu0 0.0
  %4976 = vmatpush.msra.mxu0 0.0
  %4977 = vmatpush.msra.mxu0 0.0
  %4978 = vmatpush.msra.mxu0 0.0
  %4979 = vmatpush.msra.mxu0 0.0
  %4980 = vmatpush.msra.mxu0 0.0
  %4981 = vmatpush.msra.mxu0 0.0
  %4982 = vmatpush.msra.mxu0 %v4939
  %4983 = vmatmul.f32.gmra.mxu0 %v4945
  %v4984 = vpop.f32.mrf.mxu0
  %v4985 = vadd.f32 0.0, %v4984
  %4986 = vdwg.mxu0
  %4987 = vmatpush.msra.mxu0 0.0
  %4988 = vmatpush.msra.mxu0 0.0
  %4989 = vmatpush.msra.mxu0 0.0
  %4990 = vmatpush.msra.mxu0 0.0
  %4991 = vmatpush.msra.mxu0 0.0
  %4992 = vmatpush.msra.mxu0 0.0
  %4993 = vmatpush.msra.mxu0 0.0
  %4994 = vmatpush.msra.mxu0 0.0
  %4995 = vmatpush.msra.mxu0 0.0
  %4996 = vmatpush.msra.mxu0 0.0
  %4997 = vmatpush.msra.mxu0 0.0
  %4998 = vmatpush.msra.mxu0 0.0
  %4999 = vmatpush.msra.mxu0 0.0
  %5000 = vmatpush.msra.mxu0 0.0
  %5001 = vmatpush.msra.mxu0 0.0
  %5002 = vmatpush.msra.mxu0 %v4940
  %5003 = vmatmul.f32.gmra.mxu0 %v4945
  %v5004 = vpop.f32.mrf.mxu0
  %v5005 = vadd.f32 0.0, %v5004
  %5006 = vdwg.mxu0
  %5007 = vmatpush.msra.mxu0 0.0
  %5008 = vmatpush.msra.mxu0 0.0
  %5009 = vmatpush.msra.mxu0 0.0
  %5010 = vmatpush.msra.mxu0 0.0
  %5011 = vmatpush.msra.mxu0 0.0
  %5012 = vmatpush.msra.mxu0 0.0
  %5013 = vmatpush.msra.mxu0 0.0
  %5014 = vmatpush.msra.mxu0 0.0
  %5015 = vmatpush.msra.mxu0 0.0
  %5016 = vmatpush.msra.mxu0 0.0
  %5017 = vmatpush.msra.mxu0 0.0
  %5018 = vmatpush.msra.mxu0 0.0
  %5019 = vmatpush.msra.mxu0 0.0
  %5020 = vmatpush.msra.mxu0 0.0
  %5021 = vmatpush.msra.mxu0 0.0
  %5022 = vmatpush.msra.mxu0 %v4941
  %5023 = vmatmul.f32.gmra.mxu0 %v4945
  %v5024 = vpop.f32.mrf.mxu0
  %v5025 = vadd.f32 0.0, %v5024
  %5026 = vdwg.mxu0
  %v5027 = vadd.f32 %v4859, %v4965
  %v5028 = vadd.f32 %v4879, %v4985
  %v5029 = vadd.f32 %v4899, %v5005
  %v5030 = vadd.f32 %v4919, %v5025
  %5031 = vrot.lane.b32.xlu0 %v4704, 1
  %v5032 = vpop.permute.xlu0 %5031
  %5034 = vrot.lane.b32.xlu0 %v4701, 1
  %v5035 = vpop.permute.xlu0 %5034
  %5036 = vrot.lane.b32.xlu0 %v4702, 1
  %v5037 = vpop.permute.xlu0 %5036
  %5038 = vrot.lane.b32.xlu0 %v4703, 1
  %v5039 = vpop.permute.xlu0 %5038
  %v5040 = vsel %vm400, %v5035, %v5037
  %v5041 = vsel %vm400, %v5037, %v5039
  %v5042 = vsel %vm400, %v5039, %v5032
  %v5047 = vsel %vm400, %v5032, %v5035
  %v5048 = vmul.f32 %v5047, %v412
  %v5049 = vmul.f32 %v5040, %v413
  %v5050 = vmul.f32 %v5041, %v414
  %v5051 = vmul.f32 %v5042, %v415
  %s5052 = scalar_lea.vmem %s5, 528
  %v5053 = vld [vmem:[%s5052] sm:$0xff]
  %v5055 = vsel %vm102, %v5053, 0
  %5057 = vmatpush.msra.mxu0 0.0
  %5058 = vmatpush.msra.mxu0 0.0
  %5059 = vmatpush.msra.mxu0 0.0
  %5060 = vmatpush.msra.mxu0 0.0
  %5061 = vmatpush.msra.mxu0 0.0
  %5062 = vmatpush.msra.mxu0 0.0
  %5063 = vmatpush.msra.mxu0 0.0
  %5064 = vmatpush.msra.mxu0 0.0
  %5065 = vmatpush.msra.mxu0 0.0
  %5066 = vmatpush.msra.mxu0 0.0
  %5067 = vmatpush.msra.mxu0 0.0
  %5068 = vmatpush.msra.mxu0 0.0
  %5069 = vmatpush.msra.mxu0 0.0
  %5070 = vmatpush.msra.mxu0 0.0
  %5071 = vmatpush.msra.mxu0 0.0
  %5072 = vmatpush.msra.mxu0 %v5048
  %5073 = vmatmul.f32.gmra.mxu0 %v5055
  %v5074 = vpop.f32.mrf.mxu0
  %v5075 = vadd.f32 0.0, %v5074
  %5076 = vdwg.mxu0
  %5077 = vmatpush.msra.mxu0 0.0
  %5078 = vmatpush.msra.mxu0 0.0
  %5079 = vmatpush.msra.mxu0 0.0
  %5080 = vmatpush.msra.mxu0 0.0
  %5081 = vmatpush.msra.mxu0 0.0
  %5082 = vmatpush.msra.mxu0 0.0
  %5083 = vmatpush.msra.mxu0 0.0
  %5084 = vmatpush.msra.mxu0 0.0
  %5085 = vmatpush.msra.mxu0 0.0
  %5086 = vmatpush.msra.mxu0 0.0
  %5087 = vmatpush.msra.mxu0 0.0
  %5088 = vmatpush.msra.mxu0 0.0
  %5089 = vmatpush.msra.mxu0 0.0
  %5090 = vmatpush.msra.mxu0 0.0
  %5091 = vmatpush.msra.mxu0 0.0
  %5092 = vmatpush.msra.mxu0 %v5049
  %5093 = vmatmul.f32.gmra.mxu0 %v5055
  %v5094 = vpop.f32.mrf.mxu0
  %v5095 = vadd.f32 0.0, %v5094
  %5096 = vdwg.mxu0
  %5097 = vmatpush.msra.mxu0 0.0
  %5098 = vmatpush.msra.mxu0 0.0
  %5099 = vmatpush.msra.mxu0 0.0
  %5100 = vmatpush.msra.mxu0 0.0
  %5101 = vmatpush.msra.mxu0 0.0
  %5102 = vmatpush.msra.mxu0 0.0
  %5103 = vmatpush.msra.mxu0 0.0
  %5104 = vmatpush.msra.mxu0 0.0
  %5105 = vmatpush.msra.mxu0 0.0
  %5106 = vmatpush.msra.mxu0 0.0
  %5107 = vmatpush.msra.mxu0 0.0
  %5108 = vmatpush.msra.mxu0 0.0
  %5109 = vmatpush.msra.mxu0 0.0
  %5110 = vmatpush.msra.mxu0 0.0
  %5111 = vmatpush.msra.mxu0 0.0
  %5112 = vmatpush.msra.mxu0 %v5050
  %5113 = vmatmul.f32.gmra.mxu0 %v5055
  %v5114 = vpop.f32.mrf.mxu0
  %v5115 = vadd.f32 0.0, %v5114
  %5116 = vdwg.mxu0
  %5117 = vmatpush.msra.mxu0 0.0
  %5118 = vmatpush.msra.mxu0 0.0
  %5119 = vmatpush.msra.mxu0 0.0
  %5120 = vmatpush.msra.mxu0 0.0
  %5121 = vmatpush.msra.mxu0 0.0
  %5122 = vmatpush.msra.mxu0 0.0
  %5123 = vmatpush.msra.mxu0 0.0
  %5124 = vmatpush.msra.mxu0 0.0
  %5125 = vmatpush.msra.mxu0 0.0
  %5126 = vmatpush.msra.mxu0 0.0
  %5127 = vmatpush.msra.mxu0 0.0
  %5128 = vmatpush.msra.mxu0 0.0
  %5129 = vmatpush.msra.mxu0 0.0
  %5130 = vmatpush.msra.mxu0 0.0
  %5131 = vmatpush.msra.mxu0 0.0
  %5132 = vmatpush.msra.mxu0 %v5051
  %5133 = vmatmul.f32.gmra.mxu0 %v5055
  %v5134 = vpop.f32.mrf.mxu0
  %v5135 = vadd.f32 0.0, %v5134
  %5136 = vdwg.mxu0
  %v5137 = vadd.f32 %v5027, %v5075
  %v5138 = vadd.f32 %v5028, %v5095
  %v5139 = vadd.f32 %v5029, %v5115
  %v5140 = vadd.f32 %v5030, %v5135
  %v5141 = vmul.f32 %v4701, %v516
  %v5142 = vmul.f32 %v4702, %v517
  %v5143 = vmul.f32 %v4703, %v518
  %v5144 = vmul.f32 %v4704, %v519
  %s5145 = scalar_lea.vmem %s5, 536
  %v5146 = vld [vmem:[%s5145] sm:$0xff]
  %v5148 = vsel %vm102, %v5146, 0
  %5150 = vmatpush.msra.mxu0 0.0
  %5151 = vmatpush.msra.mxu0 0.0
  %5152 = vmatpush.msra.mxu0 0.0
  %5153 = vmatpush.msra.mxu0 0.0
  %5154 = vmatpush.msra.mxu0 0.0
  %5155 = vmatpush.msra.mxu0 0.0
  %5156 = vmatpush.msra.mxu0 0.0
  %5157 = vmatpush.msra.mxu0 0.0
  %5158 = vmatpush.msra.mxu0 0.0
  %5159 = vmatpush.msra.mxu0 0.0
  %5160 = vmatpush.msra.mxu0 0.0
  %5161 = vmatpush.msra.mxu0 0.0
  %5162 = vmatpush.msra.mxu0 0.0
  %5163 = vmatpush.msra.mxu0 0.0
  %5164 = vmatpush.msra.mxu0 0.0
  %5165 = vmatpush.msra.mxu0 %v5141
  %5166 = vmatmul.f32.gmra.mxu0 %v5148
  %v5167 = vpop.f32.mrf.mxu0
  %v5168 = vadd.f32 0.0, %v5167
  %5169 = vdwg.mxu0
  %5170 = vmatpush.msra.mxu0 0.0
  %5171 = vmatpush.msra.mxu0 0.0
  %5172 = vmatpush.msra.mxu0 0.0
  %5173 = vmatpush.msra.mxu0 0.0
  %5174 = vmatpush.msra.mxu0 0.0
  %5175 = vmatpush.msra.mxu0 0.0
  %5176 = vmatpush.msra.mxu0 0.0
  %5177 = vmatpush.msra.mxu0 0.0
  %5178 = vmatpush.msra.mxu0 0.0
  %5179 = vmatpush.msra.mxu0 0.0
  %5180 = vmatpush.msra.mxu0 0.0
  %5181 = vmatpush.msra.mxu0 0.0
  %5182 = vmatpush.msra.mxu0 0.0
  %5183 = vmatpush.msra.mxu0 0.0
  %5184 = vmatpush.msra.mxu0 0.0
  %5185 = vmatpush.msra.mxu0 %v5142
  %5186 = vmatmul.f32.gmra.mxu0 %v5148
  %v5187 = vpop.f32.mrf.mxu0
  %v5188 = vadd.f32 0.0, %v5187
  %5189 = vdwg.mxu0
  %5190 = vmatpush.msra.mxu0 0.0
  %5191 = vmatpush.msra.mxu0 0.0
  %5192 = vmatpush.msra.mxu0 0.0
  %5193 = vmatpush.msra.mxu0 0.0
  %5194 = vmatpush.msra.mxu0 0.0
  %5195 = vmatpush.msra.mxu0 0.0
  %5196 = vmatpush.msra.mxu0 0.0
  %5197 = vmatpush.msra.mxu0 0.0
  %5198 = vmatpush.msra.mxu0 0.0
  %5199 = vmatpush.msra.mxu0 0.0
  %5200 = vmatpush.msra.mxu0 0.0
  %5201 = vmatpush.msra.mxu0 0.0
  %5202 = vmatpush.msra.mxu0 0.0
  %5203 = vmatpush.msra.mxu0 0.0
  %5204 = vmatpush.msra.mxu0 0.0
  %5205 = vmatpush.msra.mxu0 %v5143
  %5206 = vmatmul.f32.gmra.mxu0 %v5148
  %v5207 = vpop.f32.mrf.mxu0
  %v5208 = vadd.f32 0.0, %v5207
  %5209 = vdwg.mxu0
  %5210 = vmatpush.msra.mxu0 0.0
  %5211 = vmatpush.msra.mxu0 0.0
  %5212 = vmatpush.msra.mxu0 0.0
  %5213 = vmatpush.msra.mxu0 0.0
  %5214 = vmatpush.msra.mxu0 0.0
  %5215 = vmatpush.msra.mxu0 0.0
  %5216 = vmatpush.msra.mxu0 0.0
  %5217 = vmatpush.msra.mxu0 0.0
  %5218 = vmatpush.msra.mxu0 0.0
  %5219 = vmatpush.msra.mxu0 0.0
  %5220 = vmatpush.msra.mxu0 0.0
  %5221 = vmatpush.msra.mxu0 0.0
  %5222 = vmatpush.msra.mxu0 0.0
  %5223 = vmatpush.msra.mxu0 0.0
  %5224 = vmatpush.msra.mxu0 0.0
  %5225 = vmatpush.msra.mxu0 %v5144
  %5226 = vmatmul.f32.gmra.mxu0 %v5148
  %v5227 = vpop.f32.mrf.mxu0
  %v5228 = vadd.f32 0.0, %v5227
  %5229 = vdwg.mxu0
  %v5230 = vadd.f32 %v5137, %v5168
  %v5231 = vadd.f32 %v5138, %v5188
  %v5232 = vadd.f32 %v5139, %v5208
  %v5233 = vadd.f32 %v5140, %v5228
  %5234 = vrot.lane.b32.xlu0 %v4701, 127
  %v5235 = vpop.permute.xlu0 %5234
  %5236 = vrot.lane.b32.xlu0 %v4702, 127
  %v5237 = vpop.permute.xlu0 %5236
  %5238 = vrot.lane.b32.xlu0 %v4703, 127
  %v5239 = vpop.permute.xlu0 %5238
  %5240 = vrot.lane.b32.xlu0 %v4704, 127
  %v5241 = vpop.permute.xlu0 %5240
  %v5242 = vsel %vm625, %v5235, %v5237
  %v5243 = vsel %vm625, %v5237, %v5239
  %v5244 = vsel %vm625, %v5239, %v5241
  %v5250 = vsel %vm625, %v5241, %v5235
  %v5251 = vmul.f32 %v5242, %v638
  %v5252 = vmul.f32 %v5243, %v639
  %v5253 = vmul.f32 %v5244, %v640
  %v5254 = vmul.f32 %v5250, %v641
  %s5255 = scalar_lea.vmem %s5, 544
  %v5256 = vld [vmem:[%s5255] sm:$0xff]
  %v5258 = vsel %vm102, %v5256, 0
  %5260 = vmatpush.msra.mxu0 0.0
  %5261 = vmatpush.msra.mxu0 0.0
  %5262 = vmatpush.msra.mxu0 0.0
  %5263 = vmatpush.msra.mxu0 0.0
  %5264 = vmatpush.msra.mxu0 0.0
  %5265 = vmatpush.msra.mxu0 0.0
  %5266 = vmatpush.msra.mxu0 0.0
  %5267 = vmatpush.msra.mxu0 0.0
  %5268 = vmatpush.msra.mxu0 0.0
  %5269 = vmatpush.msra.mxu0 0.0
  %5270 = vmatpush.msra.mxu0 0.0
  %5271 = vmatpush.msra.mxu0 0.0
  %5272 = vmatpush.msra.mxu0 0.0
  %5273 = vmatpush.msra.mxu0 0.0
  %5274 = vmatpush.msra.mxu0 0.0
  %5275 = vmatpush.msra.mxu0 %v5251
  %5276 = vmatmul.f32.gmra.mxu0 %v5258
  %v5277 = vpop.f32.mrf.mxu0
  %v5278 = vadd.f32 0.0, %v5277
  %5279 = vdwg.mxu0
  %5280 = vmatpush.msra.mxu0 0.0
  %5281 = vmatpush.msra.mxu0 0.0
  %5282 = vmatpush.msra.mxu0 0.0
  %5283 = vmatpush.msra.mxu0 0.0
  %5284 = vmatpush.msra.mxu0 0.0
  %5285 = vmatpush.msra.mxu0 0.0
  %5286 = vmatpush.msra.mxu0 0.0
  %5287 = vmatpush.msra.mxu0 0.0
  %5288 = vmatpush.msra.mxu0 0.0
  %5289 = vmatpush.msra.mxu0 0.0
  %5290 = vmatpush.msra.mxu0 0.0
  %5291 = vmatpush.msra.mxu0 0.0
  %5292 = vmatpush.msra.mxu0 0.0
  %5293 = vmatpush.msra.mxu0 0.0
  %5294 = vmatpush.msra.mxu0 0.0
  %5295 = vmatpush.msra.mxu0 %v5252
  %5296 = vmatmul.f32.gmra.mxu0 %v5258
  %v5297 = vpop.f32.mrf.mxu0
  %v5298 = vadd.f32 0.0, %v5297
  %5299 = vdwg.mxu0
  %5300 = vmatpush.msra.mxu0 0.0
  %5301 = vmatpush.msra.mxu0 0.0
  %5302 = vmatpush.msra.mxu0 0.0
  %5303 = vmatpush.msra.mxu0 0.0
  %5304 = vmatpush.msra.mxu0 0.0
  %5305 = vmatpush.msra.mxu0 0.0
  %5306 = vmatpush.msra.mxu0 0.0
  %5307 = vmatpush.msra.mxu0 0.0
  %5308 = vmatpush.msra.mxu0 0.0
  %5309 = vmatpush.msra.mxu0 0.0
  %5310 = vmatpush.msra.mxu0 0.0
  %5311 = vmatpush.msra.mxu0 0.0
  %5312 = vmatpush.msra.mxu0 0.0
  %5313 = vmatpush.msra.mxu0 0.0
  %5314 = vmatpush.msra.mxu0 0.0
  %5315 = vmatpush.msra.mxu0 %v5253
  %5316 = vmatmul.f32.gmra.mxu0 %v5258
  %v5317 = vpop.f32.mrf.mxu0
  %v5318 = vadd.f32 0.0, %v5317
  %5319 = vdwg.mxu0
  %5320 = vmatpush.msra.mxu0 0.0
  %5321 = vmatpush.msra.mxu0 0.0
  %5322 = vmatpush.msra.mxu0 0.0
  %5323 = vmatpush.msra.mxu0 0.0
  %5324 = vmatpush.msra.mxu0 0.0
  %5325 = vmatpush.msra.mxu0 0.0
  %5326 = vmatpush.msra.mxu0 0.0
  %5327 = vmatpush.msra.mxu0 0.0
  %5328 = vmatpush.msra.mxu0 0.0
  %5329 = vmatpush.msra.mxu0 0.0
  %5330 = vmatpush.msra.mxu0 0.0
  %5331 = vmatpush.msra.mxu0 0.0
  %5332 = vmatpush.msra.mxu0 0.0
  %5333 = vmatpush.msra.mxu0 0.0
  %5334 = vmatpush.msra.mxu0 0.0
  %5335 = vmatpush.msra.mxu0 %v5254
  %5336 = vmatmul.f32.gmra.mxu0 %v5258
  %v5337 = vpop.f32.mrf.mxu0
  %v5338 = vadd.f32 0.0, %v5337
  %5339 = vdwg.mxu0
  %v5340 = vadd.f32 %v5230, %v5278
  %v5341 = vadd.f32 %v5231, %v5298
  %v5342 = vadd.f32 %v5232, %v5318
  %v5343 = vadd.f32 %v5233, %v5338
  %5344 = vrot.lane.b32.xlu0 %v4701, 113
  %v5345 = vpop.permute.xlu0 %5344
  %5346 = vrot.lane.b32.xlu0 %v4702, 113
  %v5347 = vpop.permute.xlu0 %5346
  %5348 = vrot.lane.b32.xlu0 %v4703, 113
  %v5349 = vpop.permute.xlu0 %5348
  %5350 = vrot.lane.b32.xlu0 %v4704, 113
  %v5351 = vpop.permute.xlu0 %5350
  %v5352 = vsel %vm747, %v5345, %v5347
  %v5353 = vsel %vm747, %v5347, %v5349
  %v5354 = vsel %vm747, %v5349, %v5351
  %v5360 = vsel %vm747, %v5351, %v5345
  %v5361 = vmul.f32 %v5352, %v760
  %v5362 = vmul.f32 %v5353, %v761
  %v5363 = vmul.f32 %v5354, %v762
  %v5364 = vmul.f32 %v5360, %v763
  %s5365 = scalar_lea.vmem %s5, 552
  %v5366 = vld [vmem:[%s5365] sm:$0xff]
  %v5368 = vsel %vm102, %v5366, 0
  %5370 = vmatpush.msra.mxu0 0.0
  %5371 = vmatpush.msra.mxu0 0.0
  %5372 = vmatpush.msra.mxu0 0.0
  %5373 = vmatpush.msra.mxu0 0.0
  %5374 = vmatpush.msra.mxu0 0.0
  %5375 = vmatpush.msra.mxu0 0.0
  %5376 = vmatpush.msra.mxu0 0.0
  %5377 = vmatpush.msra.mxu0 0.0
  %5378 = vmatpush.msra.mxu0 0.0
  %5379 = vmatpush.msra.mxu0 0.0
  %5380 = vmatpush.msra.mxu0 0.0
  %5381 = vmatpush.msra.mxu0 0.0
  %5382 = vmatpush.msra.mxu0 0.0
  %5383 = vmatpush.msra.mxu0 0.0
  %5384 = vmatpush.msra.mxu0 0.0
  %5385 = vmatpush.msra.mxu0 %v5361
  %5386 = vmatmul.f32.gmra.mxu0 %v5368
  %v5387 = vpop.f32.mrf.mxu0
  %v5388 = vadd.f32 0.0, %v5387
  %5389 = vdwg.mxu0
  %5390 = vmatpush.msra.mxu0 0.0
  %5391 = vmatpush.msra.mxu0 0.0
  %5392 = vmatpush.msra.mxu0 0.0
  %5393 = vmatpush.msra.mxu0 0.0
  %5394 = vmatpush.msra.mxu0 0.0
  %5395 = vmatpush.msra.mxu0 0.0
  %5396 = vmatpush.msra.mxu0 0.0
  %5397 = vmatpush.msra.mxu0 0.0
  %5398 = vmatpush.msra.mxu0 0.0
  %5399 = vmatpush.msra.mxu0 0.0
  %5400 = vmatpush.msra.mxu0 0.0
  %5401 = vmatpush.msra.mxu0 0.0
  %5402 = vmatpush.msra.mxu0 0.0
  %5403 = vmatpush.msra.mxu0 0.0
  %5404 = vmatpush.msra.mxu0 0.0
  %5405 = vmatpush.msra.mxu0 %v5362
  %5406 = vmatmul.f32.gmra.mxu0 %v5368
  %v5407 = vpop.f32.mrf.mxu0
  %v5408 = vadd.f32 0.0, %v5407
  %5409 = vdwg.mxu0
  %5410 = vmatpush.msra.mxu0 0.0
  %5411 = vmatpush.msra.mxu0 0.0
  %5412 = vmatpush.msra.mxu0 0.0
  %5413 = vmatpush.msra.mxu0 0.0
  %5414 = vmatpush.msra.mxu0 0.0
  %5415 = vmatpush.msra.mxu0 0.0
  %5416 = vmatpush.msra.mxu0 0.0
  %5417 = vmatpush.msra.mxu0 0.0
  %5418 = vmatpush.msra.mxu0 0.0
  %5419 = vmatpush.msra.mxu0 0.0
  %5420 = vmatpush.msra.mxu0 0.0
  %5421 = vmatpush.msra.mxu0 0.0
  %5422 = vmatpush.msra.mxu0 0.0
  %5423 = vmatpush.msra.mxu0 0.0
  %5424 = vmatpush.msra.mxu0 0.0
  %5425 = vmatpush.msra.mxu0 %v5363
  %5426 = vmatmul.f32.gmra.mxu0 %v5368
  %v5427 = vpop.f32.mrf.mxu0
  %v5428 = vadd.f32 0.0, %v5427
  %5429 = vdwg.mxu0
  %5430 = vmatpush.msra.mxu0 0.0
  %5431 = vmatpush.msra.mxu0 0.0
  %5432 = vmatpush.msra.mxu0 0.0
  %5433 = vmatpush.msra.mxu0 0.0
  %5434 = vmatpush.msra.mxu0 0.0
  %5435 = vmatpush.msra.mxu0 0.0
  %5436 = vmatpush.msra.mxu0 0.0
  %5437 = vmatpush.msra.mxu0 0.0
  %5438 = vmatpush.msra.mxu0 0.0
  %5439 = vmatpush.msra.mxu0 0.0
  %5440 = vmatpush.msra.mxu0 0.0
  %5441 = vmatpush.msra.mxu0 0.0
  %5442 = vmatpush.msra.mxu0 0.0
  %5443 = vmatpush.msra.mxu0 0.0
  %5444 = vmatpush.msra.mxu0 0.0
  %5445 = vmatpush.msra.mxu0 %v5364
  %5446 = vmatmul.f32.gmra.mxu0 %v5368
  %v5447 = vpop.f32.mrf.mxu0
  %v5448 = vadd.f32 0.0, %v5447
  %5449 = vdwg.mxu0
  %v5450 = vadd.f32 %v5340, %v5388
  %v5451 = vadd.f32 %v5341, %v5408
  %v5452 = vadd.f32 %v5342, %v5428
  %v5453 = vadd.f32 %v5343, %v5448
  %5454 = vrot.lane.b32.xlu0 %v4701, 112
  %v5455 = vpop.permute.xlu0 %5454
  %5456 = vrot.lane.b32.xlu0 %v4702, 112
  %v5457 = vpop.permute.xlu0 %5456
  %5458 = vrot.lane.b32.xlu0 %v4703, 112
  %v5459 = vpop.permute.xlu0 %5458
  %5460 = vrot.lane.b32.xlu0 %v4704, 112
  %v5461 = vpop.permute.xlu0 %5460
  %v5462 = vsel %vm869, %v5455, %v5457
  %v5463 = vsel %vm869, %v5457, %v5459
  %v5464 = vsel %vm869, %v5459, %v5461
  %v5470 = vsel %vm869, %v5461, %v5455
  %v5471 = vmul.f32 %v5462, %v882
  %v5472 = vmul.f32 %v5463, %v883
  %v5473 = vmul.f32 %v5464, %v884
  %v5474 = vmul.f32 %v5470, %v885
  %s5475 = scalar_lea.vmem %s5, 560
  %v5476 = vld [vmem:[%s5475] sm:$0xff]
  %v5478 = vsel %vm102, %v5476, 0
  %5480 = vmatpush.msra.mxu0 0.0
  %5481 = vmatpush.msra.mxu0 0.0
  %5482 = vmatpush.msra.mxu0 0.0
  %5483 = vmatpush.msra.mxu0 0.0
  %5484 = vmatpush.msra.mxu0 0.0
  %5485 = vmatpush.msra.mxu0 0.0
  %5486 = vmatpush.msra.mxu0 0.0
  %5487 = vmatpush.msra.mxu0 0.0
  %5488 = vmatpush.msra.mxu0 0.0
  %5489 = vmatpush.msra.mxu0 0.0
  %5490 = vmatpush.msra.mxu0 0.0
  %5491 = vmatpush.msra.mxu0 0.0
  %5492 = vmatpush.msra.mxu0 0.0
  %5493 = vmatpush.msra.mxu0 0.0
  %5494 = vmatpush.msra.mxu0 0.0
  %5495 = vmatpush.msra.mxu0 %v5471
  %5496 = vmatmul.f32.gmra.mxu0 %v5478
  %v5497 = vpop.f32.mrf.mxu0
  %v5498 = vadd.f32 0.0, %v5497
  %5499 = vdwg.mxu0
  %5500 = vmatpush.msra.mxu0 0.0
  %5501 = vmatpush.msra.mxu0 0.0
  %5502 = vmatpush.msra.mxu0 0.0
  %5503 = vmatpush.msra.mxu0 0.0
  %5504 = vmatpush.msra.mxu0 0.0
  %5505 = vmatpush.msra.mxu0 0.0
  %5506 = vmatpush.msra.mxu0 0.0
  %5507 = vmatpush.msra.mxu0 0.0
  %5508 = vmatpush.msra.mxu0 0.0
  %5509 = vmatpush.msra.mxu0 0.0
  %5510 = vmatpush.msra.mxu0 0.0
  %5511 = vmatpush.msra.mxu0 0.0
  %5512 = vmatpush.msra.mxu0 0.0
  %5513 = vmatpush.msra.mxu0 0.0
  %5514 = vmatpush.msra.mxu0 0.0
  %5515 = vmatpush.msra.mxu0 %v5472
  %5516 = vmatmul.f32.gmra.mxu0 %v5478
  %v5517 = vpop.f32.mrf.mxu0
  %v5518 = vadd.f32 0.0, %v5517
  %5519 = vdwg.mxu0
  %5520 = vmatpush.msra.mxu0 0.0
  %5521 = vmatpush.msra.mxu0 0.0
  %5522 = vmatpush.msra.mxu0 0.0
  %5523 = vmatpush.msra.mxu0 0.0
  %5524 = vmatpush.msra.mxu0 0.0
  %5525 = vmatpush.msra.mxu0 0.0
  %5526 = vmatpush.msra.mxu0 0.0
  %5527 = vmatpush.msra.mxu0 0.0
  %5528 = vmatpush.msra.mxu0 0.0
  %5529 = vmatpush.msra.mxu0 0.0
  %5530 = vmatpush.msra.mxu0 0.0
  %5531 = vmatpush.msra.mxu0 0.0
  %5532 = vmatpush.msra.mxu0 0.0
  %5533 = vmatpush.msra.mxu0 0.0
  %5534 = vmatpush.msra.mxu0 0.0
  %5535 = vmatpush.msra.mxu0 %v5473
  %5536 = vmatmul.f32.gmra.mxu0 %v5478
  %v5537 = vpop.f32.mrf.mxu0
  %v5538 = vadd.f32 0.0, %v5537
  %5539 = vdwg.mxu0
  %5540 = vmatpush.msra.mxu0 0.0
  %5541 = vmatpush.msra.mxu0 0.0
  %5542 = vmatpush.msra.mxu0 0.0
  %5543 = vmatpush.msra.mxu0 0.0
  %5544 = vmatpush.msra.mxu0 0.0
  %5545 = vmatpush.msra.mxu0 0.0
  %5546 = vmatpush.msra.mxu0 0.0
  %5547 = vmatpush.msra.mxu0 0.0
  %5548 = vmatpush.msra.mxu0 0.0
  %5549 = vmatpush.msra.mxu0 0.0
  %5550 = vmatpush.msra.mxu0 0.0
  %5551 = vmatpush.msra.mxu0 0.0
  %5552 = vmatpush.msra.mxu0 0.0
  %5553 = vmatpush.msra.mxu0 0.0
  %5554 = vmatpush.msra.mxu0 0.0
  %5555 = vmatpush.msra.mxu0 %v5474
  %5556 = vmatmul.f32.gmra.mxu0 %v5478
  %v5557 = vpop.f32.mrf.mxu0
  %v5558 = vadd.f32 0.0, %v5557
  %5559 = vdwg.mxu0
  %v5560 = vadd.f32 %v5450, %v5498
  %v5561 = vadd.f32 %v5451, %v5518
  %v5562 = vadd.f32 %v5452, %v5538
  %v5563 = vadd.f32 %v5453, %v5558
  %5564 = vrot.lane.b32.xlu0 %v4701, 111
  %v5565 = vpop.permute.xlu0 %5564
  %5566 = vrot.lane.b32.xlu0 %v4702, 111
  %v5567 = vpop.permute.xlu0 %5566
  %5568 = vrot.lane.b32.xlu0 %v4703, 111
  %v5569 = vpop.permute.xlu0 %5568
  %5570 = vrot.lane.b32.xlu0 %v4704, 111
  %v5571 = vpop.permute.xlu0 %5570
  %v5572 = vsel %vm991, %v5565, %v5567
  %v5573 = vsel %vm991, %v5567, %v5569
  %v5574 = vsel %vm991, %v5569, %v5571
  %v5580 = vsel %vm991, %v5571, %v5565
  %v5581 = vmul.f32 %v5572, %v1004
  %v5582 = vmul.f32 %v5573, %v1005
  %v5583 = vmul.f32 %v5574, %v1006
  %v5584 = vmul.f32 %v5580, %v1007
  %s5585 = scalar_lea.vmem %s5, 568
  %v5586 = vld [vmem:[%s5585] sm:$0xff]
  %v5588 = vsel %vm102, %v5586, 0
  %5590 = vmatpush.msra.mxu0 0.0
  %5591 = vmatpush.msra.mxu0 0.0
  %5592 = vmatpush.msra.mxu0 0.0
  %5593 = vmatpush.msra.mxu0 0.0
  %5594 = vmatpush.msra.mxu0 0.0
  %5595 = vmatpush.msra.mxu0 0.0
  %5596 = vmatpush.msra.mxu0 0.0
  %5597 = vmatpush.msra.mxu0 0.0
  %5598 = vmatpush.msra.mxu0 0.0
  %5599 = vmatpush.msra.mxu0 0.0
  %5600 = vmatpush.msra.mxu0 0.0
  %5601 = vmatpush.msra.mxu0 0.0
  %5602 = vmatpush.msra.mxu0 0.0
  %5603 = vmatpush.msra.mxu0 0.0
  %5604 = vmatpush.msra.mxu0 0.0
  %5605 = vmatpush.msra.mxu0 %v5581
  %5606 = vmatmul.f32.gmra.mxu0 %v5588
  %v5607 = vpop.f32.mrf.mxu0
  %v5608 = vadd.f32 0.0, %v5607
  %5609 = vdwg.mxu0
  %5610 = vmatpush.msra.mxu0 0.0
  %5611 = vmatpush.msra.mxu0 0.0
  %5612 = vmatpush.msra.mxu0 0.0
  %5613 = vmatpush.msra.mxu0 0.0
  %5614 = vmatpush.msra.mxu0 0.0
  %5615 = vmatpush.msra.mxu0 0.0
  %5616 = vmatpush.msra.mxu0 0.0
  %5617 = vmatpush.msra.mxu0 0.0
  %5618 = vmatpush.msra.mxu0 0.0
  %5619 = vmatpush.msra.mxu0 0.0
  %5620 = vmatpush.msra.mxu0 0.0
  %5621 = vmatpush.msra.mxu0 0.0
  %5622 = vmatpush.msra.mxu0 0.0
  %5623 = vmatpush.msra.mxu0 0.0
  %5624 = vmatpush.msra.mxu0 0.0
  %5625 = vmatpush.msra.mxu0 %v5582
  %5626 = vmatmul.f32.gmra.mxu0 %v5588
  %v5627 = vpop.f32.mrf.mxu0
  %v5628 = vadd.f32 0.0, %v5627
  %5629 = vdwg.mxu0
  %5630 = vmatpush.msra.mxu0 0.0
  %5631 = vmatpush.msra.mxu0 0.0
  %5632 = vmatpush.msra.mxu0 0.0
  %5633 = vmatpush.msra.mxu0 0.0
  %5634 = vmatpush.msra.mxu0 0.0
  %5635 = vmatpush.msra.mxu0 0.0
  %5636 = vmatpush.msra.mxu0 0.0
  %5637 = vmatpush.msra.mxu0 0.0
  %5638 = vmatpush.msra.mxu0 0.0
  %5639 = vmatpush.msra.mxu0 0.0
  %5640 = vmatpush.msra.mxu0 0.0
  %5641 = vmatpush.msra.mxu0 0.0
  %5642 = vmatpush.msra.mxu0 0.0
  %5643 = vmatpush.msra.mxu0 0.0
  %5644 = vmatpush.msra.mxu0 0.0
  %5645 = vmatpush.msra.mxu0 %v5583
  %5646 = vmatmul.f32.gmra.mxu0 %v5588
  %v5647 = vpop.f32.mrf.mxu0
  %v5648 = vadd.f32 0.0, %v5647
  %5649 = vdwg.mxu0
  %5650 = vmatpush.msra.mxu0 0.0
  %5651 = vmatpush.msra.mxu0 0.0
  %5652 = vmatpush.msra.mxu0 0.0
  %5653 = vmatpush.msra.mxu0 0.0
  %5654 = vmatpush.msra.mxu0 0.0
  %5655 = vmatpush.msra.mxu0 0.0
  %5656 = vmatpush.msra.mxu0 0.0
  %5657 = vmatpush.msra.mxu0 0.0
  %5658 = vmatpush.msra.mxu0 0.0
  %5659 = vmatpush.msra.mxu0 0.0
  %5660 = vmatpush.msra.mxu0 0.0
  %5661 = vmatpush.msra.mxu0 0.0
  %5662 = vmatpush.msra.mxu0 0.0
  %5663 = vmatpush.msra.mxu0 0.0
  %5664 = vmatpush.msra.mxu0 0.0
  %5665 = vmatpush.msra.mxu0 %v5584
  %5666 = vmatmul.f32.gmra.mxu0 %v5588
  %v5667 = vpop.f32.mrf.mxu0
  %v5668 = vadd.f32 0.0, %v5667
  %5669 = vdwg.mxu0
  %v5670 = vadd.f32 %v5560, %v5608
  %v5671 = vadd.f32 %v5561, %v5628
  %v5672 = vadd.f32 %v5562, %v5648
  %v5673 = vadd.f32 %v5563, %v5668
  %v5674 = vadd.f32 %v5670, %v5671
  %v5675 = vadd.f32 %v5674, %v5672
  %v5676 = vadd.f32 %v5675, %v5673
  %5677 = vadd.xlane.f32.xlu0 %v5676
  %v5678 = vpop.xlane.xlu0 %5677
  %v5679 = vmul.f32 %v5678, 0.001953125
  %v5680 = vsub.f32 %v5670, %v5679
  %v5681 = vsub.f32 %v5671, %v5679
  %v5682 = vsub.f32 %v5672, %v5679
  %v5683 = vsub.f32 %v5673, %v5679
  %v5684 = vmul.f32 %v5680, %v5680
  %v5685 = vmul.f32 %v5681, %v5681
  %v5686 = vmul.f32 %v5682, %v5682
  %v5687 = vmul.f32 %v5683, %v5683
  %v5688 = vadd.f32 %v5684, %v5685
  %v5689 = vadd.f32 %v5688, %v5686
  %v5690 = vadd.f32 %v5689, %v5687
  %5691 = vadd.xlane.f32.xlu0 %v5690
  %v5692 = vpop.xlane.xlu0 %5691
  %v5693 = vmul.f32 %v5692, 0.001953125
  %s5694 = scalar_lea.vmem %s6, 96
  %v5695 = vld [vmem:[%s5694] sm:$0xff]
  %v5696 = vadd.f32 %v5693, 1e-05
  %v5697 = vrsqrt.pop %v5696
  %v5698 = vmul.f32 %v5697, %v5696
  %v5699 = vmul.f32 %v5698, %v5697
  %v5700 = vmul.f32 0.5, %v5699
  %v5701 = vsub.f32 1.5, %v5700
  %v5702 = vmul.f32 %v5697, %v5701
  %vm5703 = vweird.f32 %v5696
  %vm5704 = vweird.f32 %v5697
  %vm5705 = vmor %vm5703, %vm5704
  %v5706 = vsel %vm5705, %v5697, %v5702
  %v5707 = vmul.f32 %v5695, %v5706
  %5709 = vset.pattern.permute.xlu0 0
  %5710 = vperm.xlu0 %5709, %v5707
  %v5711 = vpop.permute.xlu0 %5710
  %v5713 = vmul.f32 %v5680, %v5711
  %v5714 = vmul.f32 %v5681, %v5711
  %v5715 = vmul.f32 %v5682, %v5711
  %v5716 = vmul.f32 %v5683, %v5711
  %s5717 = scalar_lea.vmem %s6, 104
  %v5718 = vld [vmem:[%s5717] sm:$0xff]
  %5720 = vset.pattern.permute.xlu0 0
  %5721 = vperm.xlu0 %5720, %v5718
  %v5722 = vpop.permute.xlu0 %5721
  %v5724 = vadd.f32 %v5713, %v5722
  %v5725 = vadd.f32 %v5714, %v5722
  %v5726 = vadd.f32 %v5715, %v5722
  %v5727 = vadd.f32 %v5716, %v5722
  %v5728 = vadd.f32 %v5724, %v3674
  %v5729 = vadd.f32 %v5725, %v3675
  %v5730 = vadd.f32 %v5726, %v3676
  %v5731 = vadd.f32 %v5727, %v3677
  %v5732 = vmax.f32 %v5728, 0.0
  %v5733 = vmax.f32 %v5729, 0.0
  %v5734 = vmax.f32 %v5730, 0.0
  %v5735 = vmax.f32 %v5731, 0.0
  %5737 = vrot.lane.b32.xlu0 %v5735, 17
  %v5738 = vpop.permute.xlu0 %5737
  %5743 = vrot.lane.b32.xlu0 %v5732, 17
  %v5744 = vpop.permute.xlu0 %5743
  %5745 = vrot.lane.b32.xlu0 %v5733, 17
  %v5746 = vpop.permute.xlu0 %5745
  %5747 = vrot.lane.b32.xlu0 %v5734, 17
  %v5748 = vpop.permute.xlu0 %5747
  %v5749 = vsel %vm43, %v5744, %v5746
  %v5750 = vsel %vm43, %v5746, %v5748
  %v5751 = vsel %vm43, %v5748, %v5738
  %v5756 = vsel %vm43, %v5738, %v5744
  %v5757 = vmul.f32 %v5756, %v54
  %v5758 = vmul.f32 %v5749, %v55
  %v5759 = vmul.f32 %v5750, %v56
  %v5760 = vmul.f32 %v5751, %v57
  %s5761 = scalar_lea.vmem %s5, 576
  %v5762 = vld [vmem:[%s5761] sm:$0xff]
  %5763 = vrot.lane.b32.xlu0 %v5735, 16
  %v5764 = vpop.permute.xlu0 %5763
  %5766 = vrot.lane.b32.xlu0 %v5732, 16
  %v5767 = vpop.permute.xlu0 %5766
  %5768 = vrot.lane.b32.xlu0 %v5733, 16
  %v5769 = vpop.permute.xlu0 %5768
  %5770 = vrot.lane.b32.xlu0 %v5734, 16
  %v5771 = vpop.permute.xlu0 %5770
  %v5772 = vsel %vm76, %v5767, %v5769
  %v5773 = vsel %vm76, %v5769, %v5771
  %v5774 = vsel %vm76, %v5771, %v5764
  %v5779 = vsel %vm76, %v5764, %v5767
  %v5780 = vmul.f32 %v5779, %v88
  %v5781 = vmul.f32 %v5772, %v89
  %v5782 = vmul.f32 %v5773, %v90
  %v5783 = vmul.f32 %v5774, %v91
  %s5784 = scalar_lea.vmem %s5, 584
  %v5785 = vld [vmem:[%s5784] sm:$0xff]
  %v5787 = vsel %vm102, %v5785, 0
  %5789 = vmatpush.msra.mxu0 0.0
  %5790 = vmatpush.msra.mxu0 0.0
  %5791 = vmatpush.msra.mxu0 0.0
  %5792 = vmatpush.msra.mxu0 0.0
  %5793 = vmatpush.msra.mxu0 0.0
  %5794 = vmatpush.msra.mxu0 0.0
  %5795 = vmatpush.msra.mxu0 0.0
  %5796 = vmatpush.msra.mxu0 0.0
  %5797 = vmatpush.msra.mxu0 0.0
  %5798 = vmatpush.msra.mxu0 0.0
  %5799 = vmatpush.msra.mxu0 0.0
  %5800 = vmatpush.msra.mxu0 0.0
  %5801 = vmatpush.msra.mxu0 0.0
  %5802 = vmatpush.msra.mxu0 0.0
  %5803 = vmatpush.msra.mxu0 0.0
  %5804 = vmatpush.msra.mxu0 %v5780
  %5805 = vmatmul.f32.gmra.mxu0 %v5787
  %v5806 = vpop.f32.mrf.mxu0
  %v5807 = vadd.f32 0.0, %v5806
  %5808 = vdwg.mxu0
  %5809 = vmatpush.msra.mxu0 0.0
  %5810 = vmatpush.msra.mxu0 0.0
  %5811 = vmatpush.msra.mxu0 0.0
  %5812 = vmatpush.msra.mxu0 0.0
  %5813 = vmatpush.msra.mxu0 0.0
  %5814 = vmatpush.msra.mxu0 0.0
  %5815 = vmatpush.msra.mxu0 0.0
  %5816 = vmatpush.msra.mxu0 0.0
  %5817 = vmatpush.msra.mxu0 0.0
  %5818 = vmatpush.msra.mxu0 0.0
  %5819 = vmatpush.msra.mxu0 0.0
  %5820 = vmatpush.msra.mxu0 0.0
  %5821 = vmatpush.msra.mxu0 0.0
  %5822 = vmatpush.msra.mxu0 0.0
  %5823 = vmatpush.msra.mxu0 0.0
  %5824 = vmatpush.msra.mxu0 %v5781
  %5825 = vmatmul.f32.gmra.mxu0 %v5787
  %v5826 = vpop.f32.mrf.mxu0
  %v5827 = vadd.f32 0.0, %v5826
  %5828 = vdwg.mxu0
  %5829 = vmatpush.msra.mxu0 0.0
  %5830 = vmatpush.msra.mxu0 0.0
  %5831 = vmatpush.msra.mxu0 0.0
  %5832 = vmatpush.msra.mxu0 0.0
  %5833 = vmatpush.msra.mxu0 0.0
  %5834 = vmatpush.msra.mxu0 0.0
  %5835 = vmatpush.msra.mxu0 0.0
  %5836 = vmatpush.msra.mxu0 0.0
  %5837 = vmatpush.msra.mxu0 0.0
  %5838 = vmatpush.msra.mxu0 0.0
  %5839 = vmatpush.msra.mxu0 0.0
  %5840 = vmatpush.msra.mxu0 0.0
  %5841 = vmatpush.msra.mxu0 0.0
  %5842 = vmatpush.msra.mxu0 0.0
  %5843 = vmatpush.msra.mxu0 0.0
  %5844 = vmatpush.msra.mxu0 %v5782
  %5845 = vmatmul.f32.gmra.mxu0 %v5787
  %v5846 = vpop.f32.mrf.mxu0
  %v5847 = vadd.f32 0.0, %v5846
  %5848 = vdwg.mxu0
  %5849 = vmatpush.msra.mxu0 0.0
  %5850 = vmatpush.msra.mxu0 0.0
  %5851 = vmatpush.msra.mxu0 0.0
  %5852 = vmatpush.msra.mxu0 0.0
  %5853 = vmatpush.msra.mxu0 0.0
  %5854 = vmatpush.msra.mxu0 0.0
  %5855 = vmatpush.msra.mxu0 0.0
  %5856 = vmatpush.msra.mxu0 0.0
  %5857 = vmatpush.msra.mxu0 0.0
  %5858 = vmatpush.msra.mxu0 0.0
  %5859 = vmatpush.msra.mxu0 0.0
  %5860 = vmatpush.msra.mxu0 0.0
  %5861 = vmatpush.msra.mxu0 0.0
  %5862 = vmatpush.msra.mxu0 0.0
  %5863 = vmatpush.msra.mxu0 0.0
  %5864 = vmatpush.msra.mxu0 %v5783
  %5865 = vmatmul.f32.gmra.mxu0 %v5787
  %v5866 = vpop.f32.mrf.mxu0
  %v5867 = vadd.f32 0.0, %v5866
  %5868 = vdwg.mxu0
  %v5870 = vsel %vm102, %v5762, 0
  %5872 = vmatpush.msra.mxu0 0.0
  %5873 = vmatpush.msra.mxu0 0.0
  %5874 = vmatpush.msra.mxu0 0.0
  %5875 = vmatpush.msra.mxu0 0.0
  %5876 = vmatpush.msra.mxu0 0.0
  %5877 = vmatpush.msra.mxu0 0.0
  %5878 = vmatpush.msra.mxu0 0.0
  %5879 = vmatpush.msra.mxu0 0.0
  %5880 = vmatpush.msra.mxu0 0.0
  %5881 = vmatpush.msra.mxu0 0.0
  %5882 = vmatpush.msra.mxu0 0.0
  %5883 = vmatpush.msra.mxu0 0.0
  %5884 = vmatpush.msra.mxu0 0.0
  %5885 = vmatpush.msra.mxu0 0.0
  %5886 = vmatpush.msra.mxu0 0.0
  %5887 = vmatpush.msra.mxu0 %v5757
  %5888 = vmatmul.f32.gmra.mxu0 %v5870
  %v5889 = vpop.f32.mrf.mxu0
  %v5890 = vadd.f32 %v5807, %v5889
  %5891 = vdwg.mxu0
  %5892 = vmatpush.msra.mxu0 0.0
  %5893 = vmatpush.msra.mxu0 0.0
  %5894 = vmatpush.msra.mxu0 0.0
  %5895 = vmatpush.msra.mxu0 0.0
  %5896 = vmatpush.msra.mxu0 0.0
  %5897 = vmatpush.msra.mxu0 0.0
  %5898 = vmatpush.msra.mxu0 0.0
  %5899 = vmatpush.msra.mxu0 0.0
  %5900 = vmatpush.msra.mxu0 0.0
  %5901 = vmatpush.msra.mxu0 0.0
  %5902 = vmatpush.msra.mxu0 0.0
  %5903 = vmatpush.msra.mxu0 0.0
  %5904 = vmatpush.msra.mxu0 0.0
  %5905 = vmatpush.msra.mxu0 0.0
  %5906 = vmatpush.msra.mxu0 0.0
  %5907 = vmatpush.msra.mxu0 %v5758
  %5908 = vmatmul.f32.gmra.mxu0 %v5870
  %v5909 = vpop.f32.mrf.mxu0
  %v5910 = vadd.f32 %v5827, %v5909
  %5911 = vdwg.mxu0
  %5912 = vmatpush.msra.mxu0 0.0
  %5913 = vmatpush.msra.mxu0 0.0
  %5914 = vmatpush.msra.mxu0 0.0
  %5915 = vmatpush.msra.mxu0 0.0
  %5916 = vmatpush.msra.mxu0 0.0
  %5917 = vmatpush.msra.mxu0 0.0
  %5918 = vmatpush.msra.mxu0 0.0
  %5919 = vmatpush.msra.mxu0 0.0
  %5920 = vmatpush.msra.mxu0 0.0
  %5921 = vmatpush.msra.mxu0 0.0
  %5922 = vmatpush.msra.mxu0 0.0
  %5923 = vmatpush.msra.mxu0 0.0
  %5924 = vmatpush.msra.mxu0 0.0
  %5925 = vmatpush.msra.mxu0 0.0
  %5926 = vmatpush.msra.mxu0 0.0
  %5927 = vmatpush.msra.mxu0 %v5759
  %5928 = vmatmul.f32.gmra.mxu0 %v5870
  %v5929 = vpop.f32.mrf.mxu0
  %v5930 = vadd.f32 %v5847, %v5929
  %5931 = vdwg.mxu0
  %5932 = vmatpush.msra.mxu0 0.0
  %5933 = vmatpush.msra.mxu0 0.0
  %5934 = vmatpush.msra.mxu0 0.0
  %5935 = vmatpush.msra.mxu0 0.0
  %5936 = vmatpush.msra.mxu0 0.0
  %5937 = vmatpush.msra.mxu0 0.0
  %5938 = vmatpush.msra.mxu0 0.0
  %5939 = vmatpush.msra.mxu0 0.0
  %5940 = vmatpush.msra.mxu0 0.0
  %5941 = vmatpush.msra.mxu0 0.0
  %5942 = vmatpush.msra.mxu0 0.0
  %5943 = vmatpush.msra.mxu0 0.0
  %5944 = vmatpush.msra.mxu0 0.0
  %5945 = vmatpush.msra.mxu0 0.0
  %5946 = vmatpush.msra.mxu0 0.0
  %5947 = vmatpush.msra.mxu0 %v5760
  %5948 = vmatmul.f32.gmra.mxu0 %v5870
  %v5949 = vpop.f32.mrf.mxu0
  %v5950 = vadd.f32 %v5867, %v5949
  %5951 = vdwg.mxu0
  %5952 = vrot.lane.b32.xlu0 %v5735, 15
  %v5953 = vpop.permute.xlu0 %5952
  %5955 = vrot.lane.b32.xlu0 %v5732, 15
  %v5956 = vpop.permute.xlu0 %5955
  %5957 = vrot.lane.b32.xlu0 %v5733, 15
  %v5958 = vpop.permute.xlu0 %5957
  %5959 = vrot.lane.b32.xlu0 %v5734, 15
  %v5960 = vpop.permute.xlu0 %5959
  %v5961 = vsel %vm278, %v5956, %v5958
  %v5962 = vsel %vm278, %v5958, %v5960
  %v5963 = vsel %vm278, %v5960, %v5953
  %v5968 = vsel %vm278, %v5953, %v5956
  %v5969 = vmul.f32 %v5968, %v290
  %v5970 = vmul.f32 %v5961, %v291
  %v5971 = vmul.f32 %v5962, %v292
  %v5972 = vmul.f32 %v5963, %v293
  %s5973 = scalar_lea.vmem %s5, 592
  %v5974 = vld [vmem:[%s5973] sm:$0xff]
  %v5976 = vsel %vm102, %v5974, 0
  %5978 = vmatpush.msra.mxu0 0.0
  %5979 = vmatpush.msra.mxu0 0.0
  %5980 = vmatpush.msra.mxu0 0.0
  %5981 = vmatpush.msra.mxu0 0.0
  %5982 = vmatpush.msra.mxu0 0.0
  %5983 = vmatpush.msra.mxu0 0.0
  %5984 = vmatpush.msra.mxu0 0.0
  %5985 = vmatpush.msra.mxu0 0.0
  %5986 = vmatpush.msra.mxu0 0.0
  %5987 = vmatpush.msra.mxu0 0.0
  %5988 = vmatpush.msra.mxu0 0.0
  %5989 = vmatpush.msra.mxu0 0.0
  %5990 = vmatpush.msra.mxu0 0.0
  %5991 = vmatpush.msra.mxu0 0.0
  %5992 = vmatpush.msra.mxu0 0.0
  %5993 = vmatpush.msra.mxu0 %v5969
  %5994 = vmatmul.f32.gmra.mxu0 %v5976
  %v5995 = vpop.f32.mrf.mxu0
  %v5996 = vadd.f32 0.0, %v5995
  %5997 = vdwg.mxu0
  %5998 = vmatpush.msra.mxu0 0.0
  %5999 = vmatpush.msra.mxu0 0.0
  %6000 = vmatpush.msra.mxu0 0.0
  %6001 = vmatpush.msra.mxu0 0.0
  %6002 = vmatpush.msra.mxu0 0.0
  %6003 = vmatpush.msra.mxu0 0.0
  %6004 = vmatpush.msra.mxu0 0.0
  %6005 = vmatpush.msra.mxu0 0.0
  %6006 = vmatpush.msra.mxu0 0.0
  %6007 = vmatpush.msra.mxu0 0.0
  %6008 = vmatpush.msra.mxu0 0.0
  %6009 = vmatpush.msra.mxu0 0.0
  %6010 = vmatpush.msra.mxu0 0.0
  %6011 = vmatpush.msra.mxu0 0.0
  %6012 = vmatpush.msra.mxu0 0.0
  %6013 = vmatpush.msra.mxu0 %v5970
  %6014 = vmatmul.f32.gmra.mxu0 %v5976
  %v6015 = vpop.f32.mrf.mxu0
  %v6016 = vadd.f32 0.0, %v6015
  %6017 = vdwg.mxu0
  %6018 = vmatpush.msra.mxu0 0.0
  %6019 = vmatpush.msra.mxu0 0.0
  %6020 = vmatpush.msra.mxu0 0.0
  %6021 = vmatpush.msra.mxu0 0.0
  %6022 = vmatpush.msra.mxu0 0.0
  %6023 = vmatpush.msra.mxu0 0.0
  %6024 = vmatpush.msra.mxu0 0.0
  %6025 = vmatpush.msra.mxu0 0.0
  %6026 = vmatpush.msra.mxu0 0.0
  %6027 = vmatpush.msra.mxu0 0.0
  %6028 = vmatpush.msra.mxu0 0.0
  %6029 = vmatpush.msra.mxu0 0.0
  %6030 = vmatpush.msra.mxu0 0.0
  %6031 = vmatpush.msra.mxu0 0.0
  %6032 = vmatpush.msra.mxu0 0.0
  %6033 = vmatpush.msra.mxu0 %v5971
  %6034 = vmatmul.f32.gmra.mxu0 %v5976
  %v6035 = vpop.f32.mrf.mxu0
  %v6036 = vadd.f32 0.0, %v6035
  %6037 = vdwg.mxu0
  %6038 = vmatpush.msra.mxu0 0.0
  %6039 = vmatpush.msra.mxu0 0.0
  %6040 = vmatpush.msra.mxu0 0.0
  %6041 = vmatpush.msra.mxu0 0.0
  %6042 = vmatpush.msra.mxu0 0.0
  %6043 = vmatpush.msra.mxu0 0.0
  %6044 = vmatpush.msra.mxu0 0.0
  %6045 = vmatpush.msra.mxu0 0.0
  %6046 = vmatpush.msra.mxu0 0.0
  %6047 = vmatpush.msra.mxu0 0.0
  %6048 = vmatpush.msra.mxu0 0.0
  %6049 = vmatpush.msra.mxu0 0.0
  %6050 = vmatpush.msra.mxu0 0.0
  %6051 = vmatpush.msra.mxu0 0.0
  %6052 = vmatpush.msra.mxu0 0.0
  %6053 = vmatpush.msra.mxu0 %v5972
  %6054 = vmatmul.f32.gmra.mxu0 %v5976
  %v6055 = vpop.f32.mrf.mxu0
  %v6056 = vadd.f32 0.0, %v6055
  %6057 = vdwg.mxu0
  %v6058 = vadd.f32 %v5890, %v5996
  %v6059 = vadd.f32 %v5910, %v6016
  %v6060 = vadd.f32 %v5930, %v6036
  %v6061 = vadd.f32 %v5950, %v6056
  %6062 = vrot.lane.b32.xlu0 %v5735, 1
  %v6063 = vpop.permute.xlu0 %6062
  %6065 = vrot.lane.b32.xlu0 %v5732, 1
  %v6066 = vpop.permute.xlu0 %6065
  %6067 = vrot.lane.b32.xlu0 %v5733, 1
  %v6068 = vpop.permute.xlu0 %6067
  %6069 = vrot.lane.b32.xlu0 %v5734, 1
  %v6070 = vpop.permute.xlu0 %6069
  %v6071 = vsel %vm400, %v6066, %v6068
  %v6072 = vsel %vm400, %v6068, %v6070
  %v6073 = vsel %vm400, %v6070, %v6063
  %v6078 = vsel %vm400, %v6063, %v6066
  %v6079 = vmul.f32 %v6078, %v412
  %v6080 = vmul.f32 %v6071, %v413
  %v6081 = vmul.f32 %v6072, %v414
  %v6082 = vmul.f32 %v6073, %v415
  %s6083 = scalar_lea.vmem %s5, 600
  %v6084 = vld [vmem:[%s6083] sm:$0xff]
  %v6086 = vsel %vm102, %v6084, 0
  %6088 = vmatpush.msra.mxu0 0.0
  %6089 = vmatpush.msra.mxu0 0.0
  %6090 = vmatpush.msra.mxu0 0.0
  %6091 = vmatpush.msra.mxu0 0.0
  %6092 = vmatpush.msra.mxu0 0.0
  %6093 = vmatpush.msra.mxu0 0.0
  %6094 = vmatpush.msra.mxu0 0.0
  %6095 = vmatpush.msra.mxu0 0.0
  %6096 = vmatpush.msra.mxu0 0.0
  %6097 = vmatpush.msra.mxu0 0.0
  %6098 = vmatpush.msra.mxu0 0.0
  %6099 = vmatpush.msra.mxu0 0.0
  %6100 = vmatpush.msra.mxu0 0.0
  %6101 = vmatpush.msra.mxu0 0.0
  %6102 = vmatpush.msra.mxu0 0.0
  %6103 = vmatpush.msra.mxu0 %v6079
  %6104 = vmatmul.f32.gmra.mxu0 %v6086
  %v6105 = vpop.f32.mrf.mxu0
  %v6106 = vadd.f32 0.0, %v6105
  %6107 = vdwg.mxu0
  %6108 = vmatpush.msra.mxu0 0.0
  %6109 = vmatpush.msra.mxu0 0.0
  %6110 = vmatpush.msra.mxu0 0.0
  %6111 = vmatpush.msra.mxu0 0.0
  %6112 = vmatpush.msra.mxu0 0.0
  %6113 = vmatpush.msra.mxu0 0.0
  %6114 = vmatpush.msra.mxu0 0.0
  %6115 = vmatpush.msra.mxu0 0.0
  %6116 = vmatpush.msra.mxu0 0.0
  %6117 = vmatpush.msra.mxu0 0.0
  %6118 = vmatpush.msra.mxu0 0.0
  %6119 = vmatpush.msra.mxu0 0.0
  %6120 = vmatpush.msra.mxu0 0.0
  %6121 = vmatpush.msra.mxu0 0.0
  %6122 = vmatpush.msra.mxu0 0.0
  %6123 = vmatpush.msra.mxu0 %v6080
  %6124 = vmatmul.f32.gmra.mxu0 %v6086
  %v6125 = vpop.f32.mrf.mxu0
  %v6126 = vadd.f32 0.0, %v6125
  %6127 = vdwg.mxu0
  %6128 = vmatpush.msra.mxu0 0.0
  %6129 = vmatpush.msra.mxu0 0.0
  %6130 = vmatpush.msra.mxu0 0.0
  %6131 = vmatpush.msra.mxu0 0.0
  %6132 = vmatpush.msra.mxu0 0.0
  %6133 = vmatpush.msra.mxu0 0.0
  %6134 = vmatpush.msra.mxu0 0.0
  %6135 = vmatpush.msra.mxu0 0.0
  %6136 = vmatpush.msra.mxu0 0.0
  %6137 = vmatpush.msra.mxu0 0.0
  %6138 = vmatpush.msra.mxu0 0.0
  %6139 = vmatpush.msra.mxu0 0.0
  %6140 = vmatpush.msra.mxu0 0.0
  %6141 = vmatpush.msra.mxu0 0.0
  %6142 = vmatpush.msra.mxu0 0.0
  %6143 = vmatpush.msra.mxu0 %v6081
  %6144 = vmatmul.f32.gmra.mxu0 %v6086
  %v6145 = vpop.f32.mrf.mxu0
  %v6146 = vadd.f32 0.0, %v6145
  %6147 = vdwg.mxu0
  %6148 = vmatpush.msra.mxu0 0.0
  %6149 = vmatpush.msra.mxu0 0.0
  %6150 = vmatpush.msra.mxu0 0.0
  %6151 = vmatpush.msra.mxu0 0.0
  %6152 = vmatpush.msra.mxu0 0.0
  %6153 = vmatpush.msra.mxu0 0.0
  %6154 = vmatpush.msra.mxu0 0.0
  %6155 = vmatpush.msra.mxu0 0.0
  %6156 = vmatpush.msra.mxu0 0.0
  %6157 = vmatpush.msra.mxu0 0.0
  %6158 = vmatpush.msra.mxu0 0.0
  %6159 = vmatpush.msra.mxu0 0.0
  %6160 = vmatpush.msra.mxu0 0.0
  %6161 = vmatpush.msra.mxu0 0.0
  %6162 = vmatpush.msra.mxu0 0.0
  %6163 = vmatpush.msra.mxu0 %v6082
  %6164 = vmatmul.f32.gmra.mxu0 %v6086
  %v6165 = vpop.f32.mrf.mxu0
  %v6166 = vadd.f32 0.0, %v6165
  %6167 = vdwg.mxu0
  %v6168 = vadd.f32 %v6058, %v6106
  %v6169 = vadd.f32 %v6059, %v6126
  %v6170 = vadd.f32 %v6060, %v6146
  %v6171 = vadd.f32 %v6061, %v6166
  %v6172 = vmul.f32 %v5732, %v516
  %v6173 = vmul.f32 %v5733, %v517
  %v6174 = vmul.f32 %v5734, %v518
  %v6175 = vmul.f32 %v5735, %v519
  %s6176 = scalar_lea.vmem %s5, 608
  %v6177 = vld [vmem:[%s6176] sm:$0xff]
  %v6179 = vsel %vm102, %v6177, 0
  %6181 = vmatpush.msra.mxu0 0.0
  %6182 = vmatpush.msra.mxu0 0.0
  %6183 = vmatpush.msra.mxu0 0.0
  %6184 = vmatpush.msra.mxu0 0.0
  %6185 = vmatpush.msra.mxu0 0.0
  %6186 = vmatpush.msra.mxu0 0.0
  %6187 = vmatpush.msra.mxu0 0.0
  %6188 = vmatpush.msra.mxu0 0.0
  %6189 = vmatpush.msra.mxu0 0.0
  %6190 = vmatpush.msra.mxu0 0.0
  %6191 = vmatpush.msra.mxu0 0.0
  %6192 = vmatpush.msra.mxu0 0.0
  %6193 = vmatpush.msra.mxu0 0.0
  %6194 = vmatpush.msra.mxu0 0.0
  %6195 = vmatpush.msra.mxu0 0.0
  %6196 = vmatpush.msra.mxu0 %v6172
  %6197 = vmatmul.f32.gmra.mxu0 %v6179
  %v6198 = vpop.f32.mrf.mxu0
  %v6199 = vadd.f32 0.0, %v6198
  %6200 = vdwg.mxu0
  %6201 = vmatpush.msra.mxu0 0.0
  %6202 = vmatpush.msra.mxu0 0.0
  %6203 = vmatpush.msra.mxu0 0.0
  %6204 = vmatpush.msra.mxu0 0.0
  %6205 = vmatpush.msra.mxu0 0.0
  %6206 = vmatpush.msra.mxu0 0.0
  %6207 = vmatpush.msra.mxu0 0.0
  %6208 = vmatpush.msra.mxu0 0.0
  %6209 = vmatpush.msra.mxu0 0.0
  %6210 = vmatpush.msra.mxu0 0.0
  %6211 = vmatpush.msra.mxu0 0.0
  %6212 = vmatpush.msra.mxu0 0.0
  %6213 = vmatpush.msra.mxu0 0.0
  %6214 = vmatpush.msra.mxu0 0.0
  %6215 = vmatpush.msra.mxu0 0.0
  %6216 = vmatpush.msra.mxu0 %v6173
  %6217 = vmatmul.f32.gmra.mxu0 %v6179
  %v6218 = vpop.f32.mrf.mxu0
  %v6219 = vadd.f32 0.0, %v6218
  %6220 = vdwg.mxu0
  %6221 = vmatpush.msra.mxu0 0.0
  %6222 = vmatpush.msra.mxu0 0.0
  %6223 = vmatpush.msra.mxu0 0.0
  %6224 = vmatpush.msra.mxu0 0.0
  %6225 = vmatpush.msra.mxu0 0.0
  %6226 = vmatpush.msra.mxu0 0.0
  %6227 = vmatpush.msra.mxu0 0.0
  %6228 = vmatpush.msra.mxu0 0.0
  %6229 = vmatpush.msra.mxu0 0.0
  %6230 = vmatpush.msra.mxu0 0.0
  %6231 = vmatpush.msra.mxu0 0.0
  %6232 = vmatpush.msra.mxu0 0.0
  %6233 = vmatpush.msra.mxu0 0.0
  %6234 = vmatpush.msra.mxu0 0.0
  %6235 = vmatpush.msra.mxu0 0.0
  %6236 = vmatpush.msra.mxu0 %v6174
  %6237 = vmatmul.f32.gmra.mxu0 %v6179
  %v6238 = vpop.f32.mrf.mxu0
  %v6239 = vadd.f32 0.0, %v6238
  %6240 = vdwg.mxu0
  %6241 = vmatpush.msra.mxu0 0.0
  %6242 = vmatpush.msra.mxu0 0.0
  %6243 = vmatpush.msra.mxu0 0.0
  %6244 = vmatpush.msra.mxu0 0.0
  %6245 = vmatpush.msra.mxu0 0.0
  %6246 = vmatpush.msra.mxu0 0.0
  %6247 = vmatpush.msra.mxu0 0.0
  %6248 = vmatpush.msra.mxu0 0.0
  %6249 = vmatpush.msra.mxu0 0.0
  %6250 = vmatpush.msra.mxu0 0.0
  %6251 = vmatpush.msra.mxu0 0.0
  %6252 = vmatpush.msra.mxu0 0.0
  %6253 = vmatpush.msra.mxu0 0.0
  %6254 = vmatpush.msra.mxu0 0.0
  %6255 = vmatpush.msra.mxu0 0.0
  %6256 = vmatpush.msra.mxu0 %v6175
  %6257 = vmatmul.f32.gmra.mxu0 %v6179
  %v6258 = vpop.f32.mrf.mxu0
  %v6259 = vadd.f32 0.0, %v6258
  %6260 = vdwg.mxu0
  %v6261 = vadd.f32 %v6168, %v6199
  %v6262 = vadd.f32 %v6169, %v6219
  %v6263 = vadd.f32 %v6170, %v6239
  %v6264 = vadd.f32 %v6171, %v6259
  %6265 = vrot.lane.b32.xlu0 %v5732, 127
  %v6266 = vpop.permute.xlu0 %6265
  %6267 = vrot.lane.b32.xlu0 %v5733, 127
  %v6268 = vpop.permute.xlu0 %6267
  %6269 = vrot.lane.b32.xlu0 %v5734, 127
  %v6270 = vpop.permute.xlu0 %6269
  %6271 = vrot.lane.b32.xlu0 %v5735, 127
  %v6272 = vpop.permute.xlu0 %6271
  %v6273 = vsel %vm625, %v6266, %v6268
  %v6274 = vsel %vm625, %v6268, %v6270
  %v6275 = vsel %vm625, %v6270, %v6272
  %v6281 = vsel %vm625, %v6272, %v6266
  %v6282 = vmul.f32 %v6273, %v638
  %v6283 = vmul.f32 %v6274, %v639
  %v6284 = vmul.f32 %v6275, %v640
  %v6285 = vmul.f32 %v6281, %v641
  %s6286 = scalar_lea.vmem %s5, 616
  %v6287 = vld [vmem:[%s6286] sm:$0xff]
  %v6289 = vsel %vm102, %v6287, 0
  %6291 = vmatpush.msra.mxu0 0.0
  %6292 = vmatpush.msra.mxu0 0.0
  %6293 = vmatpush.msra.mxu0 0.0
  %6294 = vmatpush.msra.mxu0 0.0
  %6295 = vmatpush.msra.mxu0 0.0
  %6296 = vmatpush.msra.mxu0 0.0
  %6297 = vmatpush.msra.mxu0 0.0
  %6298 = vmatpush.msra.mxu0 0.0
  %6299 = vmatpush.msra.mxu0 0.0
  %6300 = vmatpush.msra.mxu0 0.0
  %6301 = vmatpush.msra.mxu0 0.0
  %6302 = vmatpush.msra.mxu0 0.0
  %6303 = vmatpush.msra.mxu0 0.0
  %6304 = vmatpush.msra.mxu0 0.0
  %6305 = vmatpush.msra.mxu0 0.0
  %6306 = vmatpush.msra.mxu0 %v6282
  %6307 = vmatmul.f32.gmra.mxu0 %v6289
  %v6308 = vpop.f32.mrf.mxu0
  %v6309 = vadd.f32 0.0, %v6308
  %6310 = vdwg.mxu0
  %6311 = vmatpush.msra.mxu0 0.0
  %6312 = vmatpush.msra.mxu0 0.0
  %6313 = vmatpush.msra.mxu0 0.0
  %6314 = vmatpush.msra.mxu0 0.0
  %6315 = vmatpush.msra.mxu0 0.0
  %6316 = vmatpush.msra.mxu0 0.0
  %6317 = vmatpush.msra.mxu0 0.0
  %6318 = vmatpush.msra.mxu0 0.0
  %6319 = vmatpush.msra.mxu0 0.0
  %6320 = vmatpush.msra.mxu0 0.0
  %6321 = vmatpush.msra.mxu0 0.0
  %6322 = vmatpush.msra.mxu0 0.0
  %6323 = vmatpush.msra.mxu0 0.0
  %6324 = vmatpush.msra.mxu0 0.0
  %6325 = vmatpush.msra.mxu0 0.0
  %6326 = vmatpush.msra.mxu0 %v6283
  %6327 = vmatmul.f32.gmra.mxu0 %v6289
  %v6328 = vpop.f32.mrf.mxu0
  %v6329 = vadd.f32 0.0, %v6328
  %6330 = vdwg.mxu0
  %6331 = vmatpush.msra.mxu0 0.0
  %6332 = vmatpush.msra.mxu0 0.0
  %6333 = vmatpush.msra.mxu0 0.0
  %6334 = vmatpush.msra.mxu0 0.0
  %6335 = vmatpush.msra.mxu0 0.0
  %6336 = vmatpush.msra.mxu0 0.0
  %6337 = vmatpush.msra.mxu0 0.0
  %6338 = vmatpush.msra.mxu0 0.0
  %6339 = vmatpush.msra.mxu0 0.0
  %6340 = vmatpush.msra.mxu0 0.0
  %6341 = vmatpush.msra.mxu0 0.0
  %6342 = vmatpush.msra.mxu0 0.0
  %6343 = vmatpush.msra.mxu0 0.0
  %6344 = vmatpush.msra.mxu0 0.0
  %6345 = vmatpush.msra.mxu0 0.0
  %6346 = vmatpush.msra.mxu0 %v6284
  %6347 = vmatmul.f32.gmra.mxu0 %v6289
  %v6348 = vpop.f32.mrf.mxu0
  %v6349 = vadd.f32 0.0, %v6348
  %6350 = vdwg.mxu0
  %6351 = vmatpush.msra.mxu0 0.0
  %6352 = vmatpush.msra.mxu0 0.0
  %6353 = vmatpush.msra.mxu0 0.0
  %6354 = vmatpush.msra.mxu0 0.0
  %6355 = vmatpush.msra.mxu0 0.0
  %6356 = vmatpush.msra.mxu0 0.0
  %6357 = vmatpush.msra.mxu0 0.0
  %6358 = vmatpush.msra.mxu0 0.0
  %6359 = vmatpush.msra.mxu0 0.0
  %6360 = vmatpush.msra.mxu0 0.0
  %6361 = vmatpush.msra.mxu0 0.0
  %6362 = vmatpush.msra.mxu0 0.0
  %6363 = vmatpush.msra.mxu0 0.0
  %6364 = vmatpush.msra.mxu0 0.0
  %6365 = vmatpush.msra.mxu0 0.0
  %6366 = vmatpush.msra.mxu0 %v6285
  %6367 = vmatmul.f32.gmra.mxu0 %v6289
  %v6368 = vpop.f32.mrf.mxu0
  %v6369 = vadd.f32 0.0, %v6368
  %6370 = vdwg.mxu0
  %v6371 = vadd.f32 %v6261, %v6309
  %v6372 = vadd.f32 %v6262, %v6329
  %v6373 = vadd.f32 %v6263, %v6349
  %v6374 = vadd.f32 %v6264, %v6369
  %6375 = vrot.lane.b32.xlu0 %v5732, 113
  %v6376 = vpop.permute.xlu0 %6375
  %6377 = vrot.lane.b32.xlu0 %v5733, 113
  %v6378 = vpop.permute.xlu0 %6377
  %6379 = vrot.lane.b32.xlu0 %v5734, 113
  %v6380 = vpop.permute.xlu0 %6379
  %6381 = vrot.lane.b32.xlu0 %v5735, 113
  %v6382 = vpop.permute.xlu0 %6381
  %v6383 = vsel %vm747, %v6376, %v6378
  %v6384 = vsel %vm747, %v6378, %v6380
  %v6385 = vsel %vm747, %v6380, %v6382
  %v6391 = vsel %vm747, %v6382, %v6376
  %v6392 = vmul.f32 %v6383, %v760
  %v6393 = vmul.f32 %v6384, %v761
  %v6394 = vmul.f32 %v6385, %v762
  %v6395 = vmul.f32 %v6391, %v763
  %s6396 = scalar_lea.vmem %s5, 624
  %v6397 = vld [vmem:[%s6396] sm:$0xff]
  %v6399 = vsel %vm102, %v6397, 0
  %6401 = vmatpush.msra.mxu0 0.0
  %6402 = vmatpush.msra.mxu0 0.0
  %6403 = vmatpush.msra.mxu0 0.0
  %6404 = vmatpush.msra.mxu0 0.0
  %6405 = vmatpush.msra.mxu0 0.0
  %6406 = vmatpush.msra.mxu0 0.0
  %6407 = vmatpush.msra.mxu0 0.0
  %6408 = vmatpush.msra.mxu0 0.0
  %6409 = vmatpush.msra.mxu0 0.0
  %6410 = vmatpush.msra.mxu0 0.0
  %6411 = vmatpush.msra.mxu0 0.0
  %6412 = vmatpush.msra.mxu0 0.0
  %6413 = vmatpush.msra.mxu0 0.0
  %6414 = vmatpush.msra.mxu0 0.0
  %6415 = vmatpush.msra.mxu0 0.0
  %6416 = vmatpush.msra.mxu0 %v6392
  %6417 = vmatmul.f32.gmra.mxu0 %v6399
  %v6418 = vpop.f32.mrf.mxu0
  %v6419 = vadd.f32 0.0, %v6418
  %6420 = vdwg.mxu0
  %6421 = vmatpush.msra.mxu0 0.0
  %6422 = vmatpush.msra.mxu0 0.0
  %6423 = vmatpush.msra.mxu0 0.0
  %6424 = vmatpush.msra.mxu0 0.0
  %6425 = vmatpush.msra.mxu0 0.0
  %6426 = vmatpush.msra.mxu0 0.0
  %6427 = vmatpush.msra.mxu0 0.0
  %6428 = vmatpush.msra.mxu0 0.0
  %6429 = vmatpush.msra.mxu0 0.0
  %6430 = vmatpush.msra.mxu0 0.0
  %6431 = vmatpush.msra.mxu0 0.0
  %6432 = vmatpush.msra.mxu0 0.0
  %6433 = vmatpush.msra.mxu0 0.0
  %6434 = vmatpush.msra.mxu0 0.0
  %6435 = vmatpush.msra.mxu0 0.0
  %6436 = vmatpush.msra.mxu0 %v6393
  %6437 = vmatmul.f32.gmra.mxu0 %v6399
  %v6438 = vpop.f32.mrf.mxu0
  %v6439 = vadd.f32 0.0, %v6438
  %6440 = vdwg.mxu0
  %6441 = vmatpush.msra.mxu0 0.0
  %6442 = vmatpush.msra.mxu0 0.0
  %6443 = vmatpush.msra.mxu0 0.0
  %6444 = vmatpush.msra.mxu0 0.0
  %6445 = vmatpush.msra.mxu0 0.0
  %6446 = vmatpush.msra.mxu0 0.0
  %6447 = vmatpush.msra.mxu0 0.0
  %6448 = vmatpush.msra.mxu0 0.0
  %6449 = vmatpush.msra.mxu0 0.0
  %6450 = vmatpush.msra.mxu0 0.0
  %6451 = vmatpush.msra.mxu0 0.0
  %6452 = vmatpush.msra.mxu0 0.0
  %6453 = vmatpush.msra.mxu0 0.0
  %6454 = vmatpush.msra.mxu0 0.0
  %6455 = vmatpush.msra.mxu0 0.0
  %6456 = vmatpush.msra.mxu0 %v6394
  %6457 = vmatmul.f32.gmra.mxu0 %v6399
  %v6458 = vpop.f32.mrf.mxu0
  %v6459 = vadd.f32 0.0, %v6458
  %6460 = vdwg.mxu0
  %6461 = vmatpush.msra.mxu0 0.0
  %6462 = vmatpush.msra.mxu0 0.0
  %6463 = vmatpush.msra.mxu0 0.0
  %6464 = vmatpush.msra.mxu0 0.0
  %6465 = vmatpush.msra.mxu0 0.0
  %6466 = vmatpush.msra.mxu0 0.0
  %6467 = vmatpush.msra.mxu0 0.0
  %6468 = vmatpush.msra.mxu0 0.0
  %6469 = vmatpush.msra.mxu0 0.0
  %6470 = vmatpush.msra.mxu0 0.0
  %6471 = vmatpush.msra.mxu0 0.0
  %6472 = vmatpush.msra.mxu0 0.0
  %6473 = vmatpush.msra.mxu0 0.0
  %6474 = vmatpush.msra.mxu0 0.0
  %6475 = vmatpush.msra.mxu0 0.0
  %6476 = vmatpush.msra.mxu0 %v6395
  %6477 = vmatmul.f32.gmra.mxu0 %v6399
  %v6478 = vpop.f32.mrf.mxu0
  %v6479 = vadd.f32 0.0, %v6478
  %6480 = vdwg.mxu0
  %v6481 = vadd.f32 %v6371, %v6419
  %v6482 = vadd.f32 %v6372, %v6439
  %v6483 = vadd.f32 %v6373, %v6459
  %v6484 = vadd.f32 %v6374, %v6479
  %6485 = vrot.lane.b32.xlu0 %v5732, 112
  %v6486 = vpop.permute.xlu0 %6485
  %6487 = vrot.lane.b32.xlu0 %v5733, 112
  %v6488 = vpop.permute.xlu0 %6487
  %6489 = vrot.lane.b32.xlu0 %v5734, 112
  %v6490 = vpop.permute.xlu0 %6489
  %6491 = vrot.lane.b32.xlu0 %v5735, 112
  %v6492 = vpop.permute.xlu0 %6491
  %v6493 = vsel %vm869, %v6486, %v6488
  %v6494 = vsel %vm869, %v6488, %v6490
  %v6495 = vsel %vm869, %v6490, %v6492
  %v6501 = vsel %vm869, %v6492, %v6486
  %v6502 = vmul.f32 %v6493, %v882
  %v6503 = vmul.f32 %v6494, %v883
  %v6504 = vmul.f32 %v6495, %v884
  %v6505 = vmul.f32 %v6501, %v885
  %s6506 = scalar_lea.vmem %s5, 632
  %v6507 = vld [vmem:[%s6506] sm:$0xff]
  %v6509 = vsel %vm102, %v6507, 0
  %6511 = vmatpush.msra.mxu0 0.0
  %6512 = vmatpush.msra.mxu0 0.0
  %6513 = vmatpush.msra.mxu0 0.0
  %6514 = vmatpush.msra.mxu0 0.0
  %6515 = vmatpush.msra.mxu0 0.0
  %6516 = vmatpush.msra.mxu0 0.0
  %6517 = vmatpush.msra.mxu0 0.0
  %6518 = vmatpush.msra.mxu0 0.0
  %6519 = vmatpush.msra.mxu0 0.0
  %6520 = vmatpush.msra.mxu0 0.0
  %6521 = vmatpush.msra.mxu0 0.0
  %6522 = vmatpush.msra.mxu0 0.0
  %6523 = vmatpush.msra.mxu0 0.0
  %6524 = vmatpush.msra.mxu0 0.0
  %6525 = vmatpush.msra.mxu0 0.0
  %6526 = vmatpush.msra.mxu0 %v6502
  %6527 = vmatmul.f32.gmra.mxu0 %v6509
  %v6528 = vpop.f32.mrf.mxu0
  %v6529 = vadd.f32 0.0, %v6528
  %6530 = vdwg.mxu0
  %6531 = vmatpush.msra.mxu0 0.0
  %6532 = vmatpush.msra.mxu0 0.0
  %6533 = vmatpush.msra.mxu0 0.0
  %6534 = vmatpush.msra.mxu0 0.0
  %6535 = vmatpush.msra.mxu0 0.0
  %6536 = vmatpush.msra.mxu0 0.0
  %6537 = vmatpush.msra.mxu0 0.0
  %6538 = vmatpush.msra.mxu0 0.0
  %6539 = vmatpush.msra.mxu0 0.0
  %6540 = vmatpush.msra.mxu0 0.0
  %6541 = vmatpush.msra.mxu0 0.0
  %6542 = vmatpush.msra.mxu0 0.0
  %6543 = vmatpush.msra.mxu0 0.0
  %6544 = vmatpush.msra.mxu0 0.0
  %6545 = vmatpush.msra.mxu0 0.0
  %6546 = vmatpush.msra.mxu0 %v6503
  %6547 = vmatmul.f32.gmra.mxu0 %v6509
  %v6548 = vpop.f32.mrf.mxu0
  %v6549 = vadd.f32 0.0, %v6548
  %6550 = vdwg.mxu0
  %6551 = vmatpush.msra.mxu0 0.0
  %6552 = vmatpush.msra.mxu0 0.0
  %6553 = vmatpush.msra.mxu0 0.0
  %6554 = vmatpush.msra.mxu0 0.0
  %6555 = vmatpush.msra.mxu0 0.0
  %6556 = vmatpush.msra.mxu0 0.0
  %6557 = vmatpush.msra.mxu0 0.0
  %6558 = vmatpush.msra.mxu0 0.0
  %6559 = vmatpush.msra.mxu0 0.0
  %6560 = vmatpush.msra.mxu0 0.0
  %6561 = vmatpush.msra.mxu0 0.0
  %6562 = vmatpush.msra.mxu0 0.0
  %6563 = vmatpush.msra.mxu0 0.0
  %6564 = vmatpush.msra.mxu0 0.0
  %6565 = vmatpush.msra.mxu0 0.0
  %6566 = vmatpush.msra.mxu0 %v6504
  %6567 = vmatmul.f32.gmra.mxu0 %v6509
  %v6568 = vpop.f32.mrf.mxu0
  %v6569 = vadd.f32 0.0, %v6568
  %6570 = vdwg.mxu0
  %6571 = vmatpush.msra.mxu0 0.0
  %6572 = vmatpush.msra.mxu0 0.0
  %6573 = vmatpush.msra.mxu0 0.0
  %6574 = vmatpush.msra.mxu0 0.0
  %6575 = vmatpush.msra.mxu0 0.0
  %6576 = vmatpush.msra.mxu0 0.0
  %6577 = vmatpush.msra.mxu0 0.0
  %6578 = vmatpush.msra.mxu0 0.0
  %6579 = vmatpush.msra.mxu0 0.0
  %6580 = vmatpush.msra.mxu0 0.0
  %6581 = vmatpush.msra.mxu0 0.0
  %6582 = vmatpush.msra.mxu0 0.0
  %6583 = vmatpush.msra.mxu0 0.0
  %6584 = vmatpush.msra.mxu0 0.0
  %6585 = vmatpush.msra.mxu0 0.0
  %6586 = vmatpush.msra.mxu0 %v6505
  %6587 = vmatmul.f32.gmra.mxu0 %v6509
  %v6588 = vpop.f32.mrf.mxu0
  %v6589 = vadd.f32 0.0, %v6588
  %6590 = vdwg.mxu0
  %v6591 = vadd.f32 %v6481, %v6529
  %v6592 = vadd.f32 %v6482, %v6549
  %v6593 = vadd.f32 %v6483, %v6569
  %v6594 = vadd.f32 %v6484, %v6589
  %6595 = vrot.lane.b32.xlu0 %v5732, 111
  %v6596 = vpop.permute.xlu0 %6595
  %6597 = vrot.lane.b32.xlu0 %v5733, 111
  %v6598 = vpop.permute.xlu0 %6597
  %6599 = vrot.lane.b32.xlu0 %v5734, 111
  %v6600 = vpop.permute.xlu0 %6599
  %6601 = vrot.lane.b32.xlu0 %v5735, 111
  %v6602 = vpop.permute.xlu0 %6601
  %v6603 = vsel %vm991, %v6596, %v6598
  %v6604 = vsel %vm991, %v6598, %v6600
  %v6605 = vsel %vm991, %v6600, %v6602
  %v6611 = vsel %vm991, %v6602, %v6596
  %v6612 = vmul.f32 %v6603, %v1004
  %v6613 = vmul.f32 %v6604, %v1005
  %v6614 = vmul.f32 %v6605, %v1006
  %v6615 = vmul.f32 %v6611, %v1007
  %s6616 = scalar_lea.vmem %s5, 640
  %v6617 = vld [vmem:[%s6616] sm:$0xff]
  %v6619 = vsel %vm102, %v6617, 0
  %6621 = vmatpush.msra.mxu0 0.0
  %6622 = vmatpush.msra.mxu0 0.0
  %6623 = vmatpush.msra.mxu0 0.0
  %6624 = vmatpush.msra.mxu0 0.0
  %6625 = vmatpush.msra.mxu0 0.0
  %6626 = vmatpush.msra.mxu0 0.0
  %6627 = vmatpush.msra.mxu0 0.0
  %6628 = vmatpush.msra.mxu0 0.0
  %6629 = vmatpush.msra.mxu0 0.0
  %6630 = vmatpush.msra.mxu0 0.0
  %6631 = vmatpush.msra.mxu0 0.0
  %6632 = vmatpush.msra.mxu0 0.0
  %6633 = vmatpush.msra.mxu0 0.0
  %6634 = vmatpush.msra.mxu0 0.0
  %6635 = vmatpush.msra.mxu0 0.0
  %6636 = vmatpush.msra.mxu0 %v6612
  %6637 = vmatmul.f32.gmra.mxu0 %v6619
  %v6638 = vpop.f32.mrf.mxu0
  %v6639 = vadd.f32 0.0, %v6638
  %6640 = vdwg.mxu0
  %6641 = vmatpush.msra.mxu0 0.0
  %6642 = vmatpush.msra.mxu0 0.0
  %6643 = vmatpush.msra.mxu0 0.0
  %6644 = vmatpush.msra.mxu0 0.0
  %6645 = vmatpush.msra.mxu0 0.0
  %6646 = vmatpush.msra.mxu0 0.0
  %6647 = vmatpush.msra.mxu0 0.0
  %6648 = vmatpush.msra.mxu0 0.0
  %6649 = vmatpush.msra.mxu0 0.0
  %6650 = vmatpush.msra.mxu0 0.0
  %6651 = vmatpush.msra.mxu0 0.0
  %6652 = vmatpush.msra.mxu0 0.0
  %6653 = vmatpush.msra.mxu0 0.0
  %6654 = vmatpush.msra.mxu0 0.0
  %6655 = vmatpush.msra.mxu0 0.0
  %6656 = vmatpush.msra.mxu0 %v6613
  %6657 = vmatmul.f32.gmra.mxu0 %v6619
  %v6658 = vpop.f32.mrf.mxu0
  %v6659 = vadd.f32 0.0, %v6658
  %6660 = vdwg.mxu0
  %6661 = vmatpush.msra.mxu0 0.0
  %6662 = vmatpush.msra.mxu0 0.0
  %6663 = vmatpush.msra.mxu0 0.0
  %6664 = vmatpush.msra.mxu0 0.0
  %6665 = vmatpush.msra.mxu0 0.0
  %6666 = vmatpush.msra.mxu0 0.0
  %6667 = vmatpush.msra.mxu0 0.0
  %6668 = vmatpush.msra.mxu0 0.0
  %6669 = vmatpush.msra.mxu0 0.0
  %6670 = vmatpush.msra.mxu0 0.0
  %6671 = vmatpush.msra.mxu0 0.0
  %6672 = vmatpush.msra.mxu0 0.0
  %6673 = vmatpush.msra.mxu0 0.0
  %6674 = vmatpush.msra.mxu0 0.0
  %6675 = vmatpush.msra.mxu0 0.0
  %6676 = vmatpush.msra.mxu0 %v6614
  %6677 = vmatmul.f32.gmra.mxu0 %v6619
  %v6678 = vpop.f32.mrf.mxu0
  %v6679 = vadd.f32 0.0, %v6678
  %6680 = vdwg.mxu0
  %6681 = vmatpush.msra.mxu0 0.0
  %6682 = vmatpush.msra.mxu0 0.0
  %6683 = vmatpush.msra.mxu0 0.0
  %6684 = vmatpush.msra.mxu0 0.0
  %6685 = vmatpush.msra.mxu0 0.0
  %6686 = vmatpush.msra.mxu0 0.0
  %6687 = vmatpush.msra.mxu0 0.0
  %6688 = vmatpush.msra.mxu0 0.0
  %6689 = vmatpush.msra.mxu0 0.0
  %6690 = vmatpush.msra.mxu0 0.0
  %6691 = vmatpush.msra.mxu0 0.0
  %6692 = vmatpush.msra.mxu0 0.0
  %6693 = vmatpush.msra.mxu0 0.0
  %6694 = vmatpush.msra.mxu0 0.0
  %6695 = vmatpush.msra.mxu0 0.0
  %6696 = vmatpush.msra.mxu0 %v6615
  %6697 = vmatmul.f32.gmra.mxu0 %v6619
  %v6698 = vpop.f32.mrf.mxu0
  %v6699 = vadd.f32 0.0, %v6698
  %6700 = vdwg.mxu0
  %v6701 = vadd.f32 %v6591, %v6639
  %v6702 = vadd.f32 %v6592, %v6659
  %v6703 = vadd.f32 %v6593, %v6679
  %v6704 = vadd.f32 %v6594, %v6699
  %v6705 = vadd.f32 %v6701, %v6702
  %v6706 = vadd.f32 %v6705, %v6703
  %v6707 = vadd.f32 %v6706, %v6704
  %6708 = vadd.xlane.f32.xlu0 %v6707
  %v6709 = vpop.xlane.xlu0 %6708
  %v6710 = vmul.f32 %v6709, 0.001953125
  %v6711 = vsub.f32 %v6701, %v6710
  %v6712 = vsub.f32 %v6702, %v6710
  %v6713 = vsub.f32 %v6703, %v6710
  %v6714 = vsub.f32 %v6704, %v6710
  %v6715 = vmul.f32 %v6711, %v6711
  %v6716 = vmul.f32 %v6712, %v6712
  %v6717 = vmul.f32 %v6713, %v6713
  %v6718 = vmul.f32 %v6714, %v6714
  %v6719 = vadd.f32 %v6715, %v6716
  %v6720 = vadd.f32 %v6719, %v6717
  %v6721 = vadd.f32 %v6720, %v6718
  %6722 = vadd.xlane.f32.xlu0 %v6721
  %v6723 = vpop.xlane.xlu0 %6722
  %v6724 = vmul.f32 %v6723, 0.001953125
  %s6725 = scalar_lea.vmem %s6, 112
  %v6726 = vld [vmem:[%s6725] sm:$0xff]
  %v6727 = vadd.f32 %v6724, 1e-05
  %v6728 = vrsqrt.pop %v6727
  %v6729 = vmul.f32 %v6728, %v6727
  %v6730 = vmul.f32 %v6729, %v6728
  %v6731 = vmul.f32 0.5, %v6730
  %v6732 = vsub.f32 1.5, %v6731
  %v6733 = vmul.f32 %v6728, %v6732
  %vm6734 = vweird.f32 %v6727
  %vm6735 = vweird.f32 %v6728
  %vm6736 = vmor %vm6734, %vm6735
  %v6737 = vsel %vm6736, %v6728, %v6733
  %v6738 = vmul.f32 %v6726, %v6737
  %6740 = vset.pattern.permute.xlu0 0
  %6741 = vperm.xlu0 %6740, %v6738
  %v6742 = vpop.permute.xlu0 %6741
  %v6744 = vmul.f32 %v6711, %v6742
  %v6745 = vmul.f32 %v6712, %v6742
  %v6746 = vmul.f32 %v6713, %v6742
  %v6747 = vmul.f32 %v6714, %v6742
  %s6748 = scalar_lea.vmem %s6, 120
  %v6749 = vld [vmem:[%s6748] sm:$0xff]
  %6751 = vset.pattern.permute.xlu0 0
  %6752 = vperm.xlu0 %6751, %v6749
  %v6753 = vpop.permute.xlu0 %6752
  %v6755 = vadd.f32 %v6744, %v6753
  %v6756 = vadd.f32 %v6745, %v6753
  %v6757 = vadd.f32 %v6746, %v6753
  %v6758 = vadd.f32 %v6747, %v6753
  %v6759 = vmax.f32 %v6755, 0.0
  %v6760 = vmax.f32 %v6756, 0.0
  %v6761 = vmax.f32 %v6757, 0.0
  %v6762 = vmax.f32 %v6758, 0.0
  %6764 = vrot.lane.b32.xlu0 %v6762, 17
  %v6765 = vpop.permute.xlu0 %6764
  %6770 = vrot.lane.b32.xlu0 %v6759, 17
  %v6771 = vpop.permute.xlu0 %6770
  %6772 = vrot.lane.b32.xlu0 %v6760, 17
  %v6773 = vpop.permute.xlu0 %6772
  %6774 = vrot.lane.b32.xlu0 %v6761, 17
  %v6775 = vpop.permute.xlu0 %6774
  %v6776 = vsel %vm43, %v6771, %v6773
  %v6777 = vsel %vm43, %v6773, %v6775
  %v6778 = vsel %vm43, %v6775, %v6765
  %v6783 = vsel %vm43, %v6765, %v6771
  %v6784 = vmul.f32 %v6783, %v54
  %v6785 = vmul.f32 %v6776, %v55
  %v6786 = vmul.f32 %v6777, %v56
  %v6787 = vmul.f32 %v6778, %v57
  %s6788 = scalar_lea.vmem %s5, 648
  %v6789 = vld [vmem:[%s6788] sm:$0xff]
  %6790 = vrot.lane.b32.xlu0 %v6762, 16
  %v6791 = vpop.permute.xlu0 %6790
  %6793 = vrot.lane.b32.xlu0 %v6759, 16
  %v6794 = vpop.permute.xlu0 %6793
  %6795 = vrot.lane.b32.xlu0 %v6760, 16
  %v6796 = vpop.permute.xlu0 %6795
  %6797 = vrot.lane.b32.xlu0 %v6761, 16
  %v6798 = vpop.permute.xlu0 %6797
  %v6799 = vsel %vm76, %v6794, %v6796
  %v6800 = vsel %vm76, %v6796, %v6798
  %v6801 = vsel %vm76, %v6798, %v6791
  %v6806 = vsel %vm76, %v6791, %v6794
  %v6807 = vmul.f32 %v6806, %v88
  %v6808 = vmul.f32 %v6799, %v89
  %v6809 = vmul.f32 %v6800, %v90
  %v6810 = vmul.f32 %v6801, %v91
  %s6811 = scalar_lea.vmem %s5, 656
  %v6812 = vld [vmem:[%s6811] sm:$0xff]
  %v6814 = vsel %vm102, %v6812, 0
  %6816 = vmatpush.msra.mxu0 0.0
  %6817 = vmatpush.msra.mxu0 0.0
  %6818 = vmatpush.msra.mxu0 0.0
  %6819 = vmatpush.msra.mxu0 0.0
  %6820 = vmatpush.msra.mxu0 0.0
  %6821 = vmatpush.msra.mxu0 0.0
  %6822 = vmatpush.msra.mxu0 0.0
  %6823 = vmatpush.msra.mxu0 0.0
  %6824 = vmatpush.msra.mxu0 0.0
  %6825 = vmatpush.msra.mxu0 0.0
  %6826 = vmatpush.msra.mxu0 0.0
  %6827 = vmatpush.msra.mxu0 0.0
  %6828 = vmatpush.msra.mxu0 0.0
  %6829 = vmatpush.msra.mxu0 0.0
  %6830 = vmatpush.msra.mxu0 0.0
  %6831 = vmatpush.msra.mxu0 %v6807
  %6832 = vmatmul.f32.gmra.mxu0 %v6814
  %v6833 = vpop.f32.mrf.mxu0
  %v6834 = vadd.f32 0.0, %v6833
  %6835 = vdwg.mxu0
  %6836 = vmatpush.msra.mxu0 0.0
  %6837 = vmatpush.msra.mxu0 0.0
  %6838 = vmatpush.msra.mxu0 0.0
  %6839 = vmatpush.msra.mxu0 0.0
  %6840 = vmatpush.msra.mxu0 0.0
  %6841 = vmatpush.msra.mxu0 0.0
  %6842 = vmatpush.msra.mxu0 0.0
  %6843 = vmatpush.msra.mxu0 0.0
  %6844 = vmatpush.msra.mxu0 0.0
  %6845 = vmatpush.msra.mxu0 0.0
  %6846 = vmatpush.msra.mxu0 0.0
  %6847 = vmatpush.msra.mxu0 0.0
  %6848 = vmatpush.msra.mxu0 0.0
  %6849 = vmatpush.msra.mxu0 0.0
  %6850 = vmatpush.msra.mxu0 0.0
  %6851 = vmatpush.msra.mxu0 %v6808
  %6852 = vmatmul.f32.gmra.mxu0 %v6814
  %v6853 = vpop.f32.mrf.mxu0
  %v6854 = vadd.f32 0.0, %v6853
  %6855 = vdwg.mxu0
  %6856 = vmatpush.msra.mxu0 0.0
  %6857 = vmatpush.msra.mxu0 0.0
  %6858 = vmatpush.msra.mxu0 0.0
  %6859 = vmatpush.msra.mxu0 0.0
  %6860 = vmatpush.msra.mxu0 0.0
  %6861 = vmatpush.msra.mxu0 0.0
  %6862 = vmatpush.msra.mxu0 0.0
  %6863 = vmatpush.msra.mxu0 0.0
  %6864 = vmatpush.msra.mxu0 0.0
  %6865 = vmatpush.msra.mxu0 0.0
  %6866 = vmatpush.msra.mxu0 0.0
  %6867 = vmatpush.msra.mxu0 0.0
  %6868 = vmatpush.msra.mxu0 0.0
  %6869 = vmatpush.msra.mxu0 0.0
  %6870 = vmatpush.msra.mxu0 0.0
  %6871 = vmatpush.msra.mxu0 %v6809
  %6872 = vmatmul.f32.gmra.mxu0 %v6814
  %v6873 = vpop.f32.mrf.mxu0
  %v6874 = vadd.f32 0.0, %v6873
  %6875 = vdwg.mxu0
  %6876 = vmatpush.msra.mxu0 0.0
  %6877 = vmatpush.msra.mxu0 0.0
  %6878 = vmatpush.msra.mxu0 0.0
  %6879 = vmatpush.msra.mxu0 0.0
  %6880 = vmatpush.msra.mxu0 0.0
  %6881 = vmatpush.msra.mxu0 0.0
  %6882 = vmatpush.msra.mxu0 0.0
  %6883 = vmatpush.msra.mxu0 0.0
  %6884 = vmatpush.msra.mxu0 0.0
  %6885 = vmatpush.msra.mxu0 0.0
  %6886 = vmatpush.msra.mxu0 0.0
  %6887 = vmatpush.msra.mxu0 0.0
  %6888 = vmatpush.msra.mxu0 0.0
  %6889 = vmatpush.msra.mxu0 0.0
  %6890 = vmatpush.msra.mxu0 0.0
  %6891 = vmatpush.msra.mxu0 %v6810
  %6892 = vmatmul.f32.gmra.mxu0 %v6814
  %v6893 = vpop.f32.mrf.mxu0
  %v6894 = vadd.f32 0.0, %v6893
  %6895 = vdwg.mxu0
  %v6897 = vsel %vm102, %v6789, 0
  %6899 = vmatpush.msra.mxu0 0.0
  %6900 = vmatpush.msra.mxu0 0.0
  %6901 = vmatpush.msra.mxu0 0.0
  %6902 = vmatpush.msra.mxu0 0.0
  %6903 = vmatpush.msra.mxu0 0.0
  %6904 = vmatpush.msra.mxu0 0.0
  %6905 = vmatpush.msra.mxu0 0.0
  %6906 = vmatpush.msra.mxu0 0.0
  %6907 = vmatpush.msra.mxu0 0.0
  %6908 = vmatpush.msra.mxu0 0.0
  %6909 = vmatpush.msra.mxu0 0.0
  %6910 = vmatpush.msra.mxu0 0.0
  %6911 = vmatpush.msra.mxu0 0.0
  %6912 = vmatpush.msra.mxu0 0.0
  %6913 = vmatpush.msra.mxu0 0.0
  %6914 = vmatpush.msra.mxu0 %v6784
  %6915 = vmatmul.f32.gmra.mxu0 %v6897
  %v6916 = vpop.f32.mrf.mxu0
  %v6917 = vadd.f32 %v6834, %v6916
  %6918 = vdwg.mxu0
  %6919 = vmatpush.msra.mxu0 0.0
  %6920 = vmatpush.msra.mxu0 0.0
  %6921 = vmatpush.msra.mxu0 0.0
  %6922 = vmatpush.msra.mxu0 0.0
  %6923 = vmatpush.msra.mxu0 0.0
  %6924 = vmatpush.msra.mxu0 0.0
  %6925 = vmatpush.msra.mxu0 0.0
  %6926 = vmatpush.msra.mxu0 0.0
  %6927 = vmatpush.msra.mxu0 0.0
  %6928 = vmatpush.msra.mxu0 0.0
  %6929 = vmatpush.msra.mxu0 0.0
  %6930 = vmatpush.msra.mxu0 0.0
  %6931 = vmatpush.msra.mxu0 0.0
  %6932 = vmatpush.msra.mxu0 0.0
  %6933 = vmatpush.msra.mxu0 0.0
  %6934 = vmatpush.msra.mxu0 %v6785
  %6935 = vmatmul.f32.gmra.mxu0 %v6897
  %v6936 = vpop.f32.mrf.mxu0
  %v6937 = vadd.f32 %v6854, %v6936
  %6938 = vdwg.mxu0
  %6939 = vmatpush.msra.mxu0 0.0
  %6940 = vmatpush.msra.mxu0 0.0
  %6941 = vmatpush.msra.mxu0 0.0
  %6942 = vmatpush.msra.mxu0 0.0
  %6943 = vmatpush.msra.mxu0 0.0
  %6944 = vmatpush.msra.mxu0 0.0
  %6945 = vmatpush.msra.mxu0 0.0
  %6946 = vmatpush.msra.mxu0 0.0
  %6947 = vmatpush.msra.mxu0 0.0
  %6948 = vmatpush.msra.mxu0 0.0
  %6949 = vmatpush.msra.mxu0 0.0
  %6950 = vmatpush.msra.mxu0 0.0
  %6951 = vmatpush.msra.mxu0 0.0
  %6952 = vmatpush.msra.mxu0 0.0
  %6953 = vmatpush.msra.mxu0 0.0
  %6954 = vmatpush.msra.mxu0 %v6786
  %6955 = vmatmul.f32.gmra.mxu0 %v6897
  %v6956 = vpop.f32.mrf.mxu0
  %v6957 = vadd.f32 %v6874, %v6956
  %6958 = vdwg.mxu0
  %6959 = vmatpush.msra.mxu0 0.0
  %6960 = vmatpush.msra.mxu0 0.0
  %6961 = vmatpush.msra.mxu0 0.0
  %6962 = vmatpush.msra.mxu0 0.0
  %6963 = vmatpush.msra.mxu0 0.0
  %6964 = vmatpush.msra.mxu0 0.0
  %6965 = vmatpush.msra.mxu0 0.0
  %6966 = vmatpush.msra.mxu0 0.0
  %6967 = vmatpush.msra.mxu0 0.0
  %6968 = vmatpush.msra.mxu0 0.0
  %6969 = vmatpush.msra.mxu0 0.0
  %6970 = vmatpush.msra.mxu0 0.0
  %6971 = vmatpush.msra.mxu0 0.0
  %6972 = vmatpush.msra.mxu0 0.0
  %6973 = vmatpush.msra.mxu0 0.0
  %6974 = vmatpush.msra.mxu0 %v6787
  %6975 = vmatmul.f32.gmra.mxu0 %v6897
  %v6976 = vpop.f32.mrf.mxu0
  %v6977 = vadd.f32 %v6894, %v6976
  %6978 = vdwg.mxu0
  %6979 = vrot.lane.b32.xlu0 %v6762, 15
  %v6980 = vpop.permute.xlu0 %6979
  %6982 = vrot.lane.b32.xlu0 %v6759, 15
  %v6983 = vpop.permute.xlu0 %6982
  %6984 = vrot.lane.b32.xlu0 %v6760, 15
  %v6985 = vpop.permute.xlu0 %6984
  %6986 = vrot.lane.b32.xlu0 %v6761, 15
  %v6987 = vpop.permute.xlu0 %6986
  %v6988 = vsel %vm278, %v6983, %v6985
  %v6989 = vsel %vm278, %v6985, %v6987
  %v6990 = vsel %vm278, %v6987, %v6980
  %v6995 = vsel %vm278, %v6980, %v6983
  %v6996 = vmul.f32 %v6995, %v290
  %v6997 = vmul.f32 %v6988, %v291
  %v6998 = vmul.f32 %v6989, %v292
  %v6999 = vmul.f32 %v6990, %v293
  %s7000 = scalar_lea.vmem %s5, 664
  %v7001 = vld [vmem:[%s7000] sm:$0xff]
  %v7003 = vsel %vm102, %v7001, 0
  %7005 = vmatpush.msra.mxu0 0.0
  %7006 = vmatpush.msra.mxu0 0.0
  %7007 = vmatpush.msra.mxu0 0.0
  %7008 = vmatpush.msra.mxu0 0.0
  %7009 = vmatpush.msra.mxu0 0.0
  %7010 = vmatpush.msra.mxu0 0.0
  %7011 = vmatpush.msra.mxu0 0.0
  %7012 = vmatpush.msra.mxu0 0.0
  %7013 = vmatpush.msra.mxu0 0.0
  %7014 = vmatpush.msra.mxu0 0.0
  %7015 = vmatpush.msra.mxu0 0.0
  %7016 = vmatpush.msra.mxu0 0.0
  %7017 = vmatpush.msra.mxu0 0.0
  %7018 = vmatpush.msra.mxu0 0.0
  %7019 = vmatpush.msra.mxu0 0.0
  %7020 = vmatpush.msra.mxu0 %v6996
  %7021 = vmatmul.f32.gmra.mxu0 %v7003
  %v7022 = vpop.f32.mrf.mxu0
  %v7023 = vadd.f32 0.0, %v7022
  %7024 = vdwg.mxu0
  %7025 = vmatpush.msra.mxu0 0.0
  %7026 = vmatpush.msra.mxu0 0.0
  %7027 = vmatpush.msra.mxu0 0.0
  %7028 = vmatpush.msra.mxu0 0.0
  %7029 = vmatpush.msra.mxu0 0.0
  %7030 = vmatpush.msra.mxu0 0.0
  %7031 = vmatpush.msra.mxu0 0.0
  %7032 = vmatpush.msra.mxu0 0.0
  %7033 = vmatpush.msra.mxu0 0.0
  %7034 = vmatpush.msra.mxu0 0.0
  %7035 = vmatpush.msra.mxu0 0.0
  %7036 = vmatpush.msra.mxu0 0.0
  %7037 = vmatpush.msra.mxu0 0.0
  %7038 = vmatpush.msra.mxu0 0.0
  %7039 = vmatpush.msra.mxu0 0.0
  %7040 = vmatpush.msra.mxu0 %v6997
  %7041 = vmatmul.f32.gmra.mxu0 %v7003
  %v7042 = vpop.f32.mrf.mxu0
  %v7043 = vadd.f32 0.0, %v7042
  %7044 = vdwg.mxu0
  %7045 = vmatpush.msra.mxu0 0.0
  %7046 = vmatpush.msra.mxu0 0.0
  %7047 = vmatpush.msra.mxu0 0.0
  %7048 = vmatpush.msra.mxu0 0.0
  %7049 = vmatpush.msra.mxu0 0.0
  %7050 = vmatpush.msra.mxu0 0.0
  %7051 = vmatpush.msra.mxu0 0.0
  %7052 = vmatpush.msra.mxu0 0.0
  %7053 = vmatpush.msra.mxu0 0.0
  %7054 = vmatpush.msra.mxu0 0.0
  %7055 = vmatpush.msra.mxu0 0.0
  %7056 = vmatpush.msra.mxu0 0.0
  %7057 = vmatpush.msra.mxu0 0.0
  %7058 = vmatpush.msra.mxu0 0.0
  %7059 = vmatpush.msra.mxu0 0.0
  %7060 = vmatpush.msra.mxu0 %v6998
  %7061 = vmatmul.f32.gmra.mxu0 %v7003
  %v7062 = vpop.f32.mrf.mxu0
  %v7063 = vadd.f32 0.0, %v7062
  %7064 = vdwg.mxu0
  %7065 = vmatpush.msra.mxu0 0.0
  %7066 = vmatpush.msra.mxu0 0.0
  %7067 = vmatpush.msra.mxu0 0.0
  %7068 = vmatpush.msra.mxu0 0.0
  %7069 = vmatpush.msra.mxu0 0.0
  %7070 = vmatpush.msra.mxu0 0.0
  %7071 = vmatpush.msra.mxu0 0.0
  %7072 = vmatpush.msra.mxu0 0.0
  %7073 = vmatpush.msra.mxu0 0.0
  %7074 = vmatpush.msra.mxu0 0.0
  %7075 = vmatpush.msra.mxu0 0.0
  %7076 = vmatpush.msra.mxu0 0.0
  %7077 = vmatpush.msra.mxu0 0.0
  %7078 = vmatpush.msra.mxu0 0.0
  %7079 = vmatpush.msra.mxu0 0.0
  %7080 = vmatpush.msra.mxu0 %v6999
  %7081 = vmatmul.f32.gmra.mxu0 %v7003
  %v7082 = vpop.f32.mrf.mxu0
  %v7083 = vadd.f32 0.0, %v7082
  %7084 = vdwg.mxu0
  %v7085 = vadd.f32 %v6917, %v7023
  %v7086 = vadd.f32 %v6937, %v7043
  %v7087 = vadd.f32 %v6957, %v7063
  %v7088 = vadd.f32 %v6977, %v7083
  %7089 = vrot.lane.b32.xlu0 %v6762, 1
  %v7090 = vpop.permute.xlu0 %7089
  %7092 = vrot.lane.b32.xlu0 %v6759, 1
  %v7093 = vpop.permute.xlu0 %7092
  %7094 = vrot.lane.b32.xlu0 %v6760, 1
  %v7095 = vpop.permute.xlu0 %7094
  %7096 = vrot.lane.b32.xlu0 %v6761, 1
  %v7097 = vpop.permute.xlu0 %7096
  %v7098 = vsel %vm400, %v7093, %v7095
  %v7099 = vsel %vm400, %v7095, %v7097
  %v7100 = vsel %vm400, %v7097, %v7090
  %v7105 = vsel %vm400, %v7090, %v7093
  %v7106 = vmul.f32 %v7105, %v412
  %v7107 = vmul.f32 %v7098, %v413
  %v7108 = vmul.f32 %v7099, %v414
  %v7109 = vmul.f32 %v7100, %v415
  %s7110 = scalar_lea.vmem %s5, 672
  %v7111 = vld [vmem:[%s7110] sm:$0xff]
  %v7113 = vsel %vm102, %v7111, 0
  %7115 = vmatpush.msra.mxu0 0.0
  %7116 = vmatpush.msra.mxu0 0.0
  %7117 = vmatpush.msra.mxu0 0.0
  %7118 = vmatpush.msra.mxu0 0.0
  %7119 = vmatpush.msra.mxu0 0.0
  %7120 = vmatpush.msra.mxu0 0.0
  %7121 = vmatpush.msra.mxu0 0.0
  %7122 = vmatpush.msra.mxu0 0.0
  %7123 = vmatpush.msra.mxu0 0.0
  %7124 = vmatpush.msra.mxu0 0.0
  %7125 = vmatpush.msra.mxu0 0.0
  %7126 = vmatpush.msra.mxu0 0.0
  %7127 = vmatpush.msra.mxu0 0.0
  %7128 = vmatpush.msra.mxu0 0.0
  %7129 = vmatpush.msra.mxu0 0.0
  %7130 = vmatpush.msra.mxu0 %v7106
  %7131 = vmatmul.f32.gmra.mxu0 %v7113
  %v7132 = vpop.f32.mrf.mxu0
  %v7133 = vadd.f32 0.0, %v7132
  %7134 = vdwg.mxu0
  %7135 = vmatpush.msra.mxu0 0.0
  %7136 = vmatpush.msra.mxu0 0.0
  %7137 = vmatpush.msra.mxu0 0.0
  %7138 = vmatpush.msra.mxu0 0.0
  %7139 = vmatpush.msra.mxu0 0.0
  %7140 = vmatpush.msra.mxu0 0.0
  %7141 = vmatpush.msra.mxu0 0.0
  %7142 = vmatpush.msra.mxu0 0.0
  %7143 = vmatpush.msra.mxu0 0.0
  %7144 = vmatpush.msra.mxu0 0.0
  %7145 = vmatpush.msra.mxu0 0.0
  %7146 = vmatpush.msra.mxu0 0.0
  %7147 = vmatpush.msra.mxu0 0.0
  %7148 = vmatpush.msra.mxu0 0.0
  %7149 = vmatpush.msra.mxu0 0.0
  %7150 = vmatpush.msra.mxu0 %v7107
  %7151 = vmatmul.f32.gmra.mxu0 %v7113
  %v7152 = vpop.f32.mrf.mxu0
  %v7153 = vadd.f32 0.0, %v7152
  %7154 = vdwg.mxu0
  %7155 = vmatpush.msra.mxu0 0.0
  %7156 = vmatpush.msra.mxu0 0.0
  %7157 = vmatpush.msra.mxu0 0.0
  %7158 = vmatpush.msra.mxu0 0.0
  %7159 = vmatpush.msra.mxu0 0.0
  %7160 = vmatpush.msra.mxu0 0.0
  %7161 = vmatpush.msra.mxu0 0.0
  %7162 = vmatpush.msra.mxu0 0.0
  %7163 = vmatpush.msra.mxu0 0.0
  %7164 = vmatpush.msra.mxu0 0.0
  %7165 = vmatpush.msra.mxu0 0.0
  %7166 = vmatpush.msra.mxu0 0.0
  %7167 = vmatpush.msra.mxu0 0.0
  %7168 = vmatpush.msra.mxu0 0.0
  %7169 = vmatpush.msra.mxu0 0.0
  %7170 = vmatpush.msra.mxu0 %v7108
  %7171 = vmatmul.f32.gmra.mxu0 %v7113
  %v7172 = vpop.f32.mrf.mxu0
  %v7173 = vadd.f32 0.0, %v7172
  %7174 = vdwg.mxu0
  %7175 = vmatpush.msra.mxu0 0.0
  %7176 = vmatpush.msra.mxu0 0.0
  %7177 = vmatpush.msra.mxu0 0.0
  %7178 = vmatpush.msra.mxu0 0.0
  %7179 = vmatpush.msra.mxu0 0.0
  %7180 = vmatpush.msra.mxu0 0.0
  %7181 = vmatpush.msra.mxu0 0.0
  %7182 = vmatpush.msra.mxu0 0.0
  %7183 = vmatpush.msra.mxu0 0.0
  %7184 = vmatpush.msra.mxu0 0.0
  %7185 = vmatpush.msra.mxu0 0.0
  %7186 = vmatpush.msra.mxu0 0.0
  %7187 = vmatpush.msra.mxu0 0.0
  %7188 = vmatpush.msra.mxu0 0.0
  %7189 = vmatpush.msra.mxu0 0.0
  %7190 = vmatpush.msra.mxu0 %v7109
  %7191 = vmatmul.f32.gmra.mxu0 %v7113
  %v7192 = vpop.f32.mrf.mxu0
  %v7193 = vadd.f32 0.0, %v7192
  %7194 = vdwg.mxu0
  %v7195 = vadd.f32 %v7085, %v7133
  %v7196 = vadd.f32 %v7086, %v7153
  %v7197 = vadd.f32 %v7087, %v7173
  %v7198 = vadd.f32 %v7088, %v7193
  %v7199 = vmul.f32 %v6759, %v516
  %v7200 = vmul.f32 %v6760, %v517
  %v7201 = vmul.f32 %v6761, %v518
  %v7202 = vmul.f32 %v6762, %v519
  %s7203 = scalar_lea.vmem %s5, 680
  %v7204 = vld [vmem:[%s7203] sm:$0xff]
  %v7206 = vsel %vm102, %v7204, 0
  %7208 = vmatpush.msra.mxu0 0.0
  %7209 = vmatpush.msra.mxu0 0.0
  %7210 = vmatpush.msra.mxu0 0.0
  %7211 = vmatpush.msra.mxu0 0.0
  %7212 = vmatpush.msra.mxu0 0.0
  %7213 = vmatpush.msra.mxu0 0.0
  %7214 = vmatpush.msra.mxu0 0.0
  %7215 = vmatpush.msra.mxu0 0.0
  %7216 = vmatpush.msra.mxu0 0.0
  %7217 = vmatpush.msra.mxu0 0.0
  %7218 = vmatpush.msra.mxu0 0.0
  %7219 = vmatpush.msra.mxu0 0.0
  %7220 = vmatpush.msra.mxu0 0.0
  %7221 = vmatpush.msra.mxu0 0.0
  %7222 = vmatpush.msra.mxu0 0.0
  %7223 = vmatpush.msra.mxu0 %v7199
  %7224 = vmatmul.f32.gmra.mxu0 %v7206
  %v7225 = vpop.f32.mrf.mxu0
  %v7226 = vadd.f32 0.0, %v7225
  %7227 = vdwg.mxu0
  %7228 = vmatpush.msra.mxu0 0.0
  %7229 = vmatpush.msra.mxu0 0.0
  %7230 = vmatpush.msra.mxu0 0.0
  %7231 = vmatpush.msra.mxu0 0.0
  %7232 = vmatpush.msra.mxu0 0.0
  %7233 = vmatpush.msra.mxu0 0.0
  %7234 = vmatpush.msra.mxu0 0.0
  %7235 = vmatpush.msra.mxu0 0.0
  %7236 = vmatpush.msra.mxu0 0.0
  %7237 = vmatpush.msra.mxu0 0.0
  %7238 = vmatpush.msra.mxu0 0.0
  %7239 = vmatpush.msra.mxu0 0.0
  %7240 = vmatpush.msra.mxu0 0.0
  %7241 = vmatpush.msra.mxu0 0.0
  %7242 = vmatpush.msra.mxu0 0.0
  %7243 = vmatpush.msra.mxu0 %v7200
  %7244 = vmatmul.f32.gmra.mxu0 %v7206
  %v7245 = vpop.f32.mrf.mxu0
  %v7246 = vadd.f32 0.0, %v7245
  %7247 = vdwg.mxu0
  %7248 = vmatpush.msra.mxu0 0.0
  %7249 = vmatpush.msra.mxu0 0.0
  %7250 = vmatpush.msra.mxu0 0.0
  %7251 = vmatpush.msra.mxu0 0.0
  %7252 = vmatpush.msra.mxu0 0.0
  %7253 = vmatpush.msra.mxu0 0.0
  %7254 = vmatpush.msra.mxu0 0.0
  %7255 = vmatpush.msra.mxu0 0.0
  %7256 = vmatpush.msra.mxu0 0.0
  %7257 = vmatpush.msra.mxu0 0.0
  %7258 = vmatpush.msra.mxu0 0.0
  %7259 = vmatpush.msra.mxu0 0.0
  %7260 = vmatpush.msra.mxu0 0.0
  %7261 = vmatpush.msra.mxu0 0.0
  %7262 = vmatpush.msra.mxu0 0.0
  %7263 = vmatpush.msra.mxu0 %v7201
  %7264 = vmatmul.f32.gmra.mxu0 %v7206
  %v7265 = vpop.f32.mrf.mxu0
  %v7266 = vadd.f32 0.0, %v7265
  %7267 = vdwg.mxu0
  %7268 = vmatpush.msra.mxu0 0.0
  %7269 = vmatpush.msra.mxu0 0.0
  %7270 = vmatpush.msra.mxu0 0.0
  %7271 = vmatpush.msra.mxu0 0.0
  %7272 = vmatpush.msra.mxu0 0.0
  %7273 = vmatpush.msra.mxu0 0.0
  %7274 = vmatpush.msra.mxu0 0.0
  %7275 = vmatpush.msra.mxu0 0.0
  %7276 = vmatpush.msra.mxu0 0.0
  %7277 = vmatpush.msra.mxu0 0.0
  %7278 = vmatpush.msra.mxu0 0.0
  %7279 = vmatpush.msra.mxu0 0.0
  %7280 = vmatpush.msra.mxu0 0.0
  %7281 = vmatpush.msra.mxu0 0.0
  %7282 = vmatpush.msra.mxu0 0.0
  %7283 = vmatpush.msra.mxu0 %v7202
  %7284 = vmatmul.f32.gmra.mxu0 %v7206
  %v7285 = vpop.f32.mrf.mxu0
  %v7286 = vadd.f32 0.0, %v7285
  %7287 = vdwg.mxu0
  %v7288 = vadd.f32 %v7195, %v7226
  %v7289 = vadd.f32 %v7196, %v7246
  %v7290 = vadd.f32 %v7197, %v7266
  %v7291 = vadd.f32 %v7198, %v7286
  %7292 = vrot.lane.b32.xlu0 %v6759, 127
  %v7293 = vpop.permute.xlu0 %7292
  %7294 = vrot.lane.b32.xlu0 %v6760, 127
  %v7295 = vpop.permute.xlu0 %7294
  %7296 = vrot.lane.b32.xlu0 %v6761, 127
  %v7297 = vpop.permute.xlu0 %7296
  %7298 = vrot.lane.b32.xlu0 %v6762, 127
  %v7299 = vpop.permute.xlu0 %7298
  %v7300 = vsel %vm625, %v7293, %v7295
  %v7301 = vsel %vm625, %v7295, %v7297
  %v7302 = vsel %vm625, %v7297, %v7299
  %v7308 = vsel %vm625, %v7299, %v7293
  %v7309 = vmul.f32 %v7300, %v638
  %v7310 = vmul.f32 %v7301, %v639
  %v7311 = vmul.f32 %v7302, %v640
  %v7312 = vmul.f32 %v7308, %v641
  %s7313 = scalar_lea.vmem %s5, 688
  %v7314 = vld [vmem:[%s7313] sm:$0xff]
  %v7316 = vsel %vm102, %v7314, 0
  %7318 = vmatpush.msra.mxu0 0.0
  %7319 = vmatpush.msra.mxu0 0.0
  %7320 = vmatpush.msra.mxu0 0.0
  %7321 = vmatpush.msra.mxu0 0.0
  %7322 = vmatpush.msra.mxu0 0.0
  %7323 = vmatpush.msra.mxu0 0.0
  %7324 = vmatpush.msra.mxu0 0.0
  %7325 = vmatpush.msra.mxu0 0.0
  %7326 = vmatpush.msra.mxu0 0.0
  %7327 = vmatpush.msra.mxu0 0.0
  %7328 = vmatpush.msra.mxu0 0.0
  %7329 = vmatpush.msra.mxu0 0.0
  %7330 = vmatpush.msra.mxu0 0.0
  %7331 = vmatpush.msra.mxu0 0.0
  %7332 = vmatpush.msra.mxu0 0.0
  %7333 = vmatpush.msra.mxu0 %v7309
  %7334 = vmatmul.f32.gmra.mxu0 %v7316
  %v7335 = vpop.f32.mrf.mxu0
  %v7336 = vadd.f32 0.0, %v7335
  %7337 = vdwg.mxu0
  %7338 = vmatpush.msra.mxu0 0.0
  %7339 = vmatpush.msra.mxu0 0.0
  %7340 = vmatpush.msra.mxu0 0.0
  %7341 = vmatpush.msra.mxu0 0.0
  %7342 = vmatpush.msra.mxu0 0.0
  %7343 = vmatpush.msra.mxu0 0.0
  %7344 = vmatpush.msra.mxu0 0.0
  %7345 = vmatpush.msra.mxu0 0.0
  %7346 = vmatpush.msra.mxu0 0.0
  %7347 = vmatpush.msra.mxu0 0.0
  %7348 = vmatpush.msra.mxu0 0.0
  %7349 = vmatpush.msra.mxu0 0.0
  %7350 = vmatpush.msra.mxu0 0.0
  %7351 = vmatpush.msra.mxu0 0.0
  %7352 = vmatpush.msra.mxu0 0.0
  %7353 = vmatpush.msra.mxu0 %v7310
  %7354 = vmatmul.f32.gmra.mxu0 %v7316
  %v7355 = vpop.f32.mrf.mxu0
  %v7356 = vadd.f32 0.0, %v7355
  %7357 = vdwg.mxu0
  %7358 = vmatpush.msra.mxu0 0.0
  %7359 = vmatpush.msra.mxu0 0.0
  %7360 = vmatpush.msra.mxu0 0.0
  %7361 = vmatpush.msra.mxu0 0.0
  %7362 = vmatpush.msra.mxu0 0.0
  %7363 = vmatpush.msra.mxu0 0.0
  %7364 = vmatpush.msra.mxu0 0.0
  %7365 = vmatpush.msra.mxu0 0.0
  %7366 = vmatpush.msra.mxu0 0.0
  %7367 = vmatpush.msra.mxu0 0.0
  %7368 = vmatpush.msra.mxu0 0.0
  %7369 = vmatpush.msra.mxu0 0.0
  %7370 = vmatpush.msra.mxu0 0.0
  %7371 = vmatpush.msra.mxu0 0.0
  %7372 = vmatpush.msra.mxu0 0.0
  %7373 = vmatpush.msra.mxu0 %v7311
  %7374 = vmatmul.f32.gmra.mxu0 %v7316
  %v7375 = vpop.f32.mrf.mxu0
  %v7376 = vadd.f32 0.0, %v7375
  %7377 = vdwg.mxu0
  %7378 = vmatpush.msra.mxu0 0.0
  %7379 = vmatpush.msra.mxu0 0.0
  %7380 = vmatpush.msra.mxu0 0.0
  %7381 = vmatpush.msra.mxu0 0.0
  %7382 = vmatpush.msra.mxu0 0.0
  %7383 = vmatpush.msra.mxu0 0.0
  %7384 = vmatpush.msra.mxu0 0.0
  %7385 = vmatpush.msra.mxu0 0.0
  %7386 = vmatpush.msra.mxu0 0.0
  %7387 = vmatpush.msra.mxu0 0.0
  %7388 = vmatpush.msra.mxu0 0.0
  %7389 = vmatpush.msra.mxu0 0.0
  %7390 = vmatpush.msra.mxu0 0.0
  %7391 = vmatpush.msra.mxu0 0.0
  %7392 = vmatpush.msra.mxu0 0.0
  %7393 = vmatpush.msra.mxu0 %v7312
  %7394 = vmatmul.f32.gmra.mxu0 %v7316
  %v7395 = vpop.f32.mrf.mxu0
  %v7396 = vadd.f32 0.0, %v7395
  %7397 = vdwg.mxu0
  %v7398 = vadd.f32 %v7288, %v7336
  %v7399 = vadd.f32 %v7289, %v7356
  %v7400 = vadd.f32 %v7290, %v7376
  %v7401 = vadd.f32 %v7291, %v7396
  %7402 = vrot.lane.b32.xlu0 %v6759, 113
  %v7403 = vpop.permute.xlu0 %7402
  %7404 = vrot.lane.b32.xlu0 %v6760, 113
  %v7405 = vpop.permute.xlu0 %7404
  %7406 = vrot.lane.b32.xlu0 %v6761, 113
  %v7407 = vpop.permute.xlu0 %7406
  %7408 = vrot.lane.b32.xlu0 %v6762, 113
  %v7409 = vpop.permute.xlu0 %7408
  %v7410 = vsel %vm747, %v7403, %v7405
  %v7411 = vsel %vm747, %v7405, %v7407
  %v7412 = vsel %vm747, %v7407, %v7409
  %v7418 = vsel %vm747, %v7409, %v7403
  %v7419 = vmul.f32 %v7410, %v760
  %v7420 = vmul.f32 %v7411, %v761
  %v7421 = vmul.f32 %v7412, %v762
  %v7422 = vmul.f32 %v7418, %v763
  %s7423 = scalar_lea.vmem %s5, 696
  %v7424 = vld [vmem:[%s7423] sm:$0xff]
  %v7426 = vsel %vm102, %v7424, 0
  %7428 = vmatpush.msra.mxu0 0.0
  %7429 = vmatpush.msra.mxu0 0.0
  %7430 = vmatpush.msra.mxu0 0.0
  %7431 = vmatpush.msra.mxu0 0.0
  %7432 = vmatpush.msra.mxu0 0.0
  %7433 = vmatpush.msra.mxu0 0.0
  %7434 = vmatpush.msra.mxu0 0.0
  %7435 = vmatpush.msra.mxu0 0.0
  %7436 = vmatpush.msra.mxu0 0.0
  %7437 = vmatpush.msra.mxu0 0.0
  %7438 = vmatpush.msra.mxu0 0.0
  %7439 = vmatpush.msra.mxu0 0.0
  %7440 = vmatpush.msra.mxu0 0.0
  %7441 = vmatpush.msra.mxu0 0.0
  %7442 = vmatpush.msra.mxu0 0.0
  %7443 = vmatpush.msra.mxu0 %v7419
  %7444 = vmatmul.f32.gmra.mxu0 %v7426
  %v7445 = vpop.f32.mrf.mxu0
  %v7446 = vadd.f32 0.0, %v7445
  %7447 = vdwg.mxu0
  %7448 = vmatpush.msra.mxu0 0.0
  %7449 = vmatpush.msra.mxu0 0.0
  %7450 = vmatpush.msra.mxu0 0.0
  %7451 = vmatpush.msra.mxu0 0.0
  %7452 = vmatpush.msra.mxu0 0.0
  %7453 = vmatpush.msra.mxu0 0.0
  %7454 = vmatpush.msra.mxu0 0.0
  %7455 = vmatpush.msra.mxu0 0.0
  %7456 = vmatpush.msra.mxu0 0.0
  %7457 = vmatpush.msra.mxu0 0.0
  %7458 = vmatpush.msra.mxu0 0.0
  %7459 = vmatpush.msra.mxu0 0.0
  %7460 = vmatpush.msra.mxu0 0.0
  %7461 = vmatpush.msra.mxu0 0.0
  %7462 = vmatpush.msra.mxu0 0.0
  %7463 = vmatpush.msra.mxu0 %v7420
  %7464 = vmatmul.f32.gmra.mxu0 %v7426
  %v7465 = vpop.f32.mrf.mxu0
  %v7466 = vadd.f32 0.0, %v7465
  %7467 = vdwg.mxu0
  %7468 = vmatpush.msra.mxu0 0.0
  %7469 = vmatpush.msra.mxu0 0.0
  %7470 = vmatpush.msra.mxu0 0.0
  %7471 = vmatpush.msra.mxu0 0.0
  %7472 = vmatpush.msra.mxu0 0.0
  %7473 = vmatpush.msra.mxu0 0.0
  %7474 = vmatpush.msra.mxu0 0.0
  %7475 = vmatpush.msra.mxu0 0.0
  %7476 = vmatpush.msra.mxu0 0.0
  %7477 = vmatpush.msra.mxu0 0.0
  %7478 = vmatpush.msra.mxu0 0.0
  %7479 = vmatpush.msra.mxu0 0.0
  %7480 = vmatpush.msra.mxu0 0.0
  %7481 = vmatpush.msra.mxu0 0.0
  %7482 = vmatpush.msra.mxu0 0.0
  %7483 = vmatpush.msra.mxu0 %v7421
  %7484 = vmatmul.f32.gmra.mxu0 %v7426
  %v7485 = vpop.f32.mrf.mxu0
  %v7486 = vadd.f32 0.0, %v7485
  %7487 = vdwg.mxu0
  %7488 = vmatpush.msra.mxu0 0.0
  %7489 = vmatpush.msra.mxu0 0.0
  %7490 = vmatpush.msra.mxu0 0.0
  %7491 = vmatpush.msra.mxu0 0.0
  %7492 = vmatpush.msra.mxu0 0.0
  %7493 = vmatpush.msra.mxu0 0.0
  %7494 = vmatpush.msra.mxu0 0.0
  %7495 = vmatpush.msra.mxu0 0.0
  %7496 = vmatpush.msra.mxu0 0.0
  %7497 = vmatpush.msra.mxu0 0.0
  %7498 = vmatpush.msra.mxu0 0.0
  %7499 = vmatpush.msra.mxu0 0.0
  %7500 = vmatpush.msra.mxu0 0.0
  %7501 = vmatpush.msra.mxu0 0.0
  %7502 = vmatpush.msra.mxu0 0.0
  %7503 = vmatpush.msra.mxu0 %v7422
  %7504 = vmatmul.f32.gmra.mxu0 %v7426
  %v7505 = vpop.f32.mrf.mxu0
  %v7506 = vadd.f32 0.0, %v7505
  %7507 = vdwg.mxu0
  %v7508 = vadd.f32 %v7398, %v7446
  %v7509 = vadd.f32 %v7399, %v7466
  %v7510 = vadd.f32 %v7400, %v7486
  %v7511 = vadd.f32 %v7401, %v7506
  %7512 = vrot.lane.b32.xlu0 %v6759, 112
  %v7513 = vpop.permute.xlu0 %7512
  %7514 = vrot.lane.b32.xlu0 %v6760, 112
  %v7515 = vpop.permute.xlu0 %7514
  %7516 = vrot.lane.b32.xlu0 %v6761, 112
  %v7517 = vpop.permute.xlu0 %7516
  %7518 = vrot.lane.b32.xlu0 %v6762, 112
  %v7519 = vpop.permute.xlu0 %7518
  %v7520 = vsel %vm869, %v7513, %v7515
  %v7521 = vsel %vm869, %v7515, %v7517
  %v7522 = vsel %vm869, %v7517, %v7519
  %v7528 = vsel %vm869, %v7519, %v7513
  %v7529 = vmul.f32 %v7520, %v882
  %v7530 = vmul.f32 %v7521, %v883
  %v7531 = vmul.f32 %v7522, %v884
  %v7532 = vmul.f32 %v7528, %v885
  %s7533 = scalar_lea.vmem %s5, 704
  %v7534 = vld [vmem:[%s7533] sm:$0xff]
  %v7536 = vsel %vm102, %v7534, 0
  %7538 = vmatpush.msra.mxu0 0.0
  %7539 = vmatpush.msra.mxu0 0.0
  %7540 = vmatpush.msra.mxu0 0.0
  %7541 = vmatpush.msra.mxu0 0.0
  %7542 = vmatpush.msra.mxu0 0.0
  %7543 = vmatpush.msra.mxu0 0.0
  %7544 = vmatpush.msra.mxu0 0.0
  %7545 = vmatpush.msra.mxu0 0.0
  %7546 = vmatpush.msra.mxu0 0.0
  %7547 = vmatpush.msra.mxu0 0.0
  %7548 = vmatpush.msra.mxu0 0.0
  %7549 = vmatpush.msra.mxu0 0.0
  %7550 = vmatpush.msra.mxu0 0.0
  %7551 = vmatpush.msra.mxu0 0.0
  %7552 = vmatpush.msra.mxu0 0.0
  %7553 = vmatpush.msra.mxu0 %v7529
  %7554 = vmatmul.f32.gmra.mxu0 %v7536
  %v7555 = vpop.f32.mrf.mxu0
  %v7556 = vadd.f32 0.0, %v7555
  %7557 = vdwg.mxu0
  %7558 = vmatpush.msra.mxu0 0.0
  %7559 = vmatpush.msra.mxu0 0.0
  %7560 = vmatpush.msra.mxu0 0.0
  %7561 = vmatpush.msra.mxu0 0.0
  %7562 = vmatpush.msra.mxu0 0.0
  %7563 = vmatpush.msra.mxu0 0.0
  %7564 = vmatpush.msra.mxu0 0.0
  %7565 = vmatpush.msra.mxu0 0.0
  %7566 = vmatpush.msra.mxu0 0.0
  %7567 = vmatpush.msra.mxu0 0.0
  %7568 = vmatpush.msra.mxu0 0.0
  %7569 = vmatpush.msra.mxu0 0.0
  %7570 = vmatpush.msra.mxu0 0.0
  %7571 = vmatpush.msra.mxu0 0.0
  %7572 = vmatpush.msra.mxu0 0.0
  %7573 = vmatpush.msra.mxu0 %v7530
  %7574 = vmatmul.f32.gmra.mxu0 %v7536
  %v7575 = vpop.f32.mrf.mxu0
  %v7576 = vadd.f32 0.0, %v7575
  %7577 = vdwg.mxu0
  %7578 = vmatpush.msra.mxu0 0.0
  %7579 = vmatpush.msra.mxu0 0.0
  %7580 = vmatpush.msra.mxu0 0.0
  %7581 = vmatpush.msra.mxu0 0.0
  %7582 = vmatpush.msra.mxu0 0.0
  %7583 = vmatpush.msra.mxu0 0.0
  %7584 = vmatpush.msra.mxu0 0.0
  %7585 = vmatpush.msra.mxu0 0.0
  %7586 = vmatpush.msra.mxu0 0.0
  %7587 = vmatpush.msra.mxu0 0.0
  %7588 = vmatpush.msra.mxu0 0.0
  %7589 = vmatpush.msra.mxu0 0.0
  %7590 = vmatpush.msra.mxu0 0.0
  %7591 = vmatpush.msra.mxu0 0.0
  %7592 = vmatpush.msra.mxu0 0.0
  %7593 = vmatpush.msra.mxu0 %v7531
  %7594 = vmatmul.f32.gmra.mxu0 %v7536
  %v7595 = vpop.f32.mrf.mxu0
  %v7596 = vadd.f32 0.0, %v7595
  %7597 = vdwg.mxu0
  %7598 = vmatpush.msra.mxu0 0.0
  %7599 = vmatpush.msra.mxu0 0.0
  %7600 = vmatpush.msra.mxu0 0.0
  %7601 = vmatpush.msra.mxu0 0.0
  %7602 = vmatpush.msra.mxu0 0.0
  %7603 = vmatpush.msra.mxu0 0.0
  %7604 = vmatpush.msra.mxu0 0.0
  %7605 = vmatpush.msra.mxu0 0.0
  %7606 = vmatpush.msra.mxu0 0.0
  %7607 = vmatpush.msra.mxu0 0.0
  %7608 = vmatpush.msra.mxu0 0.0
  %7609 = vmatpush.msra.mxu0 0.0
  %7610 = vmatpush.msra.mxu0 0.0
  %7611 = vmatpush.msra.mxu0 0.0
  %7612 = vmatpush.msra.mxu0 0.0
  %7613 = vmatpush.msra.mxu0 %v7532
  %7614 = vmatmul.f32.gmra.mxu0 %v7536
  %v7615 = vpop.f32.mrf.mxu0
  %v7616 = vadd.f32 0.0, %v7615
  %7617 = vdwg.mxu0
  %v7618 = vadd.f32 %v7508, %v7556
  %v7619 = vadd.f32 %v7509, %v7576
  %v7620 = vadd.f32 %v7510, %v7596
  %v7621 = vadd.f32 %v7511, %v7616
  %7622 = vrot.lane.b32.xlu0 %v6759, 111
  %v7623 = vpop.permute.xlu0 %7622
  %7624 = vrot.lane.b32.xlu0 %v6760, 111
  %v7625 = vpop.permute.xlu0 %7624
  %7626 = vrot.lane.b32.xlu0 %v6761, 111
  %v7627 = vpop.permute.xlu0 %7626
  %7628 = vrot.lane.b32.xlu0 %v6762, 111
  %v7629 = vpop.permute.xlu0 %7628
  %v7630 = vsel %vm991, %v7623, %v7625
  %v7631 = vsel %vm991, %v7625, %v7627
  %v7632 = vsel %vm991, %v7627, %v7629
  %v7638 = vsel %vm991, %v7629, %v7623
  %v7639 = vmul.f32 %v7630, %v1004
  %v7640 = vmul.f32 %v7631, %v1005
  %v7641 = vmul.f32 %v7632, %v1006
  %v7642 = vmul.f32 %v7638, %v1007
  %s7643 = scalar_lea.vmem %s5, 712
  %v7644 = vld [vmem:[%s7643] sm:$0xff]
  %v7646 = vsel %vm102, %v7644, 0
  %7648 = vmatpush.msra.mxu0 0.0
  %7649 = vmatpush.msra.mxu0 0.0
  %7650 = vmatpush.msra.mxu0 0.0
  %7651 = vmatpush.msra.mxu0 0.0
  %7652 = vmatpush.msra.mxu0 0.0
  %7653 = vmatpush.msra.mxu0 0.0
  %7654 = vmatpush.msra.mxu0 0.0
  %7655 = vmatpush.msra.mxu0 0.0
  %7656 = vmatpush.msra.mxu0 0.0
  %7657 = vmatpush.msra.mxu0 0.0
  %7658 = vmatpush.msra.mxu0 0.0
  %7659 = vmatpush.msra.mxu0 0.0
  %7660 = vmatpush.msra.mxu0 0.0
  %7661 = vmatpush.msra.mxu0 0.0
  %7662 = vmatpush.msra.mxu0 0.0
  %7663 = vmatpush.msra.mxu0 %v7639
  %7664 = vmatmul.f32.gmra.mxu0 %v7646
  %v7665 = vpop.f32.mrf.mxu0
  %v7666 = vadd.f32 0.0, %v7665
  %7667 = vdwg.mxu0
  %7668 = vmatpush.msra.mxu0 0.0
  %7669 = vmatpush.msra.mxu0 0.0
  %7670 = vmatpush.msra.mxu0 0.0
  %7671 = vmatpush.msra.mxu0 0.0
  %7672 = vmatpush.msra.mxu0 0.0
  %7673 = vmatpush.msra.mxu0 0.0
  %7674 = vmatpush.msra.mxu0 0.0
  %7675 = vmatpush.msra.mxu0 0.0
  %7676 = vmatpush.msra.mxu0 0.0
  %7677 = vmatpush.msra.mxu0 0.0
  %7678 = vmatpush.msra.mxu0 0.0
  %7679 = vmatpush.msra.mxu0 0.0
  %7680 = vmatpush.msra.mxu0 0.0
  %7681 = vmatpush.msra.mxu0 0.0
  %7682 = vmatpush.msra.mxu0 0.0
  %7683 = vmatpush.msra.mxu0 %v7640
  %7684 = vmatmul.f32.gmra.mxu0 %v7646
  %v7685 = vpop.f32.mrf.mxu0
  %v7686 = vadd.f32 0.0, %v7685
  %7687 = vdwg.mxu0
  %7688 = vmatpush.msra.mxu0 0.0
  %7689 = vmatpush.msra.mxu0 0.0
  %7690 = vmatpush.msra.mxu0 0.0
  %7691 = vmatpush.msra.mxu0 0.0
  %7692 = vmatpush.msra.mxu0 0.0
  %7693 = vmatpush.msra.mxu0 0.0
  %7694 = vmatpush.msra.mxu0 0.0
  %7695 = vmatpush.msra.mxu0 0.0
  %7696 = vmatpush.msra.mxu0 0.0
  %7697 = vmatpush.msra.mxu0 0.0
  %7698 = vmatpush.msra.mxu0 0.0
  %7699 = vmatpush.msra.mxu0 0.0
  %7700 = vmatpush.msra.mxu0 0.0
  %7701 = vmatpush.msra.mxu0 0.0
  %7702 = vmatpush.msra.mxu0 0.0
  %7703 = vmatpush.msra.mxu0 %v7641
  %7704 = vmatmul.f32.gmra.mxu0 %v7646
  %v7705 = vpop.f32.mrf.mxu0
  %v7706 = vadd.f32 0.0, %v7705
  %7707 = vdwg.mxu0
  %7708 = vmatpush.msra.mxu0 0.0
  %7709 = vmatpush.msra.mxu0 0.0
  %7710 = vmatpush.msra.mxu0 0.0
  %7711 = vmatpush.msra.mxu0 0.0
  %7712 = vmatpush.msra.mxu0 0.0
  %7713 = vmatpush.msra.mxu0 0.0
  %7714 = vmatpush.msra.mxu0 0.0
  %7715 = vmatpush.msra.mxu0 0.0
  %7716 = vmatpush.msra.mxu0 0.0
  %7717 = vmatpush.msra.mxu0 0.0
  %7718 = vmatpush.msra.mxu0 0.0
  %7719 = vmatpush.msra.mxu0 0.0
  %7720 = vmatpush.msra.mxu0 0.0
  %7721 = vmatpush.msra.mxu0 0.0
  %7722 = vmatpush.msra.mxu0 0.0
  %7723 = vmatpush.msra.mxu0 %v7642
  %7724 = vmatmul.f32.gmra.mxu0 %v7646
  %v7725 = vpop.f32.mrf.mxu0
  %v7726 = vadd.f32 0.0, %v7725
  %7727 = vdwg.mxu0
  %v7728 = vadd.f32 %v7618, %v7666
  %v7729 = vadd.f32 %v7619, %v7686
  %v7730 = vadd.f32 %v7620, %v7706
  %v7731 = vadd.f32 %v7621, %v7726
  %v7732 = vadd.f32 %v7728, %v7729
  %v7733 = vadd.f32 %v7732, %v7730
  %v7734 = vadd.f32 %v7733, %v7731
  %7735 = vadd.xlane.f32.xlu0 %v7734
  %v7736 = vpop.xlane.xlu0 %7735
  %v7737 = vmul.f32 %v7736, 0.001953125
  %v7738 = vsub.f32 %v7728, %v7737
  %v7739 = vsub.f32 %v7729, %v7737
  %v7740 = vsub.f32 %v7730, %v7737
  %v7741 = vsub.f32 %v7731, %v7737
  %v7742 = vmul.f32 %v7738, %v7738
  %v7743 = vmul.f32 %v7739, %v7739
  %v7744 = vmul.f32 %v7740, %v7740
  %v7745 = vmul.f32 %v7741, %v7741
  %v7746 = vadd.f32 %v7742, %v7743
  %v7747 = vadd.f32 %v7746, %v7744
  %v7748 = vadd.f32 %v7747, %v7745
  %7749 = vadd.xlane.f32.xlu0 %v7748
  %v7750 = vpop.xlane.xlu0 %7749
  %v7751 = vmul.f32 %v7750, 0.001953125
  %s7752 = scalar_lea.vmem %s6, 128
  %v7753 = vld [vmem:[%s7752] sm:$0xff]
  %v7754 = vadd.f32 %v7751, 1e-05
  %v7755 = vrsqrt.pop %v7754
  %v7756 = vmul.f32 %v7755, %v7754
  %v7757 = vmul.f32 %v7756, %v7755
  %v7758 = vmul.f32 0.5, %v7757
  %v7759 = vsub.f32 1.5, %v7758
  %v7760 = vmul.f32 %v7755, %v7759
  %vm7761 = vweird.f32 %v7754
  %vm7762 = vweird.f32 %v7755
  %vm7763 = vmor %vm7761, %vm7762
  %v7764 = vsel %vm7763, %v7755, %v7760
  %v7765 = vmul.f32 %v7753, %v7764
  %7767 = vset.pattern.permute.xlu0 0
  %7768 = vperm.xlu0 %7767, %v7765
  %v7769 = vpop.permute.xlu0 %7768
  %v7771 = vmul.f32 %v7738, %v7769
  %v7772 = vmul.f32 %v7739, %v7769
  %v7773 = vmul.f32 %v7740, %v7769
  %v7774 = vmul.f32 %v7741, %v7769
  %s7775 = scalar_lea.vmem %s6, 136
  %v7776 = vld [vmem:[%s7775] sm:$0xff]
  %7778 = vset.pattern.permute.xlu0 0
  %7779 = vperm.xlu0 %7778, %v7776
  %v7780 = vpop.permute.xlu0 %7779
  %v7782 = vadd.f32 %v7771, %v7780
  %v7783 = vadd.f32 %v7772, %v7780
  %v7784 = vadd.f32 %v7773, %v7780
  %v7785 = vadd.f32 %v7774, %v7780
  %v7786 = vadd.f32 %v7782, %v5732
  %v7787 = vadd.f32 %v7783, %v5733
  %v7788 = vadd.f32 %v7784, %v5734
  %v7789 = vadd.f32 %v7785, %v5735
  %v7790 = vmax.f32 %v7786, 0.0
  %v7791 = vmax.f32 %v7787, 0.0
  %v7792 = vmax.f32 %v7788, 0.0
  %v7793 = vmax.f32 %v7789, 0.0
  %7794 = vst [vmem:[%s7] sm:$0xf] %v26
  %7795 = vst [vmem:[%s7 + $0x8] sm:$0xf] %v27
  %7796 = vst [vmem:[%s7 + $0x10] sm:$0xf] %v28
  %7797 = vst [vmem:[%s7 + $0x18] sm:$0xf] %v29
  %v7802 = vrot.slane %v7790, 4
  %v7803 = vrot.slane %v7791, 4
  %v7804 = vrot.slane %v7792, 4
  %v7805 = vrot.slane %v7793, 4
  %7810 = vst [vmem:[%s7] sm:$0xf0] %v7802
  %7811 = vst [vmem:[%s7 + $0x8] sm:$0xf0] %v7803
  %7812 = vst [vmem:[%s7 + $0x10] sm:$0xf0] %v7804
  %7813 = vst [vmem:[%s7 + $0x18] sm:$0xf0] %v7805
  // Predicated region
  $region30: #{res_unet_skip_block_forward.1} parent=0 // pred_check
    _
  $region31: #{res_unet_skip_block_forward.1} parent=0 // pred_check_branch
    %7815 = sbr.rel (0) target = $region33
  $region32: #{res_unet_skip_block_forward.1} parent=0 // pred_region
    _
  $region33: #{res_unet_skip_block_forward.1} parent=0 // pred_fallthru
    _
  // Predicated region
  $region34: #{res_unet_skip_block_forward.1} parent=0 // pred_check
    _
  $region35: #{res_unet_skip_block_forward.1} parent=0 // pred_check_branch
    %7817 = sbr.rel (0) target = $region37
  $region36: #{res_unet_skip_block_forward.1} parent=0 // pred_region
    _
  $region37: #{res_unet_skip_block_forward.1} parent=0 // pred_fallthru
    _

</llo_original>
